<compile_context>
chip_gen: v7x
topology: tpu7x:2x2x1
jax: 0.10.0
libtpu: 0.0.40
codegen_flags: <defaults>
</compile_context>

<pallas_src>
import functools

import jax
import jax.numpy as jnp
from jax.experimental import pallas as pl
from jax.experimental.pallas import tpu as pltpu

_PAD = 3          # max (K - 1) // 2 over kernel sizes 7 / 5 / 3 / 1
_EPS = 1e-5


# ---------------------------------------------------------------------------
# Fused kernel
# ---------------------------------------------------------------------------
def _resnet_kernel(*refs, NB, L, CIN, NFM, expands):
    """Whole ResNet forward for one batch tile of NB examples.

    refs layout:
      x_ref                              (NB, L, CIN)      bf16
      per block: wx,sx,bx, wy,sy,by, wz,sz,bz, [wsc,] ssc,bsc
      lin_w (NFM, nc) f32, lin_b (1, nc) f32
      out_ref                            (NB, nc)          f32
      pad_s scratch                      (NB, L+2*_PAD, CIN) bf16
      pad_b scratch                      (NB, L+2*_PAD, NFM) bf16
    """
    n_params = sum(12 if e else 11 for e in expands) + 2
    x_ref = refs[0]
    param_refs = refs[1:1 + n_params]
    out_ref = refs[1 + n_params]
    pad_s = refs[2 + n_params]
    pad_b = refs[3 + n_params]

    it = iter(param_refs)

    # Zero the pad scratch once per grid step; the interior rows are
    # overwritten before every conv, the margins stay zero ('same' padding).
    pad_s[...] = jnp.zeros_like(pad_s)
    pad_b[...] = jnp.zeros_like(pad_b)

    def conv_bn(pad_ref, h2d, cin, K, w_ref, s_ref, b_ref):
        """'same' Conv1d + folded BN.  h2d: (NB*L, cin) f32 -> (NB*L, Cout) f32."""
        p = (K - 1) // 2
        pad_ref[:, _PAD:_PAD + L, :] = (
            h2d.reshape(NB, L, cin).astype(pad_ref.dtype))
        cout = w_ref.shape[2]
        acc = jnp.zeros((NB * L, cout), jnp.float32)
        for k in range(K):                       # unrolled taps -> MXU matmuls
            off = _PAD - p + k
            xs = pad_ref[:, off:off + L, :]      # (NB, L, cin) bf16
            acc = acc + jnp.dot(xs.reshape(NB * L, cin), w_ref[k],
                                preferred_element_type=jnp.float32)
        return acc * s_ref[...] + b_ref[...]     # BN (inference, folded)

    def block(h_in, cin, expand):
        """One ResNetBlock: (NB*L, cin) f32 -> (NB*L, NFM) f32."""
        wx, sx, bx = next(it), next(it), next(it)
        wy, sy, by = next(it), next(it), next(it)
        wz, sz, bz = next(it), next(it), next(it)
        if expand:
            wsc, ssc, bsc = next(it), next(it), next(it)
        else:
            ssc, bsc = next(it), next(it)

        pad_first = pad_s if cin == CIN else pad_b
        h = jnp.maximum(conv_bn(pad_first, h_in, cin, 7, wx, sx, bx), 0.0)
        h = jnp.maximum(conv_bn(pad_b, h, NFM, 5, wy, sy, by), 0.0)
        z = conv_bn(pad_b, h, NFM, 3, wz, sz, bz)

        if expand:  # 1x1 conv shortcut + BN (no padding needed)
            sc = jnp.dot(h_in.astype(jnp.bfloat16), wsc[0],
                         preferred_element_type=jnp.float32)
            sc = sc * ssc[...] + bsc[...]
        else:       # identity shortcut through BN only
            sc = h_in * ssc[...] + bsc[...]
        return jnp.maximum(z + sc, 0.0)

    # ---- 3 residual blocks, activations stay on-chip --------------------
    h = x_ref[...].astype(jnp.float32).reshape(NB * L, CIN)
    cin = CIN
    for e in expands:
        h = block(h, cin, e)
        cin = NFM

    # ---- head: global avg-pool over L + Linear + log_softmax ------------
    lin_w, lin_b = next(it), next(it)
    pooled = jnp.mean(h.reshape(NB, L, NFM), axis=1)          # (NB, NFM)
    logits = jnp.dot(pooled, lin_w[...],
                     preferred_element_type=jnp.float32) + lin_b[...]
    m = jnp.max(logits, axis=-1, keepdims=True)
    lse = m + jnp.log(jnp.sum(jnp.exp(logits - m), axis=-1, keepdims=True))
    out_ref[...] = (logits - lse).astype(out_ref.dtype)


# ---------------------------------------------------------------------------
# Wrapper
# ---------------------------------------------------------------------------
def _const_map(ndim):
    return lambda n: (0,) * ndim


def _resnet_pallas(x_ncl, flat_params, expands):
    N, CIN, L = x_ncl.shape
    lin_w = flat_params[-2]
    NFM, NC = lin_w.shape

    x = jnp.transpose(x_ncl, (0, 2, 1)).astype(jnp.bfloat16)  # NCL -> NLC

    # Batch tile: whole batch when small, else tiles of 8 so the output block
    # stays sublane-aligned and the grid has steps to software-pipeline.
    NB = N if (N <= 8 or N % 8 != 0) else 8
    grid = (N // NB,)

    in_specs = [pl.BlockSpec((NB, L, CIN), lambda n: (n, 0, 0))]
    for p in flat_params:
        in_specs.append(pl.BlockSpec(p.shape, _const_map(p.ndim)))

    kernel = functools.partial(
        _resnet_kernel, NB=NB, L=L, CIN=CIN, NFM=NFM, expands=tuple(expands))

    return pl.pallas_call(
        kernel,
        out_shape=jax.ShapeDtypeStruct((N, NC), jnp.float32),
        grid=grid,
        in_specs=in_specs,
        out_specs=pl.BlockSpec((NB, NC), lambda n: (n, 0)),
        scratch_shapes=[
            pltpu.VMEM((NB, L + 2 * _PAD, CIN), jnp.bfloat16),
            pltpu.VMEM((NB, L + 2 * _PAD, NFM), jnp.bfloat16),
        ],
        compiler_params=pltpu.CompilerParams(
            dimension_semantics=("parallel",),       # megacore-split on batch
            vmem_limit_bytes=48 * 1024 * 1024,       # explicit, fits v7x 64MiB
        ),
    )(x, *flat_params)


@functools.partial(jax.jit, static_argnames=("expands",))
def resnet_forward(x_ncl, flat_params, *, expands):
    """x_ncl: (N, input_size, L) as in the PyTorch module -> (N, nb_classes)."""
    return _resnet_pallas(x_ncl, flat_params, expands)


# ---------------------------------------------------------------------------
# Parameter construction (deterministic, synthetic, inference-mode BN folded)
# ---------------------------------------------------------------------------
def _fold_bn(key, cout, conv_bias):
    k1, k2, k3, k4 = jax.random.split(key, 4)
    gamma = 1.0 + 0.1 * jax.random.normal(k1, (cout,), jnp.float32)
    beta = 0.1 * jax.random.normal(k2, (cout,), jnp.float32)
    mean = 0.1 * jax.random.normal(k3, (cout,), jnp.float32)
    var = 1.0 + 0.1 * jax.random.uniform(k4, (cout,), jnp.float32)
    scale = gamma / jnp.sqrt(var + _EPS)
    shift = beta + scale * (conv_bias - mean)
    return scale.reshape(1, cout), shift.reshape(1, cout)


def _conv_params(key, k, cin, cout):
    kw, kb, kbn = jax.random.split(key, 3)
    w = (0.1 * jax.random.normal(kw, (k, cin, cout), jnp.float32)
         ).astype(jnp.bfloat16)                    # bf16 weights for the MXU
    bias = 0.05 * jax.random.normal(kb, (cout,), jnp.float32)
    scale, shift = _fold_bn(kbn, cout, bias)
    return [w, scale, shift]


def make_block_params(key, cin, cout):
    ks = jax.random.split(key, 4)
    expand = cin < cout                            # STATIC Python bool
    flat = []
    flat += _conv_params(ks[0], 7, cin, cout)
    flat += _conv_params(ks[1], 5, cout, cout)
    flat += _conv_params(ks[2], 3, cout, cout)
    if expand:
        flat += _conv_params(ks[3], 1, cin, cout)  # conv1x1 + bn_shortcut_y
    else:
        scale, shift = _fold_bn(ks[3], cout, jnp.zeros((cout,), jnp.float32))
        flat += [scale, shift]                     # bn_shortcut_y only
    return flat, expand


def make_resnet_params(key, input_size, nb_classes, n_feature_maps=64):
    k1, k2, k3, k4 = jax.random.split(key, 4)
    flat, expands = [], []
    for kb, cin in zip((k1, k2, k3),
                       (input_size, n_feature_maps, n_feature_maps)):
        f, e = make_block_params(kb, cin, n_feature_maps)
        flat += f
        expands.append(e)
    lin_w = 0.1 * jax.random.normal(k4, (n_feature_maps, nb_classes),
                                    jnp.float32)
    lin_b = 0.05 * jax.random.normal(jax.random.fold_in(k4, 1),
                                     (1, nb_classes), jnp.float32)
    flat += [lin_w, lin_b]
    return tuple(flat), tuple(expands)             # expands kept OUT of pytree


# ---------------------------------------------------------------------------
if __name__ == "__main__":
    key = jax.random.PRNGKey(0)
    k_in, k_par = jax.random.split(key)

    N, INPUT_SIZE, L = 2, 4, 16
    NB_CLASSES = 3

    x = jax.random.normal(k_in, (N, INPUT_SIZE, L), jnp.float32)  # NCL layout
    params, expands = make_resnet_params(k_par, INPUT_SIZE, NB_CLASSES)

    out = resnet_forward(x, params, expands=expands)
    jax.block_until_ready(out)

    assert out.shape == (N, NB_CLASSES)
    # rows of log_softmax should exponentiate-sum to ~1
    assert jnp.allclose(jnp.sum(jnp.exp(out), axis=1), 1.0, atol=1e-3)
    print("KERNEL_OK")
</pallas_src>

<mosaic_0001>
module attributes {stable_mosaic.version = 11 : i64} {
  func.func @_resnet_kernel(%arg0: i32, %arg1: memref<2x16x4xbf16, #tpu.memory_space<vmem>>, %arg2: memref<7x4x64xbf16, #tpu.memory_space<vmem>>, %arg3: memref<1x64xf32, #tpu.memory_space<vmem>>, %arg4: memref<1x64xf32, #tpu.memory_space<vmem>>, %arg5: memref<5x64x64xbf16, #tpu.memory_space<vmem>>, %arg6: memref<1x64xf32, #tpu.memory_space<vmem>>, %arg7: memref<1x64xf32, #tpu.memory_space<vmem>>, %arg8: memref<3x64x64xbf16, #tpu.memory_space<vmem>>, %arg9: memref<1x64xf32, #tpu.memory_space<vmem>>, %arg10: memref<1x64xf32, #tpu.memory_space<vmem>>, %arg11: memref<1x4x64xbf16, #tpu.memory_space<vmem>>, %arg12: memref<1x64xf32, #tpu.memory_space<vmem>>, %arg13: memref<1x64xf32, #tpu.memory_space<vmem>>, %arg14: memref<7x64x64xbf16, #tpu.memory_space<vmem>>, %arg15: memref<1x64xf32, #tpu.memory_space<vmem>>, %arg16: memref<1x64xf32, #tpu.memory_space<vmem>>, %arg17: memref<5x64x64xbf16, #tpu.memory_space<vmem>>, %arg18: memref<1x64xf32, #tpu.memory_space<vmem>>, %arg19: memref<1x64xf32, #tpu.memory_space<vmem>>, %arg20: memref<3x64x64xbf16, #tpu.memory_space<vmem>>, %arg21: memref<1x64xf32, #tpu.memory_space<vmem>>, %arg22: memref<1x64xf32, #tpu.memory_space<vmem>>, %arg23: memref<1x64xf32, #tpu.memory_space<vmem>>, %arg24: memref<1x64xf32, #tpu.memory_space<vmem>>, %arg25: memref<7x64x64xbf16, #tpu.memory_space<vmem>>, %arg26: memref<1x64xf32, #tpu.memory_space<vmem>>, %arg27: memref<1x64xf32, #tpu.memory_space<vmem>>, %arg28: memref<5x64x64xbf16, #tpu.memory_space<vmem>>, %arg29: memref<1x64xf32, #tpu.memory_space<vmem>>, %arg30: memref<1x64xf32, #tpu.memory_space<vmem>>, %arg31: memref<3x64x64xbf16, #tpu.memory_space<vmem>>, %arg32: memref<1x64xf32, #tpu.memory_space<vmem>>, %arg33: memref<1x64xf32, #tpu.memory_space<vmem>>, %arg34: memref<1x64xf32, #tpu.memory_space<vmem>>, %arg35: memref<1x64xf32, #tpu.memory_space<vmem>>, %arg36: memref<64x3xf32, #tpu.memory_space<vmem>>, %arg37: memref<1x3xf32, #tpu.memory_space<vmem>>, %arg38: memref<2x3xf32, #tpu.memory_space<vmem>>, %arg39: memref<2x22x4xbf16, #tpu.memory_space<vmem>>, %arg40: memref<2x22x64xbf16, #tpu.memory_space<vmem>>) attributes {dimension_semantics = [#tpu.dimension_semantics<parallel>], iteration_bounds = array<i64: 1>, scalar_prefetch = 0 : i64, scratch_operands = 2 : i64, tpu.core_type = #tpu.core_type<tc>, window_params = [{transform_indices = @transform_0, window_bounds = array<i64: 2, 16, 4>}, {pipeline_mode = #tpu.pipeline_mode<synchronous>, transform_indices = @transform_1, window_bounds = array<i64: 7, 4, 64>}, {pipeline_mode = #tpu.pipeline_mode<synchronous>, transform_indices = @transform_2, window_bounds = array<i64: 1, 64>}, {pipeline_mode = #tpu.pipeline_mode<synchronous>, transform_indices = @transform_3, window_bounds = array<i64: 1, 64>}, {pipeline_mode = #tpu.pipeline_mode<synchronous>, transform_indices = @transform_4, window_bounds = array<i64: 5, 64, 64>}, {pipeline_mode = #tpu.pipeline_mode<synchronous>, transform_indices = @transform_5, window_bounds = array<i64: 1, 64>}, {pipeline_mode = #tpu.pipeline_mode<synchronous>, transform_indices = @transform_6, window_bounds = array<i64: 1, 64>}, {pipeline_mode = #tpu.pipeline_mode<synchronous>, transform_indices = @transform_7, window_bounds = array<i64: 3, 64, 64>}, {pipeline_mode = #tpu.pipeline_mode<synchronous>, transform_indices = @transform_8, window_bounds = array<i64: 1, 64>}, {pipeline_mode = #tpu.pipeline_mode<synchronous>, transform_indices = @transform_9, window_bounds = array<i64: 1, 64>}, {pipeline_mode = #tpu.pipeline_mode<synchronous>, transform_indices = @transform_10, window_bounds = array<i64: 1, 4, 64>}, {pipeline_mode = #tpu.pipeline_mode<synchronous>, transform_indices = @transform_11, window_bounds = array<i64: 1, 64>}, {pipeline_mode = #tpu.pipeline_mode<synchronous>, transform_indices = @transform_12, window_bounds = array<i64: 1, 64>}, {pipeline_mode = #tpu.pipeline_mode<synchronous>, transform_indices = @transform_13, window_bounds = array<i64: 7, 64, 64>}, {pipeline_mode = #tpu.pipeline_mode<synchronous>, transform_indices = @transform_14, window_bounds = array<i64: 1, 64>}, {pipeline_mode = #tpu.pipeline_mode<synchronous>, transform_indices = @transform_15, window_bounds = array<i64: 1, 64>}, {pipeline_mode = #tpu.pipeline_mode<synchronous>, transform_indices = @transform_16, window_bounds = array<i64: 5, 64, 64>}, {pipeline_mode = #tpu.pipeline_mode<synchronous>, transform_indices = @transform_17, window_bounds = array<i64: 1, 64>}, {pipeline_mode = #tpu.pipeline_mode<synchronous>, transform_indices = @transform_18, window_bounds = array<i64: 1, 64>}, {pipeline_mode = #tpu.pipeline_mode<synchronous>, transform_indices = @transform_19, window_bounds = array<i64: 3, 64, 64>}, {pipeline_mode = #tpu.pipeline_mode<synchronous>, transform_indices = @transform_20, window_bounds = array<i64: 1, 64>}, {pipeline_mode = #tpu.pipeline_mode<synchronous>, transform_indices = @transform_21, window_bounds = array<i64: 1, 64>}, {pipeline_mode = #tpu.pipeline_mode<synchronous>, transform_indices = @transform_22, window_bounds = array<i64: 1, 64>}, {pipeline_mode = #tpu.pipeline_mode<synchronous>, transform_indices = @transform_23, window_bounds = array<i64: 1, 64>}, {pipeline_mode = #tpu.pipeline_mode<synchronous>, transform_indices = @transform_24, window_bounds = array<i64: 7, 64, 64>}, {pipeline_mode = #tpu.pipeline_mode<synchronous>, transform_indices = @transform_25, window_bounds = array<i64: 1, 64>}, {pipeline_mode = #tpu.pipeline_mode<synchronous>, transform_indices = @transform_26, window_bounds = array<i64: 1, 64>}, {pipeline_mode = #tpu.pipeline_mode<synchronous>, transform_indices = @transform_27, window_bounds = array<i64: 5, 64, 64>}, {pipeline_mode = #tpu.pipeline_mode<synchronous>, transform_indices = @transform_28, window_bounds = array<i64: 1, 64>}, {pipeline_mode = #tpu.pipeline_mode<synchronous>, transform_indices = @transform_29, window_bounds = array<i64: 1, 64>}, {pipeline_mode = #tpu.pipeline_mode<synchronous>, transform_indices = @transform_30, window_bounds = array<i64: 3, 64, 64>}, {pipeline_mode = #tpu.pipeline_mode<synchronous>, transform_indices = @transform_31, window_bounds = array<i64: 1, 64>}, {pipeline_mode = #tpu.pipeline_mode<synchronous>, transform_indices = @transform_32, window_bounds = array<i64: 1, 64>}, {pipeline_mode = #tpu.pipeline_mode<synchronous>, transform_indices = @transform_33, window_bounds = array<i64: 1, 64>}, {pipeline_mode = #tpu.pipeline_mode<synchronous>, transform_indices = @transform_34, window_bounds = array<i64: 1, 64>}, {pipeline_mode = #tpu.pipeline_mode<synchronous>, transform_indices = @transform_35, window_bounds = array<i64: 64, 3>}, {pipeline_mode = #tpu.pipeline_mode<synchronous>, transform_indices = @transform_36, window_bounds = array<i64: 1, 3>}, {transform_indices = @transform_37, window_bounds = array<i64: 2, 3>}]} {
    %cst = arith.constant 0.000000e+00 : bf16
    %0 = vector.broadcast %cst : bf16 to vector<2x22x4xbf16>
    %c0 = arith.constant 0 : index
    %c0_0 = arith.constant 0 : index
    %c0_1 = arith.constant 0 : index
    %1 = vector.load %arg39[%c0, %c0_0, %c0_1] : memref<2x22x4xbf16, #tpu.memory_space<vmem>>, vector<2x22x4xbf16>
    tpu.vector_store %arg39[%c0, %c0_0, %c0_1], %0 {strides = array<i32>} : memref<2x22x4xbf16, #tpu.memory_space<vmem>>, vector<2x22x4xbf16>,
    %cst_2 = arith.constant 0.000000e+00 : bf16
    %2 = vector.broadcast %cst_2 : bf16 to vector<2x22x64xbf16>
    %c0_3 = arith.constant 0 : index
    %c0_4 = arith.constant 0 : index
    %c0_5 = arith.constant 0 : index
    %3 = vector.load %arg40[%c0_3, %c0_4, %c0_5] : memref<2x22x64xbf16, #tpu.memory_space<vmem>>, vector<2x22x64xbf16>
    tpu.vector_store %arg40[%c0_3, %c0_4, %c0_5], %2 {strides = array<i32>} : memref<2x22x64xbf16, #tpu.memory_space<vmem>>, vector<2x22x64xbf16>,
    %c0_6 = arith.constant 0 : index
    %c0_7 = arith.constant 0 : index
    %c0_8 = arith.constant 0 : index
    %4 = vector.load %arg1[%c0_6, %c0_7, %c0_8] : memref<2x16x4xbf16, #tpu.memory_space<vmem>>, vector<2x16x4xbf16>
    %5 = arith.extf %4 : vector<2x16x4xbf16> to vector<2x16x4xf32>
    %6 = vector.shape_cast %5 : vector<2x16x4xf32> to vector<32x4xf32>
    %7 = vector.shape_cast %6 : vector<32x4xf32> to vector<2x16x4xf32>
    %8 = arith.truncf %7 : vector<2x16x4xf32> to vector<2x16x4xbf16>
    %c0_9 = arith.constant 0 : index
    %c3 = arith.constant 3 : index
    %c0_10 = arith.constant 0 : index
    %9 = vector.load %arg39[%c0_9, %c3, %c0_10] : memref<2x22x4xbf16, #tpu.memory_space<vmem>>, vector<2x16x4xbf16>
    tpu.vector_store %arg39[%c0_9, %c3, %c0_10], %8 {strides = array<i32>} : memref<2x22x4xbf16, #tpu.memory_space<vmem>>, vector<2x16x4xbf16>,
    %cst_11 = arith.constant 0.000000e+00 : f32
    %10 = vector.broadcast %cst_11 : f32 to vector<32x64xf32>
    %c0_12 = arith.constant 0 : index
    %c0_13 = arith.constant 0 : index
    %c0_14 = arith.constant 0 : index
    %11 = vector.load %arg39[%c0_12, %c0_13, %c0_14] : memref<2x22x4xbf16, #tpu.memory_space<vmem>>, vector<2x16x4xbf16>
    %12 = vector.shape_cast %11 : vector<2x16x4xbf16> to vector<32x4xbf16>
    %c0_15 = arith.constant 0 : index
    %c0_16 = arith.constant 0 : index
    %c0_17 = arith.constant 0 : index
    %13 = vector.load %arg2[%c0_15, %c0_16, %c0_17] : memref<7x4x64xbf16, #tpu.memory_space<vmem>>, vector<1x4x64xbf16>
    %14 = vector.shape_cast %13 : vector<1x4x64xbf16> to vector<4x64xbf16>
    %cst_18 = arith.constant dense<0.000000e+00> : vector<32x64xf32>
    %15 = tpu.matmul %12, %14, %cst_18 {dimension_numbers = #tpu.dot_dimension_numbers<[1], [0], [0], [1], [0, 0, 1, 1], [], []>} : vector<32x4xbf16>, vector<4x64xbf16>, vector<32x64xf32> -> vector<32x64xf32>
    %16 = arith.addf %10, %15 : vector<32x64xf32>
    %c0_19 = arith.constant 0 : index
    %c1 = arith.constant 1 : index
    %c0_20 = arith.constant 0 : index
    %17 = vector.load %arg39[%c0_19, %c1, %c0_20] : memref<2x22x4xbf16, #tpu.memory_space<vmem>>, vector<2x16x4xbf16>
    %18 = vector.shape_cast %17 : vector<2x16x4xbf16> to vector<32x4xbf16>
    %c1_21 = arith.constant 1 : index
    %c0_22 = arith.constant 0 : index
    %c0_23 = arith.constant 0 : index
    %19 = vector.load %arg2[%c1_21, %c0_22, %c0_23] : memref<7x4x64xbf16, #tpu.memory_space<vmem>>, vector<1x4x64xbf16>
    %20 = vector.shape_cast %19 : vector<1x4x64xbf16> to vector<4x64xbf16>
    %cst_24 = arith.constant dense<0.000000e+00> : vector<32x64xf32>
    %21 = tpu.matmul %18, %20, %cst_24 {dimension_numbers = #tpu.dot_dimension_numbers<[1], [0], [0], [1], [0, 0, 1, 1], [], []>} : vector<32x4xbf16>, vector<4x64xbf16>, vector<32x64xf32> -> vector<32x64xf32>
    %22 = arith.addf %16, %21 : vector<32x64xf32>
    %c0_25 = arith.constant 0 : index
    %c2 = arith.constant 2 : index
    %c0_26 = arith.constant 0 : index
    %23 = vector.load %arg39[%c0_25, %c2, %c0_26] : memref<2x22x4xbf16, #tpu.memory_space<vmem>>, vector<2x16x4xbf16>
    %24 = vector.shape_cast %23 : vector<2x16x4xbf16> to vector<32x4xbf16>
    %c2_27 = arith.constant 2 : index
    %c0_28 = arith.constant 0 : index
    %c0_29 = arith.constant 0 : index
    %25 = vector.load %arg2[%c2_27, %c0_28, %c0_29] : memref<7x4x64xbf16, #tpu.memory_space<vmem>>, vector<1x4x64xbf16>
    %26 = vector.shape_cast %25 : vector<1x4x64xbf16> to vector<4x64xbf16>
    %cst_30 = arith.constant dense<0.000000e+00> : vector<32x64xf32>
    %27 = tpu.matmul %24, %26, %cst_30 {dimension_numbers = #tpu.dot_dimension_numbers<[1], [0], [0], [1], [0, 0, 1, 1], [], []>} : vector<32x4xbf16>, vector<4x64xbf16>, vector<32x64xf32> -> vector<32x64xf32>
    %28 = arith.addf %22, %27 : vector<32x64xf32>
    %c0_31 = arith.constant 0 : index
    %c3_32 = arith.constant 3 : index
    %c0_33 = arith.constant 0 : index
    %29 = vector.load %arg39[%c0_31, %c3_32, %c0_33] : memref<2x22x4xbf16, #tpu.memory_space<vmem>>, vector<2x16x4xbf16>
    %30 = vector.shape_cast %29 : vector<2x16x4xbf16> to vector<32x4xbf16>
    %c3_34 = arith.constant 3 : index
    %c0_35 = arith.constant 0 : index
    %c0_36 = arith.constant 0 : index
    %31 = vector.load %arg2[%c3_34, %c0_35, %c0_36] : memref<7x4x64xbf16, #tpu.memory_space<vmem>>, vector<1x4x64xbf16>
    %32 = vector.shape_cast %31 : vector<1x4x64xbf16> to vector<4x64xbf16>
    %cst_37 = arith.constant dense<0.000000e+00> : vector<32x64xf32>
    %33 = tpu.matmul %30, %32, %cst_37 {dimension_numbers = #tpu.dot_dimension_numbers<[1], [0], [0], [1], [0, 0, 1, 1], [], []>} : vector<32x4xbf16>, vector<4x64xbf16>, vector<32x64xf32> -> vector<32x64xf32>
    %34 = arith.addf %28, %33 : vector<32x64xf32>
    %c0_38 = arith.constant 0 : index
    %c4 = arith.constant 4 : index
    %c0_39 = arith.constant 0 : index
    %35 = vector.load %arg39[%c0_38, %c4, %c0_39] : memref<2x22x4xbf16, #tpu.memory_space<vmem>>, vector<2x16x4xbf16>
    %36 = vector.shape_cast %35 : vector<2x16x4xbf16> to vector<32x4xbf16>
    %c4_40 = arith.constant 4 : index
    %c0_41 = arith.constant 0 : index
    %c0_42 = arith.constant 0 : index
    %37 = vector.load %arg2[%c4_40, %c0_41, %c0_42] : memref<7x4x64xbf16, #tpu.memory_space<vmem>>, vector<1x4x64xbf16>
    %38 = vector.shape_cast %37 : vector<1x4x64xbf16> to vector<4x64xbf16>
    %cst_43 = arith.constant dense<0.000000e+00> : vector<32x64xf32>
    %39 = tpu.matmul %36, %38, %cst_43 {dimension_numbers = #tpu.dot_dimension_numbers<[1], [0], [0], [1], [0, 0, 1, 1], [], []>} : vector<32x4xbf16>, vector<4x64xbf16>, vector<32x64xf32> -> vector<32x64xf32>
    %40 = arith.addf %34, %39 : vector<32x64xf32>
    %c0_44 = arith.constant 0 : index
    %c5 = arith.constant 5 : index
    %c0_45 = arith.constant 0 : index
    %41 = vector.load %arg39[%c0_44, %c5, %c0_45] : memref<2x22x4xbf16, #tpu.memory_space<vmem>>, vector<2x16x4xbf16>
    %42 = vector.shape_cast %41 : vector<2x16x4xbf16> to vector<32x4xbf16>
    %c5_46 = arith.constant 5 : index
    %c0_47 = arith.constant 0 : index
    %c0_48 = arith.constant 0 : index
    %43 = vector.load %arg2[%c5_46, %c0_47, %c0_48] : memref<7x4x64xbf16, #tpu.memory_space<vmem>>, vector<1x4x64xbf16>
    %44 = vector.shape_cast %43 : vector<1x4x64xbf16> to vector<4x64xbf16>
    %cst_49 = arith.constant dense<0.000000e+00> : vector<32x64xf32>
    %45 = tpu.matmul %42, %44, %cst_49 {dimension_numbers = #tpu.dot_dimension_numbers<[1], [0], [0], [1], [0, 0, 1, 1], [], []>} : vector<32x4xbf16>, vector<4x64xbf16>, vector<32x64xf32> -> vector<32x64xf32>
    %46 = arith.addf %40, %45 : vector<32x64xf32>
    %c0_50 = arith.constant 0 : index
    %c6 = arith.constant 6 : index
    %c0_51 = arith.constant 0 : index
    %47 = vector.load %arg39[%c0_50, %c6, %c0_51] : memref<2x22x4xbf16, #tpu.memory_space<vmem>>, vector<2x16x4xbf16>
    %48 = vector.shape_cast %47 : vector<2x16x4xbf16> to vector<32x4xbf16>
    %c6_52 = arith.constant 6 : index
    %c0_53 = arith.constant 0 : index
    %c0_54 = arith.constant 0 : index
    %49 = vector.load %arg2[%c6_52, %c0_53, %c0_54] : memref<7x4x64xbf16, #tpu.memory_space<vmem>>, vector<1x4x64xbf16>
    %50 = vector.shape_cast %49 : vector<1x4x64xbf16> to vector<4x64xbf16>
    %cst_55 = arith.constant dense<0.000000e+00> : vector<32x64xf32>
    %51 = tpu.matmul %48, %50, %cst_55 {dimension_numbers = #tpu.dot_dimension_numbers<[1], [0], [0], [1], [0, 0, 1, 1], [], []>} : vector<32x4xbf16>, vector<4x64xbf16>, vector<32x64xf32> -> vector<32x64xf32>
    %52 = arith.addf %46, %51 : vector<32x64xf32>
    %c0_56 = arith.constant 0 : index
    %c0_57 = arith.constant 0 : index
    %53 = vector.load %arg3[%c0_56, %c0_57] : memref<1x64xf32, #tpu.memory_space<vmem>>, vector<1x64xf32>
    %54 = vector.broadcast %53 : vector<1x64xf32> to vector<32x64xf32>
    %55 = arith.mulf %52, %54 : vector<32x64xf32>
    %c0_58 = arith.constant 0 : index
    %c0_59 = arith.constant 0 : index
    %56 = vector.load %arg4[%c0_58, %c0_59] : memref<1x64xf32, #tpu.memory_space<vmem>>, vector<1x64xf32>
    %57 = vector.broadcast %56 : vector<1x64xf32> to vector<32x64xf32>
    %58 = arith.addf %55, %57 : vector<32x64xf32>
    %cst_60 = arith.constant 0.000000e+00 : f32
    %59 = vector.broadcast %cst_60 : f32 to vector<32x64xf32>
    %60 = arith.maximumf %58, %59 : vector<32x64xf32>
    %61 = vector.shape_cast %60 : vector<32x64xf32> to vector<2x16x64xf32>
    %62 = arith.truncf %61 : vector<2x16x64xf32> to vector<2x16x64xbf16>
    %c0_61 = arith.constant 0 : index
    %c3_62 = arith.constant 3 : index
    %c0_63 = arith.constant 0 : index
    %63 = vector.load %arg40[%c0_61, %c3_62, %c0_63] : memref<2x22x64xbf16, #tpu.memory_space<vmem>>, vector<2x16x64xbf16>
    tpu.vector_store %arg40[%c0_61, %c3_62, %c0_63], %62 {strides = array<i32>} : memref<2x22x64xbf16, #tpu.memory_space<vmem>>, vector<2x16x64xbf16>,
    %cst_64 = arith.constant 0.000000e+00 : f32
    %64 = vector.broadcast %cst_64 : f32 to vector<32x64xf32>
    %c0_65 = arith.constant 0 : index
    %c1_66 = arith.constant 1 : index
    %c0_67 = arith.constant 0 : index
    %65 = vector.load %arg40[%c0_65, %c1_66, %c0_67] : memref<2x22x64xbf16, #tpu.memory_space<vmem>>, vector<2x16x64xbf16>
    %66 = vector.shape_cast %65 : vector<2x16x64xbf16> to vector<32x64xbf16>
    %c0_68 = arith.constant 0 : index
    %c0_69 = arith.constant 0 : index
    %c0_70 = arith.constant 0 : index
    %67 = vector.load %arg5[%c0_68, %c0_69, %c0_70] : memref<5x64x64xbf16, #tpu.memory_space<vmem>>, vector<1x64x64xbf16>
    %68 = vector.shape_cast %67 : vector<1x64x64xbf16> to vector<64x64xbf16>
    %cst_71 = arith.constant dense<0.000000e+00> : vector<32x64xf32>
    %69 = tpu.matmul %66, %68, %cst_71 {dimension_numbers = #tpu.dot_dimension_numbers<[1], [0], [0], [1], [0, 0, 1, 1], [], []>} : vector<32x64xbf16>, vector<64x64xbf16>, vector<32x64xf32> -> vector<32x64xf32>
    %70 = arith.addf %64, %69 : vector<32x64xf32>
    %c0_72 = arith.constant 0 : index
    %c2_73 = arith.constant 2 : index
    %c0_74 = arith.constant 0 : index
    %71 = vector.load %arg40[%c0_72, %c2_73, %c0_74] : memref<2x22x64xbf16, #tpu.memory_space<vmem>>, vector<2x16x64xbf16>
    %72 = vector.shape_cast %71 : vector<2x16x64xbf16> to vector<32x64xbf16>
    %c1_75 = arith.constant 1 : index
    %c0_76 = arith.constant 0 : index
    %c0_77 = arith.constant 0 : index
    %73 = vector.load %arg5[%c1_75, %c0_76, %c0_77] : memref<5x64x64xbf16, #tpu.memory_space<vmem>>, vector<1x64x64xbf16>
    %74 = vector.shape_cast %73 : vector<1x64x64xbf16> to vector<64x64xbf16>
    %cst_78 = arith.constant dense<0.000000e+00> : vector<32x64xf32>
    %75 = tpu.matmul %72, %74, %cst_78 {dimension_numbers = #tpu.dot_dimension_numbers<[1], [0], [0], [1], [0, 0, 1, 1], [], []>} : vector<32x64xbf16>, vector<64x64xbf16>, vector<32x64xf32> -> vector<32x64xf32>
    %76 = arith.addf %70, %75 : vector<32x64xf32>
    %c0_79 = arith.constant 0 : index
    %c3_80 = arith.constant 3 : index
    %c0_81 = arith.constant 0 : index
    %77 = vector.load %arg40[%c0_79, %c3_80, %c0_81] : memref<2x22x64xbf16, #tpu.memory_space<vmem>>, vector<2x16x64xbf16>
    %78 = vector.shape_cast %77 : vector<2x16x64xbf16> to vector<32x64xbf16>
    %c2_82 = arith.constant 2 : index
    %c0_83 = arith.constant 0 : index
    %c0_84 = arith.constant 0 : index
    %79 = vector.load %arg5[%c2_82, %c0_83, %c0_84] : memref<5x64x64xbf16, #tpu.memory_space<vmem>>, vector<1x64x64xbf16>
    %80 = vector.shape_cast %79 : vector<1x64x64xbf16> to vector<64x64xbf16>
    %cst_85 = arith.constant dense<0.000000e+00> : vector<32x64xf32>
    %81 = tpu.matmul %78, %80, %cst_85 {dimension_numbers = #tpu.dot_dimension_numbers<[1], [0], [0], [1], [0, 0, 1, 1], [], []>} : vector<32x64xbf16>, vector<64x64xbf16>, vector<32x64xf32> -> vector<32x64xf32>
    %82 = arith.addf %76, %81 : vector<32x64xf32>
    %c0_86 = arith.constant 0 : index
    %c4_87 = arith.constant 4 : index
    %c0_88 = arith.constant 0 : index
    %83 = vector.load %arg40[%c0_86, %c4_87, %c0_88] : memref<2x22x64xbf16, #tpu.memory_space<vmem>>, vector<2x16x64xbf16>
    %84 = vector.shape_cast %83 : vector<2x16x64xbf16> to vector<32x64xbf16>
    %c3_89 = arith.constant 3 : index
    %c0_90 = arith.constant 0 : index
    %c0_91 = arith.constant 0 : index
    %85 = vector.load %arg5[%c3_89, %c0_90, %c0_91] : memref<5x64x64xbf16, #tpu.memory_space<vmem>>, vector<1x64x64xbf16>
    %86 = vector.shape_cast %85 : vector<1x64x64xbf16> to vector<64x64xbf16>
    %cst_92 = arith.constant dense<0.000000e+00> : vector<32x64xf32>
    %87 = tpu.matmul %84, %86, %cst_92 {dimension_numbers = #tpu.dot_dimension_numbers<[1], [0], [0], [1], [0, 0, 1, 1], [], []>} : vector<32x64xbf16>, vector<64x64xbf16>, vector<32x64xf32> -> vector<32x64xf32>
    %88 = arith.addf %82, %87 : vector<32x64xf32>
    %c0_93 = arith.constant 0 : index
    %c5_94 = arith.constant 5 : index
    %c0_95 = arith.constant 0 : index
    %89 = vector.load %arg40[%c0_93, %c5_94, %c0_95] : memref<2x22x64xbf16, #tpu.memory_space<vmem>>, vector<2x16x64xbf16>
    %90 = vector.shape_cast %89 : vector<2x16x64xbf16> to vector<32x64xbf16>
    %c4_96 = arith.constant 4 : index
    %c0_97 = arith.constant 0 : index
    %c0_98 = arith.constant 0 : index
    %91 = vector.load %arg5[%c4_96, %c0_97, %c0_98] : memref<5x64x64xbf16, #tpu.memory_space<vmem>>, vector<1x64x64xbf16>
    %92 = vector.shape_cast %91 : vector<1x64x64xbf16> to vector<64x64xbf16>
    %cst_99 = arith.constant dense<0.000000e+00> : vector<32x64xf32>
    %93 = tpu.matmul %90, %92, %cst_99 {dimension_numbers = #tpu.dot_dimension_numbers<[1], [0], [0], [1], [0, 0, 1, 1], [], []>} : vector<32x64xbf16>, vector<64x64xbf16>, vector<32x64xf32> -> vector<32x64xf32>
    %94 = arith.addf %88, %93 : vector<32x64xf32>
    %c0_100 = arith.constant 0 : index
    %c0_101 = arith.constant 0 : index
    %95 = vector.load %arg6[%c0_100, %c0_101] : memref<1x64xf32, #tpu.memory_space<vmem>>, vector<1x64xf32>
    %96 = vector.broadcast %95 : vector<1x64xf32> to vector<32x64xf32>
    %97 = arith.mulf %94, %96 : vector<32x64xf32>
    %c0_102 = arith.constant 0 : index
    %c0_103 = arith.constant 0 : index
    %98 = vector.load %arg7[%c0_102, %c0_103] : memref<1x64xf32, #tpu.memory_space<vmem>>, vector<1x64xf32>
    %99 = vector.broadcast %98 : vector<1x64xf32> to vector<32x64xf32>
    %100 = arith.addf %97, %99 : vector<32x64xf32>
    %cst_104 = arith.constant 0.000000e+00 : f32
    %101 = vector.broadcast %cst_104 : f32 to vector<32x64xf32>
    %102 = arith.maximumf %100, %101 : vector<32x64xf32>
    %103 = vector.shape_cast %102 : vector<32x64xf32> to vector<2x16x64xf32>
    %104 = arith.truncf %103 : vector<2x16x64xf32> to vector<2x16x64xbf16>
    %c0_105 = arith.constant 0 : index
    %c3_106 = arith.constant 3 : index
    %c0_107 = arith.constant 0 : index
    %105 = vector.load %arg40[%c0_105, %c3_106, %c0_107] : memref<2x22x64xbf16, #tpu.memory_space<vmem>>, vector<2x16x64xbf16>
    tpu.vector_store %arg40[%c0_105, %c3_106, %c0_107], %104 {strides = array<i32>} : memref<2x22x64xbf16, #tpu.memory_space<vmem>>, vector<2x16x64xbf16>,
    %cst_108 = arith.constant 0.000000e+00 : f32
    %106 = vector.broadcast %cst_108 : f32 to vector<32x64xf32>
    %c0_109 = arith.constant 0 : index
    %c2_110 = arith.constant 2 : index
    %c0_111 = arith.constant 0 : index
    %107 = vector.load %arg40[%c0_109, %c2_110, %c0_111] : memref<2x22x64xbf16, #tpu.memory_space<vmem>>, vector<2x16x64xbf16>
    %108 = vector.shape_cast %107 : vector<2x16x64xbf16> to vector<32x64xbf16>
    %c0_112 = arith.constant 0 : index
    %c0_113 = arith.constant 0 : index
    %c0_114 = arith.constant 0 : index
    %109 = vector.load %arg8[%c0_112, %c0_113, %c0_114] : memref<3x64x64xbf16, #tpu.memory_space<vmem>>, vector<1x64x64xbf16>
    %110 = vector.shape_cast %109 : vector<1x64x64xbf16> to vector<64x64xbf16>
    %cst_115 = arith.constant dense<0.000000e+00> : vector<32x64xf32>
    %111 = tpu.matmul %108, %110, %cst_115 {dimension_numbers = #tpu.dot_dimension_numbers<[1], [0], [0], [1], [0, 0, 1, 1], [], []>} : vector<32x64xbf16>, vector<64x64xbf16>, vector<32x64xf32> -> vector<32x64xf32>
    %112 = arith.addf %106, %111 : vector<32x64xf32>
    %c0_116 = arith.constant 0 : index
    %c3_117 = arith.constant 3 : index
    %c0_118 = arith.constant 0 : index
    %113 = vector.load %arg40[%c0_116, %c3_117, %c0_118] : memref<2x22x64xbf16, #tpu.memory_space<vmem>>, vector<2x16x64xbf16>
    %114 = vector.shape_cast %113 : vector<2x16x64xbf16> to vector<32x64xbf16>
    %c1_119 = arith.constant 1 : index
    %c0_120 = arith.constant 0 : index
    %c0_121 = arith.constant 0 : index
    %115 = vector.load %arg8[%c1_119, %c0_120, %c0_121] : memref<3x64x64xbf16, #tpu.memory_space<vmem>>, vector<1x64x64xbf16>
    %116 = vector.shape_cast %115 : vector<1x64x64xbf16> to vector<64x64xbf16>
    %cst_122 = arith.constant dense<0.000000e+00> : vector<32x64xf32>
    %117 = tpu.matmul %114, %116, %cst_122 {dimension_numbers = #tpu.dot_dimension_numbers<[1], [0], [0], [1], [0, 0, 1, 1], [], []>} : vector<32x64xbf16>, vector<64x64xbf16>, vector<32x64xf32> -> vector<32x64xf32>
    %118 = arith.addf %112, %117 : vector<32x64xf32>
    %c0_123 = arith.constant 0 : index
    %c4_124 = arith.constant 4 : index
    %c0_125 = arith.constant 0 : index
    %119 = vector.load %arg40[%c0_123, %c4_124, %c0_125] : memref<2x22x64xbf16, #tpu.memory_space<vmem>>, vector<2x16x64xbf16>
    %120 = vector.shape_cast %119 : vector<2x16x64xbf16> to vector<32x64xbf16>
    %c2_126 = arith.constant 2 : index
    %c0_127 = arith.constant 0 : index
    %c0_128 = arith.constant 0 : index
    %121 = vector.load %arg8[%c2_126, %c0_127, %c0_128] : memref<3x64x64xbf16, #tpu.memory_space<vmem>>, vector<1x64x64xbf16>
    %122 = vector.shape_cast %121 : vector<1x64x64xbf16> to vector<64x64xbf16>
    %cst_129 = arith.constant dense<0.000000e+00> : vector<32x64xf32>
    %123 = tpu.matmul %120, %122, %cst_129 {dimension_numbers = #tpu.dot_dimension_numbers<[1], [0], [0], [1], [0, 0, 1, 1], [], []>} : vector<32x64xbf16>, vector<64x64xbf16>, vector<32x64xf32> -> vector<32x64xf32>
    %124 = arith.addf %118, %123 : vector<32x64xf32>
    %c0_130 = arith.constant 0 : index
    %c0_131 = arith.constant 0 : index
    %125 = vector.load %arg9[%c0_130, %c0_131] : memref<1x64xf32, #tpu.memory_space<vmem>>, vector<1x64xf32>
    %126 = vector.broadcast %125 : vector<1x64xf32> to vector<32x64xf32>
    %127 = arith.mulf %124, %126 : vector<32x64xf32>
    %c0_132 = arith.constant 0 : index
    %c0_133 = arith.constant 0 : index
    %128 = vector.load %arg10[%c0_132, %c0_133] : memref<1x64xf32, #tpu.memory_space<vmem>>, vector<1x64xf32>
    %129 = vector.broadcast %128 : vector<1x64xf32> to vector<32x64xf32>
    %130 = arith.addf %127, %129 : vector<32x64xf32>
    %131 = arith.truncf %6 : vector<32x4xf32> to vector<32x4xbf16>
    %c0_134 = arith.constant 0 : index
    %c0_135 = arith.constant 0 : index
    %c0_136 = arith.constant 0 : index
    %132 = vector.load %arg11[%c0_134, %c0_135, %c0_136] : memref<1x4x64xbf16, #tpu.memory_space<vmem>>, vector<1x4x64xbf16>
    %133 = vector.shape_cast %132 : vector<1x4x64xbf16> to vector<4x64xbf16>
    %cst_137 = arith.constant dense<0.000000e+00> : vector<32x64xf32>
    %134 = tpu.matmul %131, %133, %cst_137 {dimension_numbers = #tpu.dot_dimension_numbers<[1], [0], [0], [1], [0, 0, 1, 1], [], []>} : vector<32x4xbf16>, vector<4x64xbf16>, vector<32x64xf32> -> vector<32x64xf32>
    %c0_138 = arith.constant 0 : index
    %c0_139 = arith.constant 0 : index
    %135 = vector.load %arg12[%c0_138, %c0_139] : memref<1x64xf32, #tpu.memory_space<vmem>>, vector<1x64xf32>
    %136 = vector.broadcast %135 : vector<1x64xf32> to vector<32x64xf32>
    %137 = arith.mulf %134, %136 : vector<32x64xf32>
    %c0_140 = arith.constant 0 : index
    %c0_141 = arith.constant 0 : index
    %138 = vector.load %arg13[%c0_140, %c0_141] : memref<1x64xf32, #tpu.memory_space<vmem>>, vector<1x64xf32>
    %139 = vector.broadcast %138 : vector<1x64xf32> to vector<32x64xf32>
    %140 = arith.addf %137, %139 : vector<32x64xf32>
    %141 = arith.addf %130, %140 : vector<32x64xf32>
    %cst_142 = arith.constant 0.000000e+00 : f32
    %142 = vector.broadcast %cst_142 : f32 to vector<32x64xf32>
    %143 = arith.maximumf %141, %142 : vector<32x64xf32>
    %144 = vector.shape_cast %143 : vector<32x64xf32> to vector<2x16x64xf32>
    %145 = arith.truncf %144 : vector<2x16x64xf32> to vector<2x16x64xbf16>
    %c0_143 = arith.constant 0 : index
    %c3_144 = arith.constant 3 : index
    %c0_145 = arith.constant 0 : index
    %146 = vector.load %arg40[%c0_143, %c3_144, %c0_145] : memref<2x22x64xbf16, #tpu.memory_space<vmem>>, vector<2x16x64xbf16>
    tpu.vector_store %arg40[%c0_143, %c3_144, %c0_145], %145 {strides = array<i32>} : memref<2x22x64xbf16, #tpu.memory_space<vmem>>, vector<2x16x64xbf16>,
    %cst_146 = arith.constant 0.000000e+00 : f32
    %147 = vector.broadcast %cst_146 : f32 to vector<32x64xf32>
    %c0_147 = arith.constant 0 : index
    %c0_148 = arith.constant 0 : index
    %c0_149 = arith.constant 0 : index
    %148 = vector.load %arg40[%c0_147, %c0_148, %c0_149] : memref<2x22x64xbf16, #tpu.memory_space<vmem>>, vector<2x16x64xbf16>
    %149 = vector.shape_cast %148 : vector<2x16x64xbf16> to vector<32x64xbf16>
    %c0_150 = arith.constant 0 : index
    %c0_151 = arith.constant 0 : index
    %c0_152 = arith.constant 0 : index
    %150 = vector.load %arg14[%c0_150, %c0_151, %c0_152] : memref<7x64x64xbf16, #tpu.memory_space<vmem>>, vector<1x64x64xbf16>
    %151 = vector.shape_cast %150 : vector<1x64x64xbf16> to vector<64x64xbf16>
    %cst_153 = arith.constant dense<0.000000e+00> : vector<32x64xf32>
    %152 = tpu.matmul %149, %151, %cst_153 {dimension_numbers = #tpu.dot_dimension_numbers<[1], [0], [0], [1], [0, 0, 1, 1], [], []>} : vector<32x64xbf16>, vector<64x64xbf16>, vector<32x64xf32> -> vector<32x64xf32>
    %153 = arith.addf %147, %152 : vector<32x64xf32>
    %c0_154 = arith.constant 0 : index
    %c1_155 = arith.constant 1 : index
    %c0_156 = arith.constant 0 : index
    %154 = vector.load %arg40[%c0_154, %c1_155, %c0_156] : memref<2x22x64xbf16, #tpu.memory_space<vmem>>, vector<2x16x64xbf16>
    %155 = vector.shape_cast %154 : vector<2x16x64xbf16> to vector<32x64xbf16>
    %c1_157 = arith.constant 1 : index
    %c0_158 = arith.constant 0 : index
    %c0_159 = arith.constant 0 : index
    %156 = vector.load %arg14[%c1_157, %c0_158, %c0_159] : memref<7x64x64xbf16, #tpu.memory_space<vmem>>, vector<1x64x64xbf16>
    %157 = vector.shape_cast %156 : vector<1x64x64xbf16> to vector<64x64xbf16>
    %cst_160 = arith.constant dense<0.000000e+00> : vector<32x64xf32>
    %158 = tpu.matmul %155, %157, %cst_160 {dimension_numbers = #tpu.dot_dimension_numbers<[1], [0], [0], [1], [0, 0, 1, 1], [], []>} : vector<32x64xbf16>, vector<64x64xbf16>, vector<32x64xf32> -> vector<32x64xf32>
    %159 = arith.addf %153, %158 : vector<32x64xf32>
    %c0_161 = arith.constant 0 : index
    %c2_162 = arith.constant 2 : index
    %c0_163 = arith.constant 0 : index
    %160 = vector.load %arg40[%c0_161, %c2_162, %c0_163] : memref<2x22x64xbf16, #tpu.memory_space<vmem>>, vector<2x16x64xbf16>
    %161 = vector.shape_cast %160 : vector<2x16x64xbf16> to vector<32x64xbf16>
    %c2_164 = arith.constant 2 : index
    %c0_165 = arith.constant 0 : index
    %c0_166 = arith.constant 0 : index
    %162 = vector.load %arg14[%c2_164, %c0_165, %c0_166] : memref<7x64x64xbf16, #tpu.memory_space<vmem>>, vector<1x64x64xbf16>
    %163 = vector.shape_cast %162 : vector<1x64x64xbf16> to vector<64x64xbf16>
    %cst_167 = arith.constant dense<0.000000e+00> : vector<32x64xf32>
    %164 = tpu.matmul %161, %163, %cst_167 {dimension_numbers = #tpu.dot_dimension_numbers<[1], [0], [0], [1], [0, 0, 1, 1], [], []>} : vector<32x64xbf16>, vector<64x64xbf16>, vector<32x64xf32> -> vector<32x64xf32>
    %165 = arith.addf %159, %164 : vector<32x64xf32>
    %c0_168 = arith.constant 0 : index
    %c3_169 = arith.constant 3 : index
    %c0_170 = arith.constant 0 : index
    %166 = vector.load %arg40[%c0_168, %c3_169, %c0_170] : memref<2x22x64xbf16, #tpu.memory_space<vmem>>, vector<2x16x64xbf16>
    %167 = vector.shape_cast %166 : vector<2x16x64xbf16> to vector<32x64xbf16>
    %c3_171 = arith.constant 3 : index
    %c0_172 = arith.constant 0 : index
    %c0_173 = arith.constant 0 : index
    %168 = vector.load %arg14[%c3_171, %c0_172, %c0_173] : memref<7x64x64xbf16, #tpu.memory_space<vmem>>, vector<1x64x64xbf16>
    %169 = vector.shape_cast %168 : vector<1x64x64xbf16> to vector<64x64xbf16>
    %cst_174 = arith.constant dense<0.000000e+00> : vector<32x64xf32>
    %170 = tpu.matmul %167, %169, %cst_174 {dimension_numbers = #tpu.dot_dimension_numbers<[1], [0], [0], [1], [0, 0, 1, 1], [], []>} : vector<32x64xbf16>, vector<64x64xbf16>, vector<32x64xf32> -> vector<32x64xf32>
    %171 = arith.addf %165, %170 : vector<32x64xf32>
    %c0_175 = arith.constant 0 : index
    %c4_176 = arith.constant 4 : index
    %c0_177 = arith.constant 0 : index
    %172 = vector.load %arg40[%c0_175, %c4_176, %c0_177] : memref<2x22x64xbf16, #tpu.memory_space<vmem>>, vector<2x16x64xbf16>
    %173 = vector.shape_cast %172 : vector<2x16x64xbf16> to vector<32x64xbf16>
    %c4_178 = arith.constant 4 : index
    %c0_179 = arith.constant 0 : index
    %c0_180 = arith.constant 0 : index
    %174 = vector.load %arg14[%c4_178, %c0_179, %c0_180] : memref<7x64x64xbf16, #tpu.memory_space<vmem>>, vector<1x64x64xbf16>
    %175 = vector.shape_cast %174 : vector<1x64x64xbf16> to vector<64x64xbf16>
    %cst_181 = arith.constant dense<0.000000e+00> : vector<32x64xf32>
    %176 = tpu.matmul %173, %175, %cst_181 {dimension_numbers = #tpu.dot_dimension_numbers<[1], [0], [0], [1], [0, 0, 1, 1], [], []>} : vector<32x64xbf16>, vector<64x64xbf16>, vector<32x64xf32> -> vector<32x64xf32>
    %177 = arith.addf %171, %176 : vector<32x64xf32>
    %c0_182 = arith.constant 0 : index
    %c5_183 = arith.constant 5 : index
    %c0_184 = arith.constant 0 : index
    %178 = vector.load %arg40[%c0_182, %c5_183, %c0_184] : memref<2x22x64xbf16, #tpu.memory_space<vmem>>, vector<2x16x64xbf16>
    %179 = vector.shape_cast %178 : vector<2x16x64xbf16> to vector<32x64xbf16>
    %c5_185 = arith.constant 5 : index
    %c0_186 = arith.constant 0 : index
    %c0_187 = arith.constant 0 : index
    %180 = vector.load %arg14[%c5_185, %c0_186, %c0_187] : memref<7x64x64xbf16, #tpu.memory_space<vmem>>, vector<1x64x64xbf16>
    %181 = vector.shape_cast %180 : vector<1x64x64xbf16> to vector<64x64xbf16>
    %cst_188 = arith.constant dense<0.000000e+00> : vector<32x64xf32>
    %182 = tpu.matmul %179, %181, %cst_188 {dimension_numbers = #tpu.dot_dimension_numbers<[1], [0], [0], [1], [0, 0, 1, 1], [], []>} : vector<32x64xbf16>, vector<64x64xbf16>, vector<32x64xf32> -> vector<32x64xf32>
    %183 = arith.addf %177, %182 : vector<32x64xf32>
    %c0_189 = arith.constant 0 : index
    %c6_190 = arith.constant 6 : index
    %c0_191 = arith.constant 0 : index
    %184 = vector.load %arg40[%c0_189, %c6_190, %c0_191] : memref<2x22x64xbf16, #tpu.memory_space<vmem>>, vector<2x16x64xbf16>
    %185 = vector.shape_cast %184 : vector<2x16x64xbf16> to vector<32x64xbf16>
    %c6_192 = arith.constant 6 : index
    %c0_193 = arith.constant 0 : index
    %c0_194 = arith.constant 0 : index
    %186 = vector.load %arg14[%c6_192, %c0_193, %c0_194] : memref<7x64x64xbf16, #tpu.memory_space<vmem>>, vector<1x64x64xbf16>
    %187 = vector.shape_cast %186 : vector<1x64x64xbf16> to vector<64x64xbf16>
    %cst_195 = arith.constant dense<0.000000e+00> : vector<32x64xf32>
    %188 = tpu.matmul %185, %187, %cst_195 {dimension_numbers = #tpu.dot_dimension_numbers<[1], [0], [0], [1], [0, 0, 1, 1], [], []>} : vector<32x64xbf16>, vector<64x64xbf16>, vector<32x64xf32> -> vector<32x64xf32>
    %189 = arith.addf %183, %188 : vector<32x64xf32>
    %c0_196 = arith.constant 0 : index
    %c0_197 = arith.constant 0 : index
    %190 = vector.load %arg15[%c0_196, %c0_197] : memref<1x64xf32, #tpu.memory_space<vmem>>, vector<1x64xf32>
    %191 = vector.broadcast %190 : vector<1x64xf32> to vector<32x64xf32>
    %192 = arith.mulf %189, %191 : vector<32x64xf32>
    %c0_198 = arith.constant 0 : index
    %c0_199 = arith.constant 0 : index
    %193 = vector.load %arg16[%c0_198, %c0_199] : memref<1x64xf32, #tpu.memory_space<vmem>>, vector<1x64xf32>
    %194 = vector.broadcast %193 : vector<1x64xf32> to vector<32x64xf32>
    %195 = arith.addf %192, %194 : vector<32x64xf32>
    %cst_200 = arith.constant 0.000000e+00 : f32
    %196 = vector.broadcast %cst_200 : f32 to vector<32x64xf32>
    %197 = arith.maximumf %195, %196 : vector<32x64xf32>
    %198 = vector.shape_cast %197 : vector<32x64xf32> to vector<2x16x64xf32>
    %199 = arith.truncf %198 : vector<2x16x64xf32> to vector<2x16x64xbf16>
    %c0_201 = arith.constant 0 : index
    %c3_202 = arith.constant 3 : index
    %c0_203 = arith.constant 0 : index
    %200 = vector.load %arg40[%c0_201, %c3_202, %c0_203] : memref<2x22x64xbf16, #tpu.memory_space<vmem>>, vector<2x16x64xbf16>
    tpu.vector_store %arg40[%c0_201, %c3_202, %c0_203], %199 {strides = array<i32>} : memref<2x22x64xbf16, #tpu.memory_space<vmem>>, vector<2x16x64xbf16>,
    %cst_204 = arith.constant 0.000000e+00 : f32
    %201 = vector.broadcast %cst_204 : f32 to vector<32x64xf32>
    %c0_205 = arith.constant 0 : index
    %c1_206 = arith.constant 1 : index
    %c0_207 = arith.constant 0 : index
    %202 = vector.load %arg40[%c0_205, %c1_206, %c0_207] : memref<2x22x64xbf16, #tpu.memory_space<vmem>>, vector<2x16x64xbf16>
    %203 = vector.shape_cast %202 : vector<2x16x64xbf16> to vector<32x64xbf16>
    %c0_208 = arith.constant 0 : index
    %c0_209 = arith.constant 0 : index
    %c0_210 = arith.constant 0 : index
    %204 = vector.load %arg17[%c0_208, %c0_209, %c0_210] : memref<5x64x64xbf16, #tpu.memory_space<vmem>>, vector<1x64x64xbf16>
    %205 = vector.shape_cast %204 : vector<1x64x64xbf16> to vector<64x64xbf16>
    %cst_211 = arith.constant dense<0.000000e+00> : vector<32x64xf32>
    %206 = tpu.matmul %203, %205, %cst_211 {dimension_numbers = #tpu.dot_dimension_numbers<[1], [0], [0], [1], [0, 0, 1, 1], [], []>} : vector<32x64xbf16>, vector<64x64xbf16>, vector<32x64xf32> -> vector<32x64xf32>
    %207 = arith.addf %201, %206 : vector<32x64xf32>
    %c0_212 = arith.constant 0 : index
    %c2_213 = arith.constant 2 : index
    %c0_214 = arith.constant 0 : index
    %208 = vector.load %arg40[%c0_212, %c2_213, %c0_214] : memref<2x22x64xbf16, #tpu.memory_space<vmem>>, vector<2x16x64xbf16>
    %209 = vector.shape_cast %208 : vector<2x16x64xbf16> to vector<32x64xbf16>
    %c1_215 = arith.constant 1 : index
    %c0_216 = arith.constant 0 : index
    %c0_217 = arith.constant 0 : index
    %210 = vector.load %arg17[%c1_215, %c0_216, %c0_217] : memref<5x64x64xbf16, #tpu.memory_space<vmem>>, vector<1x64x64xbf16>
    %211 = vector.shape_cast %210 : vector<1x64x64xbf16> to vector<64x64xbf16>
    %cst_218 = arith.constant dense<0.000000e+00> : vector<32x64xf32>
    %212 = tpu.matmul %209, %211, %cst_218 {dimension_numbers = #tpu.dot_dimension_numbers<[1], [0], [0], [1], [0, 0, 1, 1], [], []>} : vector<32x64xbf16>, vector<64x64xbf16>, vector<32x64xf32> -> vector<32x64xf32>
    %213 = arith.addf %207, %212 : vector<32x64xf32>
    %c0_219 = arith.constant 0 : index
    %c3_220 = arith.constant 3 : index
    %c0_221 = arith.constant 0 : index
    %214 = vector.load %arg40[%c0_219, %c3_220, %c0_221] : memref<2x22x64xbf16, #tpu.memory_space<vmem>>, vector<2x16x64xbf16>
    %215 = vector.shape_cast %214 : vector<2x16x64xbf16> to vector<32x64xbf16>
    %c2_222 = arith.constant 2 : index
    %c0_223 = arith.constant 0 : index
    %c0_224 = arith.constant 0 : index
    %216 = vector.load %arg17[%c2_222, %c0_223, %c0_224] : memref<5x64x64xbf16, #tpu.memory_space<vmem>>, vector<1x64x64xbf16>
    %217 = vector.shape_cast %216 : vector<1x64x64xbf16> to vector<64x64xbf16>
    %cst_225 = arith.constant dense<0.000000e+00> : vector<32x64xf32>
    %218 = tpu.matmul %215, %217, %cst_225 {dimension_numbers = #tpu.dot_dimension_numbers<[1], [0], [0], [1], [0, 0, 1, 1], [], []>} : vector<32x64xbf16>, vector<64x64xbf16>, vector<32x64xf32> -> vector<32x64xf32>
    %219 = arith.addf %213, %218 : vector<32x64xf32>
    %c0_226 = arith.constant 0 : index
    %c4_227 = arith.constant 4 : index
    %c0_228 = arith.constant 0 : index
    %220 = vector.load %arg40[%c0_226, %c4_227, %c0_228] : memref<2x22x64xbf16, #tpu.memory_space<vmem>>, vector<2x16x64xbf16>
    %221 = vector.shape_cast %220 : vector<2x16x64xbf16> to vector<32x64xbf16>
    %c3_229 = arith.constant 3 : index
    %c0_230 = arith.constant 0 : index
    %c0_231 = arith.constant 0 : index
    %222 = vector.load %arg17[%c3_229, %c0_230, %c0_231] : memref<5x64x64xbf16, #tpu.memory_space<vmem>>, vector<1x64x64xbf16>
    %223 = vector.shape_cast %222 : vector<1x64x64xbf16> to vector<64x64xbf16>
    %cst_232 = arith.constant dense<0.000000e+00> : vector<32x64xf32>
    %224 = tpu.matmul %221, %223, %cst_232 {dimension_numbers = #tpu.dot_dimension_numbers<[1], [0], [0], [1], [0, 0, 1, 1], [], []>} : vector<32x64xbf16>, vector<64x64xbf16>, vector<32x64xf32> -> vector<32x64xf32>
    %225 = arith.addf %219, %224 : vector<32x64xf32>
    %c0_233 = arith.constant 0 : index
    %c5_234 = arith.constant 5 : index
    %c0_235 = arith.constant 0 : index
    %226 = vector.load %arg40[%c0_233, %c5_234, %c0_235] : memref<2x22x64xbf16, #tpu.memory_space<vmem>>, vector<2x16x64xbf16>
    %227 = vector.shape_cast %226 : vector<2x16x64xbf16> to vector<32x64xbf16>
    %c4_236 = arith.constant 4 : index
    %c0_237 = arith.constant 0 : index
    %c0_238 = arith.constant 0 : index
    %228 = vector.load %arg17[%c4_236, %c0_237, %c0_238] : memref<5x64x64xbf16, #tpu.memory_space<vmem>>, vector<1x64x64xbf16>
    %229 = vector.shape_cast %228 : vector<1x64x64xbf16> to vector<64x64xbf16>
    %cst_239 = arith.constant dense<0.000000e+00> : vector<32x64xf32>
    %230 = tpu.matmul %227, %229, %cst_239 {dimension_numbers = #tpu.dot_dimension_numbers<[1], [0], [0], [1], [0, 0, 1, 1], [], []>} : vector<32x64xbf16>, vector<64x64xbf16>, vector<32x64xf32> -> vector<32x64xf32>
    %231 = arith.addf %225, %230 : vector<32x64xf32>
    %c0_240 = arith.constant 0 : index
    %c0_241 = arith.constant 0 : index
    %232 = vector.load %arg18[%c0_240, %c0_241] : memref<1x64xf32, #tpu.memory_space<vmem>>, vector<1x64xf32>
    %233 = vector.broadcast %232 : vector<1x64xf32> to vector<32x64xf32>
    %234 = arith.mulf %231, %233 : vector<32x64xf32>
    %c0_242 = arith.constant 0 : index
    %c0_243 = arith.constant 0 : index
    %235 = vector.load %arg19[%c0_242, %c0_243] : memref<1x64xf32, #tpu.memory_space<vmem>>, vector<1x64xf32>
    %236 = vector.broadcast %235 : vector<1x64xf32> to vector<32x64xf32>
    %237 = arith.addf %234, %236 : vector<32x64xf32>
    %cst_244 = arith.constant 0.000000e+00 : f32
    %238 = vector.broadcast %cst_244 : f32 to vector<32x64xf32>
    %239 = arith.maximumf %237, %238 : vector<32x64xf32>
    %240 = vector.shape_cast %239 : vector<32x64xf32> to vector<2x16x64xf32>
    %241 = arith.truncf %240 : vector<2x16x64xf32> to vector<2x16x64xbf16>
    %c0_245 = arith.constant 0 : index
    %c3_246 = arith.constant 3 : index
    %c0_247 = arith.constant 0 : index
    %242 = vector.load %arg40[%c0_245, %c3_246, %c0_247] : memref<2x22x64xbf16, #tpu.memory_space<vmem>>, vector<2x16x64xbf16>
    tpu.vector_store %arg40[%c0_245, %c3_246, %c0_247], %241 {strides = array<i32>} : memref<2x22x64xbf16, #tpu.memory_space<vmem>>, vector<2x16x64xbf16>,
    %cst_248 = arith.constant 0.000000e+00 : f32
    %243 = vector.broadcast %cst_248 : f32 to vector<32x64xf32>
    %c0_249 = arith.constant 0 : index
    %c2_250 = arith.constant 2 : index
    %c0_251 = arith.constant 0 : index
    %244 = vector.load %arg40[%c0_249, %c2_250, %c0_251] : memref<2x22x64xbf16, #tpu.memory_space<vmem>>, vector<2x16x64xbf16>
    %245 = vector.shape_cast %244 : vector<2x16x64xbf16> to vector<32x64xbf16>
    %c0_252 = arith.constant 0 : index
    %c0_253 = arith.constant 0 : index
    %c0_254 = arith.constant 0 : index
    %246 = vector.load %arg20[%c0_252, %c0_253, %c0_254] : memref<3x64x64xbf16, #tpu.memory_space<vmem>>, vector<1x64x64xbf16>
    %247 = vector.shape_cast %246 : vector<1x64x64xbf16> to vector<64x64xbf16>
    %cst_255 = arith.constant dense<0.000000e+00> : vector<32x64xf32>
    %248 = tpu.matmul %245, %247, %cst_255 {dimension_numbers = #tpu.dot_dimension_numbers<[1], [0], [0], [1], [0, 0, 1, 1], [], []>} : vector<32x64xbf16>, vector<64x64xbf16>, vector<32x64xf32> -> vector<32x64xf32>
    %249 = arith.addf %243, %248 : vector<32x64xf32>
    %c0_256 = arith.constant 0 : index
    %c3_257 = arith.constant 3 : index
    %c0_258 = arith.constant 0 : index
    %250 = vector.load %arg40[%c0_256, %c3_257, %c0_258] : memref<2x22x64xbf16, #tpu.memory_space<vmem>>, vector<2x16x64xbf16>
    %251 = vector.shape_cast %250 : vector<2x16x64xbf16> to vector<32x64xbf16>
    %c1_259 = arith.constant 1 : index
    %c0_260 = arith.constant 0 : index
    %c0_261 = arith.constant 0 : index
    %252 = vector.load %arg20[%c1_259, %c0_260, %c0_261] : memref<3x64x64xbf16, #tpu.memory_space<vmem>>, vector<1x64x64xbf16>
    %253 = vector.shape_cast %252 : vector<1x64x64xbf16> to vector<64x64xbf16>
    %cst_262 = arith.constant dense<0.000000e+00> : vector<32x64xf32>
    %254 = tpu.matmul %251, %253, %cst_262 {dimension_numbers = #tpu.dot_dimension_numbers<[1], [0], [0], [1], [0, 0, 1, 1], [], []>} : vector<32x64xbf16>, vector<64x64xbf16>, vector<32x64xf32> -> vector<32x64xf32>
    %255 = arith.addf %249, %254 : vector<32x64xf32>
    %c0_263 = arith.constant 0 : index
    %c4_264 = arith.constant 4 : index
    %c0_265 = arith.constant 0 : index
    %256 = vector.load %arg40[%c0_263, %c4_264, %c0_265] : memref<2x22x64xbf16, #tpu.memory_space<vmem>>, vector<2x16x64xbf16>
    %257 = vector.shape_cast %256 : vector<2x16x64xbf16> to vector<32x64xbf16>
    %c2_266 = arith.constant 2 : index
    %c0_267 = arith.constant 0 : index
    %c0_268 = arith.constant 0 : index
    %258 = vector.load %arg20[%c2_266, %c0_267, %c0_268] : memref<3x64x64xbf16, #tpu.memory_space<vmem>>, vector<1x64x64xbf16>
    %259 = vector.shape_cast %258 : vector<1x64x64xbf16> to vector<64x64xbf16>
    %cst_269 = arith.constant dense<0.000000e+00> : vector<32x64xf32>
    %260 = tpu.matmul %257, %259, %cst_269 {dimension_numbers = #tpu.dot_dimension_numbers<[1], [0], [0], [1], [0, 0, 1, 1], [], []>} : vector<32x64xbf16>, vector<64x64xbf16>, vector<32x64xf32> -> vector<32x64xf32>
    %261 = arith.addf %255, %260 : vector<32x64xf32>
    %c0_270 = arith.constant 0 : index
    %c0_271 = arith.constant 0 : index
    %262 = vector.load %arg21[%c0_270, %c0_271] : memref<1x64xf32, #tpu.memory_space<vmem>>, vector<1x64xf32>
    %263 = vector.broadcast %262 : vector<1x64xf32> to vector<32x64xf32>
    %264 = arith.mulf %261, %263 : vector<32x64xf32>
    %c0_272 = arith.constant 0 : index
    %c0_273 = arith.constant 0 : index
    %265 = vector.load %arg22[%c0_272, %c0_273] : memref<1x64xf32, #tpu.memory_space<vmem>>, vector<1x64xf32>
    %266 = vector.broadcast %265 : vector<1x64xf32> to vector<32x64xf32>
    %267 = arith.addf %264, %266 : vector<32x64xf32>
    %c0_274 = arith.constant 0 : index
    %c0_275 = arith.constant 0 : index
    %268 = vector.load %arg23[%c0_274, %c0_275] : memref<1x64xf32, #tpu.memory_space<vmem>>, vector<1x64xf32>
    %269 = vector.broadcast %268 : vector<1x64xf32> to vector<32x64xf32>
    %270 = arith.mulf %143, %269 : vector<32x64xf32>
    %c0_276 = arith.constant 0 : index
    %c0_277 = arith.constant 0 : index
    %271 = vector.load %arg24[%c0_276, %c0_277] : memref<1x64xf32, #tpu.memory_space<vmem>>, vector<1x64xf32>
    %272 = vector.broadcast %271 : vector<1x64xf32> to vector<32x64xf32>
    %273 = arith.addf %270, %272 : vector<32x64xf32>
    %274 = arith.addf %267, %273 : vector<32x64xf32>
    %cst_278 = arith.constant 0.000000e+00 : f32
    %275 = vector.broadcast %cst_278 : f32 to vector<32x64xf32>
    %276 = arith.maximumf %274, %275 : vector<32x64xf32>
    %277 = vector.shape_cast %276 : vector<32x64xf32> to vector<2x16x64xf32>
    %278 = arith.truncf %277 : vector<2x16x64xf32> to vector<2x16x64xbf16>
    %c0_279 = arith.constant 0 : index
    %c3_280 = arith.constant 3 : index
    %c0_281 = arith.constant 0 : index
    %279 = vector.load %arg40[%c0_279, %c3_280, %c0_281] : memref<2x22x64xbf16, #tpu.memory_space<vmem>>, vector<2x16x64xbf16>
    tpu.vector_store %arg40[%c0_279, %c3_280, %c0_281], %278 {strides = array<i32>} : memref<2x22x64xbf16, #tpu.memory_space<vmem>>, vector<2x16x64xbf16>,
    %cst_282 = arith.constant 0.000000e+00 : f32
    %280 = vector.broadcast %cst_282 : f32 to vector<32x64xf32>
    %c0_283 = arith.constant 0 : index
    %c0_284 = arith.constant 0 : index
    %c0_285 = arith.constant 0 : index
    %281 = vector.load %arg40[%c0_283, %c0_284, %c0_285] : memref<2x22x64xbf16, #tpu.memory_space<vmem>>, vector<2x16x64xbf16>
    %282 = vector.shape_cast %281 : vector<2x16x64xbf16> to vector<32x64xbf16>
    %c0_286 = arith.constant 0 : index
    %c0_287 = arith.constant 0 : index
    %c0_288 = arith.constant 0 : index
    %283 = vector.load %arg25[%c0_286, %c0_287, %c0_288] : memref<7x64x64xbf16, #tpu.memory_space<vmem>>, vector<1x64x64xbf16>
    %284 = vector.shape_cast %283 : vector<1x64x64xbf16> to vector<64x64xbf16>
    %cst_289 = arith.constant dense<0.000000e+00> : vector<32x64xf32>
    %285 = tpu.matmul %282, %284, %cst_289 {dimension_numbers = #tpu.dot_dimension_numbers<[1], [0], [0], [1], [0, 0, 1, 1], [], []>} : vector<32x64xbf16>, vector<64x64xbf16>, vector<32x64xf32> -> vector<32x64xf32>
    %286 = arith.addf %280, %285 : vector<32x64xf32>
    %c0_290 = arith.constant 0 : index
    %c1_291 = arith.constant 1 : index
    %c0_292 = arith.constant 0 : index
    %287 = vector.load %arg40[%c0_290, %c1_291, %c0_292] : memref<2x22x64xbf16, #tpu.memory_space<vmem>>, vector<2x16x64xbf16>
    %288 = vector.shape_cast %287 : vector<2x16x64xbf16> to vector<32x64xbf16>
    %c1_293 = arith.constant 1 : index
    %c0_294 = arith.constant 0 : index
    %c0_295 = arith.constant 0 : index
    %289 = vector.load %arg25[%c1_293, %c0_294, %c0_295] : memref<7x64x64xbf16, #tpu.memory_space<vmem>>, vector<1x64x64xbf16>
    %290 = vector.shape_cast %289 : vector<1x64x64xbf16> to vector<64x64xbf16>
    %cst_296 = arith.constant dense<0.000000e+00> : vector<32x64xf32>
    %291 = tpu.matmul %288, %290, %cst_296 {dimension_numbers = #tpu.dot_dimension_numbers<[1], [0], [0], [1], [0, 0, 1, 1], [], []>} : vector<32x64xbf16>, vector<64x64xbf16>, vector<32x64xf32> -> vector<32x64xf32>
    %292 = arith.addf %286, %291 : vector<32x64xf32>
    %c0_297 = arith.constant 0 : index
    %c2_298 = arith.constant 2 : index
    %c0_299 = arith.constant 0 : index
    %293 = vector.load %arg40[%c0_297, %c2_298, %c0_299] : memref<2x22x64xbf16, #tpu.memory_space<vmem>>, vector<2x16x64xbf16>
    %294 = vector.shape_cast %293 : vector<2x16x64xbf16> to vector<32x64xbf16>
    %c2_300 = arith.constant 2 : index
    %c0_301 = arith.constant 0 : index
    %c0_302 = arith.constant 0 : index
    %295 = vector.load %arg25[%c2_300, %c0_301, %c0_302] : memref<7x64x64xbf16, #tpu.memory_space<vmem>>, vector<1x64x64xbf16>
    %296 = vector.shape_cast %295 : vector<1x64x64xbf16> to vector<64x64xbf16>
    %cst_303 = arith.constant dense<0.000000e+00> : vector<32x64xf32>
    %297 = tpu.matmul %294, %296, %cst_303 {dimension_numbers = #tpu.dot_dimension_numbers<[1], [0], [0], [1], [0, 0, 1, 1], [], []>} : vector<32x64xbf16>, vector<64x64xbf16>, vector<32x64xf32> -> vector<32x64xf32>
    %298 = arith.addf %292, %297 : vector<32x64xf32>
    %c0_304 = arith.constant 0 : index
    %c3_305 = arith.constant 3 : index
    %c0_306 = arith.constant 0 : index
    %299 = vector.load %arg40[%c0_304, %c3_305, %c0_306] : memref<2x22x64xbf16, #tpu.memory_space<vmem>>, vector<2x16x64xbf16>
    %300 = vector.shape_cast %299 : vector<2x16x64xbf16> to vector<32x64xbf16>
    %c3_307 = arith.constant 3 : index
    %c0_308 = arith.constant 0 : index
    %c0_309 = arith.constant 0 : index
    %301 = vector.load %arg25[%c3_307, %c0_308, %c0_309] : memref<7x64x64xbf16, #tpu.memory_space<vmem>>, vector<1x64x64xbf16>
    %302 = vector.shape_cast %301 : vector<1x64x64xbf16> to vector<64x64xbf16>
    %cst_310 = arith.constant dense<0.000000e+00> : vector<32x64xf32>
    %303 = tpu.matmul %300, %302, %cst_310 {dimension_numbers = #tpu.dot_dimension_numbers<[1], [0], [0], [1], [0, 0, 1, 1], [], []>} : vector<32x64xbf16>, vector<64x64xbf16>, vector<32x64xf32> -> vector<32x64xf32>
    %304 = arith.addf %298, %303 : vector<32x64xf32>
    %c0_311 = arith.constant 0 : index
    %c4_312 = arith.constant 4 : index
    %c0_313 = arith.constant 0 : index
    %305 = vector.load %arg40[%c0_311, %c4_312, %c0_313] : memref<2x22x64xbf16, #tpu.memory_space<vmem>>, vector<2x16x64xbf16>
    %306 = vector.shape_cast %305 : vector<2x16x64xbf16> to vector<32x64xbf16>
    %c4_314 = arith.constant 4 : index
    %c0_315 = arith.constant 0 : index
    %c0_316 = arith.constant 0 : index
    %307 = vector.load %arg25[%c4_314, %c0_315, %c0_316] : memref<7x64x64xbf16, #tpu.memory_space<vmem>>, vector<1x64x64xbf16>
    %308 = vector.shape_cast %307 : vector<1x64x64xbf16> to vector<64x64xbf16>
    %cst_317 = arith.constant dense<0.000000e+00> : vector<32x64xf32>
    %309 = tpu.matmul %306, %308, %cst_317 {dimension_numbers = #tpu.dot_dimension_numbers<[1], [0], [0], [1], [0, 0, 1, 1], [], []>} : vector<32x64xbf16>, vector<64x64xbf16>, vector<32x64xf32> -> vector<32x64xf32>
    %310 = arith.addf %304, %309 : vector<32x64xf32>
    %c0_318 = arith.constant 0 : index
    %c5_319 = arith.constant 5 : index
    %c0_320 = arith.constant 0 : index
    %311 = vector.load %arg40[%c0_318, %c5_319, %c0_320] : memref<2x22x64xbf16, #tpu.memory_space<vmem>>, vector<2x16x64xbf16>
    %312 = vector.shape_cast %311 : vector<2x16x64xbf16> to vector<32x64xbf16>
    %c5_321 = arith.constant 5 : index
    %c0_322 = arith.constant 0 : index
    %c0_323 = arith.constant 0 : index
    %313 = vector.load %arg25[%c5_321, %c0_322, %c0_323] : memref<7x64x64xbf16, #tpu.memory_space<vmem>>, vector<1x64x64xbf16>
    %314 = vector.shape_cast %313 : vector<1x64x64xbf16> to vector<64x64xbf16>
    %cst_324 = arith.constant dense<0.000000e+00> : vector<32x64xf32>
    %315 = tpu.matmul %312, %314, %cst_324 {dimension_numbers = #tpu.dot_dimension_numbers<[1], [0], [0], [1], [0, 0, 1, 1], [], []>} : vector<32x64xbf16>, vector<64x64xbf16>, vector<32x64xf32> -> vector<32x64xf32>
    %316 = arith.addf %310, %315 : vector<32x64xf32>
    %c0_325 = arith.constant 0 : index
    %c6_326 = arith.constant 6 : index
    %c0_327 = arith.constant 0 : index
    %317 = vector.load %arg40[%c0_325, %c6_326, %c0_327] : memref<2x22x64xbf16, #tpu.memory_space<vmem>>, vector<2x16x64xbf16>
    %318 = vector.shape_cast %317 : vector<2x16x64xbf16> to vector<32x64xbf16>
    %c6_328 = arith.constant 6 : index
    %c0_329 = arith.constant 0 : index
    %c0_330 = arith.constant 0 : index
    %319 = vector.load %arg25[%c6_328, %c0_329, %c0_330] : memref<7x64x64xbf16, #tpu.memory_space<vmem>>, vector<1x64x64xbf16>
    %320 = vector.shape_cast %319 : vector<1x64x64xbf16> to vector<64x64xbf16>
    %cst_331 = arith.constant dense<0.000000e+00> : vector<32x64xf32>
    %321 = tpu.matmul %318, %320, %cst_331 {dimension_numbers = #tpu.dot_dimension_numbers<[1], [0], [0], [1], [0, 0, 1, 1], [], []>} : vector<32x64xbf16>, vector<64x64xbf16>, vector<32x64xf32> -> vector<32x64xf32>
    %322 = arith.addf %316, %321 : vector<32x64xf32>
    %c0_332 = arith.constant 0 : index
    %c0_333 = arith.constant 0 : index
    %323 = vector.load %arg26[%c0_332, %c0_333] : memref<1x64xf32, #tpu.memory_space<vmem>>, vector<1x64xf32>
    %324 = vector.broadcast %323 : vector<1x64xf32> to vector<32x64xf32>
    %325 = arith.mulf %322, %324 : vector<32x64xf32>
    %c0_334 = arith.constant 0 : index
    %c0_335 = arith.constant 0 : index
    %326 = vector.load %arg27[%c0_334, %c0_335] : memref<1x64xf32, #tpu.memory_space<vmem>>, vector<1x64xf32>
    %327 = vector.broadcast %326 : vector<1x64xf32> to vector<32x64xf32>
    %328 = arith.addf %325, %327 : vector<32x64xf32>
    %cst_336 = arith.constant 0.000000e+00 : f32
    %329 = vector.broadcast %cst_336 : f32 to vector<32x64xf32>
    %330 = arith.maximumf %328, %329 : vector<32x64xf32>
    %331 = vector.shape_cast %330 : vector<32x64xf32> to vector<2x16x64xf32>
    %332 = arith.truncf %331 : vector<2x16x64xf32> to vector<2x16x64xbf16>
    %c0_337 = arith.constant 0 : index
    %c3_338 = arith.constant 3 : index
    %c0_339 = arith.constant 0 : index
    %333 = vector.load %arg40[%c0_337, %c3_338, %c0_339] : memref<2x22x64xbf16, #tpu.memory_space<vmem>>, vector<2x16x64xbf16>
    tpu.vector_store %arg40[%c0_337, %c3_338, %c0_339], %332 {strides = array<i32>} : memref<2x22x64xbf16, #tpu.memory_space<vmem>>, vector<2x16x64xbf16>,
    %cst_340 = arith.constant 0.000000e+00 : f32
    %334 = vector.broadcast %cst_340 : f32 to vector<32x64xf32>
    %c0_341 = arith.constant 0 : index
    %c1_342 = arith.constant 1 : index
    %c0_343 = arith.constant 0 : index
    %335 = vector.load %arg40[%c0_341, %c1_342, %c0_343] : memref<2x22x64xbf16, #tpu.memory_space<vmem>>, vector<2x16x64xbf16>
    %336 = vector.shape_cast %335 : vector<2x16x64xbf16> to vector<32x64xbf16>
    %c0_344 = arith.constant 0 : index
    %c0_345 = arith.constant 0 : index
    %c0_346 = arith.constant 0 : index
    %337 = vector.load %arg28[%c0_344, %c0_345, %c0_346] : memref<5x64x64xbf16, #tpu.memory_space<vmem>>, vector<1x64x64xbf16>
    %338 = vector.shape_cast %337 : vector<1x64x64xbf16> to vector<64x64xbf16>
    %cst_347 = arith.constant dense<0.000000e+00> : vector<32x64xf32>
    %339 = tpu.matmul %336, %338, %cst_347 {dimension_numbers = #tpu.dot_dimension_numbers<[1], [0], [0], [1], [0, 0, 1, 1], [], []>} : vector<32x64xbf16>, vector<64x64xbf16>, vector<32x64xf32> -> vector<32x64xf32>
    %340 = arith.addf %334, %339 : vector<32x64xf32>
    %c0_348 = arith.constant 0 : index
    %c2_349 = arith.constant 2 : index
    %c0_350 = arith.constant 0 : index
    %341 = vector.load %arg40[%c0_348, %c2_349, %c0_350] : memref<2x22x64xbf16, #tpu.memory_space<vmem>>, vector<2x16x64xbf16>
    %342 = vector.shape_cast %341 : vector<2x16x64xbf16> to vector<32x64xbf16>
    %c1_351 = arith.constant 1 : index
    %c0_352 = arith.constant 0 : index
    %c0_353 = arith.constant 0 : index
    %343 = vector.load %arg28[%c1_351, %c0_352, %c0_353] : memref<5x64x64xbf16, #tpu.memory_space<vmem>>, vector<1x64x64xbf16>
    %344 = vector.shape_cast %343 : vector<1x64x64xbf16> to vector<64x64xbf16>
    %cst_354 = arith.constant dense<0.000000e+00> : vector<32x64xf32>
    %345 = tpu.matmul %342, %344, %cst_354 {dimension_numbers = #tpu.dot_dimension_numbers<[1], [0], [0], [1], [0, 0, 1, 1], [], []>} : vector<32x64xbf16>, vector<64x64xbf16>, vector<32x64xf32> -> vector<32x64xf32>
    %346 = arith.addf %340, %345 : vector<32x64xf32>
    %c0_355 = arith.constant 0 : index
    %c3_356 = arith.constant 3 : index
    %c0_357 = arith.constant 0 : index
    %347 = vector.load %arg40[%c0_355, %c3_356, %c0_357] : memref<2x22x64xbf16, #tpu.memory_space<vmem>>, vector<2x16x64xbf16>
    %348 = vector.shape_cast %347 : vector<2x16x64xbf16> to vector<32x64xbf16>
    %c2_358 = arith.constant 2 : index
    %c0_359 = arith.constant 0 : index
    %c0_360 = arith.constant 0 : index
    %349 = vector.load %arg28[%c2_358, %c0_359, %c0_360] : memref<5x64x64xbf16, #tpu.memory_space<vmem>>, vector<1x64x64xbf16>
    %350 = vector.shape_cast %349 : vector<1x64x64xbf16> to vector<64x64xbf16>
    %cst_361 = arith.constant dense<0.000000e+00> : vector<32x64xf32>
    %351 = tpu.matmul %348, %350, %cst_361 {dimension_numbers = #tpu.dot_dimension_numbers<[1], [0], [0], [1], [0, 0, 1, 1], [], []>} : vector<32x64xbf16>, vector<64x64xbf16>, vector<32x64xf32> -> vector<32x64xf32>
    %352 = arith.addf %346, %351 : vector<32x64xf32>
    %c0_362 = arith.constant 0 : index
    %c4_363 = arith.constant 4 : index
    %c0_364 = arith.constant 0 : index
    %353 = vector.load %arg40[%c0_362, %c4_363, %c0_364] : memref<2x22x64xbf16, #tpu.memory_space<vmem>>, vector<2x16x64xbf16>
    %354 = vector.shape_cast %353 : vector<2x16x64xbf16> to vector<32x64xbf16>
    %c3_365 = arith.constant 3 : index
    %c0_366 = arith.constant 0 : index
    %c0_367 = arith.constant 0 : index
    %355 = vector.load %arg28[%c3_365, %c0_366, %c0_367] : memref<5x64x64xbf16, #tpu.memory_space<vmem>>, vector<1x64x64xbf16>
    %356 = vector.shape_cast %355 : vector<1x64x64xbf16> to vector<64x64xbf16>
    %cst_368 = arith.constant dense<0.000000e+00> : vector<32x64xf32>
    %357 = tpu.matmul %354, %356, %cst_368 {dimension_numbers = #tpu.dot_dimension_numbers<[1], [0], [0], [1], [0, 0, 1, 1], [], []>} : vector<32x64xbf16>, vector<64x64xbf16>, vector<32x64xf32> -> vector<32x64xf32>
    %358 = arith.addf %352, %357 : vector<32x64xf32>
    %c0_369 = arith.constant 0 : index
    %c5_370 = arith.constant 5 : index
    %c0_371 = arith.constant 0 : index
    %359 = vector.load %arg40[%c0_369, %c5_370, %c0_371] : memref<2x22x64xbf16, #tpu.memory_space<vmem>>, vector<2x16x64xbf16>
    %360 = vector.shape_cast %359 : vector<2x16x64xbf16> to vector<32x64xbf16>
    %c4_372 = arith.constant 4 : index
    %c0_373 = arith.constant 0 : index
    %c0_374 = arith.constant 0 : index
    %361 = vector.load %arg28[%c4_372, %c0_373, %c0_374] : memref<5x64x64xbf16, #tpu.memory_space<vmem>>, vector<1x64x64xbf16>
    %362 = vector.shape_cast %361 : vector<1x64x64xbf16> to vector<64x64xbf16>
    %cst_375 = arith.constant dense<0.000000e+00> : vector<32x64xf32>
    %363 = tpu.matmul %360, %362, %cst_375 {dimension_numbers = #tpu.dot_dimension_numbers<[1], [0], [0], [1], [0, 0, 1, 1], [], []>} : vector<32x64xbf16>, vector<64x64xbf16>, vector<32x64xf32> -> vector<32x64xf32>
    %364 = arith.addf %358, %363 : vector<32x64xf32>
    %c0_376 = arith.constant 0 : index
    %c0_377 = arith.constant 0 : index
    %365 = vector.load %arg29[%c0_376, %c0_377] : memref<1x64xf32, #tpu.memory_space<vmem>>, vector<1x64xf32>
    %366 = vector.broadcast %365 : vector<1x64xf32> to vector<32x64xf32>
    %367 = arith.mulf %364, %366 : vector<32x64xf32>
    %c0_378 = arith.constant 0 : index
    %c0_379 = arith.constant 0 : index
    %368 = vector.load %arg30[%c0_378, %c0_379] : memref<1x64xf32, #tpu.memory_space<vmem>>, vector<1x64xf32>
    %369 = vector.broadcast %368 : vector<1x64xf32> to vector<32x64xf32>
    %370 = arith.addf %367, %369 : vector<32x64xf32>
    %cst_380 = arith.constant 0.000000e+00 : f32
    %371 = vector.broadcast %cst_380 : f32 to vector<32x64xf32>
    %372 = arith.maximumf %370, %371 : vector<32x64xf32>
    %373 = vector.shape_cast %372 : vector<32x64xf32> to vector<2x16x64xf32>
    %374 = arith.truncf %373 : vector<2x16x64xf32> to vector<2x16x64xbf16>
    %c0_381 = arith.constant 0 : index
    %c3_382 = arith.constant 3 : index
    %c0_383 = arith.constant 0 : index
    %375 = vector.load %arg40[%c0_381, %c3_382, %c0_383] : memref<2x22x64xbf16, #tpu.memory_space<vmem>>, vector<2x16x64xbf16>
    tpu.vector_store %arg40[%c0_381, %c3_382, %c0_383], %374 {strides = array<i32>} : memref<2x22x64xbf16, #tpu.memory_space<vmem>>, vector<2x16x64xbf16>,
    %cst_384 = arith.constant 0.000000e+00 : f32
    %376 = vector.broadcast %cst_384 : f32 to vector<32x64xf32>
    %c0_385 = arith.constant 0 : index
    %c2_386 = arith.constant 2 : index
    %c0_387 = arith.constant 0 : index
    %377 = vector.load %arg40[%c0_385, %c2_386, %c0_387] : memref<2x22x64xbf16, #tpu.memory_space<vmem>>, vector<2x16x64xbf16>
    %378 = vector.shape_cast %377 : vector<2x16x64xbf16> to vector<32x64xbf16>
    %c0_388 = arith.constant 0 : index
    %c0_389 = arith.constant 0 : index
    %c0_390 = arith.constant 0 : index
    %379 = vector.load %arg31[%c0_388, %c0_389, %c0_390] : memref<3x64x64xbf16, #tpu.memory_space<vmem>>, vector<1x64x64xbf16>
    %380 = vector.shape_cast %379 : vector<1x64x64xbf16> to vector<64x64xbf16>
    %cst_391 = arith.constant dense<0.000000e+00> : vector<32x64xf32>
    %381 = tpu.matmul %378, %380, %cst_391 {dimension_numbers = #tpu.dot_dimension_numbers<[1], [0], [0], [1], [0, 0, 1, 1], [], []>} : vector<32x64xbf16>, vector<64x64xbf16>, vector<32x64xf32> -> vector<32x64xf32>
    %382 = arith.addf %376, %381 : vector<32x64xf32>
    %c0_392 = arith.constant 0 : index
    %c3_393 = arith.constant 3 : index
    %c0_394 = arith.constant 0 : index
    %383 = vector.load %arg40[%c0_392, %c3_393, %c0_394] : memref<2x22x64xbf16, #tpu.memory_space<vmem>>, vector<2x16x64xbf16>
    %384 = vector.shape_cast %383 : vector<2x16x64xbf16> to vector<32x64xbf16>
    %c1_395 = arith.constant 1 : index
    %c0_396 = arith.constant 0 : index
    %c0_397 = arith.constant 0 : index
    %385 = vector.load %arg31[%c1_395, %c0_396, %c0_397] : memref<3x64x64xbf16, #tpu.memory_space<vmem>>, vector<1x64x64xbf16>
    %386 = vector.shape_cast %385 : vector<1x64x64xbf16> to vector<64x64xbf16>
    %cst_398 = arith.constant dense<0.000000e+00> : vector<32x64xf32>
    %387 = tpu.matmul %384, %386, %cst_398 {dimension_numbers = #tpu.dot_dimension_numbers<[1], [0], [0], [1], [0, 0, 1, 1], [], []>} : vector<32x64xbf16>, vector<64x64xbf16>, vector<32x64xf32> -> vector<32x64xf32>
    %388 = arith.addf %382, %387 : vector<32x64xf32>
    %c0_399 = arith.constant 0 : index
    %c4_400 = arith.constant 4 : index
    %c0_401 = arith.constant 0 : index
    %389 = vector.load %arg40[%c0_399, %c4_400, %c0_401] : memref<2x22x64xbf16, #tpu.memory_space<vmem>>, vector<2x16x64xbf16>
    %390 = vector.shape_cast %389 : vector<2x16x64xbf16> to vector<32x64xbf16>
    %c2_402 = arith.constant 2 : index
    %c0_403 = arith.constant 0 : index
    %c0_404 = arith.constant 0 : index
    %391 = vector.load %arg31[%c2_402, %c0_403, %c0_404] : memref<3x64x64xbf16, #tpu.memory_space<vmem>>, vector<1x64x64xbf16>
    %392 = vector.shape_cast %391 : vector<1x64x64xbf16> to vector<64x64xbf16>
    %cst_405 = arith.constant dense<0.000000e+00> : vector<32x64xf32>
    %393 = tpu.matmul %390, %392, %cst_405 {dimension_numbers = #tpu.dot_dimension_numbers<[1], [0], [0], [1], [0, 0, 1, 1], [], []>} : vector<32x64xbf16>, vector<64x64xbf16>, vector<32x64xf32> -> vector<32x64xf32>
    %394 = arith.addf %388, %393 : vector<32x64xf32>
    %c0_406 = arith.constant 0 : index
    %c0_407 = arith.constant 0 : index
    %395 = vector.load %arg32[%c0_406, %c0_407] : memref<1x64xf32, #tpu.memory_space<vmem>>, vector<1x64xf32>
    %396 = vector.broadcast %395 : vector<1x64xf32> to vector<32x64xf32>
    %397 = arith.mulf %394, %396 : vector<32x64xf32>
    %c0_408 = arith.constant 0 : index
    %c0_409 = arith.constant 0 : index
    %398 = vector.load %arg33[%c0_408, %c0_409] : memref<1x64xf32, #tpu.memory_space<vmem>>, vector<1x64xf32>
    %399 = vector.broadcast %398 : vector<1x64xf32> to vector<32x64xf32>
    %400 = arith.addf %397, %399 : vector<32x64xf32>
    %c0_410 = arith.constant 0 : index
    %c0_411 = arith.constant 0 : index
    %401 = vector.load %arg34[%c0_410, %c0_411] : memref<1x64xf32, #tpu.memory_space<vmem>>, vector<1x64xf32>
    %402 = vector.broadcast %401 : vector<1x64xf32> to vector<32x64xf32>
    %403 = arith.mulf %276, %402 : vector<32x64xf32>
    %c0_412 = arith.constant 0 : index
    %c0_413 = arith.constant 0 : index
    %404 = vector.load %arg35[%c0_412, %c0_413] : memref<1x64xf32, #tpu.memory_space<vmem>>, vector<1x64xf32>
    %405 = vector.broadcast %404 : vector<1x64xf32> to vector<32x64xf32>
    %406 = arith.addf %403, %405 : vector<32x64xf32>
    %407 = arith.addf %400, %406 : vector<32x64xf32>
    %cst_414 = arith.constant 0.000000e+00 : f32
    %408 = vector.broadcast %cst_414 : f32 to vector<32x64xf32>
    %409 = arith.maximumf %407, %408 : vector<32x64xf32>
    %410 = vector.shape_cast %409 : vector<32x64xf32> to vector<2x16x64xf32>
    %cst_415 = arith.constant dense<0.000000e+00> : vector<2x64xf32>
    %411 = vector.multi_reduction <add>, %410, %cst_415 [1] : vector<2x16x64xf32> to vector<2x64xf32>
    %cst_416 = arith.constant 1.600000e+01 : f32
    %412 = vector.broadcast %cst_416 : f32 to vector<2x64xf32>
    %413 = arith.divf %411, %412 : vector<2x64xf32>
    %c0_417 = arith.constant 0 : index
    %c0_418 = arith.constant 0 : index
    %414 = vector.load %arg36[%c0_417, %c0_418] : memref<64x3xf32, #tpu.memory_space<vmem>>, vector<64x3xf32>
    %cst_419 = arith.constant dense<0.000000e+00> : vector<2x3xf32>
    %415 = tpu.matmul %413, %414, %cst_419 {dimension_numbers = #tpu.dot_dimension_numbers<[1], [0], [0], [1], [0, 0, 1, 1], [], []>} : vector<2x64xf32>, vector<64x3xf32>, vector<2x3xf32> -> vector<2x3xf32>
    %c0_420 = arith.constant 0 : index
    %c0_421 = arith.constant 0 : index
    %416 = vector.load %arg37[%c0_420, %c0_421] : memref<1x3xf32, #tpu.memory_space<vmem>>, vector<1x3xf32>
    %417 = vector.broadcast %416 : vector<1x3xf32> to vector<2x3xf32>
    %418 = arith.addf %415, %417 : vector<2x3xf32>
    %cst_422 = arith.constant dense<0xFF800000> : vector<2xf32>
    %419 = vector.multi_reduction <maximumf>, %418, %cst_422 [1] : vector<2x3xf32> to vector<2xf32>
    %420 = vector.shape_cast %419 : vector<2xf32> to vector<2x1xf32>
    %421 = vector.broadcast %420 : vector<2x1xf32> to vector<2x3xf32>
    %422 = arith.subf %418, %421 : vector<2x3xf32>
    %423 = math.exp %422 : vector<2x3xf32>
    %cst_423 = arith.constant dense<0.000000e+00> : vector<2xf32>
    %424 = vector.multi_reduction <add>, %423, %cst_423 [1] : vector<2x3xf32> to vector<2xf32>
    %425 = vector.shape_cast %424 : vector<2xf32> to vector<2x1xf32>
    %426 = math.log %425 : vector<2x1xf32>
    %427 = arith.addf %420, %426 : vector<2x1xf32>
    %428 = vector.broadcast %427 : vector<2x1xf32> to vector<2x3xf32>
    %429 = arith.subf %418, %428 : vector<2x3xf32>
    %c0_424 = arith.constant 0 : index
    %c0_425 = arith.constant 0 : index
    %430 = vector.load %arg38[%c0_424, %c0_425] : memref<2x3xf32, #tpu.memory_space<vmem>>, vector<2x3xf32>
    tpu.vector_store %arg38[%c0_424, %c0_425], %429 {strides = array<i32>} : memref<2x3xf32, #tpu.memory_space<vmem>>, vector<2x3xf32>,
    return
  }
  func.func @transform_0(%arg0: i32) -> (i32, i32, i32) {
    %c0_i32 = arith.constant 0 : i32
    %c0_i32_0 = arith.constant 0 : i32
    %c0_i32_1 = arith.constant 0 : i32
    return %arg0, %c0_i32, %c0_i32_0 : i32, i32, i32
  }
  func.func @transform_1(%arg0: i32) -> (i32, i32, i32) {
    %c0_i32 = arith.constant 0 : i32
    %c0_i32_0 = arith.constant 0 : i32
    %c0_i32_1 = arith.constant 0 : i32
    %c0_i32_2 = arith.constant 0 : i32
    return %c0_i32, %c0_i32_0, %c0_i32_1 : i32, i32, i32
  }
  func.func @transform_2(%arg0: i32) -> (i32, i32) {
    %c0_i32 = arith.constant 0 : i32
    %c0_i32_0 = arith.constant 0 : i32
    %c0_i32_1 = arith.constant 0 : i32
    return %c0_i32, %c0_i32_0 : i32, i32
  }
  func.func @transform_3(%arg0: i32) -> (i32, i32) {
    %c0_i32 = arith.constant 0 : i32
    %c0_i32_0 = arith.constant 0 : i32
    %c0_i32_1 = arith.constant 0 : i32
    return %c0_i32, %c0_i32_0 : i32, i32
  }
  func.func @transform_4(%arg0: i32) -> (i32, i32, i32) {
    %c0_i32 = arith.constant 0 : i32
    %c0_i32_0 = arith.constant 0 : i32
    %c0_i32_1 = arith.constant 0 : i32
    %c0_i32_2 = arith.constant 0 : i32
    return %c0_i32, %c0_i32_0, %c0_i32_1 : i32, i32, i32
  }
  func.func @transform_5(%arg0: i32) -> (i32, i32) {
    %c0_i32 = arith.constant 0 : i32
    %c0_i32_0 = arith.constant 0 : i32
    %c0_i32_1 = arith.constant 0 : i32
    return %c0_i32, %c0_i32_0 : i32, i32
  }
  func.func @transform_6(%arg0: i32) -> (i32, i32) {
    %c0_i32 = arith.constant 0 : i32
    %c0_i32_0 = arith.constant 0 : i32
    %c0_i32_1 = arith.constant 0 : i32
    return %c0_i32, %c0_i32_0 : i32, i32
  }
  func.func @transform_7(%arg0: i32) -> (i32, i32, i32) {
    %c0_i32 = arith.constant 0 : i32
    %c0_i32_0 = arith.constant 0 : i32
    %c0_i32_1 = arith.constant 0 : i32
    %c0_i32_2 = arith.constant 0 : i32
    return %c0_i32, %c0_i32_0, %c0_i32_1 : i32, i32, i32
  }
  func.func @transform_8(%arg0: i32) -> (i32, i32) {
    %c0_i32 = arith.constant 0 : i32
    %c0_i32_0 = arith.constant 0 : i32
    %c0_i32_1 = arith.constant 0 : i32
    return %c0_i32, %c0_i32_0 : i32, i32
  }
  func.func @transform_9(%arg0: i32) -> (i32, i32) {
    %c0_i32 = arith.constant 0 : i32
    %c0_i32_0 = arith.constant 0 : i32
    %c0_i32_1 = arith.constant 0 : i32
    return %c0_i32, %c0_i32_0 : i32, i32
  }
  func.func @transform_10(%arg0: i32) -> (i32, i32, i32) {
    %c0_i32 = arith.constant 0 : i32
    %c0_i32_0 = arith.constant 0 : i32
    %c0_i32_1 = arith.constant 0 : i32
    %c0_i32_2 = arith.constant 0 : i32
    return %c0_i32, %c0_i32_0, %c0_i32_1 : i32, i32, i32
  }
  func.func @transform_11(%arg0: i32) -> (i32, i32) {
    %c0_i32 = arith.constant 0 : i32
    %c0_i32_0 = arith.constant 0 : i32
    %c0_i32_1 = arith.constant 0 : i32
    return %c0_i32, %c0_i32_0 : i32, i32
  }
  func.func @transform_12(%arg0: i32) -> (i32, i32) {
    %c0_i32 = arith.constant 0 : i32
    %c0_i32_0 = arith.constant 0 : i32
    %c0_i32_1 = arith.constant 0 : i32
    return %c0_i32, %c0_i32_0 : i32, i32
  }
  func.func @transform_13(%arg0: i32) -> (i32, i32, i32) {
    %c0_i32 = arith.constant 0 : i32
    %c0_i32_0 = arith.constant 0 : i32
    %c0_i32_1 = arith.constant 0 : i32
    %c0_i32_2 = arith.constant 0 : i32
    return %c0_i32, %c0_i32_0, %c0_i32_1 : i32, i32, i32
  }
  func.func @transform_14(%arg0: i32) -> (i32, i32) {
    %c0_i32 = arith.constant 0 : i32
    %c0_i32_0 = arith.constant 0 : i32
    %c0_i32_1 = arith.constant 0 : i32
    return %c0_i32, %c0_i32_0 : i32, i32
  }
  func.func @transform_15(%arg0: i32) -> (i32, i32) {
    %c0_i32 = arith.constant 0 : i32
    %c0_i32_0 = arith.constant 0 : i32
    %c0_i32_1 = arith.constant 0 : i32
    return %c0_i32, %c0_i32_0 : i32, i32
  }
  func.func @transform_16(%arg0: i32) -> (i32, i32, i32) {
    %c0_i32 = arith.constant 0 : i32
    %c0_i32_0 = arith.constant 0 : i32
    %c0_i32_1 = arith.constant 0 : i32
    %c0_i32_2 = arith.constant 0 : i32
    return %c0_i32, %c0_i32_0, %c0_i32_1 : i32, i32, i32
  }
  func.func @transform_17(%arg0: i32) -> (i32, i32) {
    %c0_i32 = arith.constant 0 : i32
    %c0_i32_0 = arith.constant 0 : i32
    %c0_i32_1 = arith.constant 0 : i32
    return %c0_i32, %c0_i32_0 : i32, i32
  }
  func.func @transform_18(%arg0: i32) -> (i32, i32) {
    %c0_i32 = arith.constant 0 : i32
    %c0_i32_0 = arith.constant 0 : i32
    %c0_i32_1 = arith.constant 0 : i32
    return %c0_i32, %c0_i32_0 : i32, i32
  }
  func.func @transform_19(%arg0: i32) -> (i32, i32, i32) {
    %c0_i32 = arith.constant 0 : i32
    %c0_i32_0 = arith.constant 0 : i32
    %c0_i32_1 = arith.constant 0 : i32
    %c0_i32_2 = arith.constant 0 : i32
    return %c0_i32, %c0_i32_0, %c0_i32_1 : i32, i32, i32
  }
  func.func @transform_20(%arg0: i32) -> (i32, i32) {
    %c0_i32 = arith.constant 0 : i32
    %c0_i32_0 = arith.constant 0 : i32
    %c0_i32_1 = arith.constant 0 : i32
    return %c0_i32, %c0_i32_0 : i32, i32
  }
  func.func @transform_21(%arg0: i32) -> (i32, i32) {
    %c0_i32 = arith.constant 0 : i32
    %c0_i32_0 = arith.constant 0 : i32
    %c0_i32_1 = arith.constant 0 : i32
    return %c0_i32, %c0_i32_0 : i32, i32
  }
  func.func @transform_22(%arg0: i32) -> (i32, i32) {
    %c0_i32 = arith.constant 0 : i32
    %c0_i32_0 = arith.constant 0 : i32
    %c0_i32_1 = arith.constant 0 : i32
    return %c0_i32, %c0_i32_0 : i32, i32
  }
  func.func @transform_23(%arg0: i32) -> (i32, i32) {
    %c0_i32 = arith.constant 0 : i32
    %c0_i32_0 = arith.constant 0 : i32
    %c0_i32_1 = arith.constant 0 : i32
    return %c0_i32, %c0_i32_0 : i32, i32
  }
  func.func @transform_24(%arg0: i32) -> (i32, i32, i32) {
    %c0_i32 = arith.constant 0 : i32
    %c0_i32_0 = arith.constant 0 : i32
    %c0_i32_1 = arith.constant 0 : i32
    %c0_i32_2 = arith.constant 0 : i32
    return %c0_i32, %c0_i32_0, %c0_i32_1 : i32, i32, i32
  }
  func.func @transform_25(%arg0: i32) -> (i32, i32) {
    %c0_i32 = arith.constant 0 : i32
    %c0_i32_0 = arith.constant 0 : i32
    %c0_i32_1 = arith.constant 0 : i32
    return %c0_i32, %c0_i32_0 : i32, i32
  }
  func.func @transform_26(%arg0: i32) -> (i32, i32) {
    %c0_i32 = arith.constant 0 : i32
    %c0_i32_0 = arith.constant 0 : i32
    %c0_i32_1 = arith.constant 0 : i32
    return %c0_i32, %c0_i32_0 : i32, i32
  }
  func.func @transform_27(%arg0: i32) -> (i32, i32, i32) {
    %c0_i32 = arith.constant 0 : i32
    %c0_i32_0 = arith.constant 0 : i32
    %c0_i32_1 = arith.constant 0 : i32
    %c0_i32_2 = arith.constant 0 : i32
    return %c0_i32, %c0_i32_0, %c0_i32_1 : i32, i32, i32
  }
  func.func @transform_28(%arg0: i32) -> (i32, i32) {
    %c0_i32 = arith.constant 0 : i32
    %c0_i32_0 = arith.constant 0 : i32
    %c0_i32_1 = arith.constant 0 : i32
    return %c0_i32, %c0_i32_0 : i32, i32
  }
  func.func @transform_29(%arg0: i32) -> (i32, i32) {
    %c0_i32 = arith.constant 0 : i32
    %c0_i32_0 = arith.constant 0 : i32
    %c0_i32_1 = arith.constant 0 : i32
    return %c0_i32, %c0_i32_0 : i32, i32
  }
  func.func @transform_30(%arg0: i32) -> (i32, i32, i32) {
    %c0_i32 = arith.constant 0 : i32
    %c0_i32_0 = arith.constant 0 : i32
    %c0_i32_1 = arith.constant 0 : i32
    %c0_i32_2 = arith.constant 0 : i32
    return %c0_i32, %c0_i32_0, %c0_i32_1 : i32, i32, i32
  }
  func.func @transform_31(%arg0: i32) -> (i32, i32) {
    %c0_i32 = arith.constant 0 : i32
    %c0_i32_0 = arith.constant 0 : i32
    %c0_i32_1 = arith.constant 0 : i32
    return %c0_i32, %c0_i32_0 : i32, i32
  }
  func.func @transform_32(%arg0: i32) -> (i32, i32) {
    %c0_i32 = arith.constant 0 : i32
    %c0_i32_0 = arith.constant 0 : i32
    %c0_i32_1 = arith.constant 0 : i32
    return %c0_i32, %c0_i32_0 : i32, i32
  }
  func.func @transform_33(%arg0: i32) -> (i32, i32) {
    %c0_i32 = arith.constant 0 : i32
    %c0_i32_0 = arith.constant 0 : i32
    %c0_i32_1 = arith.constant 0 : i32
    return %c0_i32, %c0_i32_0 : i32, i32
  }
  func.func @transform_34(%arg0: i32) -> (i32, i32) {
    %c0_i32 = arith.constant 0 : i32
    %c0_i32_0 = arith.constant 0 : i32
    %c0_i32_1 = arith.constant 0 : i32
    return %c0_i32, %c0_i32_0 : i32, i32
  }
  func.func @transform_35(%arg0: i32) -> (i32, i32) {
    %c0_i32 = arith.constant 0 : i32
    %c0_i32_0 = arith.constant 0 : i32
    %c0_i32_1 = arith.constant 0 : i32
    return %c0_i32, %c0_i32_0 : i32, i32
  }
  func.func @transform_36(%arg0: i32) -> (i32, i32) {
    %c0_i32 = arith.constant 0 : i32
    %c0_i32_0 = arith.constant 0 : i32
    %c0_i32_1 = arith.constant 0 : i32
    return %c0_i32, %c0_i32_0 : i32, i32
  }
  func.func @transform_37(%arg0: i32) -> (i32, i32) {
    %c0_i32 = arith.constant 0 : i32
    %c0_i32_0 = arith.constant 0 : i32
    return %arg0, %c0_i32 : i32, i32
  }
}

</mosaic_0001>

<llo_original>
// kernel: resnet_forward.1
$region0: #{resnet_forward.1}
  #allocation0 [shape = 'u32[]', space=smem, size = 0x4, offset = 0x4, fixed_abs, tag = 'smem constant byte address 0x4 - core index']
  #allocation1 [shape = 'u32[144,128]{1,0:T(1,128)}', space=vmem, size = 0x12000, scoped, tag = 'internal scratch']
  #allocation2 [shape = 'bf16[2,22,4]{2,1,0:T(8,128)(2,1)}', space=vmem, size = 0x3000, scoped, tag = 'scratch operand']
  #allocation3 [shape = 'bf16[2,22,64]{2,1,0:T(8,128)(2,1)}', space=vmem, size = 0x3000, scoped, tag = 'scratch operand']
  %s0 = inlined_call_operand.smem [shape: u32[38], index: -1, kind: input, shape index: {}]
  %s1 = sld [smem:[%s0]]
  %s2 = scalar_lea.smem %s0, 1
  %s3 = sld [smem:[%s2]]
  %s4 = scalar_lea.smem %s0, 2
  %s5 = sld [smem:[%s4]]
  %s6 = scalar_lea.smem %s0, 3
  %s7 = sld [smem:[%s6]]
  %s8 = scalar_lea.smem %s0, 4
  %s9 = sld [smem:[%s8]]
  %s10 = scalar_lea.smem %s0, 5
  %s11 = sld [smem:[%s10]]
  %s12 = scalar_lea.smem %s0, 6
  %s13 = sld [smem:[%s12]]
  %s14 = scalar_lea.smem %s0, 7
  %s15 = sld [smem:[%s14]]
  %s16 = scalar_lea.smem %s0, 8
  %s17 = sld [smem:[%s16]]
  %s18 = scalar_lea.smem %s0, 9
  %s19 = sld [smem:[%s18]]
  %s20 = scalar_lea.smem %s0, 10
  %s21 = sld [smem:[%s20]]
  %s22 = scalar_lea.smem %s0, 11
  %s23 = sld [smem:[%s22]]
  %s24 = scalar_lea.smem %s0, 12
  %s25 = sld [smem:[%s24]]
  %s26 = scalar_lea.smem %s0, 13
  %s27 = sld [smem:[%s26]]
  %s28 = scalar_lea.smem %s0, 14
  %s29 = sld [smem:[%s28]]
  %s30 = scalar_lea.smem %s0, 15
  %s31 = sld [smem:[%s30]]
  %s32 = scalar_lea.smem %s0, 16
  %s33 = sld [smem:[%s32]]
  %s34 = scalar_lea.smem %s0, 17
  %s35 = sld [smem:[%s34]]
  %s36 = scalar_lea.smem %s0, 18
  %s37 = sld [smem:[%s36]]
  %s38 = scalar_lea.smem %s0, 19
  %s39 = sld [smem:[%s38]]
  %s40 = scalar_lea.smem %s0, 20
  %s41 = sld [smem:[%s40]]
  %s42 = scalar_lea.smem %s0, 21
  %s43 = sld [smem:[%s42]]
  %s44 = scalar_lea.smem %s0, 22
  %s45 = sld [smem:[%s44]]
  %s46 = scalar_lea.smem %s0, 23
  %s47 = sld [smem:[%s46]]
  %s48 = scalar_lea.smem %s0, 24
  %s49 = sld [smem:[%s48]]
  %s50 = scalar_lea.smem %s0, 25
  %s51 = sld [smem:[%s50]]
  %s52 = scalar_lea.smem %s0, 26
  %s53 = sld [smem:[%s52]]
  %s54 = scalar_lea.smem %s0, 27
  %s55 = sld [smem:[%s54]]
  %s56 = scalar_lea.smem %s0, 28
  %s57 = sld [smem:[%s56]]
  %s58 = scalar_lea.smem %s0, 29
  %s59 = sld [smem:[%s58]]
  %s60 = scalar_lea.smem %s0, 30
  %s61 = sld [smem:[%s60]]
  %s62 = scalar_lea.smem %s0, 31
  %s63 = sld [smem:[%s62]]
  %s64 = scalar_lea.smem %s0, 32
  %s65 = sld [smem:[%s64]]
  %s66 = scalar_lea.smem %s0, 33
  %s67 = sld [smem:[%s66]]
  %s68 = scalar_lea.smem %s0, 34
  %s69 = sld [smem:[%s68]]
  %s70 = scalar_lea.smem %s0, 35
  %s71 = sld [smem:[%s70]]
  %s72 = scalar_lea.smem %s0, 36
  %s73 = sld [smem:[%s72]]
  %s74 = scalar_lea.smem %s0, 37
  %s75 = sld [smem:[%s74]]
  %s76 = sld [smem:[#allocation0]]
  $region226: #{resnet_forward.1} parent=0
    _
  %s78 = ssub.s32 1, %s76
  %s79 = scalar_select 0, %s78, %s76
  $region1: #{resnet_forward.1} parent=0
    #allocation4 [shape = 'u8[7168]{0}', space=vmem, size = 0x1c00, scoped, tag = 'input window, operand 1, single buffered']
    #allocation5 [shape = 's32[1]{0}', space=sflag, size = 0x4, scoped, tag = 'scoped memory for resnet_forward.1']
    #allocation6 [shape = 's32[1]{0}', space=sflag, size = 0x4, scoped, tag = 'scoped memory for resnet_forward.1']
    #allocation7 [shape = 'u8[81920]{0}', space=vmem, size = 0x14000, scoped, tag = 'input window, operand 4, single buffered']
    #allocation8 [shape = 's32[1]{0}', space=sflag, size = 0x4, scoped, tag = 'scoped memory for resnet_forward.1']
    #allocation9 [shape = 'u8[512]{0}', space=vmem, size = 0x400, scoped, tag = 'input window, operand 5, single buffered']
    #allocation10 [shape = 'u8[512]{0}', space=vmem, size = 0x400, scoped, tag = 'input window, operand 6, single buffered']
    #allocation11 [shape = 's32[1]{0}', space=sflag, size = 0x4, scoped, tag = 'scoped memory for resnet_forward.1']
    #allocation12 [shape = 'u8[49152]{0}', space=vmem, size = 0xc000, scoped, tag = 'input window, operand 7, single buffered']
    #allocation13 [shape = 'u8[512]{0}', space=vmem, size = 0x400, scoped, tag = 'input window, operand 8, single buffered']
    #allocation14 [shape = 's32[1]{0}', space=sflag, size = 0x4, scoped, tag = 'scoped memory for resnet_forward.1']
    #allocation15 [shape = 'u8[512]{0}', space=vmem, size = 0x400, scoped, tag = 'input window, operand 9, single buffered']
    #allocation16 [shape = 'u8[512]{0}', space=vmem, size = 0x400, scoped, tag = 'input window, operand 11, single buffered']
    #allocation17 [shape = 's32[1]{0}', space=sflag, size = 0x4, scoped, tag = 'scoped memory for resnet_forward.1']
    #allocation18 [shape = 'u8[512]{0}', space=vmem, size = 0x400, scoped, tag = 'input window, operand 12, single buffered']
    #allocation19 [shape = 'u8[114688]{0}', space=vmem, size = 0x1c000, scoped, tag = 'input window, operand 13, single buffered']
    #allocation20 [shape = 's32[1]{0}', space=sflag, size = 0x4, scoped, tag = 'scoped memory for resnet_forward.1']
    #allocation21 [shape = 'u8[512]{0}', space=vmem, size = 0x400, scoped, tag = 'input window, operand 14, single buffered']
    #allocation22 [shape = 'u8[512]{0}', space=vmem, size = 0x400, scoped, tag = 'input window, operand 15, single buffered']
    #allocation23 [shape = 's32[1]{0}', space=sflag, size = 0x4, scoped, tag = 'scoped memory for resnet_forward.1']
    #allocation24 [shape = 'u8[512]{0}', space=vmem, size = 0x400, scoped, tag = 'input window, operand 17, single buffered']
    #allocation25 [shape = 'u8[49152]{0}', space=vmem, size = 0xc000, scoped, tag = 'input window, operand 19, single buffered']
    #allocation26 [shape = 's32[1]{0}', space=sflag, size = 0x4, scoped, tag = 'scoped memory for resnet_forward.1']
    #allocation27 [shape = 'u8[114688]{0}', space=vmem, size = 0x1c000, scoped, tag = 'input window, operand 24, single buffered']
    #allocation28 [shape = 'u8[81920]{0}', space=vmem, size = 0x14000, scoped, tag = 'input window, operand 27, single buffered']
    #allocation29 [shape = 's32[1]{0}', space=sflag, size = 0x4, scoped, tag = 'scoped memory for resnet_forward.1']
    #allocation30 [shape = 'u8[49152]{0}', space=vmem, size = 0xc000, scoped, tag = 'input window, operand 30, single buffered']
    #allocation31 [shape = 'u8[1024]{0}', space=vmem, size = 0x400, scoped, tag = 'output window, operand 0, single buffered']
    %80 = vsyncpa [#allocation5], 0
    %81 = vsyncpa [#allocation8], 0
    %82 = vsyncpa [#allocation11], 0
    %83 = vsyncpa [#allocation14], 0
    %84 = vsyncpa [#allocation17], 0
    %85 = vsyncpa [#allocation20], 0
    %86 = vsyncpa [#allocation23], 0
    %87 = vsyncpa [#allocation26], 0
    %88 = vsyncpa [#allocation29], 0
    %89 = vsyncpa [#allocation6], 0
    // Predicated region
    $region2: #{resnet_forward.1} parent=1 // pred_check
      _
    $region3: #{resnet_forward.1} parent=1 // pred_check_branch
      %91 = sbr.rel (0) target = $region5
    $region4: #{resnet_forward.1} parent=1 // pred_region
      _
    $region5: #{resnet_forward.1} parent=1 // pred_fallthru
      _
    // Predicated region
    $region6: #{resnet_forward.1} parent=1 // pred_check
      _
    $region7: #{resnet_forward.1} parent=1 // pred_check_branch
      %93 = sbr.rel (0) target = $region9
    $region8: #{resnet_forward.1} parent=1 // pred_region
      %s95 = ssub.s32 224, 224
      %96 = vsyncadd [#allocation5], %s95
      %s97 = sshll.u32 [#allocation4], 4
      %s98 = int_to_ptr.vmem [resolvable:$true] %s97
      %103 = dma.hbm_to_vmem [thread:$0]  %s3, 224, %s98, [#allocation5], 32, 32, 2
    $region9: #{resnet_forward.1} parent=1 // pred_fallthru
      _
    // Predicated region
    $region10: #{resnet_forward.1} parent=1 // pred_check
      _
    $region11: #{resnet_forward.1} parent=1 // pred_check_branch
      %105 = sbr.rel (0) target = $region13
    $region12: #{resnet_forward.1} parent=1 // pred_region
      _
    $region13: #{resnet_forward.1} parent=1 // pred_fallthru
      _
    // Predicated region
    $region14: #{resnet_forward.1} parent=1 // pred_check
      _
    $region15: #{resnet_forward.1} parent=1 // pred_check_branch
      %107 = sbr.rel (0) target = $region17
    $region16: #{resnet_forward.1} parent=1 // pred_region
      _
    $region17: #{resnet_forward.1} parent=1 // pred_fallthru
      _
    // Predicated region
    $region18: #{resnet_forward.1} parent=1 // pred_check
      _
    $region19: #{resnet_forward.1} parent=1 // pred_check_branch
      %109 = sbr.rel (0) target = $region21
    $region20: #{resnet_forward.1} parent=1 // pred_region
      %s111 = ssub.s32 2560, 2560
      %112 = vsyncadd [#allocation8], %s111
      %s113 = sshll.u32 [#allocation7], 4
      %s114 = int_to_ptr.vmem [resolvable:$true] %s113
      %119 = dma.hbm_to_vmem [thread:$0]  %s9, 2560, %s114, [#allocation8], 64, 64, 4
    $region21: #{resnet_forward.1} parent=1 // pred_fallthru
      _
    // Predicated region
    $region22: #{resnet_forward.1} parent=1 // pred_check
      _
    $region23: #{resnet_forward.1} parent=1 // pred_check_branch
      %121 = sbr.rel (0) target = $region25
    $region24: #{resnet_forward.1} parent=1 // pred_region
      %s123 = ssub.s32 16, 16
      %124 = vsyncadd [#allocation8], %s123
      %s126 = sshll.u32 [#allocation9], 4
      %s127 = int_to_ptr.vmem [resolvable:$true] %s126
      %129 = dma.hbm_to_vmem [thread:$0]  %s11, 16, %s127, [#allocation8]
    $region25: #{resnet_forward.1} parent=1 // pred_fallthru
      _
    // Predicated region
    $region26: #{resnet_forward.1} parent=1 // pred_check
      _
    $region27: #{resnet_forward.1} parent=1 // pred_check_branch
      %131 = sbr.rel (0) target = $region29
    $region28: #{resnet_forward.1} parent=1 // pred_region
      %s133 = ssub.s32 16, 16
      %134 = vsyncadd [#allocation11], %s133
      %s136 = sshll.u32 [#allocation10], 4
      %s137 = int_to_ptr.vmem [resolvable:$true] %s136
      %139 = dma.hbm_to_vmem [thread:$0]  %s13, 16, %s137, [#allocation11]
    $region29: #{resnet_forward.1} parent=1 // pred_fallthru
      _
    // Predicated region
    $region30: #{resnet_forward.1} parent=1 // pred_check
      _
    $region31: #{resnet_forward.1} parent=1 // pred_check_branch
      %141 = sbr.rel (0) target = $region33
    $region32: #{resnet_forward.1} parent=1 // pred_region
      %s143 = ssub.s32 1536, 1536
      %144 = vsyncadd [#allocation11], %s143
      %s145 = sshll.u32 [#allocation12], 4
      %s146 = int_to_ptr.vmem [resolvable:$true] %s145
      %151 = dma.hbm_to_vmem [thread:$0]  %s15, 1536, %s146, [#allocation11], 64, 64, 4
    $region33: #{resnet_forward.1} parent=1 // pred_fallthru
      _
    // Predicated region
    $region34: #{resnet_forward.1} parent=1 // pred_check
      _
    $region35: #{resnet_forward.1} parent=1 // pred_check_branch
      %153 = sbr.rel (0) target = $region37
    $region36: #{resnet_forward.1} parent=1 // pred_region
      %s155 = ssub.s32 16, 16
      %156 = vsyncadd [#allocation14], %s155
      %s158 = sshll.u32 [#allocation13], 4
      %s159 = int_to_ptr.vmem [resolvable:$true] %s158
      %161 = dma.hbm_to_vmem [thread:$0]  %s17, 16, %s159, [#allocation14]
    $region37: #{resnet_forward.1} parent=1 // pred_fallthru
      _
    // Predicated region
    $region38: #{resnet_forward.1} parent=1 // pred_check
      _
    $region39: #{resnet_forward.1} parent=1 // pred_check_branch
      %163 = sbr.rel (0) target = $region41
    $region40: #{resnet_forward.1} parent=1 // pred_region
      %s165 = ssub.s32 16, 16
      %166 = vsyncadd [#allocation14], %s165
      %s168 = sshll.u32 [#allocation15], 4
      %s169 = int_to_ptr.vmem [resolvable:$true] %s168
      %171 = dma.hbm_to_vmem [thread:$0]  %s19, 16, %s169, [#allocation14]
    $region41: #{resnet_forward.1} parent=1 // pred_fallthru
      _
    // Predicated region
    $region42: #{resnet_forward.1} parent=1 // pred_check
      _
    $region43: #{resnet_forward.1} parent=1 // pred_check_branch
      %173 = sbr.rel (0) target = $region45
    $region44: #{resnet_forward.1} parent=1 // pred_region
      _
    $region45: #{resnet_forward.1} parent=1 // pred_fallthru
      _
    // Predicated region
    $region46: #{resnet_forward.1} parent=1 // pred_check
      _
    $region47: #{resnet_forward.1} parent=1 // pred_check_branch
      %175 = sbr.rel (0) target = $region49
    $region48: #{resnet_forward.1} parent=1 // pred_region
      %s177 = ssub.s32 16, 16
      %178 = vsyncadd [#allocation17], %s177
      %s180 = sshll.u32 [#allocation16], 4
      %s181 = int_to_ptr.vmem [resolvable:$true] %s180
      %183 = dma.hbm_to_vmem [thread:$0]  %s23, 16, %s181, [#allocation17]
    $region49: #{resnet_forward.1} parent=1 // pred_fallthru
      _
    // Predicated region
    $region50: #{resnet_forward.1} parent=1 // pred_check
      _
    $region51: #{resnet_forward.1} parent=1 // pred_check_branch
      %185 = sbr.rel (0) target = $region53
    $region52: #{resnet_forward.1} parent=1 // pred_region
      %s187 = ssub.s32 16, 16
      %188 = vsyncadd [#allocation17], %s187
      %s190 = sshll.u32 [#allocation18], 4
      %s191 = int_to_ptr.vmem [resolvable:$true] %s190
      %193 = dma.hbm_to_vmem [thread:$0]  %s25, 16, %s191, [#allocation17]
    $region53: #{resnet_forward.1} parent=1 // pred_fallthru
      _
    // Predicated region
    $region54: #{resnet_forward.1} parent=1 // pred_check
      _
    $region55: #{resnet_forward.1} parent=1 // pred_check_branch
      %195 = sbr.rel (0) target = $region57
    $region56: #{resnet_forward.1} parent=1 // pred_region
      %s197 = ssub.s32 3584, 3584
      %198 = vsyncadd [#allocation20], %s197
      %s199 = sshll.u32 [#allocation19], 4
      %s200 = int_to_ptr.vmem [resolvable:$true] %s199
      %205 = dma.hbm_to_vmem [thread:$0]  %s27, 3584, %s200, [#allocation20], 64, 64, 4
    $region57: #{resnet_forward.1} parent=1 // pred_fallthru
      _
    // Predicated region
    $region58: #{resnet_forward.1} parent=1 // pred_check
      _
    $region59: #{resnet_forward.1} parent=1 // pred_check_branch
      %207 = sbr.rel (0) target = $region61
    $region60: #{resnet_forward.1} parent=1 // pred_region
      %s209 = ssub.s32 16, 16
      %210 = vsyncadd [#allocation20], %s209
      %s212 = sshll.u32 [#allocation21], 4
      %s213 = int_to_ptr.vmem [resolvable:$true] %s212
      %215 = dma.hbm_to_vmem [thread:$0]  %s29, 16, %s213, [#allocation20]
    $region61: #{resnet_forward.1} parent=1 // pred_fallthru
      _
    // Predicated region
    $region62: #{resnet_forward.1} parent=1 // pred_check
      _
    $region63: #{resnet_forward.1} parent=1 // pred_check_branch
      %217 = sbr.rel (0) target = $region65
    $region64: #{resnet_forward.1} parent=1 // pred_region
      %s219 = ssub.s32 16, 16
      %220 = vsyncadd [#allocation23], %s219
      %s222 = sshll.u32 [#allocation22], 4
      %s223 = int_to_ptr.vmem [resolvable:$true] %s222
      %225 = dma.hbm_to_vmem [thread:$0]  %s31, 16, %s223, [#allocation23]
    $region65: #{resnet_forward.1} parent=1 // pred_fallthru
      _
    // Predicated region
    $region66: #{resnet_forward.1} parent=1 // pred_check
      _
    $region67: #{resnet_forward.1} parent=1 // pred_check_branch
      %227 = sbr.rel (0) target = $region69
    $region68: #{resnet_forward.1} parent=1 // pred_region
      _
    $region69: #{resnet_forward.1} parent=1 // pred_fallthru
      _
    // Predicated region
    $region70: #{resnet_forward.1} parent=1 // pred_check
      _
    $region71: #{resnet_forward.1} parent=1 // pred_check_branch
      %229 = sbr.rel (0) target = $region73
    $region72: #{resnet_forward.1} parent=1 // pred_region
      %s231 = ssub.s32 16, 16
      %232 = vsyncadd [#allocation23], %s231
      %s234 = sshll.u32 [#allocation24], 4
      %s235 = int_to_ptr.vmem [resolvable:$true] %s234
      %237 = dma.hbm_to_vmem [thread:$0]  %s35, 16, %s235, [#allocation23]
    $region73: #{resnet_forward.1} parent=1 // pred_fallthru
      _
    // Predicated region
    $region74: #{resnet_forward.1} parent=1 // pred_check
      _
    $region75: #{resnet_forward.1} parent=1 // pred_check_branch
      %239 = sbr.rel (0) target = $region77
    $region76: #{resnet_forward.1} parent=1 // pred_region
      _
    $region77: #{resnet_forward.1} parent=1 // pred_fallthru
      _
    // Predicated region
    $region78: #{resnet_forward.1} parent=1 // pred_check
      _
    $region79: #{resnet_forward.1} parent=1 // pred_check_branch
      %241 = sbr.rel (0) target = $region81
    $region80: #{resnet_forward.1} parent=1 // pred_region
      %s243 = ssub.s32 1536, 1536
      %244 = vsyncadd [#allocation26], %s243
      %s245 = sshll.u32 [#allocation25], 4
      %s246 = int_to_ptr.vmem [resolvable:$true] %s245
      %251 = dma.hbm_to_vmem [thread:$0]  %s39, 1536, %s246, [#allocation26], 64, 64, 4
    $region81: #{resnet_forward.1} parent=1 // pred_fallthru
      _
    // Predicated region
    $region82: #{resnet_forward.1} parent=1 // pred_check
      _
    $region83: #{resnet_forward.1} parent=1 // pred_check_branch
      %253 = sbr.rel (0) target = $region85
    $region84: #{resnet_forward.1} parent=1 // pred_region
      _
    $region85: #{resnet_forward.1} parent=1 // pred_fallthru
      _
    // Predicated region
    $region86: #{resnet_forward.1} parent=1 // pred_check
      _
    $region87: #{resnet_forward.1} parent=1 // pred_check_branch
      %255 = sbr.rel (0) target = $region89
    $region88: #{resnet_forward.1} parent=1 // pred_region
      _
    $region89: #{resnet_forward.1} parent=1 // pred_fallthru
      _
    // Predicated region
    $region90: #{resnet_forward.1} parent=1 // pred_check
      _
    $region91: #{resnet_forward.1} parent=1 // pred_check_branch
      %257 = sbr.rel (0) target = $region93
    $region92: #{resnet_forward.1} parent=1 // pred_region
      _
    $region93: #{resnet_forward.1} parent=1 // pred_fallthru
      _
    // Predicated region
    $region94: #{resnet_forward.1} parent=1 // pred_check
      _
    $region95: #{resnet_forward.1} parent=1 // pred_check_branch
      %259 = sbr.rel (0) target = $region97
    $region96: #{resnet_forward.1} parent=1 // pred_region
      _
    $region97: #{resnet_forward.1} parent=1 // pred_fallthru
      _
    // Predicated region
    $region98: #{resnet_forward.1} parent=1 // pred_check
      _
    $region99: #{resnet_forward.1} parent=1 // pred_check_branch
      %261 = sbr.rel (0) target = $region101
    $region100: #{resnet_forward.1} parent=1 // pred_region
      %s263 = ssub.s32 3584, 3584
      %264 = vsyncadd [#allocation26], %s263
      %s265 = sshll.u32 [#allocation27], 4
      %s266 = int_to_ptr.vmem [resolvable:$true] %s265
      %271 = dma.hbm_to_vmem [thread:$0]  %s49, 3584, %s266, [#allocation26], 64, 64, 4
    $region101: #{resnet_forward.1} parent=1 // pred_fallthru
      _
    // Predicated region
    $region102: #{resnet_forward.1} parent=1 // pred_check
      _
    $region103: #{resnet_forward.1} parent=1 // pred_check_branch
      %273 = sbr.rel (0) target = $region105
    $region104: #{resnet_forward.1} parent=1 // pred_region
      _
    $region105: #{resnet_forward.1} parent=1 // pred_fallthru
      _
    // Predicated region
    $region106: #{resnet_forward.1} parent=1 // pred_check
      _
    $region107: #{resnet_forward.1} parent=1 // pred_check_branch
      %275 = sbr.rel (0) target = $region109
    $region108: #{resnet_forward.1} parent=1 // pred_region
      _
    $region109: #{resnet_forward.1} parent=1 // pred_fallthru
      _
    // Predicated region
    $region110: #{resnet_forward.1} parent=1 // pred_check
      _
    $region111: #{resnet_forward.1} parent=1 // pred_check_branch
      %277 = sbr.rel (0) target = $region113
    $region112: #{resnet_forward.1} parent=1 // pred_region
      %s279 = ssub.s32 2560, 2560
      %280 = vsyncadd [#allocation29], %s279
      %s281 = sshll.u32 [#allocation28], 4
      %s282 = int_to_ptr.vmem [resolvable:$true] %s281
      %287 = dma.hbm_to_vmem [thread:$0]  %s55, 2560, %s282, [#allocation29], 64, 64, 4
    $region113: #{resnet_forward.1} parent=1 // pred_fallthru
      _
    // Predicated region
    $region114: #{resnet_forward.1} parent=1 // pred_check
      _
    $region115: #{resnet_forward.1} parent=1 // pred_check_branch
      %289 = sbr.rel (0) target = $region117
    $region116: #{resnet_forward.1} parent=1 // pred_region
      _
    $region117: #{resnet_forward.1} parent=1 // pred_fallthru
      _
    // Predicated region
    $region118: #{resnet_forward.1} parent=1 // pred_check
      _
    $region119: #{resnet_forward.1} parent=1 // pred_check_branch
      %291 = sbr.rel (0) target = $region121
    $region120: #{resnet_forward.1} parent=1 // pred_region
      _
    $region121: #{resnet_forward.1} parent=1 // pred_fallthru
      _
    // Predicated region
    $region122: #{resnet_forward.1} parent=1 // pred_check
      _
    $region123: #{resnet_forward.1} parent=1 // pred_check_branch
      %293 = sbr.rel (0) target = $region125
    $region124: #{resnet_forward.1} parent=1 // pred_region
      %s295 = ssub.s32 1536, 1536
      %296 = vsyncadd [#allocation29], %s295
      %s297 = sshll.u32 [#allocation30], 4
      %s298 = int_to_ptr.vmem [resolvable:$true] %s297
      %303 = dma.hbm_to_vmem [thread:$0]  %s61, 1536, %s298, [#allocation29], 64, 64, 4
    $region125: #{resnet_forward.1} parent=1 // pred_fallthru
      _
    // Predicated region
    $region126: #{resnet_forward.1} parent=1 // pred_check
      _
    $region127: #{resnet_forward.1} parent=1 // pred_check_branch
      %305 = sbr.rel (0) target = $region129
    $region128: #{resnet_forward.1} parent=1 // pred_region
      _
    $region129: #{resnet_forward.1} parent=1 // pred_fallthru
      _
    // Predicated region
    $region130: #{resnet_forward.1} parent=1 // pred_check
      _
    $region131: #{resnet_forward.1} parent=1 // pred_check_branch
      %307 = sbr.rel (0) target = $region133
    $region132: #{resnet_forward.1} parent=1 // pred_region
      _
    $region133: #{resnet_forward.1} parent=1 // pred_fallthru
      _
    // Predicated region
    $region134: #{resnet_forward.1} parent=1 // pred_check
      _
    $region135: #{resnet_forward.1} parent=1 // pred_check_branch
      %309 = sbr.rel (0) target = $region137
    $region136: #{resnet_forward.1} parent=1 // pred_region
      _
    $region137: #{resnet_forward.1} parent=1 // pred_fallthru
      _
    // Predicated region
    $region138: #{resnet_forward.1} parent=1 // pred_check
      _
    $region139: #{resnet_forward.1} parent=1 // pred_check_branch
      %311 = sbr.rel (0) target = $region141
    $region140: #{resnet_forward.1} parent=1 // pred_region
      _
    $region141: #{resnet_forward.1} parent=1 // pred_fallthru
      _
    // Predicated region
    $region142: #{resnet_forward.1} parent=1 // pred_check
      _
    $region143: #{resnet_forward.1} parent=1 // pred_check_branch
      %313 = sbr.rel (0) target = $region145
    $region144: #{resnet_forward.1} parent=1 // pred_region
      _
    $region145: #{resnet_forward.1} parent=1 // pred_fallthru
      _
    // Predicated region
    $region146: #{resnet_forward.1} parent=1 // pred_check
      _
    $region147: #{resnet_forward.1} parent=1 // pred_check_branch
      %315 = sbr.rel (0) target = $region149
    $region148: #{resnet_forward.1} parent=1 // pred_region
      _
    $region149: #{resnet_forward.1} parent=1 // pred_fallthru
      _
    // Predicated region
    $region150: #{resnet_forward.1} parent=1 // pred_check
      _
    $region151: #{resnet_forward.1} parent=1 // pred_check_branch
      %317 = sbr.rel (0) target = $region153
    $region152: #{resnet_forward.1} parent=1 // pred_region
      %318 = dma.done [#allocation5], 224
    $region153: #{resnet_forward.1} parent=1 // pred_fallthru
      _
    // Predicated region
    $region154: #{resnet_forward.1} parent=1 // pred_check
      _
    $region155: #{resnet_forward.1} parent=1 // pred_check_branch
      %320 = sbr.rel (0) target = $region157
    $region156: #{resnet_forward.1} parent=1 // pred_region
      %321 = dma.done [#allocation8], 2560
    $region157: #{resnet_forward.1} parent=1 // pred_fallthru
      _
    // Predicated region
    $region158: #{resnet_forward.1} parent=1 // pred_check
      _
    $region159: #{resnet_forward.1} parent=1 // pred_check_branch
      %323 = sbr.rel (0) target = $region161
    $region160: #{resnet_forward.1} parent=1 // pred_region
      %324 = dma.done [#allocation8], 16
    $region161: #{resnet_forward.1} parent=1 // pred_fallthru
      _
    // Predicated region
    $region162: #{resnet_forward.1} parent=1 // pred_check
      _
    $region163: #{resnet_forward.1} parent=1 // pred_check_branch
      %326 = sbr.rel (0) target = $region165
    $region164: #{resnet_forward.1} parent=1 // pred_region
      %327 = dma.done [#allocation11], 16
    $region165: #{resnet_forward.1} parent=1 // pred_fallthru
      _
    // Predicated region
    $region166: #{resnet_forward.1} parent=1 // pred_check
      _
    $region167: #{resnet_forward.1} parent=1 // pred_check_branch
      %329 = sbr.rel (0) target = $region169
    $region168: #{resnet_forward.1} parent=1 // pred_region
      %330 = dma.done [#allocation11], 1536
    $region169: #{resnet_forward.1} parent=1 // pred_fallthru
      _
    // Predicated region
    $region170: #{resnet_forward.1} parent=1 // pred_check
      _
    $region171: #{resnet_forward.1} parent=1 // pred_check_branch
      %332 = sbr.rel (0) target = $region173
    $region172: #{resnet_forward.1} parent=1 // pred_region
      %333 = dma.done [#allocation14], 16
    $region173: #{resnet_forward.1} parent=1 // pred_fallthru
      _
    // Predicated region
    $region174: #{resnet_forward.1} parent=1 // pred_check
      _
    $region175: #{resnet_forward.1} parent=1 // pred_check_branch
      %335 = sbr.rel (0) target = $region177
    $region176: #{resnet_forward.1} parent=1 // pred_region
      %336 = dma.done [#allocation14], 16
    $region177: #{resnet_forward.1} parent=1 // pred_fallthru
      _
    // Predicated region
    $region178: #{resnet_forward.1} parent=1 // pred_check
      _
    $region179: #{resnet_forward.1} parent=1 // pred_check_branch
      %338 = sbr.rel (0) target = $region181
    $region180: #{resnet_forward.1} parent=1 // pred_region
      %339 = dma.done [#allocation17], 16
    $region181: #{resnet_forward.1} parent=1 // pred_fallthru
      _
    // Predicated region
    $region182: #{resnet_forward.1} parent=1 // pred_check
      _
    $region183: #{resnet_forward.1} parent=1 // pred_check_branch
      %341 = sbr.rel (0) target = $region185
    $region184: #{resnet_forward.1} parent=1 // pred_region
      %342 = dma.done [#allocation17], 16
    $region185: #{resnet_forward.1} parent=1 // pred_fallthru
      _
    // Predicated region
    $region186: #{resnet_forward.1} parent=1 // pred_check
      _
    $region187: #{resnet_forward.1} parent=1 // pred_check_branch
      %344 = sbr.rel (0) target = $region189
    $region188: #{resnet_forward.1} parent=1 // pred_region
      %345 = dma.done [#allocation20], 3584
    $region189: #{resnet_forward.1} parent=1 // pred_fallthru
      _
    // Predicated region
    $region190: #{resnet_forward.1} parent=1 // pred_check
      _
    $region191: #{resnet_forward.1} parent=1 // pred_check_branch
      %347 = sbr.rel (0) target = $region193
    $region192: #{resnet_forward.1} parent=1 // pred_region
      %348 = dma.done [#allocation20], 16
    $region193: #{resnet_forward.1} parent=1 // pred_fallthru
      _
    // Predicated region
    $region194: #{resnet_forward.1} parent=1 // pred_check
      _
    $region195: #{resnet_forward.1} parent=1 // pred_check_branch
      %350 = sbr.rel (0) target = $region197
    $region196: #{resnet_forward.1} parent=1 // pred_region
      %351 = dma.done [#allocation23], 16
    $region197: #{resnet_forward.1} parent=1 // pred_fallthru
      _
    // Predicated region
    $region198: #{resnet_forward.1} parent=1 // pred_check
      _
    $region199: #{resnet_forward.1} parent=1 // pred_check_branch
      %353 = sbr.rel (0) target = $region201
    $region200: #{resnet_forward.1} parent=1 // pred_region
      %354 = dma.done [#allocation23], 16
    $region201: #{resnet_forward.1} parent=1 // pred_fallthru
      _
    // Predicated region
    $region202: #{resnet_forward.1} parent=1 // pred_check
      _
    $region203: #{resnet_forward.1} parent=1 // pred_check_branch
      %356 = sbr.rel (0) target = $region205
    $region204: #{resnet_forward.1} parent=1 // pred_region
      %357 = dma.done [#allocation26], 1536
    $region205: #{resnet_forward.1} parent=1 // pred_fallthru
      _
    // Predicated region
    $region206: #{resnet_forward.1} parent=1 // pred_check
      _
    $region207: #{resnet_forward.1} parent=1 // pred_check_branch
      %359 = sbr.rel (0) target = $region209
    $region208: #{resnet_forward.1} parent=1 // pred_region
      %360 = dma.done [#allocation26], 3584
    $region209: #{resnet_forward.1} parent=1 // pred_fallthru
      _
    // Predicated region
    $region210: #{resnet_forward.1} parent=1 // pred_check
      _
    $region211: #{resnet_forward.1} parent=1 // pred_check_branch
      %362 = sbr.rel (0) target = $region213
    $region212: #{resnet_forward.1} parent=1 // pred_region
      %363 = dma.done [#allocation29], 2560
    $region213: #{resnet_forward.1} parent=1 // pred_fallthru
      _
    // Predicated region
    $region214: #{resnet_forward.1} parent=1 // pred_check
      _
    $region215: #{resnet_forward.1} parent=1 // pred_check_branch
      %365 = sbr.rel (0) target = $region217
    $region216: #{resnet_forward.1} parent=1 // pred_region
      %366 = dma.done [#allocation29], 1536
    $region217: #{resnet_forward.1} parent=1 // pred_fallthru
      _
    %vm368 = vcmask 27648
    %369 = vst.msk [vmem:[#allocation2] sm:$0xf] %vm368, 0
    %370 = vst.msk [vmem:[#allocation2 + $0x4] sm:$0xf] %vm368, 0
    %vm371 = vcmask 26624
    %372 = vst.msk [vmem:[#allocation2 + $0x8] sm:$0x7] %vm371, 0
    %373 = vst.msk [vmem:[#allocation2 + $0xc] sm:$0xf] %vm368, 0
    %374 = vst.msk [vmem:[#allocation2 + $0x10] sm:$0xf] %vm368, 0
    %375 = vst.msk [vmem:[#allocation2 + $0x14] sm:$0x7] %vm371, 0
    %vm376 = vcmask 519168
    %377 = vst.msk [vmem:[#allocation3] sm:$0xf] %vm376, 0
    %378 = vst.msk [vmem:[#allocation3 + $0x4] sm:$0xf] %vm376, 0
    %vm379 = vcmask 518144
    %380 = vst.msk [vmem:[#allocation3 + $0x8] sm:$0x7] %vm379, 0
    %381 = vst.msk [vmem:[#allocation3 + $0xc] sm:$0xf] %vm376, 0
    %382 = vst.msk [vmem:[#allocation3 + $0x10] sm:$0xf] %vm376, 0
    %383 = vst.msk [vmem:[#allocation3 + $0x14] sm:$0x7] %vm379, 0
    %v384 = vld [vmem:[%s1] sm:$0xf]
    %v385 = vld [vmem:[%s1 + $0x4] sm:$0xf]
    %v386 = vld [vmem:[%s1 + $0x8] sm:$0xf]
    %v387 = vld [vmem:[%s1 + $0xc] sm:$0xf]
    %v388 = vunpack.c.l.bf16 %v384
    %v389 = vunpack.c.l.bf16 %v385
    %v390 = vunpack.c.l.bf16 %v386
    %v391 = vunpack.c.l.bf16 %v387
    %vm392 = vsmask.f32 1280
    %vm393 = vsmask.f32 5392
    %vm394 = vmor %vm392, %vm393
    %v396 = vshrl.u32 %v384, 16
    %v398 = vrot.slane %v396, 6
    %v399 = vshll.u32 %v384, 16
    %v401 = vrot.slane %v399, 7
    %v402 = vor.u32 %v398, %v401
    %v403 = vrot.slane %v402, 4
    %v405 = vshrl.u32 %v385, 16
    %v407 = vrot.slane %v405, 6
    %v408 = vshll.u32 %v385, 16
    %v410 = vrot.slane %v408, 7
    %v411 = vor.u32 %v407, %v410
    %v412 = vsel %vm394, %v403, %v411
    %v413 = vrot.slane %v411, 4
    %v415 = vshrl.u32 %v386, 16
    %v417 = vrot.slane %v415, 6
    %v418 = vshll.u32 %v386, 16
    %v420 = vrot.slane %v418, 7
    %v421 = vor.u32 %v417, %v420
    %v422 = vrot.slane %v421, 4
    %v424 = vshrl.u32 %v387, 16
    %v426 = vrot.slane %v424, 6
    %v427 = vshll.u32 %v387, 16
    %v429 = vrot.slane %v427, 7
    %v430 = vor.u32 %v426, %v429
    %v431 = vsel %vm394, %v422, %v430
    %v432 = vrot.slane %v430, 4
    %vm439 = vcmask 27649
    %vm440 = vsmask.f32 7942
    %vm441 = vmand %vm439, %vm440
    %v442 = vld [vmem:[#allocation2] sm:$0xe]
    %v443 = vsel %vm441, %v402, %v442
    %444 = vst [vmem:[#allocation2] sm:$0xe] %v443
    %445 = vst.msk [vmem:[#allocation2 + $0x4] sm:$0xf] %vm368, %v412
    %vm446 = vcmask 25600
    %vm447 = vmand %vm446, %vm392
    %v448 = vld [vmem:[#allocation2 + $0x8] sm:$0x3]
    %v449 = vsel %vm447, %v413, %v448
    %450 = vst [vmem:[#allocation2 + $0x8] sm:$0x3] %v449
    %v451 = vld [vmem:[#allocation2 + $0xc] sm:$0xe]
    %v452 = vsel %vm441, %v421, %v451
    %453 = vst [vmem:[#allocation2 + $0xc] sm:$0xe] %v452
    %454 = vst.msk [vmem:[#allocation2 + $0x10] sm:$0xf] %vm368, %v431
    %v455 = vld [vmem:[#allocation2 + $0x14] sm:$0x3]
    %v456 = vsel %vm447, %v432, %v455
    %457 = vst [vmem:[#allocation2 + $0x14] sm:$0x3] %v456
    %v458 = vld [vmem:[#allocation2] sm:$0xf]
    %v459 = vld [vmem:[#allocation2 + $0x4] sm:$0xf]
    %v460 = vld [vmem:[#allocation2 + $0xc] sm:$0xf]
    %v461 = vld [vmem:[#allocation2 + $0x10] sm:$0xf]
    %v462 = vld [vmem:[#allocation4] sm:$0x3]
    %v463 = vld [vmem:[#allocation2 + $0x8] sm:$0x1]
    %v464 = vld [vmem:[#allocation2 + $0x14] sm:$0x1]
    %vm465 = vsmask.f32 3328
    %vm466 = vsmask.f32 7440
    %vm467 = vmor %vm465, %vm466
    %v469 = vshrl.u32 %v458, 16
    %v471 = vrot.slane %v469, 4
    %v472 = vshll.u32 %v458, 16
    %v474 = vrot.slane %v472, 5
    %v475 = vor.u32 %v471, %v474
    %v476 = vrot.slane %v475, 4
    %v478 = vshll.u32 %v459, 16
    %v480 = vrot.slane %v478, 5
    %v481 = vsel %vm467, %v476, %v480
    %v482 = vshrl.u32 %v459, 16
    %v484 = vrot.slane %v482, 4
    %v485 = vor.u32 %v484, %v480
    %v486 = vrot.slane %v485, 4
    %v488 = vshll.u32 %v463, 16
    %v490 = vrot.slane %v488, 5
    %v491 = vsel %vm467, %v486, %v490
    %v493 = vshrl.u32 %v460, 16
    %v495 = vrot.slane %v493, 4
    %v496 = vshll.u32 %v460, 16
    %v498 = vrot.slane %v496, 5
    %v499 = vor.u32 %v495, %v498
    %v500 = vrot.slane %v499, 4
    %v502 = vshll.u32 %v461, 16
    %v504 = vrot.slane %v502, 5
    %v505 = vsel %vm467, %v500, %v504
    %v506 = vshrl.u32 %v461, 16
    %v508 = vrot.slane %v506, 4
    %v509 = vor.u32 %v508, %v504
    %v510 = vrot.slane %v509, 4
    %v512 = vshll.u32 %v464, 16
    %v514 = vrot.slane %v512, 5
    %v515 = vsel %vm467, %v510, %v514
    %s516 = scalar_lea.vmem [#allocation4], 2
    %v517 = vld [vmem:[%s516] sm:$0x3]
    %v518 = vunpack.c.l.b16 %v481
    %v519 = vunpack.c.l.b16 %v491
    %v520 = vunpack.c.l.b16 %v505
    %v521 = vunpack.c.l.b16 %v515
    %v522 = vpack.c.b16 %v519, %v518
    %v523 = vpack.c.b16 %v521, %v520
    %vm524 = vcmask 31744
    %v526 = vsel %vm524, %v522, 0
    %v529 = vsel %vm524, %v523, 0
    %vm531 = vcmask 1041408
    %v533 = vsel %vm531, %v517, 0
    %535 = vmatprep.subr.bf16.mxu0 0
    %536 = vmatpush1.bf16.msra.mxu0 %v533
    %537 = vmatprep.subr.bf16.mxu0 0
    %538 = vmatpush1.bf16.msra.mxu0 0
    %539 = vmatprep.subr.bf16.mxu0 0
    %540 = vmatpush1.bf16.msra.mxu0 0
    %541 = vmatprep.subr.bf16.mxu0 0
    %542 = vmatpush1.bf16.msra.mxu0 0
    %543 = vmatprep.subr.bf16.mxu0 0
    %544 = vmatpush1.bf16.msra.mxu0 0
    %545 = vmatprep.subr.bf16.mxu0 0
    %546 = vmatpush1.bf16.msra.mxu0 0
    %547 = vmatprep.subr.bf16.mxu0 0
    %548 = vmatpush1.bf16.msra.mxu0 0
    %549 = vmatprep.subr.bf16.mxu0 0
    %550 = vmatpush1.bf16.msra.mxu0 0
    %551 = vmatprep.subr.bf16.mxu0 0
    %552 = vmatpush1.bf16.msra.mxu0 0
    %553 = vmatprep.subr.bf16.mxu0 0
    %554 = vmatpush1.bf16.msra.mxu0 0
    %555 = vmatprep.subr.bf16.mxu0 0
    %556 = vmatpush1.bf16.msra.mxu0 0
    %557 = vmatprep.subr.bf16.mxu0 0
    %558 = vmatpush1.bf16.msra.mxu0 0
    %559 = vmatprep.subr.bf16.mxu0 0
    %560 = vmatpush1.bf16.msra.mxu0 0
    %561 = vmatprep.subr.bf16.mxu0 0
    %562 = vmatpush1.bf16.msra.mxu0 0
    %563 = vmatprep.subr.bf16.mxu0 0
    %564 = vmatpush1.bf16.msra.mxu0 0
    %565 = vmatprep.subr.bf16.mxu0 0
    %566 = vmatpush1.bf16.msra.mxu0 0
    %567 = vmatprep.mubr.bf16.mxu0 0
    %568 = vmatmul.mubr.bf16.gmra.mrb[0].mxu0 %v526
    %v569 = vpop.f32.mrb[0].mxu0
    %v570 = vadd.f32 0.0, %v569
    %v571 = vpop.f32.mrb[0].mxu0
    %v572 = vpop.f32.mrb[0].mxu0
    %v573 = vadd.f32 0.0, %v572
    %v574 = vpop.f32.mrb[0].mxu0
    %575 = vmatprep.mubr.bf16.mxu0 0
    %576 = vmatmul.mubr.bf16.gmra.mrb[0].mxu0 %v529
    %v577 = vpop.f32.mrb[0].mxu0
    %v578 = vadd.f32 0.0, %v577
    %v579 = vpop.f32.mrb[0].mxu0
    %v580 = vpop.f32.mrb[0].mxu0
    %v581 = vadd.f32 0.0, %v580
    %v582 = vpop.f32.mrb[0].mxu0
    %583 = vdwg.mxu0
    %v588 = vunpack.c.l.b16 %v458
    %v589 = vunpack.c.l.b16 %v459
    %v590 = vunpack.c.l.b16 %v460
    %v591 = vunpack.c.l.b16 %v461
    %v592 = vpack.c.b16 %v589, %v588
    %v593 = vpack.c.b16 %v591, %v590
    %v595 = vsel %vm524, %v592, 0
    %v598 = vsel %vm524, %v593, 0
    %v601 = vsel %vm531, %v462, 0
    %603 = vmatprep.subr.bf16.mxu0 0
    %604 = vmatpush1.bf16.msra.mxu0 %v601
    %605 = vmatprep.subr.bf16.mxu0 0
    %606 = vmatpush1.bf16.msra.mxu0 0
    %607 = vmatprep.subr.bf16.mxu0 0
    %608 = vmatpush1.bf16.msra.mxu0 0
    %609 = vmatprep.subr.bf16.mxu0 0
    %610 = vmatpush1.bf16.msra.mxu0 0
    %611 = vmatprep.subr.bf16.mxu0 0
    %612 = vmatpush1.bf16.msra.mxu0 0
    %613 = vmatprep.subr.bf16.mxu0 0
    %614 = vmatpush1.bf16.msra.mxu0 0
    %615 = vmatprep.subr.bf16.mxu0 0
    %616 = vmatpush1.bf16.msra.mxu0 0
    %617 = vmatprep.subr.bf16.mxu0 0
    %618 = vmatpush1.bf16.msra.mxu0 0
    %619 = vmatprep.subr.bf16.mxu0 0
    %620 = vmatpush1.bf16.msra.mxu0 0
    %621 = vmatprep.subr.bf16.mxu0 0
    %622 = vmatpush1.bf16.msra.mxu0 0
    %623 = vmatprep.subr.bf16.mxu0 0
    %624 = vmatpush1.bf16.msra.mxu0 0
    %625 = vmatprep.subr.bf16.mxu0 0
    %626 = vmatpush1.bf16.msra.mxu0 0
    %627 = vmatprep.subr.bf16.mxu0 0
    %628 = vmatpush1.bf16.msra.mxu0 0
    %629 = vmatprep.subr.bf16.mxu0 0
    %630 = vmatpush1.bf16.msra.mxu0 0
    %631 = vmatprep.subr.bf16.mxu0 0
    %632 = vmatpush1.bf16.msra.mxu0 0
    %633 = vmatprep.subr.bf16.mxu0 0
    %634 = vmatpush1.bf16.msra.mxu0 0
    %635 = vmatprep.mubr.bf16.mxu0 0
    %636 = vmatmul.mubr.bf16.gmra.mrb[0].mxu0 %v595
    %v637 = vpop.f32.mrb[0].mxu0
    %v638 = vadd.f32 %v570, %v637
    %v639 = vpop.f32.mrb[0].mxu0
    %v640 = vpop.f32.mrb[0].mxu0
    %v641 = vadd.f32 %v573, %v640
    %v642 = vpop.f32.mrb[0].mxu0
    %643 = vmatprep.mubr.bf16.mxu0 0
    %644 = vmatmul.mubr.bf16.gmra.mrb[0].mxu0 %v598
    %v645 = vpop.f32.mrb[0].mxu0
    %v646 = vadd.f32 %v578, %v645
    %v647 = vpop.f32.mrb[0].mxu0
    %v648 = vpop.f32.mrb[0].mxu0
    %v649 = vadd.f32 %v581, %v648
    %v650 = vpop.f32.mrb[0].mxu0
    %651 = vdwg.mxu0
    %v652 = vld [vmem:[#allocation2] sm:$0xe]
    %v653 = vld [vmem:[#allocation2 + $0xc] sm:$0xe]
    %vm658 = vcmask 1042432
    %vm659 = vcmask 1046532
    %vm660 = vmor %vm658, %vm659
    %v661 = vrot.slane %v652, 5
    %v662 = vrot.slane %v661, 4
    %v663 = vrot.slane %v459, 5
    %v664 = vsel %vm660, %v662, %v663
    %v665 = vrot.slane %v663, 4
    %v666 = vrot.slane %v463, 5
    %v667 = vsel %vm660, %v665, %v666
    %v668 = vrot.slane %v653, 5
    %v669 = vrot.slane %v668, 4
    %v670 = vrot.slane %v461, 5
    %v671 = vsel %vm660, %v669, %v670
    %v672 = vrot.slane %v670, 4
    %v673 = vrot.slane %v464, 5
    %v674 = vsel %vm660, %v672, %v673
    %s675 = scalar_lea.vmem [#allocation4], 4
    %v676 = vld [vmem:[%s675] sm:$0x3]
    %v677 = vunpack.c.l.b16 %v664
    %v678 = vunpack.c.l.b16 %v667
    %v679 = vunpack.c.l.b16 %v671
    %v680 = vunpack.c.l.b16 %v674
    %v681 = vpack.c.b16 %v678, %v677
    %v682 = vpack.c.b16 %v680, %v679
    %v684 = vsel %vm524, %v681, 0
    %v687 = vsel %vm524, %v682, 0
    %v690 = vsel %vm531, %v676, 0
    %692 = vmatprep.subr.bf16.mxu0 0
    %693 = vmatpush1.bf16.msra.mxu0 %v690
    %694 = vmatprep.subr.bf16.mxu0 0
    %695 = vmatpush1.bf16.msra.mxu0 0
    %696 = vmatprep.subr.bf16.mxu0 0
    %697 = vmatpush1.bf16.msra.mxu0 0
    %698 = vmatprep.subr.bf16.mxu0 0
    %699 = vmatpush1.bf16.msra.mxu0 0
    %700 = vmatprep.subr.bf16.mxu0 0
    %701 = vmatpush1.bf16.msra.mxu0 0
    %702 = vmatprep.subr.bf16.mxu0 0
    %703 = vmatpush1.bf16.msra.mxu0 0
    %704 = vmatprep.subr.bf16.mxu0 0
    %705 = vmatpush1.bf16.msra.mxu0 0
    %706 = vmatprep.subr.bf16.mxu0 0
    %707 = vmatpush1.bf16.msra.mxu0 0
    %708 = vmatprep.subr.bf16.mxu0 0
    %709 = vmatpush1.bf16.msra.mxu0 0
    %710 = vmatprep.subr.bf16.mxu0 0
    %711 = vmatpush1.bf16.msra.mxu0 0
    %712 = vmatprep.subr.bf16.mxu0 0
    %713 = vmatpush1.bf16.msra.mxu0 0
    %714 = vmatprep.subr.bf16.mxu0 0
    %715 = vmatpush1.bf16.msra.mxu0 0
    %716 = vmatprep.subr.bf16.mxu0 0
    %717 = vmatpush1.bf16.msra.mxu0 0
    %718 = vmatprep.subr.bf16.mxu0 0
    %719 = vmatpush1.bf16.msra.mxu0 0
    %720 = vmatprep.subr.bf16.mxu0 0
    %721 = vmatpush1.bf16.msra.mxu0 0
    %722 = vmatprep.subr.bf16.mxu0 0
    %723 = vmatpush1.bf16.msra.mxu0 0
    %724 = vmatprep.mubr.bf16.mxu0 0
    %725 = vmatmul.mubr.bf16.gmra.mrb[0].mxu0 %v684
    %v726 = vpop.f32.mrb[0].mxu0
    %v727 = vadd.f32 0.0, %v726
    %v728 = vpop.f32.mrb[0].mxu0
    %v729 = vpop.f32.mrb[0].mxu0
    %v730 = vadd.f32 0.0, %v729
    %v731 = vpop.f32.mrb[0].mxu0
    %732 = vmatprep.mubr.bf16.mxu0 0
    %733 = vmatmul.mubr.bf16.gmra.mrb[0].mxu0 %v687
    %v734 = vpop.f32.mrb[0].mxu0
    %v735 = vadd.f32 0.0, %v734
    %v736 = vpop.f32.mrb[0].mxu0
    %v737 = vpop.f32.mrb[0].mxu0
    %v738 = vadd.f32 0.0, %v737
    %v739 = vpop.f32.mrb[0].mxu0
    %740 = vdwg.mxu0
    %v741 = vadd.f32 %v638, %v727
    %v742 = vadd.f32 %v641, %v730
    %v743 = vadd.f32 %v646, %v735
    %v744 = vadd.f32 %v649, %v738
    %v745 = vld [vmem:[#allocation2 + $0x8] sm:$0x3]
    %v746 = vld [vmem:[#allocation2 + $0x14] sm:$0x3]
    %vm747 = vsmask.f32 2304
    %vm748 = vsmask.f32 6416
    %vm749 = vmor %vm747, %vm748
    %v751 = vshrl.u32 %v652, 16
    %v753 = vrot.slane %v751, 5
    %v754 = vshll.u32 %v652, 16
    %v756 = vrot.slane %v754, 6
    %v757 = vor.u32 %v753, %v756
    %v758 = vrot.slane %v757, 4
    %v759 = vrot.slane %v482, 5
    %v760 = vrot.slane %v478, 6
    %v761 = vor.u32 %v759, %v760
    %v762 = vsel %vm749, %v758, %v761
    %v763 = vrot.slane %v761, 4
    %v765 = vshrl.u32 %v745, 16
    %v767 = vrot.slane %v765, 5
    %v768 = vshll.u32 %v745, 16
    %v770 = vrot.slane %v768, 6
    %v771 = vor.u32 %v767, %v770
    %v772 = vsel %vm749, %v763, %v771
    %v774 = vshrl.u32 %v653, 16
    %v776 = vrot.slane %v774, 5
    %v777 = vshll.u32 %v653, 16
    %v779 = vrot.slane %v777, 6
    %v780 = vor.u32 %v776, %v779
    %v781 = vrot.slane %v780, 4
    %v782 = vrot.slane %v506, 5
    %v783 = vrot.slane %v502, 6
    %v784 = vor.u32 %v782, %v783
    %v785 = vsel %vm749, %v781, %v784
    %v786 = vrot.slane %v784, 4
    %v788 = vshrl.u32 %v746, 16
    %v790 = vrot.slane %v788, 5
    %v791 = vshll.u32 %v746, 16
    %v793 = vrot.slane %v791, 6
    %v794 = vor.u32 %v790, %v793
    %v795 = vsel %vm749, %v786, %v794
    %s796 = scalar_lea.vmem [#allocation4], 6
    %v797 = vld [vmem:[%s796] sm:$0x3]
    %v798 = vunpack.c.l.b16 %v762
    %v799 = vunpack.c.l.b16 %v772
    %v800 = vunpack.c.l.b16 %v785
    %v801 = vunpack.c.l.b16 %v795
    %v802 = vpack.c.b16 %v799, %v798
    %v803 = vpack.c.b16 %v801, %v800
    %v805 = vsel %vm524, %v802, 0
    %v808 = vsel %vm524, %v803, 0
    %v811 = vsel %vm531, %v797, 0
    %813 = vmatprep.subr.bf16.mxu0 0
    %814 = vmatpush1.bf16.msra.mxu0 %v811
    %815 = vmatprep.subr.bf16.mxu0 0
    %816 = vmatpush1.bf16.msra.mxu0 0
    %817 = vmatprep.subr.bf16.mxu0 0
    %818 = vmatpush1.bf16.msra.mxu0 0
    %819 = vmatprep.subr.bf16.mxu0 0
    %820 = vmatpush1.bf16.msra.mxu0 0
    %821 = vmatprep.subr.bf16.mxu0 0
    %822 = vmatpush1.bf16.msra.mxu0 0
    %823 = vmatprep.subr.bf16.mxu0 0
    %824 = vmatpush1.bf16.msra.mxu0 0
    %825 = vmatprep.subr.bf16.mxu0 0
    %826 = vmatpush1.bf16.msra.mxu0 0
    %827 = vmatprep.subr.bf16.mxu0 0
    %828 = vmatpush1.bf16.msra.mxu0 0
    %829 = vmatprep.subr.bf16.mxu0 0
    %830 = vmatpush1.bf16.msra.mxu0 0
    %831 = vmatprep.subr.bf16.mxu0 0
    %832 = vmatpush1.bf16.msra.mxu0 0
    %833 = vmatprep.subr.bf16.mxu0 0
    %834 = vmatpush1.bf16.msra.mxu0 0
    %835 = vmatprep.subr.bf16.mxu0 0
    %836 = vmatpush1.bf16.msra.mxu0 0
    %837 = vmatprep.subr.bf16.mxu0 0
    %838 = vmatpush1.bf16.msra.mxu0 0
    %839 = vmatprep.subr.bf16.mxu0 0
    %840 = vmatpush1.bf16.msra.mxu0 0
    %841 = vmatprep.subr.bf16.mxu0 0
    %842 = vmatpush1.bf16.msra.mxu0 0
    %843 = vmatprep.subr.bf16.mxu0 0
    %844 = vmatpush1.bf16.msra.mxu0 0
    %845 = vmatprep.mubr.bf16.mxu0 0
    %846 = vmatmul.mubr.bf16.gmra.mrb[0].mxu0 %v805
    %v847 = vpop.f32.mrb[0].mxu0
    %v848 = vadd.f32 0.0, %v847
    %v849 = vpop.f32.mrb[0].mxu0
    %v850 = vpop.f32.mrb[0].mxu0
    %v851 = vadd.f32 0.0, %v850
    %v852 = vpop.f32.mrb[0].mxu0
    %853 = vmatprep.mubr.bf16.mxu0 0
    %854 = vmatmul.mubr.bf16.gmra.mrb[0].mxu0 %v808
    %v855 = vpop.f32.mrb[0].mxu0
    %v856 = vadd.f32 0.0, %v855
    %v857 = vpop.f32.mrb[0].mxu0
    %v858 = vpop.f32.mrb[0].mxu0
    %v859 = vadd.f32 0.0, %v858
    %v860 = vpop.f32.mrb[0].mxu0
    %861 = vdwg.mxu0
    %v862 = vadd.f32 %v741, %v848
    %v863 = vadd.f32 %v742, %v851
    %v864 = vadd.f32 %v743, %v856
    %v865 = vadd.f32 %v744, %v859
    %v866 = vld [vmem:[#allocation2] sm:$0xc]
    %v867 = vld [vmem:[#allocation2 + $0xc] sm:$0xc]
    %vm872 = vcmask 1041408
    %vm873 = vcmask 1045508
    %vm874 = vmor %vm872, %vm873
    %v875 = vrot.slane %v866, 6
    %v876 = vrot.slane %v875, 4
    %v877 = vrot.slane %v459, 6
    %v878 = vsel %vm874, %v876, %v877
    %v879 = vrot.slane %v877, 4
    %v880 = vrot.slane %v745, 6
    %v881 = vsel %vm874, %v879, %v880
    %v882 = vrot.slane %v867, 6
    %v883 = vrot.slane %v882, 4
    %v884 = vrot.slane %v461, 6
    %v885 = vsel %vm874, %v883, %v884
    %v886 = vrot.slane %v884, 4
    %v887 = vrot.slane %v746, 6
    %v888 = vsel %vm874, %v886, %v887
    %s889 = scalar_lea.vmem [#allocation4], 8
    %v890 = vld [vmem:[%s889] sm:$0x3]
    %v891 = vunpack.c.l.b16 %v878
    %v892 = vunpack.c.l.b16 %v881
    %v893 = vunpack.c.l.b16 %v885
    %v894 = vunpack.c.l.b16 %v888
    %v895 = vpack.c.b16 %v892, %v891
    %v896 = vpack.c.b16 %v894, %v893
    %v898 = vsel %vm524, %v895, 0
    %v901 = vsel %vm524, %v896, 0
    %v904 = vsel %vm531, %v890, 0
    %906 = vmatprep.subr.bf16.mxu0 0
    %907 = vmatpush1.bf16.msra.mxu0 %v904
    %908 = vmatprep.subr.bf16.mxu0 0
    %909 = vmatpush1.bf16.msra.mxu0 0
    %910 = vmatprep.subr.bf16.mxu0 0
    %911 = vmatpush1.bf16.msra.mxu0 0
    %912 = vmatprep.subr.bf16.mxu0 0
    %913 = vmatpush1.bf16.msra.mxu0 0
    %914 = vmatprep.subr.bf16.mxu0 0
    %915 = vmatpush1.bf16.msra.mxu0 0
    %916 = vmatprep.subr.bf16.mxu0 0
    %917 = vmatpush1.bf16.msra.mxu0 0
    %918 = vmatprep.subr.bf16.mxu0 0
    %919 = vmatpush1.bf16.msra.mxu0 0
    %920 = vmatprep.subr.bf16.mxu0 0
    %921 = vmatpush1.bf16.msra.mxu0 0
    %922 = vmatprep.subr.bf16.mxu0 0
    %923 = vmatpush1.bf16.msra.mxu0 0
    %924 = vmatprep.subr.bf16.mxu0 0
    %925 = vmatpush1.bf16.msra.mxu0 0
    %926 = vmatprep.subr.bf16.mxu0 0
    %927 = vmatpush1.bf16.msra.mxu0 0
    %928 = vmatprep.subr.bf16.mxu0 0
    %929 = vmatpush1.bf16.msra.mxu0 0
    %930 = vmatprep.subr.bf16.mxu0 0
    %931 = vmatpush1.bf16.msra.mxu0 0
    %932 = vmatprep.subr.bf16.mxu0 0
    %933 = vmatpush1.bf16.msra.mxu0 0
    %934 = vmatprep.subr.bf16.mxu0 0
    %935 = vmatpush1.bf16.msra.mxu0 0
    %936 = vmatprep.subr.bf16.mxu0 0
    %937 = vmatpush1.bf16.msra.mxu0 0
    %938 = vmatprep.mubr.bf16.mxu0 0
    %939 = vmatmul.mubr.bf16.gmra.mrb[0].mxu0 %v898
    %v940 = vpop.f32.mrb[0].mxu0
    %v941 = vadd.f32 0.0, %v940
    %v942 = vpop.f32.mrb[0].mxu0
    %v943 = vpop.f32.mrb[0].mxu0
    %v944 = vadd.f32 0.0, %v943
    %v945 = vpop.f32.mrb[0].mxu0
    %946 = vmatprep.mubr.bf16.mxu0 0
    %947 = vmatmul.mubr.bf16.gmra.mrb[0].mxu0 %v901
    %v948 = vpop.f32.mrb[0].mxu0
    %v949 = vadd.f32 0.0, %v948
    %v950 = vpop.f32.mrb[0].mxu0
    %v951 = vpop.f32.mrb[0].mxu0
    %v952 = vadd.f32 0.0, %v951
    %v953 = vpop.f32.mrb[0].mxu0
    %954 = vdwg.mxu0
    %v955 = vadd.f32 %v862, %v941
    %v956 = vadd.f32 %v863, %v944
    %v957 = vadd.f32 %v864, %v949
    %v958 = vadd.f32 %v865, %v952
    %v959 = vld [vmem:[#allocation2 + $0x8] sm:$0x7]
    %v960 = vld [vmem:[#allocation2 + $0x14] sm:$0x7]
    %v962 = vshrl.u32 %v866, 16
    %v964 = vrot.slane %v962, 6
    %v965 = vshll.u32 %v866, 16
    %v967 = vrot.slane %v965, 7
    %v968 = vor.u32 %v964, %v967
    %v969 = vrot.slane %v968, 4
    %v970 = vrot.slane %v482, 6
    %v971 = vrot.slane %v478, 7
    %v972 = vor.u32 %v970, %v971
    %v973 = vsel %vm394, %v969, %v972
    %v974 = vrot.slane %v972, 4
    %v976 = vshrl.u32 %v959, 16
    %v978 = vrot.slane %v976, 6
    %v979 = vshll.u32 %v959, 16
    %v981 = vrot.slane %v979, 7
    %v982 = vor.u32 %v978, %v981
    %v983 = vsel %vm394, %v974, %v982
    %v985 = vshrl.u32 %v867, 16
    %v987 = vrot.slane %v985, 6
    %v988 = vshll.u32 %v867, 16
    %v990 = vrot.slane %v988, 7
    %v991 = vor.u32 %v987, %v990
    %v992 = vrot.slane %v991, 4
    %v993 = vrot.slane %v506, 6
    %v994 = vrot.slane %v502, 7
    %v995 = vor.u32 %v993, %v994
    %v996 = vsel %vm394, %v992, %v995
    %v997 = vrot.slane %v995, 4
    %v999 = vshrl.u32 %v960, 16
    %v1001 = vrot.slane %v999, 6
    %v1002 = vshll.u32 %v960, 16
    %v1004 = vrot.slane %v1002, 7
    %v1005 = vor.u32 %v1001, %v1004
    %v1006 = vsel %vm394, %v997, %v1005
    %s1007 = scalar_lea.vmem [#allocation4], 10
    %v1008 = vld [vmem:[%s1007] sm:$0x3]
    %v1009 = vunpack.c.l.b16 %v973
    %v1010 = vunpack.c.l.b16 %v983
    %v1011 = vunpack.c.l.b16 %v996
    %v1012 = vunpack.c.l.b16 %v1006
    %v1013 = vpack.c.b16 %v1010, %v1009
    %v1014 = vpack.c.b16 %v1012, %v1011
    %v1016 = vsel %vm524, %v1013, 0
    %v1019 = vsel %vm524, %v1014, 0
    %v1022 = vsel %vm531, %v1008, 0
    %1024 = vmatprep.subr.bf16.mxu0 0
    %1025 = vmatpush1.bf16.msra.mxu0 %v1022
    %1026 = vmatprep.subr.bf16.mxu0 0
    %1027 = vmatpush1.bf16.msra.mxu0 0
    %1028 = vmatprep.subr.bf16.mxu0 0
    %1029 = vmatpush1.bf16.msra.mxu0 0
    %1030 = vmatprep.subr.bf16.mxu0 0
    %1031 = vmatpush1.bf16.msra.mxu0 0
    %1032 = vmatprep.subr.bf16.mxu0 0
    %1033 = vmatpush1.bf16.msra.mxu0 0
    %1034 = vmatprep.subr.bf16.mxu0 0
    %1035 = vmatpush1.bf16.msra.mxu0 0
    %1036 = vmatprep.subr.bf16.mxu0 0
    %1037 = vmatpush1.bf16.msra.mxu0 0
    %1038 = vmatprep.subr.bf16.mxu0 0
    %1039 = vmatpush1.bf16.msra.mxu0 0
    %1040 = vmatprep.subr.bf16.mxu0 0
    %1041 = vmatpush1.bf16.msra.mxu0 0
    %1042 = vmatprep.subr.bf16.mxu0 0
    %1043 = vmatpush1.bf16.msra.mxu0 0
    %1044 = vmatprep.subr.bf16.mxu0 0
    %1045 = vmatpush1.bf16.msra.mxu0 0
    %1046 = vmatprep.subr.bf16.mxu0 0
    %1047 = vmatpush1.bf16.msra.mxu0 0
    %1048 = vmatprep.subr.bf16.mxu0 0
    %1049 = vmatpush1.bf16.msra.mxu0 0
    %1050 = vmatprep.subr.bf16.mxu0 0
    %1051 = vmatpush1.bf16.msra.mxu0 0
    %1052 = vmatprep.subr.bf16.mxu0 0
    %1053 = vmatpush1.bf16.msra.mxu0 0
    %1054 = vmatprep.subr.bf16.mxu0 0
    %1055 = vmatpush1.bf16.msra.mxu0 0
    %1056 = vmatprep.mubr.bf16.mxu0 0
    %1057 = vmatmul.mubr.bf16.gmra.mrb[0].mxu0 %v1016
    %v1058 = vpop.f32.mrb[0].mxu0
    %v1059 = vadd.f32 0.0, %v1058
    %v1060 = vpop.f32.mrb[0].mxu0
    %v1061 = vpop.f32.mrb[0].mxu0
    %v1062 = vadd.f32 0.0, %v1061
    %v1063 = vpop.f32.mrb[0].mxu0
    %1064 = vmatprep.mubr.bf16.mxu0 0
    %1065 = vmatmul.mubr.bf16.gmra.mrb[0].mxu0 %v1019
    %v1066 = vpop.f32.mrb[0].mxu0
    %v1067 = vadd.f32 0.0, %v1066
    %v1068 = vpop.f32.mrb[0].mxu0
    %v1069 = vpop.f32.mrb[0].mxu0
    %v1070 = vadd.f32 0.0, %v1069
    %v1071 = vpop.f32.mrb[0].mxu0
    %1072 = vdwg.mxu0
    %v1073 = vadd.f32 %v955, %v1059
    %v1074 = vadd.f32 %v956, %v1062
    %v1075 = vadd.f32 %v957, %v1067
    %v1076 = vadd.f32 %v958, %v1070
    %v1077 = vld [vmem:[#allocation2] sm:$0x8]
    %v1078 = vld [vmem:[#allocation2 + $0xc] sm:$0x8]
    %vm1083 = vcmask 1040384
    %vm1084 = vcmask 1044484
    %vm1085 = vmor %vm1083, %vm1084
    %v1086 = vrot.slane %v1077, 7
    %v1087 = vrot.slane %v1086, 4
    %v1088 = vrot.slane %v459, 7
    %v1089 = vsel %vm1085, %v1087, %v1088
    %v1090 = vrot.slane %v1088, 4
    %v1091 = vrot.slane %v959, 7
    %v1092 = vsel %vm1085, %v1090, %v1091
    %v1093 = vrot.slane %v1078, 7
    %v1094 = vrot.slane %v1093, 4
    %v1095 = vrot.slane %v461, 7
    %v1096 = vsel %vm1085, %v1094, %v1095
    %v1097 = vrot.slane %v1095, 4
    %v1098 = vrot.slane %v960, 7
    %v1099 = vsel %vm1085, %v1097, %v1098
    %s1100 = scalar_lea.vmem [#allocation4], 12
    %v1101 = vld [vmem:[%s1100] sm:$0x3]
    %v1102 = vunpack.c.l.b16 %v1089
    %v1103 = vunpack.c.l.b16 %v1092
    %v1104 = vunpack.c.l.b16 %v1096
    %v1105 = vunpack.c.l.b16 %v1099
    %v1106 = vpack.c.b16 %v1103, %v1102
    %v1107 = vpack.c.b16 %v1105, %v1104
    %v1109 = vsel %vm524, %v1106, 0
    %v1112 = vsel %vm524, %v1107, 0
    %v1115 = vsel %vm531, %v1101, 0
    %1117 = vmatprep.subr.bf16.mxu0 0
    %1118 = vmatpush1.bf16.msra.mxu0 %v1115
    %1119 = vmatprep.subr.bf16.mxu0 0
    %1120 = vmatpush1.bf16.msra.mxu0 0
    %1121 = vmatprep.subr.bf16.mxu0 0
    %1122 = vmatpush1.bf16.msra.mxu0 0
    %1123 = vmatprep.subr.bf16.mxu0 0
    %1124 = vmatpush1.bf16.msra.mxu0 0
    %1125 = vmatprep.subr.bf16.mxu0 0
    %1126 = vmatpush1.bf16.msra.mxu0 0
    %1127 = vmatprep.subr.bf16.mxu0 0
    %1128 = vmatpush1.bf16.msra.mxu0 0
    %1129 = vmatprep.subr.bf16.mxu0 0
    %1130 = vmatpush1.bf16.msra.mxu0 0
    %1131 = vmatprep.subr.bf16.mxu0 0
    %1132 = vmatpush1.bf16.msra.mxu0 0
    %1133 = vmatprep.subr.bf16.mxu0 0
    %1134 = vmatpush1.bf16.msra.mxu0 0
    %1135 = vmatprep.subr.bf16.mxu0 0
    %1136 = vmatpush1.bf16.msra.mxu0 0
    %1137 = vmatprep.subr.bf16.mxu0 0
    %1138 = vmatpush1.bf16.msra.mxu0 0
    %1139 = vmatprep.subr.bf16.mxu0 0
    %1140 = vmatpush1.bf16.msra.mxu0 0
    %1141 = vmatprep.subr.bf16.mxu0 0
    %1142 = vmatpush1.bf16.msra.mxu0 0
    %1143 = vmatprep.subr.bf16.mxu0 0
    %1144 = vmatpush1.bf16.msra.mxu0 0
    %1145 = vmatprep.subr.bf16.mxu0 0
    %1146 = vmatpush1.bf16.msra.mxu0 0
    %1147 = vmatprep.subr.bf16.mxu0 0
    %1148 = vmatpush1.bf16.msra.mxu0 0
    %1149 = vmatprep.mubr.bf16.mxu0 0
    %1150 = vmatmul.mubr.bf16.gmra.mrb[0].mxu0 %v1109
    %v1151 = vpop.f32.mrb[0].mxu0
    %v1152 = vadd.f32 0.0, %v1151
    %v1153 = vpop.f32.mrb[0].mxu0
    %v1154 = vpop.f32.mrb[0].mxu0
    %v1155 = vadd.f32 0.0, %v1154
    %v1156 = vpop.f32.mrb[0].mxu0
    %1157 = vmatprep.mubr.bf16.mxu0 0
    %1158 = vmatmul.mubr.bf16.gmra.mrb[0].mxu0 %v1112
    %v1159 = vpop.f32.mrb[0].mxu0
    %v1160 = vadd.f32 0.0, %v1159
    %v1161 = vpop.f32.mrb[0].mxu0
    %v1162 = vpop.f32.mrb[0].mxu0
    %v1163 = vadd.f32 0.0, %v1162
    %v1164 = vpop.f32.mrb[0].mxu0
    %1165 = vdwg.mxu0
    %v1166 = vadd.f32 %v1073, %v1152
    %v1167 = vadd.f32 %v1074, %v1155
    %v1168 = vadd.f32 %v1075, %v1160
    %v1169 = vadd.f32 %v1076, %v1163
    %v1170 = vld [vmem:[%s5] sm:$0x1]
    %v1172 = vlaneseq
    %v1173 = vshrl.u32 %v1172, 7
    %v1174 = vsub.s32 0, %v1173
    %v1175 = vrot.slane %v1170, %v1174
    %v1177 = vmul.f32 %v1166, %v1175
    %v1178 = vmul.f32 %v1167, %v1175
    %v1179 = vmul.f32 %v1168, %v1175
    %v1180 = vmul.f32 %v1169, %v1175
    %v1181 = vld [vmem:[%s7] sm:$0x1]
    %v1183 = vlaneseq
    %v1184 = vshrl.u32 %v1183, 7
    %v1185 = vsub.s32 0, %v1184
    %v1186 = vrot.slane %v1181, %v1185
    %v1188 = vadd.f32 %v1177, %v1186
    %v1189 = vadd.f32 %v1178, %v1186
    %v1190 = vadd.f32 %v1179, %v1186
    %v1191 = vadd.f32 %v1180, %v1186
    %v1192 = vmax.f32 %v1188, 0.0
    %v1193 = vmax.f32 %v1189, 0.0
    %v1194 = vmax.f32 %v1190, 0.0
    %v1195 = vmax.f32 %v1191, 0.0
    %v1196 = vpack.c.bf16 %v1193, %v1192
    %v1197 = vpack.c.bf16 %v1195, %v1194
    %v1200 = vunpack.c.l.b16 %v1196
    %v1201 = vunpack.c.h.b16 %v1196
    %v1202 = vunpack.c.l.b16 %v1197
    %v1203 = vunpack.c.h.b16 %v1197
    %v1204 = vpack.c.b16 %v1200, %v1200
    %v1205 = vpack.c.b16 %v1201, %v1201
    %v1206 = vpack.c.b16 %v1202, %v1202
    %v1207 = vpack.c.b16 %v1203, %v1203
    %v1209 = vshrl.u32 %v1204, 16
    %v1211 = vrot.slane %v1209, 6
    %v1212 = vshll.u32 %v1204, 16
    %v1214 = vrot.slane %v1212, 7
    %v1215 = vor.u32 %v1211, %v1214
    %v1216 = vrot.slane %v1215, 4
    %v1218 = vshrl.u32 %v1205, 16
    %v1220 = vrot.slane %v1218, 6
    %v1221 = vshll.u32 %v1205, 16
    %v1223 = vrot.slane %v1221, 7
    %v1224 = vor.u32 %v1220, %v1223
    %v1225 = vsel %vm394, %v1216, %v1224
    %v1226 = vrot.slane %v1224, 4
    %v1228 = vshrl.u32 %v1206, 16
    %v1230 = vrot.slane %v1228, 6
    %v1231 = vshll.u32 %v1206, 16
    %v1233 = vrot.slane %v1231, 7
    %v1234 = vor.u32 %v1230, %v1233
    %v1235 = vrot.slane %v1234, 4
    %v1237 = vshrl.u32 %v1207, 16
    %v1239 = vrot.slane %v1237, 6
    %v1240 = vshll.u32 %v1207, 16
    %v1242 = vrot.slane %v1240, 7
    %v1243 = vor.u32 %v1239, %v1242
    %v1244 = vsel %vm394, %v1235, %v1243
    %v1245 = vrot.slane %v1243, 4
    %vm1252 = vcmask 519169
    %vm1253 = vmand %vm1252, %vm440
    %v1254 = vld [vmem:[#allocation3] sm:$0xe]
    %v1255 = vsel %vm1253, %v1215, %v1254
    %1256 = vst [vmem:[#allocation3] sm:$0xe] %v1255
    %1257 = vst.msk [vmem:[#allocation3 + $0x4] sm:$0xf] %vm376, %v1225
    %vm1258 = vcmask 517120
    %vm1259 = vmand %vm1258, %vm392
    %v1260 = vld [vmem:[#allocation3 + $0x8] sm:$0x3]
    %v1261 = vsel %vm1259, %v1226, %v1260
    %1262 = vst [vmem:[#allocation3 + $0x8] sm:$0x3] %v1261
    %v1263 = vld [vmem:[#allocation3 + $0xc] sm:$0xe]
    %v1264 = vsel %vm1253, %v1234, %v1263
    %1265 = vst [vmem:[#allocation3 + $0xc] sm:$0xe] %v1264
    %1266 = vst.msk [vmem:[#allocation3 + $0x10] sm:$0xf] %vm376, %v1244
    %v1267 = vld [vmem:[#allocation3 + $0x14] sm:$0x3]
    %v1268 = vsel %vm1259, %v1245, %v1267
    %1269 = vst [vmem:[#allocation3 + $0x14] sm:$0x3] %v1268
    %v1270 = vld [vmem:[#allocation3] sm:$0xf]
    %v1271 = vld [vmem:[#allocation3 + $0x4] sm:$0xf]
    %v1272 = vld [vmem:[#allocation3 + $0x8] sm:$0x1]
    %v1273 = vld [vmem:[#allocation3 + $0xc] sm:$0xf]
    %v1274 = vld [vmem:[#allocation3 + $0x10] sm:$0xf]
    %v1275 = vld [vmem:[#allocation3 + $0x14] sm:$0x1]
    %v1277 = vshrl.u32 %v1270, 16
    %v1279 = vrot.slane %v1277, 4
    %v1280 = vshll.u32 %v1270, 16
    %v1282 = vrot.slane %v1280, 5
    %v1283 = vor.u32 %v1279, %v1282
    %v1284 = vrot.slane %v1283, 4
    %v1286 = vshll.u32 %v1271, 16
    %v1288 = vrot.slane %v1286, 5
    %v1289 = vsel %vm467, %v1284, %v1288
    %v1290 = vshrl.u32 %v1271, 16
    %v1292 = vrot.slane %v1290, 4
    %v1293 = vor.u32 %v1292, %v1288
    %v1294 = vrot.slane %v1293, 4
    %v1296 = vshll.u32 %v1272, 16
    %v1298 = vrot.slane %v1296, 5
    %v1299 = vsel %vm467, %v1294, %v1298
    %v1301 = vshrl.u32 %v1273, 16
    %v1303 = vrot.slane %v1301, 4
    %v1304 = vshll.u32 %v1273, 16
    %v1306 = vrot.slane %v1304, 5
    %v1307 = vor.u32 %v1303, %v1306
    %v1308 = vrot.slane %v1307, 4
    %v1310 = vshll.u32 %v1274, 16
    %v1312 = vrot.slane %v1310, 5
    %v1313 = vsel %vm467, %v1308, %v1312
    %v1314 = vshrl.u32 %v1274, 16
    %v1316 = vrot.slane %v1314, 4
    %v1317 = vor.u32 %v1316, %v1312
    %v1318 = vrot.slane %v1317, 4
    %v1320 = vshll.u32 %v1275, 16
    %v1322 = vrot.slane %v1320, 5
    %v1323 = vsel %vm467, %v1318, %v1322
    %v1324 = vld [vmem:[#allocation7] sm:$0xf]
    %v1325 = vld [vmem:[#allocation7 + $0x4] sm:$0xf]
    %v1326 = vld [vmem:[#allocation7 + $0x8] sm:$0xf]
    %v1327 = vld [vmem:[#allocation7 + $0xc] sm:$0xf]
    %v1328 = vld [vmem:[#allocation7 + $0x10] sm:$0xf]
    %v1329 = vld [vmem:[#allocation7 + $0x14] sm:$0xf]
    %v1330 = vld [vmem:[#allocation7 + $0x18] sm:$0xf]
    %v1331 = vld [vmem:[#allocation7 + $0x1c] sm:$0xf]
    %v1332 = vld [vmem:[#allocation3] sm:$0xe]
    %v1333 = vld [vmem:[#allocation3 + $0xc] sm:$0xe]
    %v1340 = vrot.slane %v1332, 5
    %v1341 = vrot.slane %v1340, 4
    %v1342 = vrot.slane %v1271, 5
    %v1343 = vsel %vm660, %v1341, %v1342
    %v1344 = vrot.slane %v1342, 4
    %v1345 = vrot.slane %v1272, 5
    %v1346 = vsel %vm660, %v1344, %v1345
    %v1347 = vrot.slane %v1333, 5
    %v1348 = vrot.slane %v1347, 4
    %v1349 = vrot.slane %v1274, 5
    %v1350 = vsel %vm660, %v1348, %v1349
    %v1351 = vrot.slane %v1349, 4
    %v1352 = vrot.slane %v1275, 5
    %v1353 = vsel %vm660, %v1351, %v1352
    %s1354 = scalar_lea.vmem [#allocation7], 32
    %v1355 = vld [vmem:[%s1354] sm:$0xf]
    %v1356 = vld [vmem:[%s1354 + $0x4] sm:$0xf]
    %v1357 = vld [vmem:[%s1354 + $0x8] sm:$0xf]
    %v1358 = vld [vmem:[%s1354 + $0xc] sm:$0xf]
    %v1359 = vld [vmem:[%s1354 + $0x10] sm:$0xf]
    %v1360 = vld [vmem:[%s1354 + $0x14] sm:$0xf]
    %v1361 = vld [vmem:[%s1354 + $0x18] sm:$0xf]
    %v1362 = vld [vmem:[%s1354 + $0x1c] sm:$0xf]
    %v1363 = vunpack.c.l.b16 %v1343
    %v1364 = vunpack.c.l.b16 %v1346
    %v1365 = vunpack.c.l.b16 %v1350
    %v1366 = vunpack.c.l.b16 %v1353
    %v1367 = vpack.c.b16 %v1364, %v1363
    %v1368 = vpack.c.b16 %v1366, %v1365
    %v1377 = vunpack.c.l.b16 %v1355
    %v1378 = vunpack.c.l.b16 %v1356
    %v1379 = vunpack.c.l.b16 %v1357
    %v1380 = vunpack.c.l.b16 %v1358
    %v1381 = vunpack.c.l.b16 %v1359
    %v1382 = vunpack.c.l.b16 %v1360
    %v1383 = vunpack.c.l.b16 %v1361
    %v1384 = vunpack.c.l.b16 %v1362
    %v1385 = vpack.c.b16 %v1378, %v1377
    %v1386 = vpack.c.b16 %v1380, %v1379
    %v1387 = vpack.c.b16 %v1382, %v1381
    %v1388 = vpack.c.b16 %v1384, %v1383
    %vm1393 = vcmask 523264
    %v1395 = vsel %vm1393, %v1367, 0
    %v1398 = vsel %vm1393, %v1368, 0
    %1400 = vmatprep.subr.bf16.mxu0 0
    %1401 = vmatpush1.bf16.msra.mxu0 %v1385
    %1402 = vmatprep.subr.bf16.mxu0 0
    %1403 = vmatpush1.bf16.msra.mxu0 %v1386
    %1404 = vmatprep.subr.bf16.mxu0 0
    %1405 = vmatpush1.bf16.msra.mxu0 %v1387
    %1406 = vmatprep.subr.bf16.mxu0 0
    %1407 = vmatpush1.bf16.msra.mxu0 %v1388
    %1408 = vmatprep.subr.bf16.mxu0 0
    %1409 = vmatpush1.bf16.msra.mxu0 0
    %1410 = vmatprep.subr.bf16.mxu0 0
    %1411 = vmatpush1.bf16.msra.mxu0 0
    %1412 = vmatprep.subr.bf16.mxu0 0
    %1413 = vmatpush1.bf16.msra.mxu0 0
    %1414 = vmatprep.subr.bf16.mxu0 0
    %1415 = vmatpush1.bf16.msra.mxu0 0
    %1416 = vmatprep.subr.bf16.mxu0 0
    %1417 = vmatpush1.bf16.msra.mxu0 0
    %1418 = vmatprep.subr.bf16.mxu0 0
    %1419 = vmatpush1.bf16.msra.mxu0 0
    %1420 = vmatprep.subr.bf16.mxu0 0
    %1421 = vmatpush1.bf16.msra.mxu0 0
    %1422 = vmatprep.subr.bf16.mxu0 0
    %1423 = vmatpush1.bf16.msra.mxu0 0
    %1424 = vmatprep.subr.bf16.mxu0 0
    %1425 = vmatpush1.bf16.msra.mxu0 0
    %1426 = vmatprep.subr.bf16.mxu0 0
    %1427 = vmatpush1.bf16.msra.mxu0 0
    %1428 = vmatprep.subr.bf16.mxu0 0
    %1429 = vmatpush1.bf16.msra.mxu0 0
    %1430 = vmatprep.subr.bf16.mxu0 0
    %1431 = vmatpush1.bf16.msra.mxu0 0
    %1432 = vmatprep.mubr.bf16.mxu0 0
    %1433 = vmatmul.mubr.bf16.gmra.mrb[0].mxu0 %v1395
    %v1434 = vpop.f32.mrb[0].mxu0
    %v1435 = vadd.f32 0.0, %v1434
    %v1436 = vpop.f32.mrb[0].mxu0
    %v1437 = vpop.f32.mrb[0].mxu0
    %v1438 = vadd.f32 0.0, %v1437
    %v1439 = vpop.f32.mrb[0].mxu0
    %1440 = vmatprep.mubr.bf16.mxu0 0
    %1441 = vmatmul.mubr.bf16.gmra.mrb[0].mxu0 %v1398
    %v1442 = vpop.f32.mrb[0].mxu0
    %v1443 = vadd.f32 0.0, %v1442
    %v1444 = vpop.f32.mrb[0].mxu0
    %v1445 = vpop.f32.mrb[0].mxu0
    %v1446 = vadd.f32 0.0, %v1445
    %v1447 = vpop.f32.mrb[0].mxu0
    %1448 = vdwg.mxu0
    %v1449 = vunpack.c.l.b16 %v1289
    %v1450 = vunpack.c.l.b16 %v1299
    %v1451 = vunpack.c.l.b16 %v1313
    %v1452 = vunpack.c.l.b16 %v1323
    %v1453 = vpack.c.b16 %v1450, %v1449
    %v1454 = vpack.c.b16 %v1452, %v1451
    %v1463 = vunpack.c.l.b16 %v1324
    %v1464 = vunpack.c.l.b16 %v1325
    %v1465 = vunpack.c.l.b16 %v1326
    %v1466 = vunpack.c.l.b16 %v1327
    %v1467 = vunpack.c.l.b16 %v1328
    %v1468 = vunpack.c.l.b16 %v1329
    %v1469 = vunpack.c.l.b16 %v1330
    %v1470 = vunpack.c.l.b16 %v1331
    %v1471 = vpack.c.b16 %v1464, %v1463
    %v1472 = vpack.c.b16 %v1466, %v1465
    %v1473 = vpack.c.b16 %v1468, %v1467
    %v1474 = vpack.c.b16 %v1470, %v1469
    %v1480 = vsel %vm1393, %v1453, 0
    %v1483 = vsel %vm1393, %v1454, 0
    %1485 = vmatprep.subr.bf16.mxu0 0
    %1486 = vmatpush1.bf16.msra.mxu0 %v1471
    %1487 = vmatprep.subr.bf16.mxu0 0
    %1488 = vmatpush1.bf16.msra.mxu0 %v1472
    %1489 = vmatprep.subr.bf16.mxu0 0
    %1490 = vmatpush1.bf16.msra.mxu0 %v1473
    %1491 = vmatprep.subr.bf16.mxu0 0
    %1492 = vmatpush1.bf16.msra.mxu0 %v1474
    %1493 = vmatprep.subr.bf16.mxu0 0
    %1494 = vmatpush1.bf16.msra.mxu0 0
    %1495 = vmatprep.subr.bf16.mxu0 0
    %1496 = vmatpush1.bf16.msra.mxu0 0
    %1497 = vmatprep.subr.bf16.mxu0 0
    %1498 = vmatpush1.bf16.msra.mxu0 0
    %1499 = vmatprep.subr.bf16.mxu0 0
    %1500 = vmatpush1.bf16.msra.mxu0 0
    %1501 = vmatprep.subr.bf16.mxu0 0
    %1502 = vmatpush1.bf16.msra.mxu0 0
    %1503 = vmatprep.subr.bf16.mxu0 0
    %1504 = vmatpush1.bf16.msra.mxu0 0
    %1505 = vmatprep.subr.bf16.mxu0 0
    %1506 = vmatpush1.bf16.msra.mxu0 0
    %1507 = vmatprep.subr.bf16.mxu0 0
    %1508 = vmatpush1.bf16.msra.mxu0 0
    %1509 = vmatprep.subr.bf16.mxu0 0
    %1510 = vmatpush1.bf16.msra.mxu0 0
    %1511 = vmatprep.subr.bf16.mxu0 0
    %1512 = vmatpush1.bf16.msra.mxu0 0
    %1513 = vmatprep.subr.bf16.mxu0 0
    %1514 = vmatpush1.bf16.msra.mxu0 0
    %1515 = vmatprep.subr.bf16.mxu0 0
    %1516 = vmatpush1.bf16.msra.mxu0 0
    %1517 = vmatprep.mubr.bf16.mxu0 0
    %1518 = vmatmul.mubr.bf16.gmra.mrb[0].mxu0 %v1480
    %v1519 = vpop.f32.mrb[0].mxu0
    %v1520 = vadd.f32 %v1435, %v1519
    %v1521 = vpop.f32.mrb[0].mxu0
    %v1522 = vpop.f32.mrb[0].mxu0
    %v1523 = vadd.f32 %v1438, %v1522
    %v1524 = vpop.f32.mrb[0].mxu0
    %1525 = vmatprep.mubr.bf16.mxu0 0
    %1526 = vmatmul.mubr.bf16.gmra.mrb[0].mxu0 %v1483
    %v1527 = vpop.f32.mrb[0].mxu0
    %v1528 = vadd.f32 %v1443, %v1527
    %v1529 = vpop.f32.mrb[0].mxu0
    %v1530 = vpop.f32.mrb[0].mxu0
    %v1531 = vadd.f32 %v1446, %v1530
    %v1532 = vpop.f32.mrb[0].mxu0
    %1533 = vdwg.mxu0
    %v1534 = vld [vmem:[#allocation3 + $0x8] sm:$0x3]
    %v1535 = vld [vmem:[#allocation3 + $0x14] sm:$0x3]
    %v1537 = vshrl.u32 %v1332, 16
    %v1539 = vrot.slane %v1537, 5
    %v1540 = vshll.u32 %v1332, 16
    %v1542 = vrot.slane %v1540, 6
    %v1543 = vor.u32 %v1539, %v1542
    %v1544 = vrot.slane %v1543, 4
    %v1545 = vrot.slane %v1290, 5
    %v1546 = vrot.slane %v1286, 6
    %v1547 = vor.u32 %v1545, %v1546
    %v1548 = vsel %vm749, %v1544, %v1547
    %v1549 = vrot.slane %v1547, 4
    %v1551 = vshrl.u32 %v1534, 16
    %v1553 = vrot.slane %v1551, 5
    %v1554 = vshll.u32 %v1534, 16
    %v1556 = vrot.slane %v1554, 6
    %v1557 = vor.u32 %v1553, %v1556
    %v1558 = vsel %vm749, %v1549, %v1557
    %v1560 = vshrl.u32 %v1333, 16
    %v1562 = vrot.slane %v1560, 5
    %v1563 = vshll.u32 %v1333, 16
    %v1565 = vrot.slane %v1563, 6
    %v1566 = vor.u32 %v1562, %v1565
    %v1567 = vrot.slane %v1566, 4
    %v1568 = vrot.slane %v1314, 5
    %v1569 = vrot.slane %v1310, 6
    %v1570 = vor.u32 %v1568, %v1569
    %v1571 = vsel %vm749, %v1567, %v1570
    %v1572 = vrot.slane %v1570, 4
    %v1574 = vshrl.u32 %v1535, 16
    %v1576 = vrot.slane %v1574, 5
    %v1577 = vshll.u32 %v1535, 16
    %v1579 = vrot.slane %v1577, 6
    %v1580 = vor.u32 %v1576, %v1579
    %v1581 = vsel %vm749, %v1572, %v1580
    %s1582 = scalar_lea.vmem [#allocation7], 64
    %v1583 = vld [vmem:[%s1582] sm:$0xf]
    %v1584 = vld [vmem:[%s1582 + $0x4] sm:$0xf]
    %v1585 = vld [vmem:[%s1582 + $0x8] sm:$0xf]
    %v1586 = vld [vmem:[%s1582 + $0xc] sm:$0xf]
    %v1587 = vld [vmem:[%s1582 + $0x10] sm:$0xf]
    %v1588 = vld [vmem:[%s1582 + $0x14] sm:$0xf]
    %v1589 = vld [vmem:[%s1582 + $0x18] sm:$0xf]
    %v1590 = vld [vmem:[%s1582 + $0x1c] sm:$0xf]
    %v1591 = vunpack.c.l.b16 %v1548
    %v1592 = vunpack.c.l.b16 %v1558
    %v1593 = vunpack.c.l.b16 %v1571
    %v1594 = vunpack.c.l.b16 %v1581
    %v1595 = vpack.c.b16 %v1592, %v1591
    %v1596 = vpack.c.b16 %v1594, %v1593
    %v1605 = vunpack.c.l.b16 %v1583
    %v1606 = vunpack.c.l.b16 %v1584
    %v1607 = vunpack.c.l.b16 %v1585
    %v1608 = vunpack.c.l.b16 %v1586
    %v1609 = vunpack.c.l.b16 %v1587
    %v1610 = vunpack.c.l.b16 %v1588
    %v1611 = vunpack.c.l.b16 %v1589
    %v1612 = vunpack.c.l.b16 %v1590
    %v1613 = vpack.c.b16 %v1606, %v1605
    %v1614 = vpack.c.b16 %v1608, %v1607
    %v1615 = vpack.c.b16 %v1610, %v1609
    %v1616 = vpack.c.b16 %v1612, %v1611
    %v1622 = vsel %vm1393, %v1595, 0
    %v1625 = vsel %vm1393, %v1596, 0
    %1627 = vmatprep.subr.bf16.mxu0 0
    %1628 = vmatpush1.bf16.msra.mxu0 %v1613
    %1629 = vmatprep.subr.bf16.mxu0 0
    %1630 = vmatpush1.bf16.msra.mxu0 %v1614
    %1631 = vmatprep.subr.bf16.mxu0 0
    %1632 = vmatpush1.bf16.msra.mxu0 %v1615
    %1633 = vmatprep.subr.bf16.mxu0 0
    %1634 = vmatpush1.bf16.msra.mxu0 %v1616
    %1635 = vmatprep.subr.bf16.mxu0 0
    %1636 = vmatpush1.bf16.msra.mxu0 0
    %1637 = vmatprep.subr.bf16.mxu0 0
    %1638 = vmatpush1.bf16.msra.mxu0 0
    %1639 = vmatprep.subr.bf16.mxu0 0
    %1640 = vmatpush1.bf16.msra.mxu0 0
    %1641 = vmatprep.subr.bf16.mxu0 0
    %1642 = vmatpush1.bf16.msra.mxu0 0
    %1643 = vmatprep.subr.bf16.mxu0 0
    %1644 = vmatpush1.bf16.msra.mxu0 0
    %1645 = vmatprep.subr.bf16.mxu0 0
    %1646 = vmatpush1.bf16.msra.mxu0 0
    %1647 = vmatprep.subr.bf16.mxu0 0
    %1648 = vmatpush1.bf16.msra.mxu0 0
    %1649 = vmatprep.subr.bf16.mxu0 0
    %1650 = vmatpush1.bf16.msra.mxu0 0
    %1651 = vmatprep.subr.bf16.mxu0 0
    %1652 = vmatpush1.bf16.msra.mxu0 0
    %1653 = vmatprep.subr.bf16.mxu0 0
    %1654 = vmatpush1.bf16.msra.mxu0 0
    %1655 = vmatprep.subr.bf16.mxu0 0
    %1656 = vmatpush1.bf16.msra.mxu0 0
    %1657 = vmatprep.subr.bf16.mxu0 0
    %1658 = vmatpush1.bf16.msra.mxu0 0
    %1659 = vmatprep.mubr.bf16.mxu0 0
    %1660 = vmatmul.mubr.bf16.gmra.mrb[0].mxu0 %v1622
    %v1661 = vpop.f32.mrb[0].mxu0
    %v1662 = vadd.f32 0.0, %v1661
    %v1663 = vpop.f32.mrb[0].mxu0
    %v1664 = vpop.f32.mrb[0].mxu0
    %v1665 = vadd.f32 0.0, %v1664
    %v1666 = vpop.f32.mrb[0].mxu0
    %1667 = vmatprep.mubr.bf16.mxu0 0
    %1668 = vmatmul.mubr.bf16.gmra.mrb[0].mxu0 %v1625
    %v1669 = vpop.f32.mrb[0].mxu0
    %v1670 = vadd.f32 0.0, %v1669
    %v1671 = vpop.f32.mrb[0].mxu0
    %v1672 = vpop.f32.mrb[0].mxu0
    %v1673 = vadd.f32 0.0, %v1672
    %v1674 = vpop.f32.mrb[0].mxu0
    %1675 = vdwg.mxu0
    %v1676 = vadd.f32 %v1520, %v1662
    %v1677 = vadd.f32 %v1523, %v1665
    %v1678 = vadd.f32 %v1528, %v1670
    %v1679 = vadd.f32 %v1531, %v1673
    %v1680 = vld [vmem:[#allocation3] sm:$0xc]
    %v1681 = vld [vmem:[#allocation3 + $0xc] sm:$0xc]
    %v1686 = vrot.slane %v1680, 6
    %v1687 = vrot.slane %v1686, 4
    %v1688 = vrot.slane %v1271, 6
    %v1689 = vsel %vm874, %v1687, %v1688
    %v1690 = vrot.slane %v1688, 4
    %v1691 = vrot.slane %v1534, 6
    %v1692 = vsel %vm874, %v1690, %v1691
    %v1693 = vrot.slane %v1681, 6
    %v1694 = vrot.slane %v1693, 4
    %v1695 = vrot.slane %v1274, 6
    %v1696 = vsel %vm874, %v1694, %v1695
    %v1697 = vrot.slane %v1695, 4
    %v1698 = vrot.slane %v1535, 6
    %v1699 = vsel %vm874, %v1697, %v1698
    %s1700 = scalar_lea.vmem [#allocation7], 96
    %v1701 = vld [vmem:[%s1700] sm:$0xf]
    %v1702 = vld [vmem:[%s1700 + $0x4] sm:$0xf]
    %v1703 = vld [vmem:[%s1700 + $0x8] sm:$0xf]
    %v1704 = vld [vmem:[%s1700 + $0xc] sm:$0xf]
    %v1705 = vld [vmem:[%s1700 + $0x10] sm:$0xf]
    %v1706 = vld [vmem:[%s1700 + $0x14] sm:$0xf]
    %v1707 = vld [vmem:[%s1700 + $0x18] sm:$0xf]
    %v1708 = vld [vmem:[%s1700 + $0x1c] sm:$0xf]
    %v1709 = vunpack.c.l.b16 %v1689
    %v1710 = vunpack.c.l.b16 %v1692
    %v1711 = vunpack.c.l.b16 %v1696
    %v1712 = vunpack.c.l.b16 %v1699
    %v1713 = vpack.c.b16 %v1710, %v1709
    %v1714 = vpack.c.b16 %v1712, %v1711
    %v1723 = vunpack.c.l.b16 %v1701
    %v1724 = vunpack.c.l.b16 %v1702
    %v1725 = vunpack.c.l.b16 %v1703
    %v1726 = vunpack.c.l.b16 %v1704
    %v1727 = vunpack.c.l.b16 %v1705
    %v1728 = vunpack.c.l.b16 %v1706
    %v1729 = vunpack.c.l.b16 %v1707
    %v1730 = vunpack.c.l.b16 %v1708
    %v1731 = vpack.c.b16 %v1724, %v1723
    %v1732 = vpack.c.b16 %v1726, %v1725
    %v1733 = vpack.c.b16 %v1728, %v1727
    %v1734 = vpack.c.b16 %v1730, %v1729
    %v1740 = vsel %vm1393, %v1713, 0
    %v1743 = vsel %vm1393, %v1714, 0
    %1745 = vmatprep.subr.bf16.mxu0 0
    %1746 = vmatpush1.bf16.msra.mxu0 %v1731
    %1747 = vmatprep.subr.bf16.mxu0 0
    %1748 = vmatpush1.bf16.msra.mxu0 %v1732
    %1749 = vmatprep.subr.bf16.mxu0 0
    %1750 = vmatpush1.bf16.msra.mxu0 %v1733
    %1751 = vmatprep.subr.bf16.mxu0 0
    %1752 = vmatpush1.bf16.msra.mxu0 %v1734
    %1753 = vmatprep.subr.bf16.mxu0 0
    %1754 = vmatpush1.bf16.msra.mxu0 0
    %1755 = vmatprep.subr.bf16.mxu0 0
    %1756 = vmatpush1.bf16.msra.mxu0 0
    %1757 = vmatprep.subr.bf16.mxu0 0
    %1758 = vmatpush1.bf16.msra.mxu0 0
    %1759 = vmatprep.subr.bf16.mxu0 0
    %1760 = vmatpush1.bf16.msra.mxu0 0
    %1761 = vmatprep.subr.bf16.mxu0 0
    %1762 = vmatpush1.bf16.msra.mxu0 0
    %1763 = vmatprep.subr.bf16.mxu0 0
    %1764 = vmatpush1.bf16.msra.mxu0 0
    %1765 = vmatprep.subr.bf16.mxu0 0
    %1766 = vmatpush1.bf16.msra.mxu0 0
    %1767 = vmatprep.subr.bf16.mxu0 0
    %1768 = vmatpush1.bf16.msra.mxu0 0
    %1769 = vmatprep.subr.bf16.mxu0 0
    %1770 = vmatpush1.bf16.msra.mxu0 0
    %1771 = vmatprep.subr.bf16.mxu0 0
    %1772 = vmatpush1.bf16.msra.mxu0 0
    %1773 = vmatprep.subr.bf16.mxu0 0
    %1774 = vmatpush1.bf16.msra.mxu0 0
    %1775 = vmatprep.subr.bf16.mxu0 0
    %1776 = vmatpush1.bf16.msra.mxu0 0
    %1777 = vmatprep.mubr.bf16.mxu0 0
    %1778 = vmatmul.mubr.bf16.gmra.mrb[0].mxu0 %v1740
    %v1779 = vpop.f32.mrb[0].mxu0
    %v1780 = vadd.f32 0.0, %v1779
    %v1781 = vpop.f32.mrb[0].mxu0
    %v1782 = vpop.f32.mrb[0].mxu0
    %v1783 = vadd.f32 0.0, %v1782
    %v1784 = vpop.f32.mrb[0].mxu0
    %1785 = vmatprep.mubr.bf16.mxu0 0
    %1786 = vmatmul.mubr.bf16.gmra.mrb[0].mxu0 %v1743
    %v1787 = vpop.f32.mrb[0].mxu0
    %v1788 = vadd.f32 0.0, %v1787
    %v1789 = vpop.f32.mrb[0].mxu0
    %v1790 = vpop.f32.mrb[0].mxu0
    %v1791 = vadd.f32 0.0, %v1790
    %v1792 = vpop.f32.mrb[0].mxu0
    %1793 = vdwg.mxu0
    %v1794 = vadd.f32 %v1676, %v1780
    %v1795 = vadd.f32 %v1677, %v1783
    %v1796 = vadd.f32 %v1678, %v1788
    %v1797 = vadd.f32 %v1679, %v1791
    %v1798 = vld [vmem:[#allocation3 + $0x8] sm:$0x7]
    %v1799 = vld [vmem:[#allocation3 + $0x14] sm:$0x7]
    %v1801 = vshrl.u32 %v1680, 16
    %v1803 = vrot.slane %v1801, 6
    %v1804 = vshll.u32 %v1680, 16
    %v1806 = vrot.slane %v1804, 7
    %v1807 = vor.u32 %v1803, %v1806
    %v1808 = vrot.slane %v1807, 4
    %v1809 = vrot.slane %v1290, 6
    %v1810 = vrot.slane %v1286, 7
    %v1811 = vor.u32 %v1809, %v1810
    %v1812 = vsel %vm394, %v1808, %v1811
    %v1813 = vrot.slane %v1811, 4
    %v1815 = vshrl.u32 %v1798, 16
    %v1817 = vrot.slane %v1815, 6
    %v1818 = vshll.u32 %v1798, 16
    %v1820 = vrot.slane %v1818, 7
    %v1821 = vor.u32 %v1817, %v1820
    %v1822 = vsel %vm394, %v1813, %v1821
    %v1824 = vshrl.u32 %v1681, 16
    %v1826 = vrot.slane %v1824, 6
    %v1827 = vshll.u32 %v1681, 16
    %v1829 = vrot.slane %v1827, 7
    %v1830 = vor.u32 %v1826, %v1829
    %v1831 = vrot.slane %v1830, 4
    %v1832 = vrot.slane %v1314, 6
    %v1833 = vrot.slane %v1310, 7
    %v1834 = vor.u32 %v1832, %v1833
    %v1835 = vsel %vm394, %v1831, %v1834
    %v1836 = vrot.slane %v1834, 4
    %v1838 = vshrl.u32 %v1799, 16
    %v1840 = vrot.slane %v1838, 6
    %v1841 = vshll.u32 %v1799, 16
    %v1843 = vrot.slane %v1841, 7
    %v1844 = vor.u32 %v1840, %v1843
    %v1845 = vsel %vm394, %v1836, %v1844
    %s1846 = scalar_lea.vmem [#allocation7], 128
    %v1847 = vld [vmem:[%s1846] sm:$0xf]
    %v1848 = vld [vmem:[%s1846 + $0x4] sm:$0xf]
    %v1849 = vld [vmem:[%s1846 + $0x8] sm:$0xf]
    %v1850 = vld [vmem:[%s1846 + $0xc] sm:$0xf]
    %v1851 = vld [vmem:[%s1846 + $0x10] sm:$0xf]
    %v1852 = vld [vmem:[%s1846 + $0x14] sm:$0xf]
    %v1853 = vld [vmem:[%s1846 + $0x18] sm:$0xf]
    %v1854 = vld [vmem:[%s1846 + $0x1c] sm:$0xf]
    %v1855 = vunpack.c.l.b16 %v1812
    %v1856 = vunpack.c.l.b16 %v1822
    %v1857 = vunpack.c.l.b16 %v1835
    %v1858 = vunpack.c.l.b16 %v1845
    %v1859 = vpack.c.b16 %v1856, %v1855
    %v1860 = vpack.c.b16 %v1858, %v1857
    %v1869 = vunpack.c.l.b16 %v1847
    %v1870 = vunpack.c.l.b16 %v1848
    %v1871 = vunpack.c.l.b16 %v1849
    %v1872 = vunpack.c.l.b16 %v1850
    %v1873 = vunpack.c.l.b16 %v1851
    %v1874 = vunpack.c.l.b16 %v1852
    %v1875 = vunpack.c.l.b16 %v1853
    %v1876 = vunpack.c.l.b16 %v1854
    %v1877 = vpack.c.b16 %v1870, %v1869
    %v1878 = vpack.c.b16 %v1872, %v1871
    %v1879 = vpack.c.b16 %v1874, %v1873
    %v1880 = vpack.c.b16 %v1876, %v1875
    %v1886 = vsel %vm1393, %v1859, 0
    %v1889 = vsel %vm1393, %v1860, 0
    %1891 = vmatprep.subr.bf16.mxu0 0
    %1892 = vmatpush1.bf16.msra.mxu0 %v1877
    %1893 = vmatprep.subr.bf16.mxu0 0
    %1894 = vmatpush1.bf16.msra.mxu0 %v1878
    %1895 = vmatprep.subr.bf16.mxu0 0
    %1896 = vmatpush1.bf16.msra.mxu0 %v1879
    %1897 = vmatprep.subr.bf16.mxu0 0
    %1898 = vmatpush1.bf16.msra.mxu0 %v1880
    %1899 = vmatprep.subr.bf16.mxu0 0
    %1900 = vmatpush1.bf16.msra.mxu0 0
    %1901 = vmatprep.subr.bf16.mxu0 0
    %1902 = vmatpush1.bf16.msra.mxu0 0
    %1903 = vmatprep.subr.bf16.mxu0 0
    %1904 = vmatpush1.bf16.msra.mxu0 0
    %1905 = vmatprep.subr.bf16.mxu0 0
    %1906 = vmatpush1.bf16.msra.mxu0 0
    %1907 = vmatprep.subr.bf16.mxu0 0
    %1908 = vmatpush1.bf16.msra.mxu0 0
    %1909 = vmatprep.subr.bf16.mxu0 0
    %1910 = vmatpush1.bf16.msra.mxu0 0
    %1911 = vmatprep.subr.bf16.mxu0 0
    %1912 = vmatpush1.bf16.msra.mxu0 0
    %1913 = vmatprep.subr.bf16.mxu0 0
    %1914 = vmatpush1.bf16.msra.mxu0 0
    %1915 = vmatprep.subr.bf16.mxu0 0
    %1916 = vmatpush1.bf16.msra.mxu0 0
    %1917 = vmatprep.subr.bf16.mxu0 0
    %1918 = vmatpush1.bf16.msra.mxu0 0
    %1919 = vmatprep.subr.bf16.mxu0 0
    %1920 = vmatpush1.bf16.msra.mxu0 0
    %1921 = vmatprep.subr.bf16.mxu0 0
    %1922 = vmatpush1.bf16.msra.mxu0 0
    %1923 = vmatprep.mubr.bf16.mxu0 0
    %1924 = vmatmul.mubr.bf16.gmra.mrb[0].mxu0 %v1886
    %v1925 = vpop.f32.mrb[0].mxu0
    %v1926 = vadd.f32 0.0, %v1925
    %v1927 = vpop.f32.mrb[0].mxu0
    %v1928 = vpop.f32.mrb[0].mxu0
    %v1929 = vadd.f32 0.0, %v1928
    %v1930 = vpop.f32.mrb[0].mxu0
    %1931 = vmatprep.mubr.bf16.mxu0 0
    %1932 = vmatmul.mubr.bf16.gmra.mrb[0].mxu0 %v1889
    %v1933 = vpop.f32.mrb[0].mxu0
    %v1934 = vadd.f32 0.0, %v1933
    %v1935 = vpop.f32.mrb[0].mxu0
    %v1936 = vpop.f32.mrb[0].mxu0
    %v1937 = vadd.f32 0.0, %v1936
    %v1938 = vpop.f32.mrb[0].mxu0
    %1939 = vdwg.mxu0
    %v1940 = vadd.f32 %v1794, %v1926
    %v1941 = vadd.f32 %v1795, %v1929
    %v1942 = vadd.f32 %v1796, %v1934
    %v1943 = vadd.f32 %v1797, %v1937
    %v1944 = vld [vmem:[#allocation9] sm:$0x1]
    %v1946 = vlaneseq
    %v1947 = vshrl.u32 %v1946, 7
    %v1948 = vsub.s32 0, %v1947
    %v1949 = vrot.slane %v1944, %v1948
    %v1951 = vmul.f32 %v1940, %v1949
    %v1952 = vmul.f32 %v1941, %v1949
    %v1953 = vmul.f32 %v1942, %v1949
    %v1954 = vmul.f32 %v1943, %v1949
    %v1955 = vld [vmem:[#allocation10] sm:$0x1]
    %v1957 = vlaneseq
    %v1958 = vshrl.u32 %v1957, 7
    %v1959 = vsub.s32 0, %v1958
    %v1960 = vrot.slane %v1955, %v1959
    %v1962 = vadd.f32 %v1951, %v1960
    %v1963 = vadd.f32 %v1952, %v1960
    %v1964 = vadd.f32 %v1953, %v1960
    %v1965 = vadd.f32 %v1954, %v1960
    %v1966 = vmax.f32 %v1962, 0.0
    %v1967 = vmax.f32 %v1963, 0.0
    %v1968 = vmax.f32 %v1964, 0.0
    %v1969 = vmax.f32 %v1965, 0.0
    %v1970 = vpack.c.bf16 %v1967, %v1966
    %v1971 = vpack.c.bf16 %v1969, %v1968
    %v1974 = vunpack.c.l.b16 %v1970
    %v1975 = vunpack.c.h.b16 %v1970
    %v1976 = vunpack.c.l.b16 %v1971
    %v1977 = vunpack.c.h.b16 %v1971
    %v1978 = vpack.c.b16 %v1974, %v1974
    %v1979 = vpack.c.b16 %v1975, %v1975
    %v1980 = vpack.c.b16 %v1976, %v1976
    %v1981 = vpack.c.b16 %v1977, %v1977
    %v1983 = vshrl.u32 %v1978, 16
    %v1985 = vrot.slane %v1983, 6
    %v1986 = vshll.u32 %v1978, 16
    %v1988 = vrot.slane %v1986, 7
    %v1989 = vor.u32 %v1985, %v1988
    %v1990 = vrot.slane %v1989, 4
    %v1992 = vshrl.u32 %v1979, 16
    %v1994 = vrot.slane %v1992, 6
    %v1995 = vshll.u32 %v1979, 16
    %v1997 = vrot.slane %v1995, 7
    %v1998 = vor.u32 %v1994, %v1997
    %v1999 = vsel %vm394, %v1990, %v1998
    %v2000 = vrot.slane %v1998, 4
    %v2002 = vshrl.u32 %v1980, 16
    %v2004 = vrot.slane %v2002, 6
    %v2005 = vshll.u32 %v1980, 16
    %v2007 = vrot.slane %v2005, 7
    %v2008 = vor.u32 %v2004, %v2007
    %v2009 = vrot.slane %v2008, 4
    %v2011 = vshrl.u32 %v1981, 16
    %v2013 = vrot.slane %v2011, 6
    %v2014 = vshll.u32 %v1981, 16
    %v2016 = vrot.slane %v2014, 7
    %v2017 = vor.u32 %v2013, %v2016
    %v2018 = vsel %vm394, %v2009, %v2017
    %v2019 = vrot.slane %v2017, 4
    %v2026 = vsel %vm1253, %v1989, %v1332
    %2027 = vst [vmem:[#allocation3] sm:$0xe] %v2026
    %2028 = vst.msk [vmem:[#allocation3 + $0x4] sm:$0xf] %vm376, %v1999
    %v2029 = vld [vmem:[#allocation3 + $0x8] sm:$0x3]
    %v2030 = vsel %vm1259, %v2000, %v2029
    %2031 = vst [vmem:[#allocation3 + $0x8] sm:$0x3] %v2030
    %v2032 = vld [vmem:[#allocation3 + $0xc] sm:$0xe]
    %v2033 = vsel %vm1253, %v2008, %v2032
    %2034 = vst [vmem:[#allocation3 + $0xc] sm:$0xe] %v2033
    %2035 = vst.msk [vmem:[#allocation3 + $0x10] sm:$0xf] %vm376, %v2018
    %v2036 = vld [vmem:[#allocation3 + $0x14] sm:$0x3]
    %v2037 = vsel %vm1259, %v2019, %v2036
    %2038 = vst [vmem:[#allocation3 + $0x14] sm:$0x3] %v2037
    %v2039 = vld [vmem:[#allocation3] sm:$0xe]
    %v2040 = vld [vmem:[#allocation3 + $0x4] sm:$0xf]
    %v2041 = vld [vmem:[#allocation3 + $0x8] sm:$0x1]
    %v2042 = vld [vmem:[#allocation3 + $0xc] sm:$0xe]
    %v2043 = vld [vmem:[#allocation3 + $0x10] sm:$0xf]
    %v2044 = vld [vmem:[#allocation3 + $0x14] sm:$0x1]
    %v2051 = vrot.slane %v2039, 5
    %v2052 = vrot.slane %v2051, 4
    %v2053 = vrot.slane %v2040, 5
    %v2054 = vsel %vm660, %v2052, %v2053
    %v2055 = vrot.slane %v2053, 4
    %v2056 = vrot.slane %v2041, 5
    %v2057 = vsel %vm660, %v2055, %v2056
    %v2058 = vrot.slane %v2042, 5
    %v2059 = vrot.slane %v2058, 4
    %v2060 = vrot.slane %v2043, 5
    %v2061 = vsel %vm660, %v2059, %v2060
    %v2062 = vrot.slane %v2060, 4
    %v2063 = vrot.slane %v2044, 5
    %v2064 = vsel %vm660, %v2062, %v2063
    %v2065 = vld [vmem:[#allocation12] sm:$0xf]
    %v2066 = vld [vmem:[#allocation12 + $0x4] sm:$0xf]
    %v2067 = vld [vmem:[#allocation12 + $0x8] sm:$0xf]
    %v2068 = vld [vmem:[#allocation12 + $0xc] sm:$0xf]
    %v2069 = vld [vmem:[#allocation12 + $0x10] sm:$0xf]
    %v2070 = vld [vmem:[#allocation12 + $0x14] sm:$0xf]
    %v2071 = vld [vmem:[#allocation12 + $0x18] sm:$0xf]
    %v2072 = vld [vmem:[#allocation12 + $0x1c] sm:$0xf]
    %v2073 = vld [vmem:[#allocation3 + $0x8] sm:$0x3]
    %v2074 = vld [vmem:[#allocation3 + $0x14] sm:$0x3]
    %v2076 = vshrl.u32 %v2039, 16
    %v2078 = vrot.slane %v2076, 5
    %v2079 = vshll.u32 %v2039, 16
    %v2081 = vrot.slane %v2079, 6
    %v2082 = vor.u32 %v2078, %v2081
    %v2083 = vrot.slane %v2082, 4
    %v2085 = vshrl.u32 %v2040, 16
    %v2087 = vrot.slane %v2085, 5
    %v2088 = vshll.u32 %v2040, 16
    %v2090 = vrot.slane %v2088, 6
    %v2091 = vor.u32 %v2087, %v2090
    %v2092 = vsel %vm749, %v2083, %v2091
    %v2093 = vrot.slane %v2091, 4
    %v2095 = vshrl.u32 %v2073, 16
    %v2097 = vrot.slane %v2095, 5
    %v2098 = vshll.u32 %v2073, 16
    %v2100 = vrot.slane %v2098, 6
    %v2101 = vor.u32 %v2097, %v2100
    %v2102 = vsel %vm749, %v2093, %v2101
    %v2104 = vshrl.u32 %v2042, 16
    %v2106 = vrot.slane %v2104, 5
    %v2107 = vshll.u32 %v2042, 16
    %v2109 = vrot.slane %v2107, 6
    %v2110 = vor.u32 %v2106, %v2109
    %v2111 = vrot.slane %v2110, 4
    %v2113 = vshrl.u32 %v2043, 16
    %v2115 = vrot.slane %v2113, 5
    %v2116 = vshll.u32 %v2043, 16
    %v2118 = vrot.slane %v2116, 6
    %v2119 = vor.u32 %v2115, %v2118
    %v2120 = vsel %vm749, %v2111, %v2119
    %v2121 = vrot.slane %v2119, 4
    %v2123 = vshrl.u32 %v2074, 16
    %v2125 = vrot.slane %v2123, 5
    %v2126 = vshll.u32 %v2074, 16
    %v2128 = vrot.slane %v2126, 6
    %v2129 = vor.u32 %v2125, %v2128
    %v2130 = vsel %vm749, %v2121, %v2129
    %s2131 = scalar_lea.vmem [#allocation12], 32
    %v2132 = vld [vmem:[%s2131] sm:$0xf]
    %v2133 = vld [vmem:[%s2131 + $0x4] sm:$0xf]
    %v2134 = vld [vmem:[%s2131 + $0x8] sm:$0xf]
    %v2135 = vld [vmem:[%s2131 + $0xc] sm:$0xf]
    %v2136 = vld [vmem:[%s2131 + $0x10] sm:$0xf]
    %v2137 = vld [vmem:[%s2131 + $0x14] sm:$0xf]
    %v2138 = vld [vmem:[%s2131 + $0x18] sm:$0xf]
    %v2139 = vld [vmem:[%s2131 + $0x1c] sm:$0xf]
    %v2140 = vunpack.c.l.b16 %v2092
    %v2141 = vunpack.c.l.b16 %v2102
    %v2142 = vunpack.c.l.b16 %v2120
    %v2143 = vunpack.c.l.b16 %v2130
    %v2144 = vpack.c.b16 %v2141, %v2140
    %v2145 = vpack.c.b16 %v2143, %v2142
    %v2154 = vunpack.c.l.b16 %v2132
    %v2155 = vunpack.c.l.b16 %v2133
    %v2156 = vunpack.c.l.b16 %v2134
    %v2157 = vunpack.c.l.b16 %v2135
    %v2158 = vunpack.c.l.b16 %v2136
    %v2159 = vunpack.c.l.b16 %v2137
    %v2160 = vunpack.c.l.b16 %v2138
    %v2161 = vunpack.c.l.b16 %v2139
    %v2162 = vpack.c.b16 %v2155, %v2154
    %v2163 = vpack.c.b16 %v2157, %v2156
    %v2164 = vpack.c.b16 %v2159, %v2158
    %v2165 = vpack.c.b16 %v2161, %v2160
    %v2171 = vsel %vm1393, %v2144, 0
    %v2174 = vsel %vm1393, %v2145, 0
    %2176 = vmatprep.subr.bf16.mxu0 0
    %2177 = vmatpush1.bf16.msra.mxu0 %v2162
    %2178 = vmatprep.subr.bf16.mxu0 0
    %2179 = vmatpush1.bf16.msra.mxu0 %v2163
    %2180 = vmatprep.subr.bf16.mxu0 0
    %2181 = vmatpush1.bf16.msra.mxu0 %v2164
    %2182 = vmatprep.subr.bf16.mxu0 0
    %2183 = vmatpush1.bf16.msra.mxu0 %v2165
    %2184 = vmatprep.subr.bf16.mxu0 0
    %2185 = vmatpush1.bf16.msra.mxu0 0
    %2186 = vmatprep.subr.bf16.mxu0 0
    %2187 = vmatpush1.bf16.msra.mxu0 0
    %2188 = vmatprep.subr.bf16.mxu0 0
    %2189 = vmatpush1.bf16.msra.mxu0 0
    %2190 = vmatprep.subr.bf16.mxu0 0
    %2191 = vmatpush1.bf16.msra.mxu0 0
    %2192 = vmatprep.subr.bf16.mxu0 0
    %2193 = vmatpush1.bf16.msra.mxu0 0
    %2194 = vmatprep.subr.bf16.mxu0 0
    %2195 = vmatpush1.bf16.msra.mxu0 0
    %2196 = vmatprep.subr.bf16.mxu0 0
    %2197 = vmatpush1.bf16.msra.mxu0 0
    %2198 = vmatprep.subr.bf16.mxu0 0
    %2199 = vmatpush1.bf16.msra.mxu0 0
    %2200 = vmatprep.subr.bf16.mxu0 0
    %2201 = vmatpush1.bf16.msra.mxu0 0
    %2202 = vmatprep.subr.bf16.mxu0 0
    %2203 = vmatpush1.bf16.msra.mxu0 0
    %2204 = vmatprep.subr.bf16.mxu0 0
    %2205 = vmatpush1.bf16.msra.mxu0 0
    %2206 = vmatprep.subr.bf16.mxu0 0
    %2207 = vmatpush1.bf16.msra.mxu0 0
    %2208 = vmatprep.mubr.bf16.mxu0 0
    %2209 = vmatmul.mubr.bf16.gmra.mrb[0].mxu0 %v2171
    %v2210 = vpop.f32.mrb[0].mxu0
    %v2211 = vadd.f32 0.0, %v2210
    %v2212 = vpop.f32.mrb[0].mxu0
    %v2213 = vpop.f32.mrb[0].mxu0
    %v2214 = vadd.f32 0.0, %v2213
    %v2215 = vpop.f32.mrb[0].mxu0
    %2216 = vmatprep.mubr.bf16.mxu0 0
    %2217 = vmatmul.mubr.bf16.gmra.mrb[0].mxu0 %v2174
    %v2218 = vpop.f32.mrb[0].mxu0
    %v2219 = vadd.f32 0.0, %v2218
    %v2220 = vpop.f32.mrb[0].mxu0
    %v2221 = vpop.f32.mrb[0].mxu0
    %v2222 = vadd.f32 0.0, %v2221
    %v2223 = vpop.f32.mrb[0].mxu0
    %2224 = vdwg.mxu0
    %v2225 = vunpack.c.l.b16 %v2054
    %v2226 = vunpack.c.l.b16 %v2057
    %v2227 = vunpack.c.l.b16 %v2061
    %v2228 = vunpack.c.l.b16 %v2064
    %v2229 = vpack.c.b16 %v2226, %v2225
    %v2230 = vpack.c.b16 %v2228, %v2227
    %v2239 = vunpack.c.l.b16 %v2065
    %v2240 = vunpack.c.l.b16 %v2066
    %v2241 = vunpack.c.l.b16 %v2067
    %v2242 = vunpack.c.l.b16 %v2068
    %v2243 = vunpack.c.l.b16 %v2069
    %v2244 = vunpack.c.l.b16 %v2070
    %v2245 = vunpack.c.l.b16 %v2071
    %v2246 = vunpack.c.l.b16 %v2072
    %v2247 = vpack.c.b16 %v2240, %v2239
    %v2248 = vpack.c.b16 %v2242, %v2241
    %v2249 = vpack.c.b16 %v2244, %v2243
    %v2250 = vpack.c.b16 %v2246, %v2245
    %v2256 = vsel %vm1393, %v2229, 0
    %v2259 = vsel %vm1393, %v2230, 0
    %2261 = vmatprep.subr.bf16.mxu0 0
    %2262 = vmatpush1.bf16.msra.mxu0 %v2247
    %2263 = vmatprep.subr.bf16.mxu0 0
    %2264 = vmatpush1.bf16.msra.mxu0 %v2248
    %2265 = vmatprep.subr.bf16.mxu0 0
    %2266 = vmatpush1.bf16.msra.mxu0 %v2249
    %2267 = vmatprep.subr.bf16.mxu0 0
    %2268 = vmatpush1.bf16.msra.mxu0 %v2250
    %2269 = vmatprep.subr.bf16.mxu0 0
    %2270 = vmatpush1.bf16.msra.mxu0 0
    %2271 = vmatprep.subr.bf16.mxu0 0
    %2272 = vmatpush1.bf16.msra.mxu0 0
    %2273 = vmatprep.subr.bf16.mxu0 0
    %2274 = vmatpush1.bf16.msra.mxu0 0
    %2275 = vmatprep.subr.bf16.mxu0 0
    %2276 = vmatpush1.bf16.msra.mxu0 0
    %2277 = vmatprep.subr.bf16.mxu0 0
    %2278 = vmatpush1.bf16.msra.mxu0 0
    %2279 = vmatprep.subr.bf16.mxu0 0
    %2280 = vmatpush1.bf16.msra.mxu0 0
    %2281 = vmatprep.subr.bf16.mxu0 0
    %2282 = vmatpush1.bf16.msra.mxu0 0
    %2283 = vmatprep.subr.bf16.mxu0 0
    %2284 = vmatpush1.bf16.msra.mxu0 0
    %2285 = vmatprep.subr.bf16.mxu0 0
    %2286 = vmatpush1.bf16.msra.mxu0 0
    %2287 = vmatprep.subr.bf16.mxu0 0
    %2288 = vmatpush1.bf16.msra.mxu0 0
    %2289 = vmatprep.subr.bf16.mxu0 0
    %2290 = vmatpush1.bf16.msra.mxu0 0
    %2291 = vmatprep.subr.bf16.mxu0 0
    %2292 = vmatpush1.bf16.msra.mxu0 0
    %2293 = vmatprep.mubr.bf16.mxu0 0
    %2294 = vmatmul.mubr.bf16.gmra.mrb[0].mxu0 %v2256
    %v2295 = vpop.f32.mrb[0].mxu0
    %v2296 = vadd.f32 %v2211, %v2295
    %v2297 = vpop.f32.mrb[0].mxu0
    %v2298 = vpop.f32.mrb[0].mxu0
    %v2299 = vadd.f32 %v2214, %v2298
    %v2300 = vpop.f32.mrb[0].mxu0
    %2301 = vmatprep.mubr.bf16.mxu0 0
    %2302 = vmatmul.mubr.bf16.gmra.mrb[0].mxu0 %v2259
    %v2303 = vpop.f32.mrb[0].mxu0
    %v2304 = vadd.f32 %v2219, %v2303
    %v2305 = vpop.f32.mrb[0].mxu0
    %v2306 = vpop.f32.mrb[0].mxu0
    %v2307 = vadd.f32 %v2222, %v2306
    %v2308 = vpop.f32.mrb[0].mxu0
    %2309 = vdwg.mxu0
    %v2310 = vld [vmem:[#allocation3] sm:$0xc]
    %v2311 = vld [vmem:[#allocation3 + $0xc] sm:$0xc]
    %v2316 = vrot.slane %v2310, 6
    %v2317 = vrot.slane %v2316, 4
    %v2318 = vrot.slane %v2040, 6
    %v2319 = vsel %vm874, %v2317, %v2318
    %v2320 = vrot.slane %v2318, 4
    %v2321 = vrot.slane %v2073, 6
    %v2322 = vsel %vm874, %v2320, %v2321
    %v2323 = vrot.slane %v2311, 6
    %v2324 = vrot.slane %v2323, 4
    %v2325 = vrot.slane %v2043, 6
    %v2326 = vsel %vm874, %v2324, %v2325
    %v2327 = vrot.slane %v2325, 4
    %v2328 = vrot.slane %v2074, 6
    %v2329 = vsel %vm874, %v2327, %v2328
    %s2330 = scalar_lea.vmem [#allocation12], 64
    %v2331 = vld [vmem:[%s2330] sm:$0xf]
    %v2332 = vld [vmem:[%s2330 + $0x4] sm:$0xf]
    %v2333 = vld [vmem:[%s2330 + $0x8] sm:$0xf]
    %v2334 = vld [vmem:[%s2330 + $0xc] sm:$0xf]
    %v2335 = vld [vmem:[%s2330 + $0x10] sm:$0xf]
    %v2336 = vld [vmem:[%s2330 + $0x14] sm:$0xf]
    %v2337 = vld [vmem:[%s2330 + $0x18] sm:$0xf]
    %v2338 = vld [vmem:[%s2330 + $0x1c] sm:$0xf]
    %v2339 = vunpack.c.l.b16 %v2319
    %v2340 = vunpack.c.l.b16 %v2322
    %v2341 = vunpack.c.l.b16 %v2326
    %v2342 = vunpack.c.l.b16 %v2329
    %v2343 = vpack.c.b16 %v2340, %v2339
    %v2344 = vpack.c.b16 %v2342, %v2341
    %v2353 = vunpack.c.l.b16 %v2331
    %v2354 = vunpack.c.l.b16 %v2332
    %v2355 = vunpack.c.l.b16 %v2333
    %v2356 = vunpack.c.l.b16 %v2334
    %v2357 = vunpack.c.l.b16 %v2335
    %v2358 = vunpack.c.l.b16 %v2336
    %v2359 = vunpack.c.l.b16 %v2337
    %v2360 = vunpack.c.l.b16 %v2338
    %v2361 = vpack.c.b16 %v2354, %v2353
    %v2362 = vpack.c.b16 %v2356, %v2355
    %v2363 = vpack.c.b16 %v2358, %v2357
    %v2364 = vpack.c.b16 %v2360, %v2359
    %v2370 = vsel %vm1393, %v2343, 0
    %v2373 = vsel %vm1393, %v2344, 0
    %2375 = vmatprep.subr.bf16.mxu0 0
    %2376 = vmatpush1.bf16.msra.mxu0 %v2361
    %2377 = vmatprep.subr.bf16.mxu0 0
    %2378 = vmatpush1.bf16.msra.mxu0 %v2362
    %2379 = vmatprep.subr.bf16.mxu0 0
    %2380 = vmatpush1.bf16.msra.mxu0 %v2363
    %2381 = vmatprep.subr.bf16.mxu0 0
    %2382 = vmatpush1.bf16.msra.mxu0 %v2364
    %2383 = vmatprep.subr.bf16.mxu0 0
    %2384 = vmatpush1.bf16.msra.mxu0 0
    %2385 = vmatprep.subr.bf16.mxu0 0
    %2386 = vmatpush1.bf16.msra.mxu0 0
    %2387 = vmatprep.subr.bf16.mxu0 0
    %2388 = vmatpush1.bf16.msra.mxu0 0
    %2389 = vmatprep.subr.bf16.mxu0 0
    %2390 = vmatpush1.bf16.msra.mxu0 0
    %2391 = vmatprep.subr.bf16.mxu0 0
    %2392 = vmatpush1.bf16.msra.mxu0 0
    %2393 = vmatprep.subr.bf16.mxu0 0
    %2394 = vmatpush1.bf16.msra.mxu0 0
    %2395 = vmatprep.subr.bf16.mxu0 0
    %2396 = vmatpush1.bf16.msra.mxu0 0
    %2397 = vmatprep.subr.bf16.mxu0 0
    %2398 = vmatpush1.bf16.msra.mxu0 0
    %2399 = vmatprep.subr.bf16.mxu0 0
    %2400 = vmatpush1.bf16.msra.mxu0 0
    %2401 = vmatprep.subr.bf16.mxu0 0
    %2402 = vmatpush1.bf16.msra.mxu0 0
    %2403 = vmatprep.subr.bf16.mxu0 0
    %2404 = vmatpush1.bf16.msra.mxu0 0
    %2405 = vmatprep.subr.bf16.mxu0 0
    %2406 = vmatpush1.bf16.msra.mxu0 0
    %2407 = vmatprep.mubr.bf16.mxu0 0
    %2408 = vmatmul.mubr.bf16.gmra.mrb[0].mxu0 %v2370
    %v2409 = vpop.f32.mrb[0].mxu0
    %v2410 = vadd.f32 0.0, %v2409
    %v2411 = vpop.f32.mrb[0].mxu0
    %v2412 = vpop.f32.mrb[0].mxu0
    %v2413 = vadd.f32 0.0, %v2412
    %v2414 = vpop.f32.mrb[0].mxu0
    %2415 = vmatprep.mubr.bf16.mxu0 0
    %2416 = vmatmul.mubr.bf16.gmra.mrb[0].mxu0 %v2373
    %v2417 = vpop.f32.mrb[0].mxu0
    %v2418 = vadd.f32 0.0, %v2417
    %v2419 = vpop.f32.mrb[0].mxu0
    %v2420 = vpop.f32.mrb[0].mxu0
    %v2421 = vadd.f32 0.0, %v2420
    %v2422 = vpop.f32.mrb[0].mxu0
    %2423 = vdwg.mxu0
    %v2424 = vadd.f32 %v2296, %v2410
    %v2425 = vadd.f32 %v2299, %v2413
    %v2426 = vadd.f32 %v2304, %v2418
    %v2427 = vadd.f32 %v2307, %v2421
    %v2428 = vld [vmem:[#allocation13] sm:$0x1]
    %v2430 = vlaneseq
    %v2431 = vshrl.u32 %v2430, 7
    %v2432 = vsub.s32 0, %v2431
    %v2433 = vrot.slane %v2428, %v2432
    %v2435 = vmul.f32 %v2424, %v2433
    %v2436 = vmul.f32 %v2425, %v2433
    %v2437 = vmul.f32 %v2426, %v2433
    %v2438 = vmul.f32 %v2427, %v2433
    %v2439 = vld [vmem:[#allocation15] sm:$0x1]
    %v2441 = vlaneseq
    %v2442 = vshrl.u32 %v2441, 7
    %v2443 = vsub.s32 0, %v2442
    %v2444 = vrot.slane %v2439, %v2443
    %v2446 = vadd.f32 %v2435, %v2444
    %v2447 = vadd.f32 %v2436, %v2444
    %v2448 = vadd.f32 %v2437, %v2444
    %v2449 = vadd.f32 %v2438, %v2444
    %v2450 = vpack.c.bf16 %v389, %v388
    %v2451 = vpack.c.bf16 %v391, %v390
    %v2452 = vld [vmem:[%s21] sm:$0x3]
    %v2454 = vsel %vm524, %v2450, 0
    %v2457 = vsel %vm524, %v2451, 0
    %v2460 = vsel %vm531, %v2452, 0
    %2462 = vmatprep.subr.bf16.mxu0 0
    %2463 = vmatpush1.bf16.msra.mxu0 %v2460
    %2464 = vmatprep.subr.bf16.mxu0 0
    %2465 = vmatpush1.bf16.msra.mxu0 0
    %2466 = vmatprep.subr.bf16.mxu0 0
    %2467 = vmatpush1.bf16.msra.mxu0 0
    %2468 = vmatprep.subr.bf16.mxu0 0
    %2469 = vmatpush1.bf16.msra.mxu0 0
    %2470 = vmatprep.subr.bf16.mxu0 0
    %2471 = vmatpush1.bf16.msra.mxu0 0
    %2472 = vmatprep.subr.bf16.mxu0 0
    %2473 = vmatpush1.bf16.msra.mxu0 0
    %2474 = vmatprep.subr.bf16.mxu0 0
    %2475 = vmatpush1.bf16.msra.mxu0 0
    %2476 = vmatprep.subr.bf16.mxu0 0
    %2477 = vmatpush1.bf16.msra.mxu0 0
    %2478 = vmatprep.subr.bf16.mxu0 0
    %2479 = vmatpush1.bf16.msra.mxu0 0
    %2480 = vmatprep.subr.bf16.mxu0 0
    %2481 = vmatpush1.bf16.msra.mxu0 0
    %2482 = vmatprep.subr.bf16.mxu0 0
    %2483 = vmatpush1.bf16.msra.mxu0 0
    %2484 = vmatprep.subr.bf16.mxu0 0
    %2485 = vmatpush1.bf16.msra.mxu0 0
    %2486 = vmatprep.subr.bf16.mxu0 0
    %2487 = vmatpush1.bf16.msra.mxu0 0
    %2488 = vmatprep.subr.bf16.mxu0 0
    %2489 = vmatpush1.bf16.msra.mxu0 0
    %2490 = vmatprep.subr.bf16.mxu0 0
    %2491 = vmatpush1.bf16.msra.mxu0 0
    %2492 = vmatprep.subr.bf16.mxu0 0
    %2493 = vmatpush1.bf16.msra.mxu0 0
    %2494 = vmatprep.mubr.bf16.mxu0 0
    %2495 = vmatmul.mubr.bf16.gmra.mrb[0].mxu0 %v2454
    %v2496 = vpop.f32.mrb[0].mxu0
    %v2497 = vadd.f32 0.0, %v2496
    %v2498 = vpop.f32.mrb[0].mxu0
    %v2499 = vpop.f32.mrb[0].mxu0
    %v2500 = vadd.f32 0.0, %v2499
    %v2501 = vpop.f32.mrb[0].mxu0
    %2502 = vmatprep.mubr.bf16.mxu0 0
    %2503 = vmatmul.mubr.bf16.gmra.mrb[0].mxu0 %v2457
    %v2504 = vpop.f32.mrb[0].mxu0
    %v2505 = vadd.f32 0.0, %v2504
    %v2506 = vpop.f32.mrb[0].mxu0
    %v2507 = vpop.f32.mrb[0].mxu0
    %v2508 = vadd.f32 0.0, %v2507
    %v2509 = vpop.f32.mrb[0].mxu0
    %2510 = vdwg.mxu0
    %v2511 = vld [vmem:[#allocation16] sm:$0x1]
    %v2513 = vlaneseq
    %v2514 = vshrl.u32 %v2513, 7
    %v2515 = vsub.s32 0, %v2514
    %v2516 = vrot.slane %v2511, %v2515
    %v2518 = vmul.f32 %v2497, %v2516
    %v2519 = vmul.f32 %v2500, %v2516
    %v2520 = vmul.f32 %v2505, %v2516
    %v2521 = vmul.f32 %v2508, %v2516
    %v2522 = vld [vmem:[#allocation18] sm:$0x1]
    %v2524 = vlaneseq
    %v2525 = vshrl.u32 %v2524, 7
    %v2526 = vsub.s32 0, %v2525
    %v2527 = vrot.slane %v2522, %v2526
    %v2529 = vadd.f32 %v2518, %v2527
    %v2530 = vadd.f32 %v2519, %v2527
    %v2531 = vadd.f32 %v2520, %v2527
    %v2532 = vadd.f32 %v2521, %v2527
    %v2533 = vadd.f32 %v2446, %v2529
    %v2534 = vadd.f32 %v2447, %v2530
    %v2535 = vadd.f32 %v2448, %v2531
    %v2536 = vadd.f32 %v2449, %v2532
    %v2537 = vmax.f32 %v2533, 0.0
    %v2538 = vmax.f32 %v2534, 0.0
    %v2539 = vmax.f32 %v2535, 0.0
    %v2540 = vmax.f32 %v2536, 0.0
    %v2541 = vpack.c.bf16 %v2538, %v2537
    %v2542 = vpack.c.bf16 %v2540, %v2539
    %v2545 = vunpack.c.l.b16 %v2541
    %v2546 = vunpack.c.h.b16 %v2541
    %v2547 = vunpack.c.l.b16 %v2542
    %v2548 = vunpack.c.h.b16 %v2542
    %v2549 = vpack.c.b16 %v2545, %v2545
    %v2550 = vpack.c.b16 %v2546, %v2546
    %v2551 = vpack.c.b16 %v2547, %v2547
    %v2552 = vpack.c.b16 %v2548, %v2548
    %v2554 = vshrl.u32 %v2549, 16
    %v2556 = vrot.slane %v2554, 6
    %v2557 = vshll.u32 %v2549, 16
    %v2559 = vrot.slane %v2557, 7
    %v2560 = vor.u32 %v2556, %v2559
    %v2561 = vrot.slane %v2560, 4
    %v2563 = vshrl.u32 %v2550, 16
    %v2565 = vrot.slane %v2563, 6
    %v2566 = vshll.u32 %v2550, 16
    %v2568 = vrot.slane %v2566, 7
    %v2569 = vor.u32 %v2565, %v2568
    %v2570 = vsel %vm394, %v2561, %v2569
    %v2571 = vrot.slane %v2569, 4
    %v2573 = vshrl.u32 %v2551, 16
    %v2575 = vrot.slane %v2573, 6
    %v2576 = vshll.u32 %v2551, 16
    %v2578 = vrot.slane %v2576, 7
    %v2579 = vor.u32 %v2575, %v2578
    %v2580 = vrot.slane %v2579, 4
    %v2582 = vshrl.u32 %v2552, 16
    %v2584 = vrot.slane %v2582, 6
    %v2585 = vshll.u32 %v2552, 16
    %v2587 = vrot.slane %v2585, 7
    %v2588 = vor.u32 %v2584, %v2587
    %v2589 = vsel %vm394, %v2580, %v2588
    %v2590 = vrot.slane %v2588, 4
    %v2597 = vsel %vm1253, %v2560, %v2039
    %2598 = vst [vmem:[#allocation3] sm:$0xe] %v2597
    %2599 = vst.msk [vmem:[#allocation3 + $0x4] sm:$0xf] %vm376, %v2570
    %v2600 = vld [vmem:[#allocation3 + $0x8] sm:$0x3]
    %v2601 = vsel %vm1259, %v2571, %v2600
    %2602 = vst [vmem:[#allocation3 + $0x8] sm:$0x3] %v2601
    %v2603 = vld [vmem:[#allocation3 + $0xc] sm:$0xe]
    %v2604 = vsel %vm1253, %v2579, %v2603
    %2605 = vst [vmem:[#allocation3 + $0xc] sm:$0xe] %v2604
    %2606 = vst.msk [vmem:[#allocation3 + $0x10] sm:$0xf] %vm376, %v2589
    %v2607 = vld [vmem:[#allocation3 + $0x14] sm:$0x3]
    %v2608 = vsel %vm1259, %v2590, %v2607
    %2609 = vst [vmem:[#allocation3 + $0x14] sm:$0x3] %v2608
    %v2610 = vld [vmem:[#allocation3] sm:$0xf]
    %v2611 = vld [vmem:[#allocation3 + $0x4] sm:$0xf]
    %v2612 = vld [vmem:[#allocation3 + $0xc] sm:$0xf]
    %v2613 = vld [vmem:[#allocation3 + $0x10] sm:$0xf]
    %v2614 = vld [vmem:[#allocation19] sm:$0xf]
    %v2615 = vld [vmem:[#allocation19 + $0x4] sm:$0xf]
    %v2616 = vld [vmem:[#allocation19 + $0x8] sm:$0xf]
    %v2617 = vld [vmem:[#allocation19 + $0xc] sm:$0xf]
    %v2618 = vld [vmem:[#allocation19 + $0x10] sm:$0xf]
    %v2619 = vld [vmem:[#allocation19 + $0x14] sm:$0xf]
    %v2620 = vld [vmem:[#allocation19 + $0x18] sm:$0xf]
    %v2621 = vld [vmem:[#allocation19 + $0x1c] sm:$0xf]
    %v2622 = vld [vmem:[#allocation3 + $0x8] sm:$0x1]
    %v2623 = vld [vmem:[#allocation3 + $0x14] sm:$0x1]
    %v2625 = vshrl.u32 %v2610, 16
    %v2627 = vrot.slane %v2625, 4
    %v2628 = vshll.u32 %v2610, 16
    %v2630 = vrot.slane %v2628, 5
    %v2631 = vor.u32 %v2627, %v2630
    %v2632 = vrot.slane %v2631, 4
    %v2634 = vshll.u32 %v2611, 16
    %v2636 = vrot.slane %v2634, 5
    %v2637 = vsel %vm467, %v2632, %v2636
    %v2638 = vshrl.u32 %v2611, 16
    %v2640 = vrot.slane %v2638, 4
    %v2641 = vor.u32 %v2640, %v2636
    %v2642 = vrot.slane %v2641, 4
    %v2644 = vshll.u32 %v2622, 16
    %v2646 = vrot.slane %v2644, 5
    %v2647 = vsel %vm467, %v2642, %v2646
    %v2649 = vshrl.u32 %v2612, 16
    %v2651 = vrot.slane %v2649, 4
    %v2652 = vshll.u32 %v2612, 16
    %v2654 = vrot.slane %v2652, 5
    %v2655 = vor.u32 %v2651, %v2654
    %v2656 = vrot.slane %v2655, 4
    %v2658 = vshll.u32 %v2613, 16
    %v2660 = vrot.slane %v2658, 5
    %v2661 = vsel %vm467, %v2656, %v2660
    %v2662 = vshrl.u32 %v2613, 16
    %v2664 = vrot.slane %v2662, 4
    %v2665 = vor.u32 %v2664, %v2660
    %v2666 = vrot.slane %v2665, 4
    %v2668 = vshll.u32 %v2623, 16
    %v2670 = vrot.slane %v2668, 5
    %v2671 = vsel %vm467, %v2666, %v2670
    %s2672 = scalar_lea.vmem [#allocation19], 32
    %v2673 = vld [vmem:[%s2672] sm:$0xf]
    %v2674 = vld [vmem:[%s2672 + $0x4] sm:$0xf]
    %v2675 = vld [vmem:[%s2672 + $0x8] sm:$0xf]
    %v2676 = vld [vmem:[%s2672 + $0xc] sm:$0xf]
    %v2677 = vld [vmem:[%s2672 + $0x10] sm:$0xf]
    %v2678 = vld [vmem:[%s2672 + $0x14] sm:$0xf]
    %v2679 = vld [vmem:[%s2672 + $0x18] sm:$0xf]
    %v2680 = vld [vmem:[%s2672 + $0x1c] sm:$0xf]
    %v2681 = vunpack.c.l.b16 %v2637
    %v2682 = vunpack.c.l.b16 %v2647
    %v2683 = vunpack.c.l.b16 %v2661
    %v2684 = vunpack.c.l.b16 %v2671
    %v2685 = vpack.c.b16 %v2682, %v2681
    %v2686 = vpack.c.b16 %v2684, %v2683
    %v2695 = vunpack.c.l.b16 %v2673
    %v2696 = vunpack.c.l.b16 %v2674
    %v2697 = vunpack.c.l.b16 %v2675
    %v2698 = vunpack.c.l.b16 %v2676
    %v2699 = vunpack.c.l.b16 %v2677
    %v2700 = vunpack.c.l.b16 %v2678
    %v2701 = vunpack.c.l.b16 %v2679
    %v2702 = vunpack.c.l.b16 %v2680
    %v2703 = vpack.c.b16 %v2696, %v2695
    %v2704 = vpack.c.b16 %v2698, %v2697
    %v2705 = vpack.c.b16 %v2700, %v2699
    %v2706 = vpack.c.b16 %v2702, %v2701
    %v2712 = vsel %vm1393, %v2685, 0
    %v2715 = vsel %vm1393, %v2686, 0
    %2717 = vmatprep.subr.bf16.mxu0 0
    %2718 = vmatpush1.bf16.msra.mxu0 %v2703
    %2719 = vmatprep.subr.bf16.mxu0 0
    %2720 = vmatpush1.bf16.msra.mxu0 %v2704
    %2721 = vmatprep.subr.bf16.mxu0 0
    %2722 = vmatpush1.bf16.msra.mxu0 %v2705
    %2723 = vmatprep.subr.bf16.mxu0 0
    %2724 = vmatpush1.bf16.msra.mxu0 %v2706
    %2725 = vmatprep.subr.bf16.mxu0 0
    %2726 = vmatpush1.bf16.msra.mxu0 0
    %2727 = vmatprep.subr.bf16.mxu0 0
    %2728 = vmatpush1.bf16.msra.mxu0 0
    %2729 = vmatprep.subr.bf16.mxu0 0
    %2730 = vmatpush1.bf16.msra.mxu0 0
    %2731 = vmatprep.subr.bf16.mxu0 0
    %2732 = vmatpush1.bf16.msra.mxu0 0
    %2733 = vmatprep.subr.bf16.mxu0 0
    %2734 = vmatpush1.bf16.msra.mxu0 0
    %2735 = vmatprep.subr.bf16.mxu0 0
    %2736 = vmatpush1.bf16.msra.mxu0 0
    %2737 = vmatprep.subr.bf16.mxu0 0
    %2738 = vmatpush1.bf16.msra.mxu0 0
    %2739 = vmatprep.subr.bf16.mxu0 0
    %2740 = vmatpush1.bf16.msra.mxu0 0
    %2741 = vmatprep.subr.bf16.mxu0 0
    %2742 = vmatpush1.bf16.msra.mxu0 0
    %2743 = vmatprep.subr.bf16.mxu0 0
    %2744 = vmatpush1.bf16.msra.mxu0 0
    %2745 = vmatprep.subr.bf16.mxu0 0
    %2746 = vmatpush1.bf16.msra.mxu0 0
    %2747 = vmatprep.subr.bf16.mxu0 0
    %2748 = vmatpush1.bf16.msra.mxu0 0
    %2749 = vmatprep.mubr.bf16.mxu0 0
    %2750 = vmatmul.mubr.bf16.gmra.mrb[0].mxu0 %v2712
    %v2751 = vpop.f32.mrb[0].mxu0
    %v2752 = vadd.f32 0.0, %v2751
    %v2753 = vpop.f32.mrb[0].mxu0
    %v2754 = vpop.f32.mrb[0].mxu0
    %v2755 = vadd.f32 0.0, %v2754
    %v2756 = vpop.f32.mrb[0].mxu0
    %2757 = vmatprep.mubr.bf16.mxu0 0
    %2758 = vmatmul.mubr.bf16.gmra.mrb[0].mxu0 %v2715
    %v2759 = vpop.f32.mrb[0].mxu0
    %v2760 = vadd.f32 0.0, %v2759
    %v2761 = vpop.f32.mrb[0].mxu0
    %v2762 = vpop.f32.mrb[0].mxu0
    %v2763 = vadd.f32 0.0, %v2762
    %v2764 = vpop.f32.mrb[0].mxu0
    %2765 = vdwg.mxu0
    %v2770 = vunpack.c.l.b16 %v2610
    %v2771 = vunpack.c.l.b16 %v2611
    %v2772 = vunpack.c.l.b16 %v2612
    %v2773 = vunpack.c.l.b16 %v2613
    %v2774 = vpack.c.b16 %v2771, %v2770
    %v2775 = vpack.c.b16 %v2773, %v2772
    %v2784 = vunpack.c.l.b16 %v2614
    %v2785 = vunpack.c.l.b16 %v2615
    %v2786 = vunpack.c.l.b16 %v2616
    %v2787 = vunpack.c.l.b16 %v2617
    %v2788 = vunpack.c.l.b16 %v2618
    %v2789 = vunpack.c.l.b16 %v2619
    %v2790 = vunpack.c.l.b16 %v2620
    %v2791 = vunpack.c.l.b16 %v2621
    %v2792 = vpack.c.b16 %v2785, %v2784
    %v2793 = vpack.c.b16 %v2787, %v2786
    %v2794 = vpack.c.b16 %v2789, %v2788
    %v2795 = vpack.c.b16 %v2791, %v2790
    %v2801 = vsel %vm1393, %v2774, 0
    %v2804 = vsel %vm1393, %v2775, 0
    %2806 = vmatprep.subr.bf16.mxu0 0
    %2807 = vmatpush1.bf16.msra.mxu0 %v2792
    %2808 = vmatprep.subr.bf16.mxu0 0
    %2809 = vmatpush1.bf16.msra.mxu0 %v2793
    %2810 = vmatprep.subr.bf16.mxu0 0
    %2811 = vmatpush1.bf16.msra.mxu0 %v2794
    %2812 = vmatprep.subr.bf16.mxu0 0
    %2813 = vmatpush1.bf16.msra.mxu0 %v2795
    %2814 = vmatprep.subr.bf16.mxu0 0
    %2815 = vmatpush1.bf16.msra.mxu0 0
    %2816 = vmatprep.subr.bf16.mxu0 0
    %2817 = vmatpush1.bf16.msra.mxu0 0
    %2818 = vmatprep.subr.bf16.mxu0 0
    %2819 = vmatpush1.bf16.msra.mxu0 0
    %2820 = vmatprep.subr.bf16.mxu0 0
    %2821 = vmatpush1.bf16.msra.mxu0 0
    %2822 = vmatprep.subr.bf16.mxu0 0
    %2823 = vmatpush1.bf16.msra.mxu0 0
    %2824 = vmatprep.subr.bf16.mxu0 0
    %2825 = vmatpush1.bf16.msra.mxu0 0
    %2826 = vmatprep.subr.bf16.mxu0 0
    %2827 = vmatpush1.bf16.msra.mxu0 0
    %2828 = vmatprep.subr.bf16.mxu0 0
    %2829 = vmatpush1.bf16.msra.mxu0 0
    %2830 = vmatprep.subr.bf16.mxu0 0
    %2831 = vmatpush1.bf16.msra.mxu0 0
    %2832 = vmatprep.subr.bf16.mxu0 0
    %2833 = vmatpush1.bf16.msra.mxu0 0
    %2834 = vmatprep.subr.bf16.mxu0 0
    %2835 = vmatpush1.bf16.msra.mxu0 0
    %2836 = vmatprep.subr.bf16.mxu0 0
    %2837 = vmatpush1.bf16.msra.mxu0 0
    %2838 = vmatprep.mubr.bf16.mxu0 0
    %2839 = vmatmul.mubr.bf16.gmra.mrb[0].mxu0 %v2801
    %v2840 = vpop.f32.mrb[0].mxu0
    %v2841 = vadd.f32 %v2752, %v2840
    %v2842 = vpop.f32.mrb[0].mxu0
    %v2843 = vpop.f32.mrb[0].mxu0
    %v2844 = vadd.f32 %v2755, %v2843
    %v2845 = vpop.f32.mrb[0].mxu0
    %2846 = vmatprep.mubr.bf16.mxu0 0
    %2847 = vmatmul.mubr.bf16.gmra.mrb[0].mxu0 %v2804
    %v2848 = vpop.f32.mrb[0].mxu0
    %v2849 = vadd.f32 %v2760, %v2848
    %v2850 = vpop.f32.mrb[0].mxu0
    %v2851 = vpop.f32.mrb[0].mxu0
    %v2852 = vadd.f32 %v2763, %v2851
    %v2853 = vpop.f32.mrb[0].mxu0
    %2854 = vdwg.mxu0
    %v2855 = vld [vmem:[#allocation3] sm:$0xe]
    %v2856 = vld [vmem:[#allocation3 + $0xc] sm:$0xe]
    %v2861 = vrot.slane %v2855, 5
    %v2862 = vrot.slane %v2861, 4
    %v2863 = vrot.slane %v2611, 5
    %v2864 = vsel %vm660, %v2862, %v2863
    %v2865 = vrot.slane %v2863, 4
    %v2866 = vrot.slane %v2622, 5
    %v2867 = vsel %vm660, %v2865, %v2866
    %v2868 = vrot.slane %v2856, 5
    %v2869 = vrot.slane %v2868, 4
    %v2870 = vrot.slane %v2613, 5
    %v2871 = vsel %vm660, %v2869, %v2870
    %v2872 = vrot.slane %v2870, 4
    %v2873 = vrot.slane %v2623, 5
    %v2874 = vsel %vm660, %v2872, %v2873
    %s2875 = scalar_lea.vmem [#allocation19], 64
    %v2876 = vld [vmem:[%s2875] sm:$0xf]
    %v2877 = vld [vmem:[%s2875 + $0x4] sm:$0xf]
    %v2878 = vld [vmem:[%s2875 + $0x8] sm:$0xf]
    %v2879 = vld [vmem:[%s2875 + $0xc] sm:$0xf]
    %v2880 = vld [vmem:[%s2875 + $0x10] sm:$0xf]
    %v2881 = vld [vmem:[%s2875 + $0x14] sm:$0xf]
    %v2882 = vld [vmem:[%s2875 + $0x18] sm:$0xf]
    %v2883 = vld [vmem:[%s2875 + $0x1c] sm:$0xf]
    %v2884 = vunpack.c.l.b16 %v2864
    %v2885 = vunpack.c.l.b16 %v2867
    %v2886 = vunpack.c.l.b16 %v2871
    %v2887 = vunpack.c.l.b16 %v2874
    %v2888 = vpack.c.b16 %v2885, %v2884
    %v2889 = vpack.c.b16 %v2887, %v2886
    %v2898 = vunpack.c.l.b16 %v2876
    %v2899 = vunpack.c.l.b16 %v2877
    %v2900 = vunpack.c.l.b16 %v2878
    %v2901 = vunpack.c.l.b16 %v2879
    %v2902 = vunpack.c.l.b16 %v2880
    %v2903 = vunpack.c.l.b16 %v2881
    %v2904 = vunpack.c.l.b16 %v2882
    %v2905 = vunpack.c.l.b16 %v2883
    %v2906 = vpack.c.b16 %v2899, %v2898
    %v2907 = vpack.c.b16 %v2901, %v2900
    %v2908 = vpack.c.b16 %v2903, %v2902
    %v2909 = vpack.c.b16 %v2905, %v2904
    %v2915 = vsel %vm1393, %v2888, 0
    %v2918 = vsel %vm1393, %v2889, 0
    %2920 = vmatprep.subr.bf16.mxu0 0
    %2921 = vmatpush1.bf16.msra.mxu0 %v2906
    %2922 = vmatprep.subr.bf16.mxu0 0
    %2923 = vmatpush1.bf16.msra.mxu0 %v2907
    %2924 = vmatprep.subr.bf16.mxu0 0
    %2925 = vmatpush1.bf16.msra.mxu0 %v2908
    %2926 = vmatprep.subr.bf16.mxu0 0
    %2927 = vmatpush1.bf16.msra.mxu0 %v2909
    %2928 = vmatprep.subr.bf16.mxu0 0
    %2929 = vmatpush1.bf16.msra.mxu0 0
    %2930 = vmatprep.subr.bf16.mxu0 0
    %2931 = vmatpush1.bf16.msra.mxu0 0
    %2932 = vmatprep.subr.bf16.mxu0 0
    %2933 = vmatpush1.bf16.msra.mxu0 0
    %2934 = vmatprep.subr.bf16.mxu0 0
    %2935 = vmatpush1.bf16.msra.mxu0 0
    %2936 = vmatprep.subr.bf16.mxu0 0
    %2937 = vmatpush1.bf16.msra.mxu0 0
    %2938 = vmatprep.subr.bf16.mxu0 0
    %2939 = vmatpush1.bf16.msra.mxu0 0
    %2940 = vmatprep.subr.bf16.mxu0 0
    %2941 = vmatpush1.bf16.msra.mxu0 0
    %2942 = vmatprep.subr.bf16.mxu0 0
    %2943 = vmatpush1.bf16.msra.mxu0 0
    %2944 = vmatprep.subr.bf16.mxu0 0
    %2945 = vmatpush1.bf16.msra.mxu0 0
    %2946 = vmatprep.subr.bf16.mxu0 0
    %2947 = vmatpush1.bf16.msra.mxu0 0
    %2948 = vmatprep.subr.bf16.mxu0 0
    %2949 = vmatpush1.bf16.msra.mxu0 0
    %2950 = vmatprep.subr.bf16.mxu0 0
    %2951 = vmatpush1.bf16.msra.mxu0 0
    %2952 = vmatprep.mubr.bf16.mxu0 0
    %2953 = vmatmul.mubr.bf16.gmra.mrb[0].mxu0 %v2915
    %v2954 = vpop.f32.mrb[0].mxu0
    %v2955 = vadd.f32 0.0, %v2954
    %v2956 = vpop.f32.mrb[0].mxu0
    %v2957 = vpop.f32.mrb[0].mxu0
    %v2958 = vadd.f32 0.0, %v2957
    %v2959 = vpop.f32.mrb[0].mxu0
    %2960 = vmatprep.mubr.bf16.mxu0 0
    %2961 = vmatmul.mubr.bf16.gmra.mrb[0].mxu0 %v2918
    %v2962 = vpop.f32.mrb[0].mxu0
    %v2963 = vadd.f32 0.0, %v2962
    %v2964 = vpop.f32.mrb[0].mxu0
    %v2965 = vpop.f32.mrb[0].mxu0
    %v2966 = vadd.f32 0.0, %v2965
    %v2967 = vpop.f32.mrb[0].mxu0
    %2968 = vdwg.mxu0
    %v2969 = vadd.f32 %v2841, %v2955
    %v2970 = vadd.f32 %v2844, %v2958
    %v2971 = vadd.f32 %v2849, %v2963
    %v2972 = vadd.f32 %v2852, %v2966
    %v2973 = vld [vmem:[#allocation3 + $0x8] sm:$0x3]
    %v2974 = vld [vmem:[#allocation3 + $0x14] sm:$0x3]
    %v2976 = vshrl.u32 %v2855, 16
    %v2978 = vrot.slane %v2976, 5
    %v2979 = vshll.u32 %v2855, 16
    %v2981 = vrot.slane %v2979, 6
    %v2982 = vor.u32 %v2978, %v2981
    %v2983 = vrot.slane %v2982, 4
    %v2984 = vrot.slane %v2638, 5
    %v2985 = vrot.slane %v2634, 6
    %v2986 = vor.u32 %v2984, %v2985
    %v2987 = vsel %vm749, %v2983, %v2986
    %v2988 = vrot.slane %v2986, 4
    %v2990 = vshrl.u32 %v2973, 16
    %v2992 = vrot.slane %v2990, 5
    %v2993 = vshll.u32 %v2973, 16
    %v2995 = vrot.slane %v2993, 6
    %v2996 = vor.u32 %v2992, %v2995
    %v2997 = vsel %vm749, %v2988, %v2996
    %v2999 = vshrl.u32 %v2856, 16
    %v3001 = vrot.slane %v2999, 5
    %v3002 = vshll.u32 %v2856, 16
    %v3004 = vrot.slane %v3002, 6
    %v3005 = vor.u32 %v3001, %v3004
    %v3006 = vrot.slane %v3005, 4
    %v3007 = vrot.slane %v2662, 5
    %v3008 = vrot.slane %v2658, 6
    %v3009 = vor.u32 %v3007, %v3008
    %v3010 = vsel %vm749, %v3006, %v3009
    %v3011 = vrot.slane %v3009, 4
    %v3013 = vshrl.u32 %v2974, 16
    %v3015 = vrot.slane %v3013, 5
    %v3016 = vshll.u32 %v2974, 16
    %v3018 = vrot.slane %v3016, 6
    %v3019 = vor.u32 %v3015, %v3018
    %v3020 = vsel %vm749, %v3011, %v3019
    %s3021 = scalar_lea.vmem [#allocation19], 96
    %v3022 = vld [vmem:[%s3021] sm:$0xf]
    %v3023 = vld [vmem:[%s3021 + $0x4] sm:$0xf]
    %v3024 = vld [vmem:[%s3021 + $0x8] sm:$0xf]
    %v3025 = vld [vmem:[%s3021 + $0xc] sm:$0xf]
    %v3026 = vld [vmem:[%s3021 + $0x10] sm:$0xf]
    %v3027 = vld [vmem:[%s3021 + $0x14] sm:$0xf]
    %v3028 = vld [vmem:[%s3021 + $0x18] sm:$0xf]
    %v3029 = vld [vmem:[%s3021 + $0x1c] sm:$0xf]
    %v3030 = vunpack.c.l.b16 %v2987
    %v3031 = vunpack.c.l.b16 %v2997
    %v3032 = vunpack.c.l.b16 %v3010
    %v3033 = vunpack.c.l.b16 %v3020
    %v3034 = vpack.c.b16 %v3031, %v3030
    %v3035 = vpack.c.b16 %v3033, %v3032
    %v3044 = vunpack.c.l.b16 %v3022
    %v3045 = vunpack.c.l.b16 %v3023
    %v3046 = vunpack.c.l.b16 %v3024
    %v3047 = vunpack.c.l.b16 %v3025
    %v3048 = vunpack.c.l.b16 %v3026
    %v3049 = vunpack.c.l.b16 %v3027
    %v3050 = vunpack.c.l.b16 %v3028
    %v3051 = vunpack.c.l.b16 %v3029
    %v3052 = vpack.c.b16 %v3045, %v3044
    %v3053 = vpack.c.b16 %v3047, %v3046
    %v3054 = vpack.c.b16 %v3049, %v3048
    %v3055 = vpack.c.b16 %v3051, %v3050
    %v3061 = vsel %vm1393, %v3034, 0
    %v3064 = vsel %vm1393, %v3035, 0
    %3066 = vmatprep.subr.bf16.mxu0 0
    %3067 = vmatpush1.bf16.msra.mxu0 %v3052
    %3068 = vmatprep.subr.bf16.mxu0 0
    %3069 = vmatpush1.bf16.msra.mxu0 %v3053
    %3070 = vmatprep.subr.bf16.mxu0 0
    %3071 = vmatpush1.bf16.msra.mxu0 %v3054
    %3072 = vmatprep.subr.bf16.mxu0 0
    %3073 = vmatpush1.bf16.msra.mxu0 %v3055
    %3074 = vmatprep.subr.bf16.mxu0 0
    %3075 = vmatpush1.bf16.msra.mxu0 0
    %3076 = vmatprep.subr.bf16.mxu0 0
    %3077 = vmatpush1.bf16.msra.mxu0 0
    %3078 = vmatprep.subr.bf16.mxu0 0
    %3079 = vmatpush1.bf16.msra.mxu0 0
    %3080 = vmatprep.subr.bf16.mxu0 0
    %3081 = vmatpush1.bf16.msra.mxu0 0
    %3082 = vmatprep.subr.bf16.mxu0 0
    %3083 = vmatpush1.bf16.msra.mxu0 0
    %3084 = vmatprep.subr.bf16.mxu0 0
    %3085 = vmatpush1.bf16.msra.mxu0 0
    %3086 = vmatprep.subr.bf16.mxu0 0
    %3087 = vmatpush1.bf16.msra.mxu0 0
    %3088 = vmatprep.subr.bf16.mxu0 0
    %3089 = vmatpush1.bf16.msra.mxu0 0
    %3090 = vmatprep.subr.bf16.mxu0 0
    %3091 = vmatpush1.bf16.msra.mxu0 0
    %3092 = vmatprep.subr.bf16.mxu0 0
    %3093 = vmatpush1.bf16.msra.mxu0 0
    %3094 = vmatprep.subr.bf16.mxu0 0
    %3095 = vmatpush1.bf16.msra.mxu0 0
    %3096 = vmatprep.subr.bf16.mxu0 0
    %3097 = vmatpush1.bf16.msra.mxu0 0
    %3098 = vmatprep.mubr.bf16.mxu0 0
    %3099 = vmatmul.mubr.bf16.gmra.mrb[0].mxu0 %v3061
    %v3100 = vpop.f32.mrb[0].mxu0
    %v3101 = vadd.f32 0.0, %v3100
    %v3102 = vpop.f32.mrb[0].mxu0
    %v3103 = vpop.f32.mrb[0].mxu0
    %v3104 = vadd.f32 0.0, %v3103
    %v3105 = vpop.f32.mrb[0].mxu0
    %3106 = vmatprep.mubr.bf16.mxu0 0
    %3107 = vmatmul.mubr.bf16.gmra.mrb[0].mxu0 %v3064
    %v3108 = vpop.f32.mrb[0].mxu0
    %v3109 = vadd.f32 0.0, %v3108
    %v3110 = vpop.f32.mrb[0].mxu0
    %v3111 = vpop.f32.mrb[0].mxu0
    %v3112 = vadd.f32 0.0, %v3111
    %v3113 = vpop.f32.mrb[0].mxu0
    %3114 = vdwg.mxu0
    %v3115 = vadd.f32 %v2969, %v3101
    %v3116 = vadd.f32 %v2970, %v3104
    %v3117 = vadd.f32 %v2971, %v3109
    %v3118 = vadd.f32 %v2972, %v3112
    %v3119 = vld [vmem:[#allocation3] sm:$0xc]
    %v3120 = vld [vmem:[#allocation3 + $0xc] sm:$0xc]
    %v3125 = vrot.slane %v3119, 6
    %v3126 = vrot.slane %v3125, 4
    %v3127 = vrot.slane %v2611, 6
    %v3128 = vsel %vm874, %v3126, %v3127
    %v3129 = vrot.slane %v3127, 4
    %v3130 = vrot.slane %v2973, 6
    %v3131 = vsel %vm874, %v3129, %v3130
    %v3132 = vrot.slane %v3120, 6
    %v3133 = vrot.slane %v3132, 4
    %v3134 = vrot.slane %v2613, 6
    %v3135 = vsel %vm874, %v3133, %v3134
    %v3136 = vrot.slane %v3134, 4
    %v3137 = vrot.slane %v2974, 6
    %v3138 = vsel %vm874, %v3136, %v3137
    %s3139 = scalar_lea.vmem [#allocation19], 128
    %v3140 = vld [vmem:[%s3139] sm:$0xf]
    %v3141 = vld [vmem:[%s3139 + $0x4] sm:$0xf]
    %v3142 = vld [vmem:[%s3139 + $0x8] sm:$0xf]
    %v3143 = vld [vmem:[%s3139 + $0xc] sm:$0xf]
    %v3144 = vld [vmem:[%s3139 + $0x10] sm:$0xf]
    %v3145 = vld [vmem:[%s3139 + $0x14] sm:$0xf]
    %v3146 = vld [vmem:[%s3139 + $0x18] sm:$0xf]
    %v3147 = vld [vmem:[%s3139 + $0x1c] sm:$0xf]
    %v3148 = vunpack.c.l.b16 %v3128
    %v3149 = vunpack.c.l.b16 %v3131
    %v3150 = vunpack.c.l.b16 %v3135
    %v3151 = vunpack.c.l.b16 %v3138
    %v3152 = vpack.c.b16 %v3149, %v3148
    %v3153 = vpack.c.b16 %v3151, %v3150
    %v3162 = vunpack.c.l.b16 %v3140
    %v3163 = vunpack.c.l.b16 %v3141
    %v3164 = vunpack.c.l.b16 %v3142
    %v3165 = vunpack.c.l.b16 %v3143
    %v3166 = vunpack.c.l.b16 %v3144
    %v3167 = vunpack.c.l.b16 %v3145
    %v3168 = vunpack.c.l.b16 %v3146
    %v3169 = vunpack.c.l.b16 %v3147
    %v3170 = vpack.c.b16 %v3163, %v3162
    %v3171 = vpack.c.b16 %v3165, %v3164
    %v3172 = vpack.c.b16 %v3167, %v3166
    %v3173 = vpack.c.b16 %v3169, %v3168
    %v3179 = vsel %vm1393, %v3152, 0
    %v3182 = vsel %vm1393, %v3153, 0
    %3184 = vmatprep.subr.bf16.mxu0 0
    %3185 = vmatpush1.bf16.msra.mxu0 %v3170
    %3186 = vmatprep.subr.bf16.mxu0 0
    %3187 = vmatpush1.bf16.msra.mxu0 %v3171
    %3188 = vmatprep.subr.bf16.mxu0 0
    %3189 = vmatpush1.bf16.msra.mxu0 %v3172
    %3190 = vmatprep.subr.bf16.mxu0 0
    %3191 = vmatpush1.bf16.msra.mxu0 %v3173
    %3192 = vmatprep.subr.bf16.mxu0 0
    %3193 = vmatpush1.bf16.msra.mxu0 0
    %3194 = vmatprep.subr.bf16.mxu0 0
    %3195 = vmatpush1.bf16.msra.mxu0 0
    %3196 = vmatprep.subr.bf16.mxu0 0
    %3197 = vmatpush1.bf16.msra.mxu0 0
    %3198 = vmatprep.subr.bf16.mxu0 0
    %3199 = vmatpush1.bf16.msra.mxu0 0
    %3200 = vmatprep.subr.bf16.mxu0 0
    %3201 = vmatpush1.bf16.msra.mxu0 0
    %3202 = vmatprep.subr.bf16.mxu0 0
    %3203 = vmatpush1.bf16.msra.mxu0 0
    %3204 = vmatprep.subr.bf16.mxu0 0
    %3205 = vmatpush1.bf16.msra.mxu0 0
    %3206 = vmatprep.subr.bf16.mxu0 0
    %3207 = vmatpush1.bf16.msra.mxu0 0
    %3208 = vmatprep.subr.bf16.mxu0 0
    %3209 = vmatpush1.bf16.msra.mxu0 0
    %3210 = vmatprep.subr.bf16.mxu0 0
    %3211 = vmatpush1.bf16.msra.mxu0 0
    %3212 = vmatprep.subr.bf16.mxu0 0
    %3213 = vmatpush1.bf16.msra.mxu0 0
    %3214 = vmatprep.subr.bf16.mxu0 0
    %3215 = vmatpush1.bf16.msra.mxu0 0
    %3216 = vmatprep.mubr.bf16.mxu0 0
    %3217 = vmatmul.mubr.bf16.gmra.mrb[0].mxu0 %v3179
    %v3218 = vpop.f32.mrb[0].mxu0
    %v3219 = vadd.f32 0.0, %v3218
    %v3220 = vpop.f32.mrb[0].mxu0
    %v3221 = vpop.f32.mrb[0].mxu0
    %v3222 = vadd.f32 0.0, %v3221
    %v3223 = vpop.f32.mrb[0].mxu0
    %3224 = vmatprep.mubr.bf16.mxu0 0
    %3225 = vmatmul.mubr.bf16.gmra.mrb[0].mxu0 %v3182
    %v3226 = vpop.f32.mrb[0].mxu0
    %v3227 = vadd.f32 0.0, %v3226
    %v3228 = vpop.f32.mrb[0].mxu0
    %v3229 = vpop.f32.mrb[0].mxu0
    %v3230 = vadd.f32 0.0, %v3229
    %v3231 = vpop.f32.mrb[0].mxu0
    %3232 = vdwg.mxu0
    %v3233 = vadd.f32 %v3115, %v3219
    %v3234 = vadd.f32 %v3116, %v3222
    %v3235 = vadd.f32 %v3117, %v3227
    %v3236 = vadd.f32 %v3118, %v3230
    %v3237 = vld [vmem:[#allocation3 + $0x8] sm:$0x7]
    %v3238 = vld [vmem:[#allocation3 + $0x14] sm:$0x7]
    %v3240 = vshrl.u32 %v3119, 16
    %v3242 = vrot.slane %v3240, 6
    %v3243 = vshll.u32 %v3119, 16
    %v3245 = vrot.slane %v3243, 7
    %v3246 = vor.u32 %v3242, %v3245
    %v3247 = vrot.slane %v3246, 4
    %v3248 = vrot.slane %v2638, 6
    %v3249 = vrot.slane %v2634, 7
    %v3250 = vor.u32 %v3248, %v3249
    %v3251 = vsel %vm394, %v3247, %v3250
    %v3252 = vrot.slane %v3250, 4
    %v3254 = vshrl.u32 %v3237, 16
    %v3256 = vrot.slane %v3254, 6
    %v3257 = vshll.u32 %v3237, 16
    %v3259 = vrot.slane %v3257, 7
    %v3260 = vor.u32 %v3256, %v3259
    %v3261 = vsel %vm394, %v3252, %v3260
    %v3263 = vshrl.u32 %v3120, 16
    %v3265 = vrot.slane %v3263, 6
    %v3266 = vshll.u32 %v3120, 16
    %v3268 = vrot.slane %v3266, 7
    %v3269 = vor.u32 %v3265, %v3268
    %v3270 = vrot.slane %v3269, 4
    %v3271 = vrot.slane %v2662, 6
    %v3272 = vrot.slane %v2658, 7
    %v3273 = vor.u32 %v3271, %v3272
    %v3274 = vsel %vm394, %v3270, %v3273
    %v3275 = vrot.slane %v3273, 4
    %v3277 = vshrl.u32 %v3238, 16
    %v3279 = vrot.slane %v3277, 6
    %v3280 = vshll.u32 %v3238, 16
    %v3282 = vrot.slane %v3280, 7
    %v3283 = vor.u32 %v3279, %v3282
    %v3284 = vsel %vm394, %v3275, %v3283
    %s3285 = scalar_lea.vmem [#allocation19], 160
    %v3286 = vld [vmem:[%s3285] sm:$0xf]
    %v3287 = vld [vmem:[%s3285 + $0x4] sm:$0xf]
    %v3288 = vld [vmem:[%s3285 + $0x8] sm:$0xf]
    %v3289 = vld [vmem:[%s3285 + $0xc] sm:$0xf]
    %v3290 = vld [vmem:[%s3285 + $0x10] sm:$0xf]
    %v3291 = vld [vmem:[%s3285 + $0x14] sm:$0xf]
    %v3292 = vld [vmem:[%s3285 + $0x18] sm:$0xf]
    %v3293 = vld [vmem:[%s3285 + $0x1c] sm:$0xf]
    %v3294 = vunpack.c.l.b16 %v3251
    %v3295 = vunpack.c.l.b16 %v3261
    %v3296 = vunpack.c.l.b16 %v3274
    %v3297 = vunpack.c.l.b16 %v3284
    %v3298 = vpack.c.b16 %v3295, %v3294
    %v3299 = vpack.c.b16 %v3297, %v3296
    %v3308 = vunpack.c.l.b16 %v3286
    %v3309 = vunpack.c.l.b16 %v3287
    %v3310 = vunpack.c.l.b16 %v3288
    %v3311 = vunpack.c.l.b16 %v3289
    %v3312 = vunpack.c.l.b16 %v3290
    %v3313 = vunpack.c.l.b16 %v3291
    %v3314 = vunpack.c.l.b16 %v3292
    %v3315 = vunpack.c.l.b16 %v3293
    %v3316 = vpack.c.b16 %v3309, %v3308
    %v3317 = vpack.c.b16 %v3311, %v3310
    %v3318 = vpack.c.b16 %v3313, %v3312
    %v3319 = vpack.c.b16 %v3315, %v3314
    %v3325 = vsel %vm1393, %v3298, 0
    %v3328 = vsel %vm1393, %v3299, 0
    %3330 = vmatprep.subr.bf16.mxu0 0
    %3331 = vmatpush1.bf16.msra.mxu0 %v3316
    %3332 = vmatprep.subr.bf16.mxu0 0
    %3333 = vmatpush1.bf16.msra.mxu0 %v3317
    %3334 = vmatprep.subr.bf16.mxu0 0
    %3335 = vmatpush1.bf16.msra.mxu0 %v3318
    %3336 = vmatprep.subr.bf16.mxu0 0
    %3337 = vmatpush1.bf16.msra.mxu0 %v3319
    %3338 = vmatprep.subr.bf16.mxu0 0
    %3339 = vmatpush1.bf16.msra.mxu0 0
    %3340 = vmatprep.subr.bf16.mxu0 0
    %3341 = vmatpush1.bf16.msra.mxu0 0
    %3342 = vmatprep.subr.bf16.mxu0 0
    %3343 = vmatpush1.bf16.msra.mxu0 0
    %3344 = vmatprep.subr.bf16.mxu0 0
    %3345 = vmatpush1.bf16.msra.mxu0 0
    %3346 = vmatprep.subr.bf16.mxu0 0
    %3347 = vmatpush1.bf16.msra.mxu0 0
    %3348 = vmatprep.subr.bf16.mxu0 0
    %3349 = vmatpush1.bf16.msra.mxu0 0
    %3350 = vmatprep.subr.bf16.mxu0 0
    %3351 = vmatpush1.bf16.msra.mxu0 0
    %3352 = vmatprep.subr.bf16.mxu0 0
    %3353 = vmatpush1.bf16.msra.mxu0 0
    %3354 = vmatprep.subr.bf16.mxu0 0
    %3355 = vmatpush1.bf16.msra.mxu0 0
    %3356 = vmatprep.subr.bf16.mxu0 0
    %3357 = vmatpush1.bf16.msra.mxu0 0
    %3358 = vmatprep.subr.bf16.mxu0 0
    %3359 = vmatpush1.bf16.msra.mxu0 0
    %3360 = vmatprep.subr.bf16.mxu0 0
    %3361 = vmatpush1.bf16.msra.mxu0 0
    %3362 = vmatprep.mubr.bf16.mxu0 0
    %3363 = vmatmul.mubr.bf16.gmra.mrb[0].mxu0 %v3325
    %v3364 = vpop.f32.mrb[0].mxu0
    %v3365 = vadd.f32 0.0, %v3364
    %v3366 = vpop.f32.mrb[0].mxu0
    %v3367 = vpop.f32.mrb[0].mxu0
    %v3368 = vadd.f32 0.0, %v3367
    %v3369 = vpop.f32.mrb[0].mxu0
    %3370 = vmatprep.mubr.bf16.mxu0 0
    %3371 = vmatmul.mubr.bf16.gmra.mrb[0].mxu0 %v3328
    %v3372 = vpop.f32.mrb[0].mxu0
    %v3373 = vadd.f32 0.0, %v3372
    %v3374 = vpop.f32.mrb[0].mxu0
    %v3375 = vpop.f32.mrb[0].mxu0
    %v3376 = vadd.f32 0.0, %v3375
    %v3377 = vpop.f32.mrb[0].mxu0
    %3378 = vdwg.mxu0
    %v3379 = vadd.f32 %v3233, %v3365
    %v3380 = vadd.f32 %v3234, %v3368
    %v3381 = vadd.f32 %v3235, %v3373
    %v3382 = vadd.f32 %v3236, %v3376
    %v3383 = vld [vmem:[#allocation3] sm:$0x8]
    %v3384 = vld [vmem:[#allocation3 + $0xc] sm:$0x8]
    %v3389 = vrot.slane %v3383, 7
    %v3390 = vrot.slane %v3389, 4
    %v3391 = vrot.slane %v2611, 7
    %v3392 = vsel %vm1085, %v3390, %v3391
    %v3393 = vrot.slane %v3391, 4
    %v3394 = vrot.slane %v3237, 7
    %v3395 = vsel %vm1085, %v3393, %v3394
    %v3396 = vrot.slane %v3384, 7
    %v3397 = vrot.slane %v3396, 4
    %v3398 = vrot.slane %v2613, 7
    %v3399 = vsel %vm1085, %v3397, %v3398
    %v3400 = vrot.slane %v3398, 4
    %v3401 = vrot.slane %v3238, 7
    %v3402 = vsel %vm1085, %v3400, %v3401
    %s3403 = scalar_lea.vmem [#allocation19], 192
    %v3404 = vld [vmem:[%s3403] sm:$0xf]
    %v3405 = vld [vmem:[%s3403 + $0x4] sm:$0xf]
    %v3406 = vld [vmem:[%s3403 + $0x8] sm:$0xf]
    %v3407 = vld [vmem:[%s3403 + $0xc] sm:$0xf]
    %v3408 = vld [vmem:[%s3403 + $0x10] sm:$0xf]
    %v3409 = vld [vmem:[%s3403 + $0x14] sm:$0xf]
    %v3410 = vld [vmem:[%s3403 + $0x18] sm:$0xf]
    %v3411 = vld [vmem:[%s3403 + $0x1c] sm:$0xf]
    %v3412 = vunpack.c.l.b16 %v3392
    %v3413 = vunpack.c.l.b16 %v3395
    %v3414 = vunpack.c.l.b16 %v3399
    %v3415 = vunpack.c.l.b16 %v3402
    %v3416 = vpack.c.b16 %v3413, %v3412
    %v3417 = vpack.c.b16 %v3415, %v3414
    %v3426 = vunpack.c.l.b16 %v3404
    %v3427 = vunpack.c.l.b16 %v3405
    %v3428 = vunpack.c.l.b16 %v3406
    %v3429 = vunpack.c.l.b16 %v3407
    %v3430 = vunpack.c.l.b16 %v3408
    %v3431 = vunpack.c.l.b16 %v3409
    %v3432 = vunpack.c.l.b16 %v3410
    %v3433 = vunpack.c.l.b16 %v3411
    %v3434 = vpack.c.b16 %v3427, %v3426
    %v3435 = vpack.c.b16 %v3429, %v3428
    %v3436 = vpack.c.b16 %v3431, %v3430
    %v3437 = vpack.c.b16 %v3433, %v3432
    %v3443 = vsel %vm1393, %v3416, 0
    %v3446 = vsel %vm1393, %v3417, 0
    %3448 = vmatprep.subr.bf16.mxu0 0
    %3449 = vmatpush1.bf16.msra.mxu0 %v3434
    %3450 = vmatprep.subr.bf16.mxu0 0
    %3451 = vmatpush1.bf16.msra.mxu0 %v3435
    %3452 = vmatprep.subr.bf16.mxu0 0
    %3453 = vmatpush1.bf16.msra.mxu0 %v3436
    %3454 = vmatprep.subr.bf16.mxu0 0
    %3455 = vmatpush1.bf16.msra.mxu0 %v3437
    %3456 = vmatprep.subr.bf16.mxu0 0
    %3457 = vmatpush1.bf16.msra.mxu0 0
    %3458 = vmatprep.subr.bf16.mxu0 0
    %3459 = vmatpush1.bf16.msra.mxu0 0
    %3460 = vmatprep.subr.bf16.mxu0 0
    %3461 = vmatpush1.bf16.msra.mxu0 0
    %3462 = vmatprep.subr.bf16.mxu0 0
    %3463 = vmatpush1.bf16.msra.mxu0 0
    %3464 = vmatprep.subr.bf16.mxu0 0
    %3465 = vmatpush1.bf16.msra.mxu0 0
    %3466 = vmatprep.subr.bf16.mxu0 0
    %3467 = vmatpush1.bf16.msra.mxu0 0
    %3468 = vmatprep.subr.bf16.mxu0 0
    %3469 = vmatpush1.bf16.msra.mxu0 0
    %3470 = vmatprep.subr.bf16.mxu0 0
    %3471 = vmatpush1.bf16.msra.mxu0 0
    %3472 = vmatprep.subr.bf16.mxu0 0
    %3473 = vmatpush1.bf16.msra.mxu0 0
    %3474 = vmatprep.subr.bf16.mxu0 0
    %3475 = vmatpush1.bf16.msra.mxu0 0
    %3476 = vmatprep.subr.bf16.mxu0 0
    %3477 = vmatpush1.bf16.msra.mxu0 0
    %3478 = vmatprep.subr.bf16.mxu0 0
    %3479 = vmatpush1.bf16.msra.mxu0 0
    %3480 = vmatprep.mubr.bf16.mxu0 0
    %3481 = vmatmul.mubr.bf16.gmra.mrb[0].mxu0 %v3443
    %v3482 = vpop.f32.mrb[0].mxu0
    %v3483 = vadd.f32 0.0, %v3482
    %v3484 = vpop.f32.mrb[0].mxu0
    %v3485 = vpop.f32.mrb[0].mxu0
    %v3486 = vadd.f32 0.0, %v3485
    %v3487 = vpop.f32.mrb[0].mxu0
    %3488 = vmatprep.mubr.bf16.mxu0 0
    %3489 = vmatmul.mubr.bf16.gmra.mrb[0].mxu0 %v3446
    %v3490 = vpop.f32.mrb[0].mxu0
    %v3491 = vadd.f32 0.0, %v3490
    %v3492 = vpop.f32.mrb[0].mxu0
    %v3493 = vpop.f32.mrb[0].mxu0
    %v3494 = vadd.f32 0.0, %v3493
    %v3495 = vpop.f32.mrb[0].mxu0
    %3496 = vdwg.mxu0
    %v3497 = vadd.f32 %v3379, %v3483
    %v3498 = vadd.f32 %v3380, %v3486
    %v3499 = vadd.f32 %v3381, %v3491
    %v3500 = vadd.f32 %v3382, %v3494
    %v3501 = vld [vmem:[#allocation21] sm:$0x1]
    %v3503 = vlaneseq
    %v3504 = vshrl.u32 %v3503, 7
    %v3505 = vsub.s32 0, %v3504
    %v3506 = vrot.slane %v3501, %v3505
    %v3508 = vmul.f32 %v3497, %v3506
    %v3509 = vmul.f32 %v3498, %v3506
    %v3510 = vmul.f32 %v3499, %v3506
    %v3511 = vmul.f32 %v3500, %v3506
    %v3512 = vld [vmem:[#allocation22] sm:$0x1]
    %v3514 = vlaneseq
    %v3515 = vshrl.u32 %v3514, 7
    %v3516 = vsub.s32 0, %v3515
    %v3517 = vrot.slane %v3512, %v3516
    %v3519 = vadd.f32 %v3508, %v3517
    %v3520 = vadd.f32 %v3509, %v3517
    %v3521 = vadd.f32 %v3510, %v3517
    %v3522 = vadd.f32 %v3511, %v3517
    %v3523 = vmax.f32 %v3519, 0.0
    %v3524 = vmax.f32 %v3520, 0.0
    %v3525 = vmax.f32 %v3521, 0.0
    %v3526 = vmax.f32 %v3522, 0.0
    %v3527 = vpack.c.bf16 %v3524, %v3523
    %v3528 = vpack.c.bf16 %v3526, %v3525
    %v3531 = vunpack.c.l.b16 %v3527
    %v3532 = vunpack.c.h.b16 %v3527
    %v3533 = vunpack.c.l.b16 %v3528
    %v3534 = vunpack.c.h.b16 %v3528
    %v3535 = vpack.c.b16 %v3531, %v3531
    %v3536 = vpack.c.b16 %v3532, %v3532
    %v3537 = vpack.c.b16 %v3533, %v3533
    %v3538 = vpack.c.b16 %v3534, %v3534
    %v3540 = vshrl.u32 %v3535, 16
    %v3542 = vrot.slane %v3540, 6
    %v3543 = vshll.u32 %v3535, 16
    %v3545 = vrot.slane %v3543, 7
    %v3546 = vor.u32 %v3542, %v3545
    %v3547 = vrot.slane %v3546, 4
    %v3549 = vshrl.u32 %v3536, 16
    %v3551 = vrot.slane %v3549, 6
    %v3552 = vshll.u32 %v3536, 16
    %v3554 = vrot.slane %v3552, 7
    %v3555 = vor.u32 %v3551, %v3554
    %v3556 = vsel %vm394, %v3547, %v3555
    %v3557 = vrot.slane %v3555, 4
    %v3559 = vshrl.u32 %v3537, 16
    %v3561 = vrot.slane %v3559, 6
    %v3562 = vshll.u32 %v3537, 16
    %v3564 = vrot.slane %v3562, 7
    %v3565 = vor.u32 %v3561, %v3564
    %v3566 = vrot.slane %v3565, 4
    %v3568 = vshrl.u32 %v3538, 16
    %v3570 = vrot.slane %v3568, 6
    %v3571 = vshll.u32 %v3538, 16
    %v3573 = vrot.slane %v3571, 7
    %v3574 = vor.u32 %v3570, %v3573
    %v3575 = vsel %vm394, %v3566, %v3574
    %v3576 = vrot.slane %v3574, 4
    %v3583 = vsel %vm1253, %v3546, %v2855
    %3584 = vst [vmem:[#allocation3] sm:$0xe] %v3583
    %3585 = vst.msk [vmem:[#allocation3 + $0x4] sm:$0xf] %vm376, %v3556
    %v3586 = vld [vmem:[#allocation3 + $0x8] sm:$0x3]
    %v3587 = vsel %vm1259, %v3557, %v3586
    %3588 = vst [vmem:[#allocation3 + $0x8] sm:$0x3] %v3587
    %v3589 = vld [vmem:[#allocation3 + $0xc] sm:$0xe]
    %v3590 = vsel %vm1253, %v3565, %v3589
    %3591 = vst [vmem:[#allocation3 + $0xc] sm:$0xe] %v3590
    %3592 = vst.msk [vmem:[#allocation3 + $0x10] sm:$0xf] %vm376, %v3575
    %v3593 = vld [vmem:[#allocation3 + $0x14] sm:$0x3]
    %v3594 = vsel %vm1259, %v3576, %v3593
    %3595 = vst [vmem:[#allocation3 + $0x14] sm:$0x3] %v3594
    %v3596 = vld [vmem:[#allocation3] sm:$0xf]
    %v3597 = vld [vmem:[#allocation3 + $0x4] sm:$0xf]
    %v3598 = vld [vmem:[#allocation3 + $0x8] sm:$0x1]
    %v3599 = vld [vmem:[#allocation3 + $0xc] sm:$0xf]
    %v3600 = vld [vmem:[#allocation3 + $0x10] sm:$0xf]
    %v3601 = vld [vmem:[#allocation3 + $0x14] sm:$0x1]
    %v3603 = vshrl.u32 %v3596, 16
    %v3605 = vrot.slane %v3603, 4
    %v3606 = vshll.u32 %v3596, 16
    %v3608 = vrot.slane %v3606, 5
    %v3609 = vor.u32 %v3605, %v3608
    %v3610 = vrot.slane %v3609, 4
    %v3612 = vshll.u32 %v3597, 16
    %v3614 = vrot.slane %v3612, 5
    %v3615 = vsel %vm467, %v3610, %v3614
    %v3616 = vshrl.u32 %v3597, 16
    %v3618 = vrot.slane %v3616, 4
    %v3619 = vor.u32 %v3618, %v3614
    %v3620 = vrot.slane %v3619, 4
    %v3622 = vshll.u32 %v3598, 16
    %v3624 = vrot.slane %v3622, 5
    %v3625 = vsel %vm467, %v3620, %v3624
    %v3627 = vshrl.u32 %v3599, 16
    %v3629 = vrot.slane %v3627, 4
    %v3630 = vshll.u32 %v3599, 16
    %v3632 = vrot.slane %v3630, 5
    %v3633 = vor.u32 %v3629, %v3632
    %v3634 = vrot.slane %v3633, 4
    %v3636 = vshll.u32 %v3600, 16
    %v3638 = vrot.slane %v3636, 5
    %v3639 = vsel %vm467, %v3634, %v3638
    %v3640 = vshrl.u32 %v3600, 16
    %v3642 = vrot.slane %v3640, 4
    %v3643 = vor.u32 %v3642, %v3638
    %v3644 = vrot.slane %v3643, 4
    %v3646 = vshll.u32 %v3601, 16
    %v3648 = vrot.slane %v3646, 5
    %v3649 = vsel %vm467, %v3644, %v3648
    %v3650 = vld [vmem:[%s33] sm:$0xf]
    %v3651 = vld [vmem:[%s33 + $0x4] sm:$0xf]
    %v3652 = vld [vmem:[%s33 + $0x8] sm:$0xf]
    %v3653 = vld [vmem:[%s33 + $0xc] sm:$0xf]
    %v3654 = vld [vmem:[%s33 + $0x10] sm:$0xf]
    %v3655 = vld [vmem:[%s33 + $0x14] sm:$0xf]
    %v3656 = vld [vmem:[%s33 + $0x18] sm:$0xf]
    %v3657 = vld [vmem:[%s33 + $0x1c] sm:$0xf]
    %v3658 = vld [vmem:[#allocation3] sm:$0xe]
    %v3659 = vld [vmem:[#allocation3 + $0xc] sm:$0xe]
    %v3666 = vrot.slane %v3658, 5
    %v3667 = vrot.slane %v3666, 4
    %v3668 = vrot.slane %v3597, 5
    %v3669 = vsel %vm660, %v3667, %v3668
    %v3670 = vrot.slane %v3668, 4
    %v3671 = vrot.slane %v3598, 5
    %v3672 = vsel %vm660, %v3670, %v3671
    %v3673 = vrot.slane %v3659, 5
    %v3674 = vrot.slane %v3673, 4
    %v3675 = vrot.slane %v3600, 5
    %v3676 = vsel %vm660, %v3674, %v3675
    %v3677 = vrot.slane %v3675, 4
    %v3678 = vrot.slane %v3601, 5
    %v3679 = vsel %vm660, %v3677, %v3678
    %s3680 = scalar_lea.vmem %s33, 32
    %v3681 = vld [vmem:[%s3680] sm:$0xf]
    %v3682 = vld [vmem:[%s3680 + $0x4] sm:$0xf]
    %v3683 = vld [vmem:[%s3680 + $0x8] sm:$0xf]
    %v3684 = vld [vmem:[%s3680 + $0xc] sm:$0xf]
    %v3685 = vld [vmem:[%s3680 + $0x10] sm:$0xf]
    %v3686 = vld [vmem:[%s3680 + $0x14] sm:$0xf]
    %v3687 = vld [vmem:[%s3680 + $0x18] sm:$0xf]
    %v3688 = vld [vmem:[%s3680 + $0x1c] sm:$0xf]
    %v3689 = vunpack.c.l.b16 %v3669
    %v3690 = vunpack.c.l.b16 %v3672
    %v3691 = vunpack.c.l.b16 %v3676
    %v3692 = vunpack.c.l.b16 %v3679
    %v3693 = vpack.c.b16 %v3690, %v3689
    %v3694 = vpack.c.b16 %v3692, %v3691
    %v3703 = vunpack.c.l.b16 %v3681
    %v3704 = vunpack.c.l.b16 %v3682
    %v3705 = vunpack.c.l.b16 %v3683
    %v3706 = vunpack.c.l.b16 %v3684
    %v3707 = vunpack.c.l.b16 %v3685
    %v3708 = vunpack.c.l.b16 %v3686
    %v3709 = vunpack.c.l.b16 %v3687
    %v3710 = vunpack.c.l.b16 %v3688
    %v3711 = vpack.c.b16 %v3704, %v3703
    %v3712 = vpack.c.b16 %v3706, %v3705
    %v3713 = vpack.c.b16 %v3708, %v3707
    %v3714 = vpack.c.b16 %v3710, %v3709
    %v3720 = vsel %vm1393, %v3693, 0
    %v3723 = vsel %vm1393, %v3694, 0
    %3725 = vmatprep.subr.bf16.mxu0 0
    %3726 = vmatpush1.bf16.msra.mxu0 %v3711
    %3727 = vmatprep.subr.bf16.mxu0 0
    %3728 = vmatpush1.bf16.msra.mxu0 %v3712
    %3729 = vmatprep.subr.bf16.mxu0 0
    %3730 = vmatpush1.bf16.msra.mxu0 %v3713
    %3731 = vmatprep.subr.bf16.mxu0 0
    %3732 = vmatpush1.bf16.msra.mxu0 %v3714
    %3733 = vmatprep.subr.bf16.mxu0 0
    %3734 = vmatpush1.bf16.msra.mxu0 0
    %3735 = vmatprep.subr.bf16.mxu0 0
    %3736 = vmatpush1.bf16.msra.mxu0 0
    %3737 = vmatprep.subr.bf16.mxu0 0
    %3738 = vmatpush1.bf16.msra.mxu0 0
    %3739 = vmatprep.subr.bf16.mxu0 0
    %3740 = vmatpush1.bf16.msra.mxu0 0
    %3741 = vmatprep.subr.bf16.mxu0 0
    %3742 = vmatpush1.bf16.msra.mxu0 0
    %3743 = vmatprep.subr.bf16.mxu0 0
    %3744 = vmatpush1.bf16.msra.mxu0 0
    %3745 = vmatprep.subr.bf16.mxu0 0
    %3746 = vmatpush1.bf16.msra.mxu0 0
    %3747 = vmatprep.subr.bf16.mxu0 0
    %3748 = vmatpush1.bf16.msra.mxu0 0
    %3749 = vmatprep.subr.bf16.mxu0 0
    %3750 = vmatpush1.bf16.msra.mxu0 0
    %3751 = vmatprep.subr.bf16.mxu0 0
    %3752 = vmatpush1.bf16.msra.mxu0 0
    %3753 = vmatprep.subr.bf16.mxu0 0
    %3754 = vmatpush1.bf16.msra.mxu0 0
    %3755 = vmatprep.subr.bf16.mxu0 0
    %3756 = vmatpush1.bf16.msra.mxu0 0
    %3757 = vmatprep.mubr.bf16.mxu0 0
    %3758 = vmatmul.mubr.bf16.gmra.mrb[0].mxu0 %v3720
    %v3759 = vpop.f32.mrb[0].mxu0
    %v3760 = vadd.f32 0.0, %v3759
    %v3761 = vpop.f32.mrb[0].mxu0
    %v3762 = vpop.f32.mrb[0].mxu0
    %v3763 = vadd.f32 0.0, %v3762
    %v3764 = vpop.f32.mrb[0].mxu0
    %3765 = vmatprep.mubr.bf16.mxu0 0
    %3766 = vmatmul.mubr.bf16.gmra.mrb[0].mxu0 %v3723
    %v3767 = vpop.f32.mrb[0].mxu0
    %v3768 = vadd.f32 0.0, %v3767
    %v3769 = vpop.f32.mrb[0].mxu0
    %v3770 = vpop.f32.mrb[0].mxu0
    %v3771 = vadd.f32 0.0, %v3770
    %v3772 = vpop.f32.mrb[0].mxu0
    %3773 = vdwg.mxu0
    %v3774 = vunpack.c.l.b16 %v3615
    %v3775 = vunpack.c.l.b16 %v3625
    %v3776 = vunpack.c.l.b16 %v3639
    %v3777 = vunpack.c.l.b16 %v3649
    %v3778 = vpack.c.b16 %v3775, %v3774
    %v3779 = vpack.c.b16 %v3777, %v3776
    %v3788 = vunpack.c.l.b16 %v3650
    %v3789 = vunpack.c.l.b16 %v3651
    %v3790 = vunpack.c.l.b16 %v3652
    %v3791 = vunpack.c.l.b16 %v3653
    %v3792 = vunpack.c.l.b16 %v3654
    %v3793 = vunpack.c.l.b16 %v3655
    %v3794 = vunpack.c.l.b16 %v3656
    %v3795 = vunpack.c.l.b16 %v3657
    %v3796 = vpack.c.b16 %v3789, %v3788
    %v3797 = vpack.c.b16 %v3791, %v3790
    %v3798 = vpack.c.b16 %v3793, %v3792
    %v3799 = vpack.c.b16 %v3795, %v3794
    %v3805 = vsel %vm1393, %v3778, 0
    %v3808 = vsel %vm1393, %v3779, 0
    %3810 = vmatprep.subr.bf16.mxu0 0
    %3811 = vmatpush1.bf16.msra.mxu0 %v3796
    %3812 = vmatprep.subr.bf16.mxu0 0
    %3813 = vmatpush1.bf16.msra.mxu0 %v3797
    %3814 = vmatprep.subr.bf16.mxu0 0
    %3815 = vmatpush1.bf16.msra.mxu0 %v3798
    %3816 = vmatprep.subr.bf16.mxu0 0
    %3817 = vmatpush1.bf16.msra.mxu0 %v3799
    %3818 = vmatprep.subr.bf16.mxu0 0
    %3819 = vmatpush1.bf16.msra.mxu0 0
    %3820 = vmatprep.subr.bf16.mxu0 0
    %3821 = vmatpush1.bf16.msra.mxu0 0
    %3822 = vmatprep.subr.bf16.mxu0 0
    %3823 = vmatpush1.bf16.msra.mxu0 0
    %3824 = vmatprep.subr.bf16.mxu0 0
    %3825 = vmatpush1.bf16.msra.mxu0 0
    %3826 = vmatprep.subr.bf16.mxu0 0
    %3827 = vmatpush1.bf16.msra.mxu0 0
    %3828 = vmatprep.subr.bf16.mxu0 0
    %3829 = vmatpush1.bf16.msra.mxu0 0
    %3830 = vmatprep.subr.bf16.mxu0 0
    %3831 = vmatpush1.bf16.msra.mxu0 0
    %3832 = vmatprep.subr.bf16.mxu0 0
    %3833 = vmatpush1.bf16.msra.mxu0 0
    %3834 = vmatprep.subr.bf16.mxu0 0
    %3835 = vmatpush1.bf16.msra.mxu0 0
    %3836 = vmatprep.subr.bf16.mxu0 0
    %3837 = vmatpush1.bf16.msra.mxu0 0
    %3838 = vmatprep.subr.bf16.mxu0 0
    %3839 = vmatpush1.bf16.msra.mxu0 0
    %3840 = vmatprep.subr.bf16.mxu0 0
    %3841 = vmatpush1.bf16.msra.mxu0 0
    %3842 = vmatprep.mubr.bf16.mxu0 0
    %3843 = vmatmul.mubr.bf16.gmra.mrb[0].mxu0 %v3805
    %v3844 = vpop.f32.mrb[0].mxu0
    %v3845 = vadd.f32 %v3760, %v3844
    %v3846 = vpop.f32.mrb[0].mxu0
    %v3847 = vpop.f32.mrb[0].mxu0
    %v3848 = vadd.f32 %v3763, %v3847
    %v3849 = vpop.f32.mrb[0].mxu0
    %3850 = vmatprep.mubr.bf16.mxu0 0
    %3851 = vmatmul.mubr.bf16.gmra.mrb[0].mxu0 %v3808
    %v3852 = vpop.f32.mrb[0].mxu0
    %v3853 = vadd.f32 %v3768, %v3852
    %v3854 = vpop.f32.mrb[0].mxu0
    %v3855 = vpop.f32.mrb[0].mxu0
    %v3856 = vadd.f32 %v3771, %v3855
    %v3857 = vpop.f32.mrb[0].mxu0
    %3858 = vdwg.mxu0
    %v3859 = vld [vmem:[#allocation3 + $0x8] sm:$0x3]
    %v3860 = vld [vmem:[#allocation3 + $0x14] sm:$0x3]
    %v3862 = vshrl.u32 %v3658, 16
    %v3864 = vrot.slane %v3862, 5
    %v3865 = vshll.u32 %v3658, 16
    %v3867 = vrot.slane %v3865, 6
    %v3868 = vor.u32 %v3864, %v3867
    %v3869 = vrot.slane %v3868, 4
    %v3870 = vrot.slane %v3616, 5
    %v3871 = vrot.slane %v3612, 6
    %v3872 = vor.u32 %v3870, %v3871
    %v3873 = vsel %vm749, %v3869, %v3872
    %v3874 = vrot.slane %v3872, 4
    %v3876 = vshrl.u32 %v3859, 16
    %v3878 = vrot.slane %v3876, 5
    %v3879 = vshll.u32 %v3859, 16
    %v3881 = vrot.slane %v3879, 6
    %v3882 = vor.u32 %v3878, %v3881
    %v3883 = vsel %vm749, %v3874, %v3882
    %v3885 = vshrl.u32 %v3659, 16
    %v3887 = vrot.slane %v3885, 5
    %v3888 = vshll.u32 %v3659, 16
    %v3890 = vrot.slane %v3888, 6
    %v3891 = vor.u32 %v3887, %v3890
    %v3892 = vrot.slane %v3891, 4
    %v3893 = vrot.slane %v3640, 5
    %v3894 = vrot.slane %v3636, 6
    %v3895 = vor.u32 %v3893, %v3894
    %v3896 = vsel %vm749, %v3892, %v3895
    %v3897 = vrot.slane %v3895, 4
    %v3899 = vshrl.u32 %v3860, 16
    %v3901 = vrot.slane %v3899, 5
    %v3902 = vshll.u32 %v3860, 16
    %v3904 = vrot.slane %v3902, 6
    %v3905 = vor.u32 %v3901, %v3904
    %v3906 = vsel %vm749, %v3897, %v3905
    %s3907 = scalar_lea.vmem %s33, 64
    %v3908 = vld [vmem:[%s3907] sm:$0xf]
    %v3909 = vld [vmem:[%s3907 + $0x4] sm:$0xf]
    %v3910 = vld [vmem:[%s3907 + $0x8] sm:$0xf]
    %v3911 = vld [vmem:[%s3907 + $0xc] sm:$0xf]
    %v3912 = vld [vmem:[%s3907 + $0x10] sm:$0xf]
    %v3913 = vld [vmem:[%s3907 + $0x14] sm:$0xf]
    %v3914 = vld [vmem:[%s3907 + $0x18] sm:$0xf]
    %v3915 = vld [vmem:[%s3907 + $0x1c] sm:$0xf]
    %v3916 = vunpack.c.l.b16 %v3873
    %v3917 = vunpack.c.l.b16 %v3883
    %v3918 = vunpack.c.l.b16 %v3896
    %v3919 = vunpack.c.l.b16 %v3906
    %v3920 = vpack.c.b16 %v3917, %v3916
    %v3921 = vpack.c.b16 %v3919, %v3918
    %v3930 = vunpack.c.l.b16 %v3908
    %v3931 = vunpack.c.l.b16 %v3909
    %v3932 = vunpack.c.l.b16 %v3910
    %v3933 = vunpack.c.l.b16 %v3911
    %v3934 = vunpack.c.l.b16 %v3912
    %v3935 = vunpack.c.l.b16 %v3913
    %v3936 = vunpack.c.l.b16 %v3914
    %v3937 = vunpack.c.l.b16 %v3915
    %v3938 = vpack.c.b16 %v3931, %v3930
    %v3939 = vpack.c.b16 %v3933, %v3932
    %v3940 = vpack.c.b16 %v3935, %v3934
    %v3941 = vpack.c.b16 %v3937, %v3936
    %v3947 = vsel %vm1393, %v3920, 0
    %v3950 = vsel %vm1393, %v3921, 0
    %3952 = vmatprep.subr.bf16.mxu0 0
    %3953 = vmatpush1.bf16.msra.mxu0 %v3938
    %3954 = vmatprep.subr.bf16.mxu0 0
    %3955 = vmatpush1.bf16.msra.mxu0 %v3939
    %3956 = vmatprep.subr.bf16.mxu0 0
    %3957 = vmatpush1.bf16.msra.mxu0 %v3940
    %3958 = vmatprep.subr.bf16.mxu0 0
    %3959 = vmatpush1.bf16.msra.mxu0 %v3941
    %3960 = vmatprep.subr.bf16.mxu0 0
    %3961 = vmatpush1.bf16.msra.mxu0 0
    %3962 = vmatprep.subr.bf16.mxu0 0
    %3963 = vmatpush1.bf16.msra.mxu0 0
    %3964 = vmatprep.subr.bf16.mxu0 0
    %3965 = vmatpush1.bf16.msra.mxu0 0
    %3966 = vmatprep.subr.bf16.mxu0 0
    %3967 = vmatpush1.bf16.msra.mxu0 0
    %3968 = vmatprep.subr.bf16.mxu0 0
    %3969 = vmatpush1.bf16.msra.mxu0 0
    %3970 = vmatprep.subr.bf16.mxu0 0
    %3971 = vmatpush1.bf16.msra.mxu0 0
    %3972 = vmatprep.subr.bf16.mxu0 0
    %3973 = vmatpush1.bf16.msra.mxu0 0
    %3974 = vmatprep.subr.bf16.mxu0 0
    %3975 = vmatpush1.bf16.msra.mxu0 0
    %3976 = vmatprep.subr.bf16.mxu0 0
    %3977 = vmatpush1.bf16.msra.mxu0 0
    %3978 = vmatprep.subr.bf16.mxu0 0
    %3979 = vmatpush1.bf16.msra.mxu0 0
    %3980 = vmatprep.subr.bf16.mxu0 0
    %3981 = vmatpush1.bf16.msra.mxu0 0
    %3982 = vmatprep.subr.bf16.mxu0 0
    %3983 = vmatpush1.bf16.msra.mxu0 0
    %3984 = vmatprep.mubr.bf16.mxu0 0
    %3985 = vmatmul.mubr.bf16.gmra.mrb[0].mxu0 %v3947
    %v3986 = vpop.f32.mrb[0].mxu0
    %v3987 = vadd.f32 0.0, %v3986
    %v3988 = vpop.f32.mrb[0].mxu0
    %v3989 = vpop.f32.mrb[0].mxu0
    %v3990 = vadd.f32 0.0, %v3989
    %v3991 = vpop.f32.mrb[0].mxu0
    %3992 = vmatprep.mubr.bf16.mxu0 0
    %3993 = vmatmul.mubr.bf16.gmra.mrb[0].mxu0 %v3950
    %v3994 = vpop.f32.mrb[0].mxu0
    %v3995 = vadd.f32 0.0, %v3994
    %v3996 = vpop.f32.mrb[0].mxu0
    %v3997 = vpop.f32.mrb[0].mxu0
    %v3998 = vadd.f32 0.0, %v3997
    %v3999 = vpop.f32.mrb[0].mxu0
    %4000 = vdwg.mxu0
    %v4001 = vadd.f32 %v3845, %v3987
    %v4002 = vadd.f32 %v3848, %v3990
    %v4003 = vadd.f32 %v3853, %v3995
    %v4004 = vadd.f32 %v3856, %v3998
    %v4005 = vld [vmem:[#allocation3] sm:$0xc]
    %v4006 = vld [vmem:[#allocation3 + $0xc] sm:$0xc]
    %v4011 = vrot.slane %v4005, 6
    %v4012 = vrot.slane %v4011, 4
    %v4013 = vrot.slane %v3597, 6
    %v4014 = vsel %vm874, %v4012, %v4013
    %v4015 = vrot.slane %v4013, 4
    %v4016 = vrot.slane %v3859, 6
    %v4017 = vsel %vm874, %v4015, %v4016
    %v4018 = vrot.slane %v4006, 6
    %v4019 = vrot.slane %v4018, 4
    %v4020 = vrot.slane %v3600, 6
    %v4021 = vsel %vm874, %v4019, %v4020
    %v4022 = vrot.slane %v4020, 4
    %v4023 = vrot.slane %v3860, 6
    %v4024 = vsel %vm874, %v4022, %v4023
    %s4025 = scalar_lea.vmem %s33, 96
    %v4026 = vld [vmem:[%s4025] sm:$0xf]
    %v4027 = vld [vmem:[%s4025 + $0x4] sm:$0xf]
    %v4028 = vld [vmem:[%s4025 + $0x8] sm:$0xf]
    %v4029 = vld [vmem:[%s4025 + $0xc] sm:$0xf]
    %v4030 = vld [vmem:[%s4025 + $0x10] sm:$0xf]
    %v4031 = vld [vmem:[%s4025 + $0x14] sm:$0xf]
    %v4032 = vld [vmem:[%s4025 + $0x18] sm:$0xf]
    %v4033 = vld [vmem:[%s4025 + $0x1c] sm:$0xf]
    %v4034 = vunpack.c.l.b16 %v4014
    %v4035 = vunpack.c.l.b16 %v4017
    %v4036 = vunpack.c.l.b16 %v4021
    %v4037 = vunpack.c.l.b16 %v4024
    %v4038 = vpack.c.b16 %v4035, %v4034
    %v4039 = vpack.c.b16 %v4037, %v4036
    %v4048 = vunpack.c.l.b16 %v4026
    %v4049 = vunpack.c.l.b16 %v4027
    %v4050 = vunpack.c.l.b16 %v4028
    %v4051 = vunpack.c.l.b16 %v4029
    %v4052 = vunpack.c.l.b16 %v4030
    %v4053 = vunpack.c.l.b16 %v4031
    %v4054 = vunpack.c.l.b16 %v4032
    %v4055 = vunpack.c.l.b16 %v4033
    %v4056 = vpack.c.b16 %v4049, %v4048
    %v4057 = vpack.c.b16 %v4051, %v4050
    %v4058 = vpack.c.b16 %v4053, %v4052
    %v4059 = vpack.c.b16 %v4055, %v4054
    %v4065 = vsel %vm1393, %v4038, 0
    %v4068 = vsel %vm1393, %v4039, 0
    %4070 = vmatprep.subr.bf16.mxu0 0
    %4071 = vmatpush1.bf16.msra.mxu0 %v4056
    %4072 = vmatprep.subr.bf16.mxu0 0
    %4073 = vmatpush1.bf16.msra.mxu0 %v4057
    %4074 = vmatprep.subr.bf16.mxu0 0
    %4075 = vmatpush1.bf16.msra.mxu0 %v4058
    %4076 = vmatprep.subr.bf16.mxu0 0
    %4077 = vmatpush1.bf16.msra.mxu0 %v4059
    %4078 = vmatprep.subr.bf16.mxu0 0
    %4079 = vmatpush1.bf16.msra.mxu0 0
    %4080 = vmatprep.subr.bf16.mxu0 0
    %4081 = vmatpush1.bf16.msra.mxu0 0
    %4082 = vmatprep.subr.bf16.mxu0 0
    %4083 = vmatpush1.bf16.msra.mxu0 0
    %4084 = vmatprep.subr.bf16.mxu0 0
    %4085 = vmatpush1.bf16.msra.mxu0 0
    %4086 = vmatprep.subr.bf16.mxu0 0
    %4087 = vmatpush1.bf16.msra.mxu0 0
    %4088 = vmatprep.subr.bf16.mxu0 0
    %4089 = vmatpush1.bf16.msra.mxu0 0
    %4090 = vmatprep.subr.bf16.mxu0 0
    %4091 = vmatpush1.bf16.msra.mxu0 0
    %4092 = vmatprep.subr.bf16.mxu0 0
    %4093 = vmatpush1.bf16.msra.mxu0 0
    %4094 = vmatprep.subr.bf16.mxu0 0
    %4095 = vmatpush1.bf16.msra.mxu0 0
    %4096 = vmatprep.subr.bf16.mxu0 0
    %4097 = vmatpush1.bf16.msra.mxu0 0
    %4098 = vmatprep.subr.bf16.mxu0 0
    %4099 = vmatpush1.bf16.msra.mxu0 0
    %4100 = vmatprep.subr.bf16.mxu0 0
    %4101 = vmatpush1.bf16.msra.mxu0 0
    %4102 = vmatprep.mubr.bf16.mxu0 0
    %4103 = vmatmul.mubr.bf16.gmra.mrb[0].mxu0 %v4065
    %v4104 = vpop.f32.mrb[0].mxu0
    %v4105 = vadd.f32 0.0, %v4104
    %v4106 = vpop.f32.mrb[0].mxu0
    %v4107 = vpop.f32.mrb[0].mxu0
    %v4108 = vadd.f32 0.0, %v4107
    %v4109 = vpop.f32.mrb[0].mxu0
    %4110 = vmatprep.mubr.bf16.mxu0 0
    %4111 = vmatmul.mubr.bf16.gmra.mrb[0].mxu0 %v4068
    %v4112 = vpop.f32.mrb[0].mxu0
    %v4113 = vadd.f32 0.0, %v4112
    %v4114 = vpop.f32.mrb[0].mxu0
    %v4115 = vpop.f32.mrb[0].mxu0
    %v4116 = vadd.f32 0.0, %v4115
    %v4117 = vpop.f32.mrb[0].mxu0
    %4118 = vdwg.mxu0
    %v4119 = vadd.f32 %v4001, %v4105
    %v4120 = vadd.f32 %v4002, %v4108
    %v4121 = vadd.f32 %v4003, %v4113
    %v4122 = vadd.f32 %v4004, %v4116
    %v4123 = vld [vmem:[#allocation3 + $0x8] sm:$0x7]
    %v4124 = vld [vmem:[#allocation3 + $0x14] sm:$0x7]
    %v4126 = vshrl.u32 %v4005, 16
    %v4128 = vrot.slane %v4126, 6
    %v4129 = vshll.u32 %v4005, 16
    %v4131 = vrot.slane %v4129, 7
    %v4132 = vor.u32 %v4128, %v4131
    %v4133 = vrot.slane %v4132, 4
    %v4134 = vrot.slane %v3616, 6
    %v4135 = vrot.slane %v3612, 7
    %v4136 = vor.u32 %v4134, %v4135
    %v4137 = vsel %vm394, %v4133, %v4136
    %v4138 = vrot.slane %v4136, 4
    %v4140 = vshrl.u32 %v4123, 16
    %v4142 = vrot.slane %v4140, 6
    %v4143 = vshll.u32 %v4123, 16
    %v4145 = vrot.slane %v4143, 7
    %v4146 = vor.u32 %v4142, %v4145
    %v4147 = vsel %vm394, %v4138, %v4146
    %v4149 = vshrl.u32 %v4006, 16
    %v4151 = vrot.slane %v4149, 6
    %v4152 = vshll.u32 %v4006, 16
    %v4154 = vrot.slane %v4152, 7
    %v4155 = vor.u32 %v4151, %v4154
    %v4156 = vrot.slane %v4155, 4
    %v4157 = vrot.slane %v3640, 6
    %v4158 = vrot.slane %v3636, 7
    %v4159 = vor.u32 %v4157, %v4158
    %v4160 = vsel %vm394, %v4156, %v4159
    %v4161 = vrot.slane %v4159, 4
    %v4163 = vshrl.u32 %v4124, 16
    %v4165 = vrot.slane %v4163, 6
    %v4166 = vshll.u32 %v4124, 16
    %v4168 = vrot.slane %v4166, 7
    %v4169 = vor.u32 %v4165, %v4168
    %v4170 = vsel %vm394, %v4161, %v4169
    %s4171 = scalar_lea.vmem %s33, 128
    %v4172 = vld [vmem:[%s4171] sm:$0xf]
    %v4173 = vld [vmem:[%s4171 + $0x4] sm:$0xf]
    %v4174 = vld [vmem:[%s4171 + $0x8] sm:$0xf]
    %v4175 = vld [vmem:[%s4171 + $0xc] sm:$0xf]
    %v4176 = vld [vmem:[%s4171 + $0x10] sm:$0xf]
    %v4177 = vld [vmem:[%s4171 + $0x14] sm:$0xf]
    %v4178 = vld [vmem:[%s4171 + $0x18] sm:$0xf]
    %v4179 = vld [vmem:[%s4171 + $0x1c] sm:$0xf]
    %v4180 = vunpack.c.l.b16 %v4137
    %v4181 = vunpack.c.l.b16 %v4147
    %v4182 = vunpack.c.l.b16 %v4160
    %v4183 = vunpack.c.l.b16 %v4170
    %v4184 = vpack.c.b16 %v4181, %v4180
    %v4185 = vpack.c.b16 %v4183, %v4182
    %v4194 = vunpack.c.l.b16 %v4172
    %v4195 = vunpack.c.l.b16 %v4173
    %v4196 = vunpack.c.l.b16 %v4174
    %v4197 = vunpack.c.l.b16 %v4175
    %v4198 = vunpack.c.l.b16 %v4176
    %v4199 = vunpack.c.l.b16 %v4177
    %v4200 = vunpack.c.l.b16 %v4178
    %v4201 = vunpack.c.l.b16 %v4179
    %v4202 = vpack.c.b16 %v4195, %v4194
    %v4203 = vpack.c.b16 %v4197, %v4196
    %v4204 = vpack.c.b16 %v4199, %v4198
    %v4205 = vpack.c.b16 %v4201, %v4200
    %v4211 = vsel %vm1393, %v4184, 0
    %v4214 = vsel %vm1393, %v4185, 0
    %4216 = vmatprep.subr.bf16.mxu0 0
    %4217 = vmatpush1.bf16.msra.mxu0 %v4202
    %4218 = vmatprep.subr.bf16.mxu0 0
    %4219 = vmatpush1.bf16.msra.mxu0 %v4203
    %4220 = vmatprep.subr.bf16.mxu0 0
    %4221 = vmatpush1.bf16.msra.mxu0 %v4204
    %4222 = vmatprep.subr.bf16.mxu0 0
    %4223 = vmatpush1.bf16.msra.mxu0 %v4205
    %4224 = vmatprep.subr.bf16.mxu0 0
    %4225 = vmatpush1.bf16.msra.mxu0 0
    %4226 = vmatprep.subr.bf16.mxu0 0
    %4227 = vmatpush1.bf16.msra.mxu0 0
    %4228 = vmatprep.subr.bf16.mxu0 0
    %4229 = vmatpush1.bf16.msra.mxu0 0
    %4230 = vmatprep.subr.bf16.mxu0 0
    %4231 = vmatpush1.bf16.msra.mxu0 0
    %4232 = vmatprep.subr.bf16.mxu0 0
    %4233 = vmatpush1.bf16.msra.mxu0 0
    %4234 = vmatprep.subr.bf16.mxu0 0
    %4235 = vmatpush1.bf16.msra.mxu0 0
    %4236 = vmatprep.subr.bf16.mxu0 0
    %4237 = vmatpush1.bf16.msra.mxu0 0
    %4238 = vmatprep.subr.bf16.mxu0 0
    %4239 = vmatpush1.bf16.msra.mxu0 0
    %4240 = vmatprep.subr.bf16.mxu0 0
    %4241 = vmatpush1.bf16.msra.mxu0 0
    %4242 = vmatprep.subr.bf16.mxu0 0
    %4243 = vmatpush1.bf16.msra.mxu0 0
    %4244 = vmatprep.subr.bf16.mxu0 0
    %4245 = vmatpush1.bf16.msra.mxu0 0
    %4246 = vmatprep.subr.bf16.mxu0 0
    %4247 = vmatpush1.bf16.msra.mxu0 0
    %4248 = vmatprep.mubr.bf16.mxu0 0
    %4249 = vmatmul.mubr.bf16.gmra.mrb[0].mxu0 %v4211
    %v4250 = vpop.f32.mrb[0].mxu0
    %v4251 = vadd.f32 0.0, %v4250
    %v4252 = vpop.f32.mrb[0].mxu0
    %v4253 = vpop.f32.mrb[0].mxu0
    %v4254 = vadd.f32 0.0, %v4253
    %v4255 = vpop.f32.mrb[0].mxu0
    %4256 = vmatprep.mubr.bf16.mxu0 0
    %4257 = vmatmul.mubr.bf16.gmra.mrb[0].mxu0 %v4214
    %v4258 = vpop.f32.mrb[0].mxu0
    %v4259 = vadd.f32 0.0, %v4258
    %v4260 = vpop.f32.mrb[0].mxu0
    %v4261 = vpop.f32.mrb[0].mxu0
    %v4262 = vadd.f32 0.0, %v4261
    %v4263 = vpop.f32.mrb[0].mxu0
    %4264 = vdwg.mxu0
    %v4265 = vadd.f32 %v4119, %v4251
    %v4266 = vadd.f32 %v4120, %v4254
    %v4267 = vadd.f32 %v4121, %v4259
    %v4268 = vadd.f32 %v4122, %v4262
    %v4269 = vld [vmem:[#allocation24] sm:$0x1]
    %v4271 = vlaneseq
    %v4272 = vshrl.u32 %v4271, 7
    %v4273 = vsub.s32 0, %v4272
    %v4274 = vrot.slane %v4269, %v4273
    %v4276 = vmul.f32 %v4265, %v4274
    %v4277 = vmul.f32 %v4266, %v4274
    %v4278 = vmul.f32 %v4267, %v4274
    %v4279 = vmul.f32 %v4268, %v4274
    %v4280 = vld [vmem:[%s37] sm:$0x1]
    %v4282 = vlaneseq
    %v4283 = vshrl.u32 %v4282, 7
    %v4284 = vsub.s32 0, %v4283
    %v4285 = vrot.slane %v4280, %v4284
    %v4287 = vadd.f32 %v4276, %v4285
    %v4288 = vadd.f32 %v4277, %v4285
    %v4289 = vadd.f32 %v4278, %v4285
    %v4290 = vadd.f32 %v4279, %v4285
    %v4291 = vmax.f32 %v4287, 0.0
    %v4292 = vmax.f32 %v4288, 0.0
    %v4293 = vmax.f32 %v4289, 0.0
    %v4294 = vmax.f32 %v4290, 0.0
    %v4295 = vpack.c.bf16 %v4292, %v4291
    %v4296 = vpack.c.bf16 %v4294, %v4293
    %v4299 = vunpack.c.l.b16 %v4295
    %v4300 = vunpack.c.h.b16 %v4295
    %v4301 = vunpack.c.l.b16 %v4296
    %v4302 = vunpack.c.h.b16 %v4296
    %v4303 = vpack.c.b16 %v4299, %v4299
    %v4304 = vpack.c.b16 %v4300, %v4300
    %v4305 = vpack.c.b16 %v4301, %v4301
    %v4306 = vpack.c.b16 %v4302, %v4302
    %v4308 = vshrl.u32 %v4303, 16
    %v4310 = vrot.slane %v4308, 6
    %v4311 = vshll.u32 %v4303, 16
    %v4313 = vrot.slane %v4311, 7
    %v4314 = vor.u32 %v4310, %v4313
    %v4315 = vrot.slane %v4314, 4
    %v4317 = vshrl.u32 %v4304, 16
    %v4319 = vrot.slane %v4317, 6
    %v4320 = vshll.u32 %v4304, 16
    %v4322 = vrot.slane %v4320, 7
    %v4323 = vor.u32 %v4319, %v4322
    %v4324 = vsel %vm394, %v4315, %v4323
    %v4325 = vrot.slane %v4323, 4
    %v4327 = vshrl.u32 %v4305, 16
    %v4329 = vrot.slane %v4327, 6
    %v4330 = vshll.u32 %v4305, 16
    %v4332 = vrot.slane %v4330, 7
    %v4333 = vor.u32 %v4329, %v4332
    %v4334 = vrot.slane %v4333, 4
    %v4336 = vshrl.u32 %v4306, 16
    %v4338 = vrot.slane %v4336, 6
    %v4339 = vshll.u32 %v4306, 16
    %v4341 = vrot.slane %v4339, 7
    %v4342 = vor.u32 %v4338, %v4341
    %v4343 = vsel %vm394, %v4334, %v4342
    %v4344 = vrot.slane %v4342, 4
    %v4351 = vsel %vm1253, %v4314, %v3658
    %4352 = vst [vmem:[#allocation3] sm:$0xe] %v4351
    %4353 = vst.msk [vmem:[#allocation3 + $0x4] sm:$0xf] %vm376, %v4324
    %v4354 = vld [vmem:[#allocation3 + $0x8] sm:$0x3]
    %v4355 = vsel %vm1259, %v4325, %v4354
    %4356 = vst [vmem:[#allocation3 + $0x8] sm:$0x3] %v4355
    %v4357 = vld [vmem:[#allocation3 + $0xc] sm:$0xe]
    %v4358 = vsel %vm1253, %v4333, %v4357
    %4359 = vst [vmem:[#allocation3 + $0xc] sm:$0xe] %v4358
    %4360 = vst.msk [vmem:[#allocation3 + $0x10] sm:$0xf] %vm376, %v4343
    %v4361 = vld [vmem:[#allocation3 + $0x14] sm:$0x3]
    %v4362 = vsel %vm1259, %v4344, %v4361
    %4363 = vst [vmem:[#allocation3 + $0x14] sm:$0x3] %v4362
    %v4364 = vld [vmem:[#allocation3] sm:$0xe]
    %v4365 = vld [vmem:[#allocation3 + $0x4] sm:$0xf]
    %v4366 = vld [vmem:[#allocation3 + $0x8] sm:$0x1]
    %v4367 = vld [vmem:[#allocation3 + $0xc] sm:$0xe]
    %v4368 = vld [vmem:[#allocation3 + $0x10] sm:$0xf]
    %v4369 = vld [vmem:[#allocation3 + $0x14] sm:$0x1]
    %v4376 = vrot.slane %v4364, 5
    %v4377 = vrot.slane %v4376, 4
    %v4378 = vrot.slane %v4365, 5
    %v4379 = vsel %vm660, %v4377, %v4378
    %v4380 = vrot.slane %v4378, 4
    %v4381 = vrot.slane %v4366, 5
    %v4382 = vsel %vm660, %v4380, %v4381
    %v4383 = vrot.slane %v4367, 5
    %v4384 = vrot.slane %v4383, 4
    %v4385 = vrot.slane %v4368, 5
    %v4386 = vsel %vm660, %v4384, %v4385
    %v4387 = vrot.slane %v4385, 4
    %v4388 = vrot.slane %v4369, 5
    %v4389 = vsel %vm660, %v4387, %v4388
    %v4390 = vld [vmem:[#allocation25] sm:$0xf]
    %v4391 = vld [vmem:[#allocation25 + $0x4] sm:$0xf]
    %v4392 = vld [vmem:[#allocation25 + $0x8] sm:$0xf]
    %v4393 = vld [vmem:[#allocation25 + $0xc] sm:$0xf]
    %v4394 = vld [vmem:[#allocation25 + $0x10] sm:$0xf]
    %v4395 = vld [vmem:[#allocation25 + $0x14] sm:$0xf]
    %v4396 = vld [vmem:[#allocation25 + $0x18] sm:$0xf]
    %v4397 = vld [vmem:[#allocation25 + $0x1c] sm:$0xf]
    %v4398 = vld [vmem:[#allocation3 + $0x8] sm:$0x3]
    %v4399 = vld [vmem:[#allocation3 + $0x14] sm:$0x3]
    %v4401 = vshrl.u32 %v4364, 16
    %v4403 = vrot.slane %v4401, 5
    %v4404 = vshll.u32 %v4364, 16
    %v4406 = vrot.slane %v4404, 6
    %v4407 = vor.u32 %v4403, %v4406
    %v4408 = vrot.slane %v4407, 4
    %v4410 = vshrl.u32 %v4365, 16
    %v4412 = vrot.slane %v4410, 5
    %v4413 = vshll.u32 %v4365, 16
    %v4415 = vrot.slane %v4413, 6
    %v4416 = vor.u32 %v4412, %v4415
    %v4417 = vsel %vm749, %v4408, %v4416
    %v4418 = vrot.slane %v4416, 4
    %v4420 = vshrl.u32 %v4398, 16
    %v4422 = vrot.slane %v4420, 5
    %v4423 = vshll.u32 %v4398, 16
    %v4425 = vrot.slane %v4423, 6
    %v4426 = vor.u32 %v4422, %v4425
    %v4427 = vsel %vm749, %v4418, %v4426
    %v4429 = vshrl.u32 %v4367, 16
    %v4431 = vrot.slane %v4429, 5
    %v4432 = vshll.u32 %v4367, 16
    %v4434 = vrot.slane %v4432, 6
    %v4435 = vor.u32 %v4431, %v4434
    %v4436 = vrot.slane %v4435, 4
    %v4438 = vshrl.u32 %v4368, 16
    %v4440 = vrot.slane %v4438, 5
    %v4441 = vshll.u32 %v4368, 16
    %v4443 = vrot.slane %v4441, 6
    %v4444 = vor.u32 %v4440, %v4443
    %v4445 = vsel %vm749, %v4436, %v4444
    %v4446 = vrot.slane %v4444, 4
    %v4448 = vshrl.u32 %v4399, 16
    %v4450 = vrot.slane %v4448, 5
    %v4451 = vshll.u32 %v4399, 16
    %v4453 = vrot.slane %v4451, 6
    %v4454 = vor.u32 %v4450, %v4453
    %v4455 = vsel %vm749, %v4446, %v4454
    %s4456 = scalar_lea.vmem [#allocation25], 32
    %v4457 = vld [vmem:[%s4456] sm:$0xf]
    %v4458 = vld [vmem:[%s4456 + $0x4] sm:$0xf]
    %v4459 = vld [vmem:[%s4456 + $0x8] sm:$0xf]
    %v4460 = vld [vmem:[%s4456 + $0xc] sm:$0xf]
    %v4461 = vld [vmem:[%s4456 + $0x10] sm:$0xf]
    %v4462 = vld [vmem:[%s4456 + $0x14] sm:$0xf]
    %v4463 = vld [vmem:[%s4456 + $0x18] sm:$0xf]
    %v4464 = vld [vmem:[%s4456 + $0x1c] sm:$0xf]
    %v4465 = vunpack.c.l.b16 %v4417
    %v4466 = vunpack.c.l.b16 %v4427
    %v4467 = vunpack.c.l.b16 %v4445
    %v4468 = vunpack.c.l.b16 %v4455
    %v4469 = vpack.c.b16 %v4466, %v4465
    %v4470 = vpack.c.b16 %v4468, %v4467
    %v4479 = vunpack.c.l.b16 %v4457
    %v4480 = vunpack.c.l.b16 %v4458
    %v4481 = vunpack.c.l.b16 %v4459
    %v4482 = vunpack.c.l.b16 %v4460
    %v4483 = vunpack.c.l.b16 %v4461
    %v4484 = vunpack.c.l.b16 %v4462
    %v4485 = vunpack.c.l.b16 %v4463
    %v4486 = vunpack.c.l.b16 %v4464
    %v4487 = vpack.c.b16 %v4480, %v4479
    %v4488 = vpack.c.b16 %v4482, %v4481
    %v4489 = vpack.c.b16 %v4484, %v4483
    %v4490 = vpack.c.b16 %v4486, %v4485
    %v4496 = vsel %vm1393, %v4469, 0
    %v4499 = vsel %vm1393, %v4470, 0
    %4501 = vmatprep.subr.bf16.mxu0 0
    %4502 = vmatpush1.bf16.msra.mxu0 %v4487
    %4503 = vmatprep.subr.bf16.mxu0 0
    %4504 = vmatpush1.bf16.msra.mxu0 %v4488
    %4505 = vmatprep.subr.bf16.mxu0 0
    %4506 = vmatpush1.bf16.msra.mxu0 %v4489
    %4507 = vmatprep.subr.bf16.mxu0 0
    %4508 = vmatpush1.bf16.msra.mxu0 %v4490
    %4509 = vmatprep.subr.bf16.mxu0 0
    %4510 = vmatpush1.bf16.msra.mxu0 0
    %4511 = vmatprep.subr.bf16.mxu0 0
    %4512 = vmatpush1.bf16.msra.mxu0 0
    %4513 = vmatprep.subr.bf16.mxu0 0
    %4514 = vmatpush1.bf16.msra.mxu0 0
    %4515 = vmatprep.subr.bf16.mxu0 0
    %4516 = vmatpush1.bf16.msra.mxu0 0
    %4517 = vmatprep.subr.bf16.mxu0 0
    %4518 = vmatpush1.bf16.msra.mxu0 0
    %4519 = vmatprep.subr.bf16.mxu0 0
    %4520 = vmatpush1.bf16.msra.mxu0 0
    %4521 = vmatprep.subr.bf16.mxu0 0
    %4522 = vmatpush1.bf16.msra.mxu0 0
    %4523 = vmatprep.subr.bf16.mxu0 0
    %4524 = vmatpush1.bf16.msra.mxu0 0
    %4525 = vmatprep.subr.bf16.mxu0 0
    %4526 = vmatpush1.bf16.msra.mxu0 0
    %4527 = vmatprep.subr.bf16.mxu0 0
    %4528 = vmatpush1.bf16.msra.mxu0 0
    %4529 = vmatprep.subr.bf16.mxu0 0
    %4530 = vmatpush1.bf16.msra.mxu0 0
    %4531 = vmatprep.subr.bf16.mxu0 0
    %4532 = vmatpush1.bf16.msra.mxu0 0
    %4533 = vmatprep.mubr.bf16.mxu0 0
    %4534 = vmatmul.mubr.bf16.gmra.mrb[0].mxu0 %v4496
    %v4535 = vpop.f32.mrb[0].mxu0
    %v4536 = vadd.f32 0.0, %v4535
    %v4537 = vpop.f32.mrb[0].mxu0
    %v4538 = vpop.f32.mrb[0].mxu0
    %v4539 = vadd.f32 0.0, %v4538
    %v4540 = vpop.f32.mrb[0].mxu0
    %4541 = vmatprep.mubr.bf16.mxu0 0
    %4542 = vmatmul.mubr.bf16.gmra.mrb[0].mxu0 %v4499
    %v4543 = vpop.f32.mrb[0].mxu0
    %v4544 = vadd.f32 0.0, %v4543
    %v4545 = vpop.f32.mrb[0].mxu0
    %v4546 = vpop.f32.mrb[0].mxu0
    %v4547 = vadd.f32 0.0, %v4546
    %v4548 = vpop.f32.mrb[0].mxu0
    %4549 = vdwg.mxu0
    %v4550 = vunpack.c.l.b16 %v4379
    %v4551 = vunpack.c.l.b16 %v4382
    %v4552 = vunpack.c.l.b16 %v4386
    %v4553 = vunpack.c.l.b16 %v4389
    %v4554 = vpack.c.b16 %v4551, %v4550
    %v4555 = vpack.c.b16 %v4553, %v4552
    %v4564 = vunpack.c.l.b16 %v4390
    %v4565 = vunpack.c.l.b16 %v4391
    %v4566 = vunpack.c.l.b16 %v4392
    %v4567 = vunpack.c.l.b16 %v4393
    %v4568 = vunpack.c.l.b16 %v4394
    %v4569 = vunpack.c.l.b16 %v4395
    %v4570 = vunpack.c.l.b16 %v4396
    %v4571 = vunpack.c.l.b16 %v4397
    %v4572 = vpack.c.b16 %v4565, %v4564
    %v4573 = vpack.c.b16 %v4567, %v4566
    %v4574 = vpack.c.b16 %v4569, %v4568
    %v4575 = vpack.c.b16 %v4571, %v4570
    %v4581 = vsel %vm1393, %v4554, 0
    %v4584 = vsel %vm1393, %v4555, 0
    %4586 = vmatprep.subr.bf16.mxu0 0
    %4587 = vmatpush1.bf16.msra.mxu0 %v4572
    %4588 = vmatprep.subr.bf16.mxu0 0
    %4589 = vmatpush1.bf16.msra.mxu0 %v4573
    %4590 = vmatprep.subr.bf16.mxu0 0
    %4591 = vmatpush1.bf16.msra.mxu0 %v4574
    %4592 = vmatprep.subr.bf16.mxu0 0
    %4593 = vmatpush1.bf16.msra.mxu0 %v4575
    %4594 = vmatprep.subr.bf16.mxu0 0
    %4595 = vmatpush1.bf16.msra.mxu0 0
    %4596 = vmatprep.subr.bf16.mxu0 0
    %4597 = vmatpush1.bf16.msra.mxu0 0
    %4598 = vmatprep.subr.bf16.mxu0 0
    %4599 = vmatpush1.bf16.msra.mxu0 0
    %4600 = vmatprep.subr.bf16.mxu0 0
    %4601 = vmatpush1.bf16.msra.mxu0 0
    %4602 = vmatprep.subr.bf16.mxu0 0
    %4603 = vmatpush1.bf16.msra.mxu0 0
    %4604 = vmatprep.subr.bf16.mxu0 0
    %4605 = vmatpush1.bf16.msra.mxu0 0
    %4606 = vmatprep.subr.bf16.mxu0 0
    %4607 = vmatpush1.bf16.msra.mxu0 0
    %4608 = vmatprep.subr.bf16.mxu0 0
    %4609 = vmatpush1.bf16.msra.mxu0 0
    %4610 = vmatprep.subr.bf16.mxu0 0
    %4611 = vmatpush1.bf16.msra.mxu0 0
    %4612 = vmatprep.subr.bf16.mxu0 0
    %4613 = vmatpush1.bf16.msra.mxu0 0
    %4614 = vmatprep.subr.bf16.mxu0 0
    %4615 = vmatpush1.bf16.msra.mxu0 0
    %4616 = vmatprep.subr.bf16.mxu0 0
    %4617 = vmatpush1.bf16.msra.mxu0 0
    %4618 = vmatprep.mubr.bf16.mxu0 0
    %4619 = vmatmul.mubr.bf16.gmra.mrb[0].mxu0 %v4581
    %v4620 = vpop.f32.mrb[0].mxu0
    %v4621 = vadd.f32 %v4536, %v4620
    %v4622 = vpop.f32.mrb[0].mxu0
    %v4623 = vpop.f32.mrb[0].mxu0
    %v4624 = vadd.f32 %v4539, %v4623
    %v4625 = vpop.f32.mrb[0].mxu0
    %4626 = vmatprep.mubr.bf16.mxu0 0
    %4627 = vmatmul.mubr.bf16.gmra.mrb[0].mxu0 %v4584
    %v4628 = vpop.f32.mrb[0].mxu0
    %v4629 = vadd.f32 %v4544, %v4628
    %v4630 = vpop.f32.mrb[0].mxu0
    %v4631 = vpop.f32.mrb[0].mxu0
    %v4632 = vadd.f32 %v4547, %v4631
    %v4633 = vpop.f32.mrb[0].mxu0
    %4634 = vdwg.mxu0
    %v4635 = vld [vmem:[#allocation3] sm:$0xc]
    %v4636 = vld [vmem:[#allocation3 + $0xc] sm:$0xc]
    %v4641 = vrot.slane %v4635, 6
    %v4642 = vrot.slane %v4641, 4
    %v4643 = vrot.slane %v4365, 6
    %v4644 = vsel %vm874, %v4642, %v4643
    %v4645 = vrot.slane %v4643, 4
    %v4646 = vrot.slane %v4398, 6
    %v4647 = vsel %vm874, %v4645, %v4646
    %v4648 = vrot.slane %v4636, 6
    %v4649 = vrot.slane %v4648, 4
    %v4650 = vrot.slane %v4368, 6
    %v4651 = vsel %vm874, %v4649, %v4650
    %v4652 = vrot.slane %v4650, 4
    %v4653 = vrot.slane %v4399, 6
    %v4654 = vsel %vm874, %v4652, %v4653
    %s4655 = scalar_lea.vmem [#allocation25], 64
    %v4656 = vld [vmem:[%s4655] sm:$0xf]
    %v4657 = vld [vmem:[%s4655 + $0x4] sm:$0xf]
    %v4658 = vld [vmem:[%s4655 + $0x8] sm:$0xf]
    %v4659 = vld [vmem:[%s4655 + $0xc] sm:$0xf]
    %v4660 = vld [vmem:[%s4655 + $0x10] sm:$0xf]
    %v4661 = vld [vmem:[%s4655 + $0x14] sm:$0xf]
    %v4662 = vld [vmem:[%s4655 + $0x18] sm:$0xf]
    %v4663 = vld [vmem:[%s4655 + $0x1c] sm:$0xf]
    %v4664 = vunpack.c.l.b16 %v4644
    %v4665 = vunpack.c.l.b16 %v4647
    %v4666 = vunpack.c.l.b16 %v4651
    %v4667 = vunpack.c.l.b16 %v4654
    %v4668 = vpack.c.b16 %v4665, %v4664
    %v4669 = vpack.c.b16 %v4667, %v4666
    %v4678 = vunpack.c.l.b16 %v4656
    %v4679 = vunpack.c.l.b16 %v4657
    %v4680 = vunpack.c.l.b16 %v4658
    %v4681 = vunpack.c.l.b16 %v4659
    %v4682 = vunpack.c.l.b16 %v4660
    %v4683 = vunpack.c.l.b16 %v4661
    %v4684 = vunpack.c.l.b16 %v4662
    %v4685 = vunpack.c.l.b16 %v4663
    %v4686 = vpack.c.b16 %v4679, %v4678
    %v4687 = vpack.c.b16 %v4681, %v4680
    %v4688 = vpack.c.b16 %v4683, %v4682
    %v4689 = vpack.c.b16 %v4685, %v4684
    %v4695 = vsel %vm1393, %v4668, 0
    %v4698 = vsel %vm1393, %v4669, 0
    %4700 = vmatprep.subr.bf16.mxu0 0
    %4701 = vmatpush1.bf16.msra.mxu0 %v4686
    %4702 = vmatprep.subr.bf16.mxu0 0
    %4703 = vmatpush1.bf16.msra.mxu0 %v4687
    %4704 = vmatprep.subr.bf16.mxu0 0
    %4705 = vmatpush1.bf16.msra.mxu0 %v4688
    %4706 = vmatprep.subr.bf16.mxu0 0
    %4707 = vmatpush1.bf16.msra.mxu0 %v4689
    %4708 = vmatprep.subr.bf16.mxu0 0
    %4709 = vmatpush1.bf16.msra.mxu0 0
    %4710 = vmatprep.subr.bf16.mxu0 0
    %4711 = vmatpush1.bf16.msra.mxu0 0
    %4712 = vmatprep.subr.bf16.mxu0 0
    %4713 = vmatpush1.bf16.msra.mxu0 0
    %4714 = vmatprep.subr.bf16.mxu0 0
    %4715 = vmatpush1.bf16.msra.mxu0 0
    %4716 = vmatprep.subr.bf16.mxu0 0
    %4717 = vmatpush1.bf16.msra.mxu0 0
    %4718 = vmatprep.subr.bf16.mxu0 0
    %4719 = vmatpush1.bf16.msra.mxu0 0
    %4720 = vmatprep.subr.bf16.mxu0 0
    %4721 = vmatpush1.bf16.msra.mxu0 0
    %4722 = vmatprep.subr.bf16.mxu0 0
    %4723 = vmatpush1.bf16.msra.mxu0 0
    %4724 = vmatprep.subr.bf16.mxu0 0
    %4725 = vmatpush1.bf16.msra.mxu0 0
    %4726 = vmatprep.subr.bf16.mxu0 0
    %4727 = vmatpush1.bf16.msra.mxu0 0
    %4728 = vmatprep.subr.bf16.mxu0 0
    %4729 = vmatpush1.bf16.msra.mxu0 0
    %4730 = vmatprep.subr.bf16.mxu0 0
    %4731 = vmatpush1.bf16.msra.mxu0 0
    %4732 = vmatprep.mubr.bf16.mxu0 0
    %4733 = vmatmul.mubr.bf16.gmra.mrb[0].mxu0 %v4695
    %v4734 = vpop.f32.mrb[0].mxu0
    %v4735 = vadd.f32 0.0, %v4734
    %v4736 = vpop.f32.mrb[0].mxu0
    %v4737 = vpop.f32.mrb[0].mxu0
    %v4738 = vadd.f32 0.0, %v4737
    %v4739 = vpop.f32.mrb[0].mxu0
    %4740 = vmatprep.mubr.bf16.mxu0 0
    %4741 = vmatmul.mubr.bf16.gmra.mrb[0].mxu0 %v4698
    %v4742 = vpop.f32.mrb[0].mxu0
    %v4743 = vadd.f32 0.0, %v4742
    %v4744 = vpop.f32.mrb[0].mxu0
    %v4745 = vpop.f32.mrb[0].mxu0
    %v4746 = vadd.f32 0.0, %v4745
    %v4747 = vpop.f32.mrb[0].mxu0
    %4748 = vdwg.mxu0
    %v4749 = vadd.f32 %v4621, %v4735
    %v4750 = vadd.f32 %v4624, %v4738
    %v4751 = vadd.f32 %v4629, %v4743
    %v4752 = vadd.f32 %v4632, %v4746
    %v4753 = vld [vmem:[%s41] sm:$0x1]
    %v4755 = vlaneseq
    %v4756 = vshrl.u32 %v4755, 7
    %v4757 = vsub.s32 0, %v4756
    %v4758 = vrot.slane %v4753, %v4757
    %v4760 = vmul.f32 %v4749, %v4758
    %v4761 = vmul.f32 %v4750, %v4758
    %v4762 = vmul.f32 %v4751, %v4758
    %v4763 = vmul.f32 %v4752, %v4758
    %v4764 = vld [vmem:[%s43] sm:$0x1]
    %v4766 = vlaneseq
    %v4767 = vshrl.u32 %v4766, 7
    %v4768 = vsub.s32 0, %v4767
    %v4769 = vrot.slane %v4764, %v4768
    %v4771 = vadd.f32 %v4760, %v4769
    %v4772 = vadd.f32 %v4761, %v4769
    %v4773 = vadd.f32 %v4762, %v4769
    %v4774 = vadd.f32 %v4763, %v4769
    %v4775 = vld [vmem:[%s45] sm:$0x1]
    %v4777 = vlaneseq
    %v4778 = vshrl.u32 %v4777, 7
    %v4779 = vsub.s32 0, %v4778
    %v4780 = vrot.slane %v4775, %v4779
    %v4782 = vmul.f32 %v2537, %v4780
    %v4783 = vmul.f32 %v2538, %v4780
    %v4784 = vmul.f32 %v2539, %v4780
    %v4785 = vmul.f32 %v2540, %v4780
    %v4786 = vld [vmem:[%s47] sm:$0x1]
    %v4788 = vlaneseq
    %v4789 = vshrl.u32 %v4788, 7
    %v4790 = vsub.s32 0, %v4789
    %v4791 = vrot.slane %v4786, %v4790
    %v4793 = vadd.f32 %v4782, %v4791
    %v4794 = vadd.f32 %v4783, %v4791
    %v4795 = vadd.f32 %v4784, %v4791
    %v4796 = vadd.f32 %v4785, %v4791
    %v4797 = vadd.f32 %v4771, %v4793
    %v4798 = vadd.f32 %v4772, %v4794
    %v4799 = vadd.f32 %v4773, %v4795
    %v4800 = vadd.f32 %v4774, %v4796
    %v4801 = vmax.f32 %v4797, 0.0
    %v4802 = vmax.f32 %v4798, 0.0
    %v4803 = vmax.f32 %v4799, 0.0
    %v4804 = vmax.f32 %v4800, 0.0
    %v4805 = vpack.c.bf16 %v4802, %v4801
    %v4806 = vpack.c.bf16 %v4804, %v4803
    %v4809 = vunpack.c.l.b16 %v4805
    %v4810 = vunpack.c.h.b16 %v4805
    %v4811 = vunpack.c.l.b16 %v4806
    %v4812 = vunpack.c.h.b16 %v4806
    %v4813 = vpack.c.b16 %v4809, %v4809
    %v4814 = vpack.c.b16 %v4810, %v4810
    %v4815 = vpack.c.b16 %v4811, %v4811
    %v4816 = vpack.c.b16 %v4812, %v4812
    %v4818 = vshrl.u32 %v4813, 16
    %v4820 = vrot.slane %v4818, 6
    %v4821 = vshll.u32 %v4813, 16
    %v4823 = vrot.slane %v4821, 7
    %v4824 = vor.u32 %v4820, %v4823
    %v4825 = vrot.slane %v4824, 4
    %v4827 = vshrl.u32 %v4814, 16
    %v4829 = vrot.slane %v4827, 6
    %v4830 = vshll.u32 %v4814, 16
    %v4832 = vrot.slane %v4830, 7
    %v4833 = vor.u32 %v4829, %v4832
    %v4834 = vsel %vm394, %v4825, %v4833
    %v4835 = vrot.slane %v4833, 4
    %v4837 = vshrl.u32 %v4815, 16
    %v4839 = vrot.slane %v4837, 6
    %v4840 = vshll.u32 %v4815, 16
    %v4842 = vrot.slane %v4840, 7
    %v4843 = vor.u32 %v4839, %v4842
    %v4844 = vrot.slane %v4843, 4
    %v4846 = vshrl.u32 %v4816, 16
    %v4848 = vrot.slane %v4846, 6
    %v4849 = vshll.u32 %v4816, 16
    %v4851 = vrot.slane %v4849, 7
    %v4852 = vor.u32 %v4848, %v4851
    %v4853 = vsel %vm394, %v4844, %v4852
    %v4854 = vrot.slane %v4852, 4
    %v4861 = vsel %vm1253, %v4824, %v4364
    %4862 = vst [vmem:[#allocation3] sm:$0xe] %v4861
    %4863 = vst.msk [vmem:[#allocation3 + $0x4] sm:$0xf] %vm376, %v4834
    %v4864 = vld [vmem:[#allocation3 + $0x8] sm:$0x3]
    %v4865 = vsel %vm1259, %v4835, %v4864
    %4866 = vst [vmem:[#allocation3 + $0x8] sm:$0x3] %v4865
    %v4867 = vld [vmem:[#allocation3 + $0xc] sm:$0xe]
    %v4868 = vsel %vm1253, %v4843, %v4867
    %4869 = vst [vmem:[#allocation3 + $0xc] sm:$0xe] %v4868
    %4870 = vst.msk [vmem:[#allocation3 + $0x10] sm:$0xf] %vm376, %v4853
    %v4871 = vld [vmem:[#allocation3 + $0x14] sm:$0x3]
    %v4872 = vsel %vm1259, %v4854, %v4871
    %4873 = vst [vmem:[#allocation3 + $0x14] sm:$0x3] %v4872
    %v4874 = vld [vmem:[#allocation3] sm:$0xf]
    %v4875 = vld [vmem:[#allocation3 + $0x4] sm:$0xf]
    %v4876 = vld [vmem:[#allocation3 + $0xc] sm:$0xf]
    %v4877 = vld [vmem:[#allocation3 + $0x10] sm:$0xf]
    %v4878 = vld [vmem:[#allocation27] sm:$0xf]
    %v4879 = vld [vmem:[#allocation27 + $0x4] sm:$0xf]
    %v4880 = vld [vmem:[#allocation27 + $0x8] sm:$0xf]
    %v4881 = vld [vmem:[#allocation27 + $0xc] sm:$0xf]
    %v4882 = vld [vmem:[#allocation27 + $0x10] sm:$0xf]
    %v4883 = vld [vmem:[#allocation27 + $0x14] sm:$0xf]
    %v4884 = vld [vmem:[#allocation27 + $0x18] sm:$0xf]
    %v4885 = vld [vmem:[#allocation27 + $0x1c] sm:$0xf]
    %v4886 = vld [vmem:[#allocation3 + $0x8] sm:$0x1]
    %v4887 = vld [vmem:[#allocation3 + $0x14] sm:$0x1]
    %v4889 = vshrl.u32 %v4874, 16
    %v4891 = vrot.slane %v4889, 4
    %v4892 = vshll.u32 %v4874, 16
    %v4894 = vrot.slane %v4892, 5
    %v4895 = vor.u32 %v4891, %v4894
    %v4896 = vrot.slane %v4895, 4
    %v4898 = vshll.u32 %v4875, 16
    %v4900 = vrot.slane %v4898, 5
    %v4901 = vsel %vm467, %v4896, %v4900
    %v4902 = vshrl.u32 %v4875, 16
    %v4904 = vrot.slane %v4902, 4
    %v4905 = vor.u32 %v4904, %v4900
    %v4906 = vrot.slane %v4905, 4
    %v4908 = vshll.u32 %v4886, 16
    %v4910 = vrot.slane %v4908, 5
    %v4911 = vsel %vm467, %v4906, %v4910
    %v4913 = vshrl.u32 %v4876, 16
    %v4915 = vrot.slane %v4913, 4
    %v4916 = vshll.u32 %v4876, 16
    %v4918 = vrot.slane %v4916, 5
    %v4919 = vor.u32 %v4915, %v4918
    %v4920 = vrot.slane %v4919, 4
    %v4922 = vshll.u32 %v4877, 16
    %v4924 = vrot.slane %v4922, 5
    %v4925 = vsel %vm467, %v4920, %v4924
    %v4926 = vshrl.u32 %v4877, 16
    %v4928 = vrot.slane %v4926, 4
    %v4929 = vor.u32 %v4928, %v4924
    %v4930 = vrot.slane %v4929, 4
    %v4932 = vshll.u32 %v4887, 16
    %v4934 = vrot.slane %v4932, 5
    %v4935 = vsel %vm467, %v4930, %v4934
    %s4936 = scalar_lea.vmem [#allocation27], 32
    %v4937 = vld [vmem:[%s4936] sm:$0xf]
    %v4938 = vld [vmem:[%s4936 + $0x4] sm:$0xf]
    %v4939 = vld [vmem:[%s4936 + $0x8] sm:$0xf]
    %v4940 = vld [vmem:[%s4936 + $0xc] sm:$0xf]
    %v4941 = vld [vmem:[%s4936 + $0x10] sm:$0xf]
    %v4942 = vld [vmem:[%s4936 + $0x14] sm:$0xf]
    %v4943 = vld [vmem:[%s4936 + $0x18] sm:$0xf]
    %v4944 = vld [vmem:[%s4936 + $0x1c] sm:$0xf]
    %v4945 = vunpack.c.l.b16 %v4901
    %v4946 = vunpack.c.l.b16 %v4911
    %v4947 = vunpack.c.l.b16 %v4925
    %v4948 = vunpack.c.l.b16 %v4935
    %v4949 = vpack.c.b16 %v4946, %v4945
    %v4950 = vpack.c.b16 %v4948, %v4947
    %v4959 = vunpack.c.l.b16 %v4937
    %v4960 = vunpack.c.l.b16 %v4938
    %v4961 = vunpack.c.l.b16 %v4939
    %v4962 = vunpack.c.l.b16 %v4940
    %v4963 = vunpack.c.l.b16 %v4941
    %v4964 = vunpack.c.l.b16 %v4942
    %v4965 = vunpack.c.l.b16 %v4943
    %v4966 = vunpack.c.l.b16 %v4944
    %v4967 = vpack.c.b16 %v4960, %v4959
    %v4968 = vpack.c.b16 %v4962, %v4961
    %v4969 = vpack.c.b16 %v4964, %v4963
    %v4970 = vpack.c.b16 %v4966, %v4965
    %v4976 = vsel %vm1393, %v4949, 0
    %v4979 = vsel %vm1393, %v4950, 0
    %4981 = vmatprep.subr.bf16.mxu0 0
    %4982 = vmatpush1.bf16.msra.mxu0 %v4967
    %4983 = vmatprep.subr.bf16.mxu0 0
    %4984 = vmatpush1.bf16.msra.mxu0 %v4968
    %4985 = vmatprep.subr.bf16.mxu0 0
    %4986 = vmatpush1.bf16.msra.mxu0 %v4969
    %4987 = vmatprep.subr.bf16.mxu0 0
    %4988 = vmatpush1.bf16.msra.mxu0 %v4970
    %4989 = vmatprep.subr.bf16.mxu0 0
    %4990 = vmatpush1.bf16.msra.mxu0 0
    %4991 = vmatprep.subr.bf16.mxu0 0
    %4992 = vmatpush1.bf16.msra.mxu0 0
    %4993 = vmatprep.subr.bf16.mxu0 0
    %4994 = vmatpush1.bf16.msra.mxu0 0
    %4995 = vmatprep.subr.bf16.mxu0 0
    %4996 = vmatpush1.bf16.msra.mxu0 0
    %4997 = vmatprep.subr.bf16.mxu0 0
    %4998 = vmatpush1.bf16.msra.mxu0 0
    %4999 = vmatprep.subr.bf16.mxu0 0
    %5000 = vmatpush1.bf16.msra.mxu0 0
    %5001 = vmatprep.subr.bf16.mxu0 0
    %5002 = vmatpush1.bf16.msra.mxu0 0
    %5003 = vmatprep.subr.bf16.mxu0 0
    %5004 = vmatpush1.bf16.msra.mxu0 0
    %5005 = vmatprep.subr.bf16.mxu0 0
    %5006 = vmatpush1.bf16.msra.mxu0 0
    %5007 = vmatprep.subr.bf16.mxu0 0
    %5008 = vmatpush1.bf16.msra.mxu0 0
    %5009 = vmatprep.subr.bf16.mxu0 0
    %5010 = vmatpush1.bf16.msra.mxu0 0
    %5011 = vmatprep.subr.bf16.mxu0 0
    %5012 = vmatpush1.bf16.msra.mxu0 0
    %5013 = vmatprep.mubr.bf16.mxu0 0
    %5014 = vmatmul.mubr.bf16.gmra.mrb[0].mxu0 %v4976
    %v5015 = vpop.f32.mrb[0].mxu0
    %v5016 = vadd.f32 0.0, %v5015
    %v5017 = vpop.f32.mrb[0].mxu0
    %v5018 = vpop.f32.mrb[0].mxu0
    %v5019 = vadd.f32 0.0, %v5018
    %v5020 = vpop.f32.mrb[0].mxu0
    %5021 = vmatprep.mubr.bf16.mxu0 0
    %5022 = vmatmul.mubr.bf16.gmra.mrb[0].mxu0 %v4979
    %v5023 = vpop.f32.mrb[0].mxu0
    %v5024 = vadd.f32 0.0, %v5023
    %v5025 = vpop.f32.mrb[0].mxu0
    %v5026 = vpop.f32.mrb[0].mxu0
    %v5027 = vadd.f32 0.0, %v5026
    %v5028 = vpop.f32.mrb[0].mxu0
    %5029 = vdwg.mxu0
    %v5034 = vunpack.c.l.b16 %v4874
    %v5035 = vunpack.c.l.b16 %v4875
    %v5036 = vunpack.c.l.b16 %v4876
    %v5037 = vunpack.c.l.b16 %v4877
    %v5038 = vpack.c.b16 %v5035, %v5034
    %v5039 = vpack.c.b16 %v5037, %v5036
    %v5048 = vunpack.c.l.b16 %v4878
    %v5049 = vunpack.c.l.b16 %v4879
    %v5050 = vunpack.c.l.b16 %v4880
    %v5051 = vunpack.c.l.b16 %v4881
    %v5052 = vunpack.c.l.b16 %v4882
    %v5053 = vunpack.c.l.b16 %v4883
    %v5054 = vunpack.c.l.b16 %v4884
    %v5055 = vunpack.c.l.b16 %v4885
    %v5056 = vpack.c.b16 %v5049, %v5048
    %v5057 = vpack.c.b16 %v5051, %v5050
    %v5058 = vpack.c.b16 %v5053, %v5052
    %v5059 = vpack.c.b16 %v5055, %v5054
    %v5065 = vsel %vm1393, %v5038, 0
    %v5068 = vsel %vm1393, %v5039, 0
    %5070 = vmatprep.subr.bf16.mxu0 0
    %5071 = vmatpush1.bf16.msra.mxu0 %v5056
    %5072 = vmatprep.subr.bf16.mxu0 0
    %5073 = vmatpush1.bf16.msra.mxu0 %v5057
    %5074 = vmatprep.subr.bf16.mxu0 0
    %5075 = vmatpush1.bf16.msra.mxu0 %v5058
    %5076 = vmatprep.subr.bf16.mxu0 0
    %5077 = vmatpush1.bf16.msra.mxu0 %v5059
    %5078 = vmatprep.subr.bf16.mxu0 0
    %5079 = vmatpush1.bf16.msra.mxu0 0
    %5080 = vmatprep.subr.bf16.mxu0 0
    %5081 = vmatpush1.bf16.msra.mxu0 0
    %5082 = vmatprep.subr.bf16.mxu0 0
    %5083 = vmatpush1.bf16.msra.mxu0 0
    %5084 = vmatprep.subr.bf16.mxu0 0
    %5085 = vmatpush1.bf16.msra.mxu0 0
    %5086 = vmatprep.subr.bf16.mxu0 0
    %5087 = vmatpush1.bf16.msra.mxu0 0
    %5088 = vmatprep.subr.bf16.mxu0 0
    %5089 = vmatpush1.bf16.msra.mxu0 0
    %5090 = vmatprep.subr.bf16.mxu0 0
    %5091 = vmatpush1.bf16.msra.mxu0 0
    %5092 = vmatprep.subr.bf16.mxu0 0
    %5093 = vmatpush1.bf16.msra.mxu0 0
    %5094 = vmatprep.subr.bf16.mxu0 0
    %5095 = vmatpush1.bf16.msra.mxu0 0
    %5096 = vmatprep.subr.bf16.mxu0 0
    %5097 = vmatpush1.bf16.msra.mxu0 0
    %5098 = vmatprep.subr.bf16.mxu0 0
    %5099 = vmatpush1.bf16.msra.mxu0 0
    %5100 = vmatprep.subr.bf16.mxu0 0
    %5101 = vmatpush1.bf16.msra.mxu0 0
    %5102 = vmatprep.mubr.bf16.mxu0 0
    %5103 = vmatmul.mubr.bf16.gmra.mrb[0].mxu0 %v5065
    %v5104 = vpop.f32.mrb[0].mxu0
    %v5105 = vadd.f32 %v5016, %v5104
    %v5106 = vpop.f32.mrb[0].mxu0
    %v5107 = vpop.f32.mrb[0].mxu0
    %v5108 = vadd.f32 %v5019, %v5107
    %v5109 = vpop.f32.mrb[0].mxu0
    %5110 = vmatprep.mubr.bf16.mxu0 0
    %5111 = vmatmul.mubr.bf16.gmra.mrb[0].mxu0 %v5068
    %v5112 = vpop.f32.mrb[0].mxu0
    %v5113 = vadd.f32 %v5024, %v5112
    %v5114 = vpop.f32.mrb[0].mxu0
    %v5115 = vpop.f32.mrb[0].mxu0
    %v5116 = vadd.f32 %v5027, %v5115
    %v5117 = vpop.f32.mrb[0].mxu0
    %5118 = vdwg.mxu0
    %v5119 = vld [vmem:[#allocation3] sm:$0xe]
    %v5120 = vld [vmem:[#allocation3 + $0xc] sm:$0xe]
    %v5125 = vrot.slane %v5119, 5
    %v5126 = vrot.slane %v5125, 4
    %v5127 = vrot.slane %v4875, 5
    %v5128 = vsel %vm660, %v5126, %v5127
    %v5129 = vrot.slane %v5127, 4
    %v5130 = vrot.slane %v4886, 5
    %v5131 = vsel %vm660, %v5129, %v5130
    %v5132 = vrot.slane %v5120, 5
    %v5133 = vrot.slane %v5132, 4
    %v5134 = vrot.slane %v4877, 5
    %v5135 = vsel %vm660, %v5133, %v5134
    %v5136 = vrot.slane %v5134, 4
    %v5137 = vrot.slane %v4887, 5
    %v5138 = vsel %vm660, %v5136, %v5137
    %s5139 = scalar_lea.vmem [#allocation27], 64
    %v5140 = vld [vmem:[%s5139] sm:$0xf]
    %v5141 = vld [vmem:[%s5139 + $0x4] sm:$0xf]
    %v5142 = vld [vmem:[%s5139 + $0x8] sm:$0xf]
    %v5143 = vld [vmem:[%s5139 + $0xc] sm:$0xf]
    %v5144 = vld [vmem:[%s5139 + $0x10] sm:$0xf]
    %v5145 = vld [vmem:[%s5139 + $0x14] sm:$0xf]
    %v5146 = vld [vmem:[%s5139 + $0x18] sm:$0xf]
    %v5147 = vld [vmem:[%s5139 + $0x1c] sm:$0xf]
    %v5148 = vunpack.c.l.b16 %v5128
    %v5149 = vunpack.c.l.b16 %v5131
    %v5150 = vunpack.c.l.b16 %v5135
    %v5151 = vunpack.c.l.b16 %v5138
    %v5152 = vpack.c.b16 %v5149, %v5148
    %v5153 = vpack.c.b16 %v5151, %v5150
    %v5162 = vunpack.c.l.b16 %v5140
    %v5163 = vunpack.c.l.b16 %v5141
    %v5164 = vunpack.c.l.b16 %v5142
    %v5165 = vunpack.c.l.b16 %v5143
    %v5166 = vunpack.c.l.b16 %v5144
    %v5167 = vunpack.c.l.b16 %v5145
    %v5168 = vunpack.c.l.b16 %v5146
    %v5169 = vunpack.c.l.b16 %v5147
    %v5170 = vpack.c.b16 %v5163, %v5162
    %v5171 = vpack.c.b16 %v5165, %v5164
    %v5172 = vpack.c.b16 %v5167, %v5166
    %v5173 = vpack.c.b16 %v5169, %v5168
    %v5179 = vsel %vm1393, %v5152, 0
    %v5182 = vsel %vm1393, %v5153, 0
    %5184 = vmatprep.subr.bf16.mxu0 0
    %5185 = vmatpush1.bf16.msra.mxu0 %v5170
    %5186 = vmatprep.subr.bf16.mxu0 0
    %5187 = vmatpush1.bf16.msra.mxu0 %v5171
    %5188 = vmatprep.subr.bf16.mxu0 0
    %5189 = vmatpush1.bf16.msra.mxu0 %v5172
    %5190 = vmatprep.subr.bf16.mxu0 0
    %5191 = vmatpush1.bf16.msra.mxu0 %v5173
    %5192 = vmatprep.subr.bf16.mxu0 0
    %5193 = vmatpush1.bf16.msra.mxu0 0
    %5194 = vmatprep.subr.bf16.mxu0 0
    %5195 = vmatpush1.bf16.msra.mxu0 0
    %5196 = vmatprep.subr.bf16.mxu0 0
    %5197 = vmatpush1.bf16.msra.mxu0 0
    %5198 = vmatprep.subr.bf16.mxu0 0
    %5199 = vmatpush1.bf16.msra.mxu0 0
    %5200 = vmatprep.subr.bf16.mxu0 0
    %5201 = vmatpush1.bf16.msra.mxu0 0
    %5202 = vmatprep.subr.bf16.mxu0 0
    %5203 = vmatpush1.bf16.msra.mxu0 0
    %5204 = vmatprep.subr.bf16.mxu0 0
    %5205 = vmatpush1.bf16.msra.mxu0 0
    %5206 = vmatprep.subr.bf16.mxu0 0
    %5207 = vmatpush1.bf16.msra.mxu0 0
    %5208 = vmatprep.subr.bf16.mxu0 0
    %5209 = vmatpush1.bf16.msra.mxu0 0
    %5210 = vmatprep.subr.bf16.mxu0 0
    %5211 = vmatpush1.bf16.msra.mxu0 0
    %5212 = vmatprep.subr.bf16.mxu0 0
    %5213 = vmatpush1.bf16.msra.mxu0 0
    %5214 = vmatprep.subr.bf16.mxu0 0
    %5215 = vmatpush1.bf16.msra.mxu0 0
    %5216 = vmatprep.mubr.bf16.mxu0 0
    %5217 = vmatmul.mubr.bf16.gmra.mrb[0].mxu0 %v5179
    %v5218 = vpop.f32.mrb[0].mxu0
    %v5219 = vadd.f32 0.0, %v5218
    %v5220 = vpop.f32.mrb[0].mxu0
    %v5221 = vpop.f32.mrb[0].mxu0
    %v5222 = vadd.f32 0.0, %v5221
    %v5223 = vpop.f32.mrb[0].mxu0
    %5224 = vmatprep.mubr.bf16.mxu0 0
    %5225 = vmatmul.mubr.bf16.gmra.mrb[0].mxu0 %v5182
    %v5226 = vpop.f32.mrb[0].mxu0
    %v5227 = vadd.f32 0.0, %v5226
    %v5228 = vpop.f32.mrb[0].mxu0
    %v5229 = vpop.f32.mrb[0].mxu0
    %v5230 = vadd.f32 0.0, %v5229
    %v5231 = vpop.f32.mrb[0].mxu0
    %5232 = vdwg.mxu0
    %v5233 = vadd.f32 %v5105, %v5219
    %v5234 = vadd.f32 %v5108, %v5222
    %v5235 = vadd.f32 %v5113, %v5227
    %v5236 = vadd.f32 %v5116, %v5230
    %v5237 = vld [vmem:[#allocation3 + $0x8] sm:$0x3]
    %v5238 = vld [vmem:[#allocation3 + $0x14] sm:$0x3]
    %v5240 = vshrl.u32 %v5119, 16
    %v5242 = vrot.slane %v5240, 5
    %v5243 = vshll.u32 %v5119, 16
    %v5245 = vrot.slane %v5243, 6
    %v5246 = vor.u32 %v5242, %v5245
    %v5247 = vrot.slane %v5246, 4
    %v5248 = vrot.slane %v4902, 5
    %v5249 = vrot.slane %v4898, 6
    %v5250 = vor.u32 %v5248, %v5249
    %v5251 = vsel %vm749, %v5247, %v5250
    %v5252 = vrot.slane %v5250, 4
    %v5254 = vshrl.u32 %v5237, 16
    %v5256 = vrot.slane %v5254, 5
    %v5257 = vshll.u32 %v5237, 16
    %v5259 = vrot.slane %v5257, 6
    %v5260 = vor.u32 %v5256, %v5259
    %v5261 = vsel %vm749, %v5252, %v5260
    %v5263 = vshrl.u32 %v5120, 16
    %v5265 = vrot.slane %v5263, 5
    %v5266 = vshll.u32 %v5120, 16
    %v5268 = vrot.slane %v5266, 6
    %v5269 = vor.u32 %v5265, %v5268
    %v5270 = vrot.slane %v5269, 4
    %v5271 = vrot.slane %v4926, 5
    %v5272 = vrot.slane %v4922, 6
    %v5273 = vor.u32 %v5271, %v5272
    %v5274 = vsel %vm749, %v5270, %v5273
    %v5275 = vrot.slane %v5273, 4
    %v5277 = vshrl.u32 %v5238, 16
    %v5279 = vrot.slane %v5277, 5
    %v5280 = vshll.u32 %v5238, 16
    %v5282 = vrot.slane %v5280, 6
    %v5283 = vor.u32 %v5279, %v5282
    %v5284 = vsel %vm749, %v5275, %v5283
    %s5285 = scalar_lea.vmem [#allocation27], 96
    %v5286 = vld [vmem:[%s5285] sm:$0xf]
    %v5287 = vld [vmem:[%s5285 + $0x4] sm:$0xf]
    %v5288 = vld [vmem:[%s5285 + $0x8] sm:$0xf]
    %v5289 = vld [vmem:[%s5285 + $0xc] sm:$0xf]
    %v5290 = vld [vmem:[%s5285 + $0x10] sm:$0xf]
    %v5291 = vld [vmem:[%s5285 + $0x14] sm:$0xf]
    %v5292 = vld [vmem:[%s5285 + $0x18] sm:$0xf]
    %v5293 = vld [vmem:[%s5285 + $0x1c] sm:$0xf]
    %v5294 = vunpack.c.l.b16 %v5251
    %v5295 = vunpack.c.l.b16 %v5261
    %v5296 = vunpack.c.l.b16 %v5274
    %v5297 = vunpack.c.l.b16 %v5284
    %v5298 = vpack.c.b16 %v5295, %v5294
    %v5299 = vpack.c.b16 %v5297, %v5296
    %v5308 = vunpack.c.l.b16 %v5286
    %v5309 = vunpack.c.l.b16 %v5287
    %v5310 = vunpack.c.l.b16 %v5288
    %v5311 = vunpack.c.l.b16 %v5289
    %v5312 = vunpack.c.l.b16 %v5290
    %v5313 = vunpack.c.l.b16 %v5291
    %v5314 = vunpack.c.l.b16 %v5292
    %v5315 = vunpack.c.l.b16 %v5293
    %v5316 = vpack.c.b16 %v5309, %v5308
    %v5317 = vpack.c.b16 %v5311, %v5310
    %v5318 = vpack.c.b16 %v5313, %v5312
    %v5319 = vpack.c.b16 %v5315, %v5314
    %v5325 = vsel %vm1393, %v5298, 0
    %v5328 = vsel %vm1393, %v5299, 0
    %5330 = vmatprep.subr.bf16.mxu0 0
    %5331 = vmatpush1.bf16.msra.mxu0 %v5316
    %5332 = vmatprep.subr.bf16.mxu0 0
    %5333 = vmatpush1.bf16.msra.mxu0 %v5317
    %5334 = vmatprep.subr.bf16.mxu0 0
    %5335 = vmatpush1.bf16.msra.mxu0 %v5318
    %5336 = vmatprep.subr.bf16.mxu0 0
    %5337 = vmatpush1.bf16.msra.mxu0 %v5319
    %5338 = vmatprep.subr.bf16.mxu0 0
    %5339 = vmatpush1.bf16.msra.mxu0 0
    %5340 = vmatprep.subr.bf16.mxu0 0
    %5341 = vmatpush1.bf16.msra.mxu0 0
    %5342 = vmatprep.subr.bf16.mxu0 0
    %5343 = vmatpush1.bf16.msra.mxu0 0
    %5344 = vmatprep.subr.bf16.mxu0 0
    %5345 = vmatpush1.bf16.msra.mxu0 0
    %5346 = vmatprep.subr.bf16.mxu0 0
    %5347 = vmatpush1.bf16.msra.mxu0 0
    %5348 = vmatprep.subr.bf16.mxu0 0
    %5349 = vmatpush1.bf16.msra.mxu0 0
    %5350 = vmatprep.subr.bf16.mxu0 0
    %5351 = vmatpush1.bf16.msra.mxu0 0
    %5352 = vmatprep.subr.bf16.mxu0 0
    %5353 = vmatpush1.bf16.msra.mxu0 0
    %5354 = vmatprep.subr.bf16.mxu0 0
    %5355 = vmatpush1.bf16.msra.mxu0 0
    %5356 = vmatprep.subr.bf16.mxu0 0
    %5357 = vmatpush1.bf16.msra.mxu0 0
    %5358 = vmatprep.subr.bf16.mxu0 0
    %5359 = vmatpush1.bf16.msra.mxu0 0
    %5360 = vmatprep.subr.bf16.mxu0 0
    %5361 = vmatpush1.bf16.msra.mxu0 0
    %5362 = vmatprep.mubr.bf16.mxu0 0
    %5363 = vmatmul.mubr.bf16.gmra.mrb[0].mxu0 %v5325
    %v5364 = vpop.f32.mrb[0].mxu0
    %v5365 = vadd.f32 0.0, %v5364
    %v5366 = vpop.f32.mrb[0].mxu0
    %v5367 = vpop.f32.mrb[0].mxu0
    %v5368 = vadd.f32 0.0, %v5367
    %v5369 = vpop.f32.mrb[0].mxu0
    %5370 = vmatprep.mubr.bf16.mxu0 0
    %5371 = vmatmul.mubr.bf16.gmra.mrb[0].mxu0 %v5328
    %v5372 = vpop.f32.mrb[0].mxu0
    %v5373 = vadd.f32 0.0, %v5372
    %v5374 = vpop.f32.mrb[0].mxu0
    %v5375 = vpop.f32.mrb[0].mxu0
    %v5376 = vadd.f32 0.0, %v5375
    %v5377 = vpop.f32.mrb[0].mxu0
    %5378 = vdwg.mxu0
    %v5379 = vadd.f32 %v5233, %v5365
    %v5380 = vadd.f32 %v5234, %v5368
    %v5381 = vadd.f32 %v5235, %v5373
    %v5382 = vadd.f32 %v5236, %v5376
    %v5383 = vld [vmem:[#allocation3] sm:$0xc]
    %v5384 = vld [vmem:[#allocation3 + $0xc] sm:$0xc]
    %v5389 = vrot.slane %v5383, 6
    %v5390 = vrot.slane %v5389, 4
    %v5391 = vrot.slane %v4875, 6
    %v5392 = vsel %vm874, %v5390, %v5391
    %v5393 = vrot.slane %v5391, 4
    %v5394 = vrot.slane %v5237, 6
    %v5395 = vsel %vm874, %v5393, %v5394
    %v5396 = vrot.slane %v5384, 6
    %v5397 = vrot.slane %v5396, 4
    %v5398 = vrot.slane %v4877, 6
    %v5399 = vsel %vm874, %v5397, %v5398
    %v5400 = vrot.slane %v5398, 4
    %v5401 = vrot.slane %v5238, 6
    %v5402 = vsel %vm874, %v5400, %v5401
    %s5403 = scalar_lea.vmem [#allocation27], 128
    %v5404 = vld [vmem:[%s5403] sm:$0xf]
    %v5405 = vld [vmem:[%s5403 + $0x4] sm:$0xf]
    %v5406 = vld [vmem:[%s5403 + $0x8] sm:$0xf]
    %v5407 = vld [vmem:[%s5403 + $0xc] sm:$0xf]
    %v5408 = vld [vmem:[%s5403 + $0x10] sm:$0xf]
    %v5409 = vld [vmem:[%s5403 + $0x14] sm:$0xf]
    %v5410 = vld [vmem:[%s5403 + $0x18] sm:$0xf]
    %v5411 = vld [vmem:[%s5403 + $0x1c] sm:$0xf]
    %v5412 = vunpack.c.l.b16 %v5392
    %v5413 = vunpack.c.l.b16 %v5395
    %v5414 = vunpack.c.l.b16 %v5399
    %v5415 = vunpack.c.l.b16 %v5402
    %v5416 = vpack.c.b16 %v5413, %v5412
    %v5417 = vpack.c.b16 %v5415, %v5414
    %v5426 = vunpack.c.l.b16 %v5404
    %v5427 = vunpack.c.l.b16 %v5405
    %v5428 = vunpack.c.l.b16 %v5406
    %v5429 = vunpack.c.l.b16 %v5407
    %v5430 = vunpack.c.l.b16 %v5408
    %v5431 = vunpack.c.l.b16 %v5409
    %v5432 = vunpack.c.l.b16 %v5410
    %v5433 = vunpack.c.l.b16 %v5411
    %v5434 = vpack.c.b16 %v5427, %v5426
    %v5435 = vpack.c.b16 %v5429, %v5428
    %v5436 = vpack.c.b16 %v5431, %v5430
    %v5437 = vpack.c.b16 %v5433, %v5432
    %v5443 = vsel %vm1393, %v5416, 0
    %v5446 = vsel %vm1393, %v5417, 0
    %5448 = vmatprep.subr.bf16.mxu0 0
    %5449 = vmatpush1.bf16.msra.mxu0 %v5434
    %5450 = vmatprep.subr.bf16.mxu0 0
    %5451 = vmatpush1.bf16.msra.mxu0 %v5435
    %5452 = vmatprep.subr.bf16.mxu0 0
    %5453 = vmatpush1.bf16.msra.mxu0 %v5436
    %5454 = vmatprep.subr.bf16.mxu0 0
    %5455 = vmatpush1.bf16.msra.mxu0 %v5437
    %5456 = vmatprep.subr.bf16.mxu0 0
    %5457 = vmatpush1.bf16.msra.mxu0 0
    %5458 = vmatprep.subr.bf16.mxu0 0
    %5459 = vmatpush1.bf16.msra.mxu0 0
    %5460 = vmatprep.subr.bf16.mxu0 0
    %5461 = vmatpush1.bf16.msra.mxu0 0
    %5462 = vmatprep.subr.bf16.mxu0 0
    %5463 = vmatpush1.bf16.msra.mxu0 0
    %5464 = vmatprep.subr.bf16.mxu0 0
    %5465 = vmatpush1.bf16.msra.mxu0 0
    %5466 = vmatprep.subr.bf16.mxu0 0
    %5467 = vmatpush1.bf16.msra.mxu0 0
    %5468 = vmatprep.subr.bf16.mxu0 0
    %5469 = vmatpush1.bf16.msra.mxu0 0
    %5470 = vmatprep.subr.bf16.mxu0 0
    %5471 = vmatpush1.bf16.msra.mxu0 0
    %5472 = vmatprep.subr.bf16.mxu0 0
    %5473 = vmatpush1.bf16.msra.mxu0 0
    %5474 = vmatprep.subr.bf16.mxu0 0
    %5475 = vmatpush1.bf16.msra.mxu0 0
    %5476 = vmatprep.subr.bf16.mxu0 0
    %5477 = vmatpush1.bf16.msra.mxu0 0
    %5478 = vmatprep.subr.bf16.mxu0 0
    %5479 = vmatpush1.bf16.msra.mxu0 0
    %5480 = vmatprep.mubr.bf16.mxu0 0
    %5481 = vmatmul.mubr.bf16.gmra.mrb[0].mxu0 %v5443
    %v5482 = vpop.f32.mrb[0].mxu0
    %v5483 = vadd.f32 0.0, %v5482
    %v5484 = vpop.f32.mrb[0].mxu0
    %v5485 = vpop.f32.mrb[0].mxu0
    %v5486 = vadd.f32 0.0, %v5485
    %v5487 = vpop.f32.mrb[0].mxu0
    %5488 = vmatprep.mubr.bf16.mxu0 0
    %5489 = vmatmul.mubr.bf16.gmra.mrb[0].mxu0 %v5446
    %v5490 = vpop.f32.mrb[0].mxu0
    %v5491 = vadd.f32 0.0, %v5490
    %v5492 = vpop.f32.mrb[0].mxu0
    %v5493 = vpop.f32.mrb[0].mxu0
    %v5494 = vadd.f32 0.0, %v5493
    %v5495 = vpop.f32.mrb[0].mxu0
    %5496 = vdwg.mxu0
    %v5497 = vadd.f32 %v5379, %v5483
    %v5498 = vadd.f32 %v5380, %v5486
    %v5499 = vadd.f32 %v5381, %v5491
    %v5500 = vadd.f32 %v5382, %v5494
    %v5501 = vld [vmem:[#allocation3 + $0x8] sm:$0x7]
    %v5502 = vld [vmem:[#allocation3 + $0x14] sm:$0x7]
    %v5504 = vshrl.u32 %v5383, 16
    %v5506 = vrot.slane %v5504, 6
    %v5507 = vshll.u32 %v5383, 16
    %v5509 = vrot.slane %v5507, 7
    %v5510 = vor.u32 %v5506, %v5509
    %v5511 = vrot.slane %v5510, 4
    %v5512 = vrot.slane %v4902, 6
    %v5513 = vrot.slane %v4898, 7
    %v5514 = vor.u32 %v5512, %v5513
    %v5515 = vsel %vm394, %v5511, %v5514
    %v5516 = vrot.slane %v5514, 4
    %v5518 = vshrl.u32 %v5501, 16
    %v5520 = vrot.slane %v5518, 6
    %v5521 = vshll.u32 %v5501, 16
    %v5523 = vrot.slane %v5521, 7
    %v5524 = vor.u32 %v5520, %v5523
    %v5525 = vsel %vm394, %v5516, %v5524
    %v5527 = vshrl.u32 %v5384, 16
    %v5529 = vrot.slane %v5527, 6
    %v5530 = vshll.u32 %v5384, 16
    %v5532 = vrot.slane %v5530, 7
    %v5533 = vor.u32 %v5529, %v5532
    %v5534 = vrot.slane %v5533, 4
    %v5535 = vrot.slane %v4926, 6
    %v5536 = vrot.slane %v4922, 7
    %v5537 = vor.u32 %v5535, %v5536
    %v5538 = vsel %vm394, %v5534, %v5537
    %v5539 = vrot.slane %v5537, 4
    %v5541 = vshrl.u32 %v5502, 16
    %v5543 = vrot.slane %v5541, 6
    %v5544 = vshll.u32 %v5502, 16
    %v5546 = vrot.slane %v5544, 7
    %v5547 = vor.u32 %v5543, %v5546
    %v5548 = vsel %vm394, %v5539, %v5547
    %s5549 = scalar_lea.vmem [#allocation27], 160
    %v5550 = vld [vmem:[%s5549] sm:$0xf]
    %v5551 = vld [vmem:[%s5549 + $0x4] sm:$0xf]
    %v5552 = vld [vmem:[%s5549 + $0x8] sm:$0xf]
    %v5553 = vld [vmem:[%s5549 + $0xc] sm:$0xf]
    %v5554 = vld [vmem:[%s5549 + $0x10] sm:$0xf]
    %v5555 = vld [vmem:[%s5549 + $0x14] sm:$0xf]
    %v5556 = vld [vmem:[%s5549 + $0x18] sm:$0xf]
    %v5557 = vld [vmem:[%s5549 + $0x1c] sm:$0xf]
    %v5558 = vunpack.c.l.b16 %v5515
    %v5559 = vunpack.c.l.b16 %v5525
    %v5560 = vunpack.c.l.b16 %v5538
    %v5561 = vunpack.c.l.b16 %v5548
    %v5562 = vpack.c.b16 %v5559, %v5558
    %v5563 = vpack.c.b16 %v5561, %v5560
    %v5572 = vunpack.c.l.b16 %v5550
    %v5573 = vunpack.c.l.b16 %v5551
    %v5574 = vunpack.c.l.b16 %v5552
    %v5575 = vunpack.c.l.b16 %v5553
    %v5576 = vunpack.c.l.b16 %v5554
    %v5577 = vunpack.c.l.b16 %v5555
    %v5578 = vunpack.c.l.b16 %v5556
    %v5579 = vunpack.c.l.b16 %v5557
    %v5580 = vpack.c.b16 %v5573, %v5572
    %v5581 = vpack.c.b16 %v5575, %v5574
    %v5582 = vpack.c.b16 %v5577, %v5576
    %v5583 = vpack.c.b16 %v5579, %v5578
    %v5589 = vsel %vm1393, %v5562, 0
    %v5592 = vsel %vm1393, %v5563, 0
    %5594 = vmatprep.subr.bf16.mxu0 0
    %5595 = vmatpush1.bf16.msra.mxu0 %v5580
    %5596 = vmatprep.subr.bf16.mxu0 0
    %5597 = vmatpush1.bf16.msra.mxu0 %v5581
    %5598 = vmatprep.subr.bf16.mxu0 0
    %5599 = vmatpush1.bf16.msra.mxu0 %v5582
    %5600 = vmatprep.subr.bf16.mxu0 0
    %5601 = vmatpush1.bf16.msra.mxu0 %v5583
    %5602 = vmatprep.subr.bf16.mxu0 0
    %5603 = vmatpush1.bf16.msra.mxu0 0
    %5604 = vmatprep.subr.bf16.mxu0 0
    %5605 = vmatpush1.bf16.msra.mxu0 0
    %5606 = vmatprep.subr.bf16.mxu0 0
    %5607 = vmatpush1.bf16.msra.mxu0 0
    %5608 = vmatprep.subr.bf16.mxu0 0
    %5609 = vmatpush1.bf16.msra.mxu0 0
    %5610 = vmatprep.subr.bf16.mxu0 0
    %5611 = vmatpush1.bf16.msra.mxu0 0
    %5612 = vmatprep.subr.bf16.mxu0 0
    %5613 = vmatpush1.bf16.msra.mxu0 0
    %5614 = vmatprep.subr.bf16.mxu0 0
    %5615 = vmatpush1.bf16.msra.mxu0 0
    %5616 = vmatprep.subr.bf16.mxu0 0
    %5617 = vmatpush1.bf16.msra.mxu0 0
    %5618 = vmatprep.subr.bf16.mxu0 0
    %5619 = vmatpush1.bf16.msra.mxu0 0
    %5620 = vmatprep.subr.bf16.mxu0 0
    %5621 = vmatpush1.bf16.msra.mxu0 0
    %5622 = vmatprep.subr.bf16.mxu0 0
    %5623 = vmatpush1.bf16.msra.mxu0 0
    %5624 = vmatprep.subr.bf16.mxu0 0
    %5625 = vmatpush1.bf16.msra.mxu0 0
    %5626 = vmatprep.mubr.bf16.mxu0 0
    %5627 = vmatmul.mubr.bf16.gmra.mrb[0].mxu0 %v5589
    %v5628 = vpop.f32.mrb[0].mxu0
    %v5629 = vadd.f32 0.0, %v5628
    %v5630 = vpop.f32.mrb[0].mxu0
    %v5631 = vpop.f32.mrb[0].mxu0
    %v5632 = vadd.f32 0.0, %v5631
    %v5633 = vpop.f32.mrb[0].mxu0
    %5634 = vmatprep.mubr.bf16.mxu0 0
    %5635 = vmatmul.mubr.bf16.gmra.mrb[0].mxu0 %v5592
    %v5636 = vpop.f32.mrb[0].mxu0
    %v5637 = vadd.f32 0.0, %v5636
    %v5638 = vpop.f32.mrb[0].mxu0
    %v5639 = vpop.f32.mrb[0].mxu0
    %v5640 = vadd.f32 0.0, %v5639
    %v5641 = vpop.f32.mrb[0].mxu0
    %5642 = vdwg.mxu0
    %v5643 = vadd.f32 %v5497, %v5629
    %v5644 = vadd.f32 %v5498, %v5632
    %v5645 = vadd.f32 %v5499, %v5637
    %v5646 = vadd.f32 %v5500, %v5640
    %v5647 = vld [vmem:[#allocation3] sm:$0x8]
    %v5648 = vld [vmem:[#allocation3 + $0xc] sm:$0x8]
    %v5653 = vrot.slane %v5647, 7
    %v5654 = vrot.slane %v5653, 4
    %v5655 = vrot.slane %v4875, 7
    %v5656 = vsel %vm1085, %v5654, %v5655
    %v5657 = vrot.slane %v5655, 4
    %v5658 = vrot.slane %v5501, 7
    %v5659 = vsel %vm1085, %v5657, %v5658
    %v5660 = vrot.slane %v5648, 7
    %v5661 = vrot.slane %v5660, 4
    %v5662 = vrot.slane %v4877, 7
    %v5663 = vsel %vm1085, %v5661, %v5662
    %v5664 = vrot.slane %v5662, 4
    %v5665 = vrot.slane %v5502, 7
    %v5666 = vsel %vm1085, %v5664, %v5665
    %s5667 = scalar_lea.vmem [#allocation27], 192
    %v5668 = vld [vmem:[%s5667] sm:$0xf]
    %v5669 = vld [vmem:[%s5667 + $0x4] sm:$0xf]
    %v5670 = vld [vmem:[%s5667 + $0x8] sm:$0xf]
    %v5671 = vld [vmem:[%s5667 + $0xc] sm:$0xf]
    %v5672 = vld [vmem:[%s5667 + $0x10] sm:$0xf]
    %v5673 = vld [vmem:[%s5667 + $0x14] sm:$0xf]
    %v5674 = vld [vmem:[%s5667 + $0x18] sm:$0xf]
    %v5675 = vld [vmem:[%s5667 + $0x1c] sm:$0xf]
    %v5676 = vunpack.c.l.b16 %v5656
    %v5677 = vunpack.c.l.b16 %v5659
    %v5678 = vunpack.c.l.b16 %v5663
    %v5679 = vunpack.c.l.b16 %v5666
    %v5680 = vpack.c.b16 %v5677, %v5676
    %v5681 = vpack.c.b16 %v5679, %v5678
    %v5690 = vunpack.c.l.b16 %v5668
    %v5691 = vunpack.c.l.b16 %v5669
    %v5692 = vunpack.c.l.b16 %v5670
    %v5693 = vunpack.c.l.b16 %v5671
    %v5694 = vunpack.c.l.b16 %v5672
    %v5695 = vunpack.c.l.b16 %v5673
    %v5696 = vunpack.c.l.b16 %v5674
    %v5697 = vunpack.c.l.b16 %v5675
    %v5698 = vpack.c.b16 %v5691, %v5690
    %v5699 = vpack.c.b16 %v5693, %v5692
    %v5700 = vpack.c.b16 %v5695, %v5694
    %v5701 = vpack.c.b16 %v5697, %v5696
    %v5707 = vsel %vm1393, %v5680, 0
    %v5710 = vsel %vm1393, %v5681, 0
    %5712 = vmatprep.subr.bf16.mxu0 0
    %5713 = vmatpush1.bf16.msra.mxu0 %v5698
    %5714 = vmatprep.subr.bf16.mxu0 0
    %5715 = vmatpush1.bf16.msra.mxu0 %v5699
    %5716 = vmatprep.subr.bf16.mxu0 0
    %5717 = vmatpush1.bf16.msra.mxu0 %v5700
    %5718 = vmatprep.subr.bf16.mxu0 0
    %5719 = vmatpush1.bf16.msra.mxu0 %v5701
    %5720 = vmatprep.subr.bf16.mxu0 0
    %5721 = vmatpush1.bf16.msra.mxu0 0
    %5722 = vmatprep.subr.bf16.mxu0 0
    %5723 = vmatpush1.bf16.msra.mxu0 0
    %5724 = vmatprep.subr.bf16.mxu0 0
    %5725 = vmatpush1.bf16.msra.mxu0 0
    %5726 = vmatprep.subr.bf16.mxu0 0
    %5727 = vmatpush1.bf16.msra.mxu0 0
    %5728 = vmatprep.subr.bf16.mxu0 0
    %5729 = vmatpush1.bf16.msra.mxu0 0
    %5730 = vmatprep.subr.bf16.mxu0 0
    %5731 = vmatpush1.bf16.msra.mxu0 0
    %5732 = vmatprep.subr.bf16.mxu0 0
    %5733 = vmatpush1.bf16.msra.mxu0 0
    %5734 = vmatprep.subr.bf16.mxu0 0
    %5735 = vmatpush1.bf16.msra.mxu0 0
    %5736 = vmatprep.subr.bf16.mxu0 0
    %5737 = vmatpush1.bf16.msra.mxu0 0
    %5738 = vmatprep.subr.bf16.mxu0 0
    %5739 = vmatpush1.bf16.msra.mxu0 0
    %5740 = vmatprep.subr.bf16.mxu0 0
    %5741 = vmatpush1.bf16.msra.mxu0 0
    %5742 = vmatprep.subr.bf16.mxu0 0
    %5743 = vmatpush1.bf16.msra.mxu0 0
    %5744 = vmatprep.mubr.bf16.mxu0 0
    %5745 = vmatmul.mubr.bf16.gmra.mrb[0].mxu0 %v5707
    %v5746 = vpop.f32.mrb[0].mxu0
    %v5747 = vadd.f32 0.0, %v5746
    %v5748 = vpop.f32.mrb[0].mxu0
    %v5749 = vpop.f32.mrb[0].mxu0
    %v5750 = vadd.f32 0.0, %v5749
    %v5751 = vpop.f32.mrb[0].mxu0
    %5752 = vmatprep.mubr.bf16.mxu0 0
    %5753 = vmatmul.mubr.bf16.gmra.mrb[0].mxu0 %v5710
    %v5754 = vpop.f32.mrb[0].mxu0
    %v5755 = vadd.f32 0.0, %v5754
    %v5756 = vpop.f32.mrb[0].mxu0
    %v5757 = vpop.f32.mrb[0].mxu0
    %v5758 = vadd.f32 0.0, %v5757
    %v5759 = vpop.f32.mrb[0].mxu0
    %5760 = vdwg.mxu0
    %v5761 = vadd.f32 %v5643, %v5747
    %v5762 = vadd.f32 %v5644, %v5750
    %v5763 = vadd.f32 %v5645, %v5755
    %v5764 = vadd.f32 %v5646, %v5758
    %v5765 = vld [vmem:[%s51] sm:$0x1]
    %v5767 = vlaneseq
    %v5768 = vshrl.u32 %v5767, 7
    %v5769 = vsub.s32 0, %v5768
    %v5770 = vrot.slane %v5765, %v5769
    %v5772 = vmul.f32 %v5761, %v5770
    %v5773 = vmul.f32 %v5762, %v5770
    %v5774 = vmul.f32 %v5763, %v5770
    %v5775 = vmul.f32 %v5764, %v5770
    %v5776 = vld [vmem:[%s53] sm:$0x1]
    %v5778 = vlaneseq
    %v5779 = vshrl.u32 %v5778, 7
    %v5780 = vsub.s32 0, %v5779
    %v5781 = vrot.slane %v5776, %v5780
    %v5783 = vadd.f32 %v5772, %v5781
    %v5784 = vadd.f32 %v5773, %v5781
    %v5785 = vadd.f32 %v5774, %v5781
    %v5786 = vadd.f32 %v5775, %v5781
    %v5787 = vmax.f32 %v5783, 0.0
    %v5788 = vmax.f32 %v5784, 0.0
    %v5789 = vmax.f32 %v5785, 0.0
    %v5790 = vmax.f32 %v5786, 0.0
    %v5791 = vpack.c.bf16 %v5788, %v5787
    %v5792 = vpack.c.bf16 %v5790, %v5789
    %v5795 = vunpack.c.l.b16 %v5791
    %v5796 = vunpack.c.h.b16 %v5791
    %v5797 = vunpack.c.l.b16 %v5792
    %v5798 = vunpack.c.h.b16 %v5792
    %v5799 = vpack.c.b16 %v5795, %v5795
    %v5800 = vpack.c.b16 %v5796, %v5796
    %v5801 = vpack.c.b16 %v5797, %v5797
    %v5802 = vpack.c.b16 %v5798, %v5798
    %v5804 = vshrl.u32 %v5799, 16
    %v5806 = vrot.slane %v5804, 6
    %v5807 = vshll.u32 %v5799, 16
    %v5809 = vrot.slane %v5807, 7
    %v5810 = vor.u32 %v5806, %v5809
    %v5811 = vrot.slane %v5810, 4
    %v5813 = vshrl.u32 %v5800, 16
    %v5815 = vrot.slane %v5813, 6
    %v5816 = vshll.u32 %v5800, 16
    %v5818 = vrot.slane %v5816, 7
    %v5819 = vor.u32 %v5815, %v5818
    %v5820 = vsel %vm394, %v5811, %v5819
    %v5821 = vrot.slane %v5819, 4
    %v5823 = vshrl.u32 %v5801, 16
    %v5825 = vrot.slane %v5823, 6
    %v5826 = vshll.u32 %v5801, 16
    %v5828 = vrot.slane %v5826, 7
    %v5829 = vor.u32 %v5825, %v5828
    %v5830 = vrot.slane %v5829, 4
    %v5832 = vshrl.u32 %v5802, 16
    %v5834 = vrot.slane %v5832, 6
    %v5835 = vshll.u32 %v5802, 16
    %v5837 = vrot.slane %v5835, 7
    %v5838 = vor.u32 %v5834, %v5837
    %v5839 = vsel %vm394, %v5830, %v5838
    %v5840 = vrot.slane %v5838, 4
    %v5847 = vsel %vm1253, %v5810, %v5119
    %5848 = vst [vmem:[#allocation3] sm:$0xe] %v5847
    %5849 = vst.msk [vmem:[#allocation3 + $0x4] sm:$0xf] %vm376, %v5820
    %v5850 = vld [vmem:[#allocation3 + $0x8] sm:$0x3]
    %v5851 = vsel %vm1259, %v5821, %v5850
    %5852 = vst [vmem:[#allocation3 + $0x8] sm:$0x3] %v5851
    %v5853 = vld [vmem:[#allocation3 + $0xc] sm:$0xe]
    %v5854 = vsel %vm1253, %v5829, %v5853
    %5855 = vst [vmem:[#allocation3 + $0xc] sm:$0xe] %v5854
    %5856 = vst.msk [vmem:[#allocation3 + $0x10] sm:$0xf] %vm376, %v5839
    %v5857 = vld [vmem:[#allocation3 + $0x14] sm:$0x3]
    %v5858 = vsel %vm1259, %v5840, %v5857
    %5859 = vst [vmem:[#allocation3 + $0x14] sm:$0x3] %v5858
    %v5860 = vld [vmem:[#allocation3] sm:$0xf]
    %v5861 = vld [vmem:[#allocation3 + $0x4] sm:$0xf]
    %v5862 = vld [vmem:[#allocation3 + $0x8] sm:$0x1]
    %v5863 = vld [vmem:[#allocation3 + $0xc] sm:$0xf]
    %v5864 = vld [vmem:[#allocation3 + $0x10] sm:$0xf]
    %v5865 = vld [vmem:[#allocation3 + $0x14] sm:$0x1]
    %v5867 = vshrl.u32 %v5860, 16
    %v5869 = vrot.slane %v5867, 4
    %v5870 = vshll.u32 %v5860, 16
    %v5872 = vrot.slane %v5870, 5
    %v5873 = vor.u32 %v5869, %v5872
    %v5874 = vrot.slane %v5873, 4
    %v5876 = vshll.u32 %v5861, 16
    %v5878 = vrot.slane %v5876, 5
    %v5879 = vsel %vm467, %v5874, %v5878
    %v5880 = vshrl.u32 %v5861, 16
    %v5882 = vrot.slane %v5880, 4
    %v5883 = vor.u32 %v5882, %v5878
    %v5884 = vrot.slane %v5883, 4
    %v5886 = vshll.u32 %v5862, 16
    %v5888 = vrot.slane %v5886, 5
    %v5889 = vsel %vm467, %v5884, %v5888
    %v5891 = vshrl.u32 %v5863, 16
    %v5893 = vrot.slane %v5891, 4
    %v5894 = vshll.u32 %v5863, 16
    %v5896 = vrot.slane %v5894, 5
    %v5897 = vor.u32 %v5893, %v5896
    %v5898 = vrot.slane %v5897, 4
    %v5900 = vshll.u32 %v5864, 16
    %v5902 = vrot.slane %v5900, 5
    %v5903 = vsel %vm467, %v5898, %v5902
    %v5904 = vshrl.u32 %v5864, 16
    %v5906 = vrot.slane %v5904, 4
    %v5907 = vor.u32 %v5906, %v5902
    %v5908 = vrot.slane %v5907, 4
    %v5910 = vshll.u32 %v5865, 16
    %v5912 = vrot.slane %v5910, 5
    %v5913 = vsel %vm467, %v5908, %v5912
    %v5914 = vld [vmem:[#allocation28] sm:$0xf]
    %v5915 = vld [vmem:[#allocation28 + $0x4] sm:$0xf]
    %v5916 = vld [vmem:[#allocation28 + $0x8] sm:$0xf]
    %v5917 = vld [vmem:[#allocation28 + $0xc] sm:$0xf]
    %v5918 = vld [vmem:[#allocation28 + $0x10] sm:$0xf]
    %v5919 = vld [vmem:[#allocation28 + $0x14] sm:$0xf]
    %v5920 = vld [vmem:[#allocation28 + $0x18] sm:$0xf]
    %v5921 = vld [vmem:[#allocation28 + $0x1c] sm:$0xf]
    %v5922 = vld [vmem:[#allocation3] sm:$0xe]
    %v5923 = vld [vmem:[#allocation3 + $0xc] sm:$0xe]
    %v5930 = vrot.slane %v5922, 5
    %v5931 = vrot.slane %v5930, 4
    %v5932 = vrot.slane %v5861, 5
    %v5933 = vsel %vm660, %v5931, %v5932
    %v5934 = vrot.slane %v5932, 4
    %v5935 = vrot.slane %v5862, 5
    %v5936 = vsel %vm660, %v5934, %v5935
    %v5937 = vrot.slane %v5923, 5
    %v5938 = vrot.slane %v5937, 4
    %v5939 = vrot.slane %v5864, 5
    %v5940 = vsel %vm660, %v5938, %v5939
    %v5941 = vrot.slane %v5939, 4
    %v5942 = vrot.slane %v5865, 5
    %v5943 = vsel %vm660, %v5941, %v5942
    %s5944 = scalar_lea.vmem [#allocation28], 32
    %v5945 = vld [vmem:[%s5944] sm:$0xf]
    %v5946 = vld [vmem:[%s5944 + $0x4] sm:$0xf]
    %v5947 = vld [vmem:[%s5944 + $0x8] sm:$0xf]
    %v5948 = vld [vmem:[%s5944 + $0xc] sm:$0xf]
    %v5949 = vld [vmem:[%s5944 + $0x10] sm:$0xf]
    %v5950 = vld [vmem:[%s5944 + $0x14] sm:$0xf]
    %v5951 = vld [vmem:[%s5944 + $0x18] sm:$0xf]
    %v5952 = vld [vmem:[%s5944 + $0x1c] sm:$0xf]
    %v5953 = vunpack.c.l.b16 %v5933
    %v5954 = vunpack.c.l.b16 %v5936
    %v5955 = vunpack.c.l.b16 %v5940
    %v5956 = vunpack.c.l.b16 %v5943
    %v5957 = vpack.c.b16 %v5954, %v5953
    %v5958 = vpack.c.b16 %v5956, %v5955
    %v5967 = vunpack.c.l.b16 %v5945
    %v5968 = vunpack.c.l.b16 %v5946
    %v5969 = vunpack.c.l.b16 %v5947
    %v5970 = vunpack.c.l.b16 %v5948
    %v5971 = vunpack.c.l.b16 %v5949
    %v5972 = vunpack.c.l.b16 %v5950
    %v5973 = vunpack.c.l.b16 %v5951
    %v5974 = vunpack.c.l.b16 %v5952
    %v5975 = vpack.c.b16 %v5968, %v5967
    %v5976 = vpack.c.b16 %v5970, %v5969
    %v5977 = vpack.c.b16 %v5972, %v5971
    %v5978 = vpack.c.b16 %v5974, %v5973
    %v5984 = vsel %vm1393, %v5957, 0
    %v5987 = vsel %vm1393, %v5958, 0
    %5989 = vmatprep.subr.bf16.mxu0 0
    %5990 = vmatpush1.bf16.msra.mxu0 %v5975
    %5991 = vmatprep.subr.bf16.mxu0 0
    %5992 = vmatpush1.bf16.msra.mxu0 %v5976
    %5993 = vmatprep.subr.bf16.mxu0 0
    %5994 = vmatpush1.bf16.msra.mxu0 %v5977
    %5995 = vmatprep.subr.bf16.mxu0 0
    %5996 = vmatpush1.bf16.msra.mxu0 %v5978
    %5997 = vmatprep.subr.bf16.mxu0 0
    %5998 = vmatpush1.bf16.msra.mxu0 0
    %5999 = vmatprep.subr.bf16.mxu0 0
    %6000 = vmatpush1.bf16.msra.mxu0 0
    %6001 = vmatprep.subr.bf16.mxu0 0
    %6002 = vmatpush1.bf16.msra.mxu0 0
    %6003 = vmatprep.subr.bf16.mxu0 0
    %6004 = vmatpush1.bf16.msra.mxu0 0
    %6005 = vmatprep.subr.bf16.mxu0 0
    %6006 = vmatpush1.bf16.msra.mxu0 0
    %6007 = vmatprep.subr.bf16.mxu0 0
    %6008 = vmatpush1.bf16.msra.mxu0 0
    %6009 = vmatprep.subr.bf16.mxu0 0
    %6010 = vmatpush1.bf16.msra.mxu0 0
    %6011 = vmatprep.subr.bf16.mxu0 0
    %6012 = vmatpush1.bf16.msra.mxu0 0
    %6013 = vmatprep.subr.bf16.mxu0 0
    %6014 = vmatpush1.bf16.msra.mxu0 0
    %6015 = vmatprep.subr.bf16.mxu0 0
    %6016 = vmatpush1.bf16.msra.mxu0 0
    %6017 = vmatprep.subr.bf16.mxu0 0
    %6018 = vmatpush1.bf16.msra.mxu0 0
    %6019 = vmatprep.subr.bf16.mxu0 0
    %6020 = vmatpush1.bf16.msra.mxu0 0
    %6021 = vmatprep.mubr.bf16.mxu0 0
    %6022 = vmatmul.mubr.bf16.gmra.mrb[0].mxu0 %v5984
    %v6023 = vpop.f32.mrb[0].mxu0
    %v6024 = vadd.f32 0.0, %v6023
    %v6025 = vpop.f32.mrb[0].mxu0
    %v6026 = vpop.f32.mrb[0].mxu0
    %v6027 = vadd.f32 0.0, %v6026
    %v6028 = vpop.f32.mrb[0].mxu0
    %6029 = vmatprep.mubr.bf16.mxu0 0
    %6030 = vmatmul.mubr.bf16.gmra.mrb[0].mxu0 %v5987
    %v6031 = vpop.f32.mrb[0].mxu0
    %v6032 = vadd.f32 0.0, %v6031
    %v6033 = vpop.f32.mrb[0].mxu0
    %v6034 = vpop.f32.mrb[0].mxu0
    %v6035 = vadd.f32 0.0, %v6034
    %v6036 = vpop.f32.mrb[0].mxu0
    %6037 = vdwg.mxu0
    %v6038 = vunpack.c.l.b16 %v5879
    %v6039 = vunpack.c.l.b16 %v5889
    %v6040 = vunpack.c.l.b16 %v5903
    %v6041 = vunpack.c.l.b16 %v5913
    %v6042 = vpack.c.b16 %v6039, %v6038
    %v6043 = vpack.c.b16 %v6041, %v6040
    %v6052 = vunpack.c.l.b16 %v5914
    %v6053 = vunpack.c.l.b16 %v5915
    %v6054 = vunpack.c.l.b16 %v5916
    %v6055 = vunpack.c.l.b16 %v5917
    %v6056 = vunpack.c.l.b16 %v5918
    %v6057 = vunpack.c.l.b16 %v5919
    %v6058 = vunpack.c.l.b16 %v5920
    %v6059 = vunpack.c.l.b16 %v5921
    %v6060 = vpack.c.b16 %v6053, %v6052
    %v6061 = vpack.c.b16 %v6055, %v6054
    %v6062 = vpack.c.b16 %v6057, %v6056
    %v6063 = vpack.c.b16 %v6059, %v6058
    %v6069 = vsel %vm1393, %v6042, 0
    %v6072 = vsel %vm1393, %v6043, 0
    %6074 = vmatprep.subr.bf16.mxu0 0
    %6075 = vmatpush1.bf16.msra.mxu0 %v6060
    %6076 = vmatprep.subr.bf16.mxu0 0
    %6077 = vmatpush1.bf16.msra.mxu0 %v6061
    %6078 = vmatprep.subr.bf16.mxu0 0
    %6079 = vmatpush1.bf16.msra.mxu0 %v6062
    %6080 = vmatprep.subr.bf16.mxu0 0
    %6081 = vmatpush1.bf16.msra.mxu0 %v6063
    %6082 = vmatprep.subr.bf16.mxu0 0
    %6083 = vmatpush1.bf16.msra.mxu0 0
    %6084 = vmatprep.subr.bf16.mxu0 0
    %6085 = vmatpush1.bf16.msra.mxu0 0
    %6086 = vmatprep.subr.bf16.mxu0 0
    %6087 = vmatpush1.bf16.msra.mxu0 0
    %6088 = vmatprep.subr.bf16.mxu0 0
    %6089 = vmatpush1.bf16.msra.mxu0 0
    %6090 = vmatprep.subr.bf16.mxu0 0
    %6091 = vmatpush1.bf16.msra.mxu0 0
    %6092 = vmatprep.subr.bf16.mxu0 0
    %6093 = vmatpush1.bf16.msra.mxu0 0
    %6094 = vmatprep.subr.bf16.mxu0 0
    %6095 = vmatpush1.bf16.msra.mxu0 0
    %6096 = vmatprep.subr.bf16.mxu0 0
    %6097 = vmatpush1.bf16.msra.mxu0 0
    %6098 = vmatprep.subr.bf16.mxu0 0
    %6099 = vmatpush1.bf16.msra.mxu0 0
    %6100 = vmatprep.subr.bf16.mxu0 0
    %6101 = vmatpush1.bf16.msra.mxu0 0
    %6102 = vmatprep.subr.bf16.mxu0 0
    %6103 = vmatpush1.bf16.msra.mxu0 0
    %6104 = vmatprep.subr.bf16.mxu0 0
    %6105 = vmatpush1.bf16.msra.mxu0 0
    %6106 = vmatprep.mubr.bf16.mxu0 0
    %6107 = vmatmul.mubr.bf16.gmra.mrb[0].mxu0 %v6069
    %v6108 = vpop.f32.mrb[0].mxu0
    %v6109 = vadd.f32 %v6024, %v6108
    %v6110 = vpop.f32.mrb[0].mxu0
    %v6111 = vpop.f32.mrb[0].mxu0
    %v6112 = vadd.f32 %v6027, %v6111
    %v6113 = vpop.f32.mrb[0].mxu0
    %6114 = vmatprep.mubr.bf16.mxu0 0
    %6115 = vmatmul.mubr.bf16.gmra.mrb[0].mxu0 %v6072
    %v6116 = vpop.f32.mrb[0].mxu0
    %v6117 = vadd.f32 %v6032, %v6116
    %v6118 = vpop.f32.mrb[0].mxu0
    %v6119 = vpop.f32.mrb[0].mxu0
    %v6120 = vadd.f32 %v6035, %v6119
    %v6121 = vpop.f32.mrb[0].mxu0
    %6122 = vdwg.mxu0
    %v6123 = vld [vmem:[#allocation3 + $0x8] sm:$0x3]
    %v6124 = vld [vmem:[#allocation3 + $0x14] sm:$0x3]
    %v6126 = vshrl.u32 %v5922, 16
    %v6128 = vrot.slane %v6126, 5
    %v6129 = vshll.u32 %v5922, 16
    %v6131 = vrot.slane %v6129, 6
    %v6132 = vor.u32 %v6128, %v6131
    %v6133 = vrot.slane %v6132, 4
    %v6134 = vrot.slane %v5880, 5
    %v6135 = vrot.slane %v5876, 6
    %v6136 = vor.u32 %v6134, %v6135
    %v6137 = vsel %vm749, %v6133, %v6136
    %v6138 = vrot.slane %v6136, 4
    %v6140 = vshrl.u32 %v6123, 16
    %v6142 = vrot.slane %v6140, 5
    %v6143 = vshll.u32 %v6123, 16
    %v6145 = vrot.slane %v6143, 6
    %v6146 = vor.u32 %v6142, %v6145
    %v6147 = vsel %vm749, %v6138, %v6146
    %v6149 = vshrl.u32 %v5923, 16
    %v6151 = vrot.slane %v6149, 5
    %v6152 = vshll.u32 %v5923, 16
    %v6154 = vrot.slane %v6152, 6
    %v6155 = vor.u32 %v6151, %v6154
    %v6156 = vrot.slane %v6155, 4
    %v6157 = vrot.slane %v5904, 5
    %v6158 = vrot.slane %v5900, 6
    %v6159 = vor.u32 %v6157, %v6158
    %v6160 = vsel %vm749, %v6156, %v6159
    %v6161 = vrot.slane %v6159, 4
    %v6163 = vshrl.u32 %v6124, 16
    %v6165 = vrot.slane %v6163, 5
    %v6166 = vshll.u32 %v6124, 16
    %v6168 = vrot.slane %v6166, 6
    %v6169 = vor.u32 %v6165, %v6168
    %v6170 = vsel %vm749, %v6161, %v6169
    %s6171 = scalar_lea.vmem [#allocation28], 64
    %v6172 = vld [vmem:[%s6171] sm:$0xf]
    %v6173 = vld [vmem:[%s6171 + $0x4] sm:$0xf]
    %v6174 = vld [vmem:[%s6171 + $0x8] sm:$0xf]
    %v6175 = vld [vmem:[%s6171 + $0xc] sm:$0xf]
    %v6176 = vld [vmem:[%s6171 + $0x10] sm:$0xf]
    %v6177 = vld [vmem:[%s6171 + $0x14] sm:$0xf]
    %v6178 = vld [vmem:[%s6171 + $0x18] sm:$0xf]
    %v6179 = vld [vmem:[%s6171 + $0x1c] sm:$0xf]
    %v6180 = vunpack.c.l.b16 %v6137
    %v6181 = vunpack.c.l.b16 %v6147
    %v6182 = vunpack.c.l.b16 %v6160
    %v6183 = vunpack.c.l.b16 %v6170
    %v6184 = vpack.c.b16 %v6181, %v6180
    %v6185 = vpack.c.b16 %v6183, %v6182
    %v6194 = vunpack.c.l.b16 %v6172
    %v6195 = vunpack.c.l.b16 %v6173
    %v6196 = vunpack.c.l.b16 %v6174
    %v6197 = vunpack.c.l.b16 %v6175
    %v6198 = vunpack.c.l.b16 %v6176
    %v6199 = vunpack.c.l.b16 %v6177
    %v6200 = vunpack.c.l.b16 %v6178
    %v6201 = vunpack.c.l.b16 %v6179
    %v6202 = vpack.c.b16 %v6195, %v6194
    %v6203 = vpack.c.b16 %v6197, %v6196
    %v6204 = vpack.c.b16 %v6199, %v6198
    %v6205 = vpack.c.b16 %v6201, %v6200
    %v6211 = vsel %vm1393, %v6184, 0
    %v6214 = vsel %vm1393, %v6185, 0
    %6216 = vmatprep.subr.bf16.mxu0 0
    %6217 = vmatpush1.bf16.msra.mxu0 %v6202
    %6218 = vmatprep.subr.bf16.mxu0 0
    %6219 = vmatpush1.bf16.msra.mxu0 %v6203
    %6220 = vmatprep.subr.bf16.mxu0 0
    %6221 = vmatpush1.bf16.msra.mxu0 %v6204
    %6222 = vmatprep.subr.bf16.mxu0 0
    %6223 = vmatpush1.bf16.msra.mxu0 %v6205
    %6224 = vmatprep.subr.bf16.mxu0 0
    %6225 = vmatpush1.bf16.msra.mxu0 0
    %6226 = vmatprep.subr.bf16.mxu0 0
    %6227 = vmatpush1.bf16.msra.mxu0 0
    %6228 = vmatprep.subr.bf16.mxu0 0
    %6229 = vmatpush1.bf16.msra.mxu0 0
    %6230 = vmatprep.subr.bf16.mxu0 0
    %6231 = vmatpush1.bf16.msra.mxu0 0
    %6232 = vmatprep.subr.bf16.mxu0 0
    %6233 = vmatpush1.bf16.msra.mxu0 0
    %6234 = vmatprep.subr.bf16.mxu0 0
    %6235 = vmatpush1.bf16.msra.mxu0 0
    %6236 = vmatprep.subr.bf16.mxu0 0
    %6237 = vmatpush1.bf16.msra.mxu0 0
    %6238 = vmatprep.subr.bf16.mxu0 0
    %6239 = vmatpush1.bf16.msra.mxu0 0
    %6240 = vmatprep.subr.bf16.mxu0 0
    %6241 = vmatpush1.bf16.msra.mxu0 0
    %6242 = vmatprep.subr.bf16.mxu0 0
    %6243 = vmatpush1.bf16.msra.mxu0 0
    %6244 = vmatprep.subr.bf16.mxu0 0
    %6245 = vmatpush1.bf16.msra.mxu0 0
    %6246 = vmatprep.subr.bf16.mxu0 0
    %6247 = vmatpush1.bf16.msra.mxu0 0
    %6248 = vmatprep.mubr.bf16.mxu0 0
    %6249 = vmatmul.mubr.bf16.gmra.mrb[0].mxu0 %v6211
    %v6250 = vpop.f32.mrb[0].mxu0
    %v6251 = vadd.f32 0.0, %v6250
    %v6252 = vpop.f32.mrb[0].mxu0
    %v6253 = vpop.f32.mrb[0].mxu0
    %v6254 = vadd.f32 0.0, %v6253
    %v6255 = vpop.f32.mrb[0].mxu0
    %6256 = vmatprep.mubr.bf16.mxu0 0
    %6257 = vmatmul.mubr.bf16.gmra.mrb[0].mxu0 %v6214
    %v6258 = vpop.f32.mrb[0].mxu0
    %v6259 = vadd.f32 0.0, %v6258
    %v6260 = vpop.f32.mrb[0].mxu0
    %v6261 = vpop.f32.mrb[0].mxu0
    %v6262 = vadd.f32 0.0, %v6261
    %v6263 = vpop.f32.mrb[0].mxu0
    %6264 = vdwg.mxu0
    %v6265 = vadd.f32 %v6109, %v6251
    %v6266 = vadd.f32 %v6112, %v6254
    %v6267 = vadd.f32 %v6117, %v6259
    %v6268 = vadd.f32 %v6120, %v6262
    %v6269 = vld [vmem:[#allocation3] sm:$0xc]
    %v6270 = vld [vmem:[#allocation3 + $0xc] sm:$0xc]
    %v6275 = vrot.slane %v6269, 6
    %v6276 = vrot.slane %v6275, 4
    %v6277 = vrot.slane %v5861, 6
    %v6278 = vsel %vm874, %v6276, %v6277
    %v6279 = vrot.slane %v6277, 4
    %v6280 = vrot.slane %v6123, 6
    %v6281 = vsel %vm874, %v6279, %v6280
    %v6282 = vrot.slane %v6270, 6
    %v6283 = vrot.slane %v6282, 4
    %v6284 = vrot.slane %v5864, 6
    %v6285 = vsel %vm874, %v6283, %v6284
    %v6286 = vrot.slane %v6284, 4
    %v6287 = vrot.slane %v6124, 6
    %v6288 = vsel %vm874, %v6286, %v6287
    %s6289 = scalar_lea.vmem [#allocation28], 96
    %v6290 = vld [vmem:[%s6289] sm:$0xf]
    %v6291 = vld [vmem:[%s6289 + $0x4] sm:$0xf]
    %v6292 = vld [vmem:[%s6289 + $0x8] sm:$0xf]
    %v6293 = vld [vmem:[%s6289 + $0xc] sm:$0xf]
    %v6294 = vld [vmem:[%s6289 + $0x10] sm:$0xf]
    %v6295 = vld [vmem:[%s6289 + $0x14] sm:$0xf]
    %v6296 = vld [vmem:[%s6289 + $0x18] sm:$0xf]
    %v6297 = vld [vmem:[%s6289 + $0x1c] sm:$0xf]
    %v6298 = vunpack.c.l.b16 %v6278
    %v6299 = vunpack.c.l.b16 %v6281
    %v6300 = vunpack.c.l.b16 %v6285
    %v6301 = vunpack.c.l.b16 %v6288
    %v6302 = vpack.c.b16 %v6299, %v6298
    %v6303 = vpack.c.b16 %v6301, %v6300
    %v6312 = vunpack.c.l.b16 %v6290
    %v6313 = vunpack.c.l.b16 %v6291
    %v6314 = vunpack.c.l.b16 %v6292
    %v6315 = vunpack.c.l.b16 %v6293
    %v6316 = vunpack.c.l.b16 %v6294
    %v6317 = vunpack.c.l.b16 %v6295
    %v6318 = vunpack.c.l.b16 %v6296
    %v6319 = vunpack.c.l.b16 %v6297
    %v6320 = vpack.c.b16 %v6313, %v6312
    %v6321 = vpack.c.b16 %v6315, %v6314
    %v6322 = vpack.c.b16 %v6317, %v6316
    %v6323 = vpack.c.b16 %v6319, %v6318
    %v6329 = vsel %vm1393, %v6302, 0
    %v6332 = vsel %vm1393, %v6303, 0
    %6334 = vmatprep.subr.bf16.mxu0 0
    %6335 = vmatpush1.bf16.msra.mxu0 %v6320
    %6336 = vmatprep.subr.bf16.mxu0 0
    %6337 = vmatpush1.bf16.msra.mxu0 %v6321
    %6338 = vmatprep.subr.bf16.mxu0 0
    %6339 = vmatpush1.bf16.msra.mxu0 %v6322
    %6340 = vmatprep.subr.bf16.mxu0 0
    %6341 = vmatpush1.bf16.msra.mxu0 %v6323
    %6342 = vmatprep.subr.bf16.mxu0 0
    %6343 = vmatpush1.bf16.msra.mxu0 0
    %6344 = vmatprep.subr.bf16.mxu0 0
    %6345 = vmatpush1.bf16.msra.mxu0 0
    %6346 = vmatprep.subr.bf16.mxu0 0
    %6347 = vmatpush1.bf16.msra.mxu0 0
    %6348 = vmatprep.subr.bf16.mxu0 0
    %6349 = vmatpush1.bf16.msra.mxu0 0
    %6350 = vmatprep.subr.bf16.mxu0 0
    %6351 = vmatpush1.bf16.msra.mxu0 0
    %6352 = vmatprep.subr.bf16.mxu0 0
    %6353 = vmatpush1.bf16.msra.mxu0 0
    %6354 = vmatprep.subr.bf16.mxu0 0
    %6355 = vmatpush1.bf16.msra.mxu0 0
    %6356 = vmatprep.subr.bf16.mxu0 0
    %6357 = vmatpush1.bf16.msra.mxu0 0
    %6358 = vmatprep.subr.bf16.mxu0 0
    %6359 = vmatpush1.bf16.msra.mxu0 0
    %6360 = vmatprep.subr.bf16.mxu0 0
    %6361 = vmatpush1.bf16.msra.mxu0 0
    %6362 = vmatprep.subr.bf16.mxu0 0
    %6363 = vmatpush1.bf16.msra.mxu0 0
    %6364 = vmatprep.subr.bf16.mxu0 0
    %6365 = vmatpush1.bf16.msra.mxu0 0
    %6366 = vmatprep.mubr.bf16.mxu0 0
    %6367 = vmatmul.mubr.bf16.gmra.mrb[0].mxu0 %v6329
    %v6368 = vpop.f32.mrb[0].mxu0
    %v6369 = vadd.f32 0.0, %v6368
    %v6370 = vpop.f32.mrb[0].mxu0
    %v6371 = vpop.f32.mrb[0].mxu0
    %v6372 = vadd.f32 0.0, %v6371
    %v6373 = vpop.f32.mrb[0].mxu0
    %6374 = vmatprep.mubr.bf16.mxu0 0
    %6375 = vmatmul.mubr.bf16.gmra.mrb[0].mxu0 %v6332
    %v6376 = vpop.f32.mrb[0].mxu0
    %v6377 = vadd.f32 0.0, %v6376
    %v6378 = vpop.f32.mrb[0].mxu0
    %v6379 = vpop.f32.mrb[0].mxu0
    %v6380 = vadd.f32 0.0, %v6379
    %v6381 = vpop.f32.mrb[0].mxu0
    %6382 = vdwg.mxu0
    %v6383 = vadd.f32 %v6265, %v6369
    %v6384 = vadd.f32 %v6266, %v6372
    %v6385 = vadd.f32 %v6267, %v6377
    %v6386 = vadd.f32 %v6268, %v6380
    %v6387 = vld [vmem:[#allocation3 + $0x8] sm:$0x7]
    %v6388 = vld [vmem:[#allocation3 + $0x14] sm:$0x7]
    %v6390 = vshrl.u32 %v6269, 16
    %v6392 = vrot.slane %v6390, 6
    %v6393 = vshll.u32 %v6269, 16
    %v6395 = vrot.slane %v6393, 7
    %v6396 = vor.u32 %v6392, %v6395
    %v6397 = vrot.slane %v6396, 4
    %v6398 = vrot.slane %v5880, 6
    %v6399 = vrot.slane %v5876, 7
    %v6400 = vor.u32 %v6398, %v6399
    %v6401 = vsel %vm394, %v6397, %v6400
    %v6402 = vrot.slane %v6400, 4
    %v6404 = vshrl.u32 %v6387, 16
    %v6406 = vrot.slane %v6404, 6
    %v6407 = vshll.u32 %v6387, 16
    %v6409 = vrot.slane %v6407, 7
    %v6410 = vor.u32 %v6406, %v6409
    %v6411 = vsel %vm394, %v6402, %v6410
    %v6413 = vshrl.u32 %v6270, 16
    %v6415 = vrot.slane %v6413, 6
    %v6416 = vshll.u32 %v6270, 16
    %v6418 = vrot.slane %v6416, 7
    %v6419 = vor.u32 %v6415, %v6418
    %v6420 = vrot.slane %v6419, 4
    %v6421 = vrot.slane %v5904, 6
    %v6422 = vrot.slane %v5900, 7
    %v6423 = vor.u32 %v6421, %v6422
    %v6424 = vsel %vm394, %v6420, %v6423
    %v6425 = vrot.slane %v6423, 4
    %v6427 = vshrl.u32 %v6388, 16
    %v6429 = vrot.slane %v6427, 6
    %v6430 = vshll.u32 %v6388, 16
    %v6432 = vrot.slane %v6430, 7
    %v6433 = vor.u32 %v6429, %v6432
    %v6434 = vsel %vm394, %v6425, %v6433
    %s6435 = scalar_lea.vmem [#allocation28], 128
    %v6436 = vld [vmem:[%s6435] sm:$0xf]
    %v6437 = vld [vmem:[%s6435 + $0x4] sm:$0xf]
    %v6438 = vld [vmem:[%s6435 + $0x8] sm:$0xf]
    %v6439 = vld [vmem:[%s6435 + $0xc] sm:$0xf]
    %v6440 = vld [vmem:[%s6435 + $0x10] sm:$0xf]
    %v6441 = vld [vmem:[%s6435 + $0x14] sm:$0xf]
    %v6442 = vld [vmem:[%s6435 + $0x18] sm:$0xf]
    %v6443 = vld [vmem:[%s6435 + $0x1c] sm:$0xf]
    %v6444 = vunpack.c.l.b16 %v6401
    %v6445 = vunpack.c.l.b16 %v6411
    %v6446 = vunpack.c.l.b16 %v6424
    %v6447 = vunpack.c.l.b16 %v6434
    %v6448 = vpack.c.b16 %v6445, %v6444
    %v6449 = vpack.c.b16 %v6447, %v6446
    %v6458 = vunpack.c.l.b16 %v6436
    %v6459 = vunpack.c.l.b16 %v6437
    %v6460 = vunpack.c.l.b16 %v6438
    %v6461 = vunpack.c.l.b16 %v6439
    %v6462 = vunpack.c.l.b16 %v6440
    %v6463 = vunpack.c.l.b16 %v6441
    %v6464 = vunpack.c.l.b16 %v6442
    %v6465 = vunpack.c.l.b16 %v6443
    %v6466 = vpack.c.b16 %v6459, %v6458
    %v6467 = vpack.c.b16 %v6461, %v6460
    %v6468 = vpack.c.b16 %v6463, %v6462
    %v6469 = vpack.c.b16 %v6465, %v6464
    %v6475 = vsel %vm1393, %v6448, 0
    %v6478 = vsel %vm1393, %v6449, 0
    %6480 = vmatprep.subr.bf16.mxu0 0
    %6481 = vmatpush1.bf16.msra.mxu0 %v6466
    %6482 = vmatprep.subr.bf16.mxu0 0
    %6483 = vmatpush1.bf16.msra.mxu0 %v6467
    %6484 = vmatprep.subr.bf16.mxu0 0
    %6485 = vmatpush1.bf16.msra.mxu0 %v6468
    %6486 = vmatprep.subr.bf16.mxu0 0
    %6487 = vmatpush1.bf16.msra.mxu0 %v6469
    %6488 = vmatprep.subr.bf16.mxu0 0
    %6489 = vmatpush1.bf16.msra.mxu0 0
    %6490 = vmatprep.subr.bf16.mxu0 0
    %6491 = vmatpush1.bf16.msra.mxu0 0
    %6492 = vmatprep.subr.bf16.mxu0 0
    %6493 = vmatpush1.bf16.msra.mxu0 0
    %6494 = vmatprep.subr.bf16.mxu0 0
    %6495 = vmatpush1.bf16.msra.mxu0 0
    %6496 = vmatprep.subr.bf16.mxu0 0
    %6497 = vmatpush1.bf16.msra.mxu0 0
    %6498 = vmatprep.subr.bf16.mxu0 0
    %6499 = vmatpush1.bf16.msra.mxu0 0
    %6500 = vmatprep.subr.bf16.mxu0 0
    %6501 = vmatpush1.bf16.msra.mxu0 0
    %6502 = vmatprep.subr.bf16.mxu0 0
    %6503 = vmatpush1.bf16.msra.mxu0 0
    %6504 = vmatprep.subr.bf16.mxu0 0
    %6505 = vmatpush1.bf16.msra.mxu0 0
    %6506 = vmatprep.subr.bf16.mxu0 0
    %6507 = vmatpush1.bf16.msra.mxu0 0
    %6508 = vmatprep.subr.bf16.mxu0 0
    %6509 = vmatpush1.bf16.msra.mxu0 0
    %6510 = vmatprep.subr.bf16.mxu0 0
    %6511 = vmatpush1.bf16.msra.mxu0 0
    %6512 = vmatprep.mubr.bf16.mxu0 0
    %6513 = vmatmul.mubr.bf16.gmra.mrb[0].mxu0 %v6475
    %v6514 = vpop.f32.mrb[0].mxu0
    %v6515 = vadd.f32 0.0, %v6514
    %v6516 = vpop.f32.mrb[0].mxu0
    %v6517 = vpop.f32.mrb[0].mxu0
    %v6518 = vadd.f32 0.0, %v6517
    %v6519 = vpop.f32.mrb[0].mxu0
    %6520 = vmatprep.mubr.bf16.mxu0 0
    %6521 = vmatmul.mubr.bf16.gmra.mrb[0].mxu0 %v6478
    %v6522 = vpop.f32.mrb[0].mxu0
    %v6523 = vadd.f32 0.0, %v6522
    %v6524 = vpop.f32.mrb[0].mxu0
    %v6525 = vpop.f32.mrb[0].mxu0
    %v6526 = vadd.f32 0.0, %v6525
    %v6527 = vpop.f32.mrb[0].mxu0
    %6528 = vdwg.mxu0
    %v6529 = vadd.f32 %v6383, %v6515
    %v6530 = vadd.f32 %v6384, %v6518
    %v6531 = vadd.f32 %v6385, %v6523
    %v6532 = vadd.f32 %v6386, %v6526
    %v6533 = vld [vmem:[%s57] sm:$0x1]
    %v6535 = vlaneseq
    %v6536 = vshrl.u32 %v6535, 7
    %v6537 = vsub.s32 0, %v6536
    %v6538 = vrot.slane %v6533, %v6537
    %v6540 = vmul.f32 %v6529, %v6538
    %v6541 = vmul.f32 %v6530, %v6538
    %v6542 = vmul.f32 %v6531, %v6538
    %v6543 = vmul.f32 %v6532, %v6538
    %v6544 = vld [vmem:[%s59] sm:$0x1]
    %v6546 = vlaneseq
    %v6547 = vshrl.u32 %v6546, 7
    %v6548 = vsub.s32 0, %v6547
    %v6549 = vrot.slane %v6544, %v6548
    %v6551 = vadd.f32 %v6540, %v6549
    %v6552 = vadd.f32 %v6541, %v6549
    %v6553 = vadd.f32 %v6542, %v6549
    %v6554 = vadd.f32 %v6543, %v6549
    %v6555 = vmax.f32 %v6551, 0.0
    %v6556 = vmax.f32 %v6552, 0.0
    %v6557 = vmax.f32 %v6553, 0.0
    %v6558 = vmax.f32 %v6554, 0.0
    %v6559 = vpack.c.bf16 %v6556, %v6555
    %v6560 = vpack.c.bf16 %v6558, %v6557
    %v6563 = vunpack.c.l.b16 %v6559
    %v6564 = vunpack.c.h.b16 %v6559
    %v6565 = vunpack.c.l.b16 %v6560
    %v6566 = vunpack.c.h.b16 %v6560
    %v6567 = vpack.c.b16 %v6563, %v6563
    %v6568 = vpack.c.b16 %v6564, %v6564
    %v6569 = vpack.c.b16 %v6565, %v6565
    %v6570 = vpack.c.b16 %v6566, %v6566
    %v6572 = vshrl.u32 %v6567, 16
    %v6574 = vrot.slane %v6572, 6
    %v6575 = vshll.u32 %v6567, 16
    %v6577 = vrot.slane %v6575, 7
    %v6578 = vor.u32 %v6574, %v6577
    %v6579 = vrot.slane %v6578, 4
    %v6581 = vshrl.u32 %v6568, 16
    %v6583 = vrot.slane %v6581, 6
    %v6584 = vshll.u32 %v6568, 16
    %v6586 = vrot.slane %v6584, 7
    %v6587 = vor.u32 %v6583, %v6586
    %v6588 = vsel %vm394, %v6579, %v6587
    %v6589 = vrot.slane %v6587, 4
    %v6591 = vshrl.u32 %v6569, 16
    %v6593 = vrot.slane %v6591, 6
    %v6594 = vshll.u32 %v6569, 16
    %v6596 = vrot.slane %v6594, 7
    %v6597 = vor.u32 %v6593, %v6596
    %v6598 = vrot.slane %v6597, 4
    %v6600 = vshrl.u32 %v6570, 16
    %v6602 = vrot.slane %v6600, 6
    %v6603 = vshll.u32 %v6570, 16
    %v6605 = vrot.slane %v6603, 7
    %v6606 = vor.u32 %v6602, %v6605
    %v6607 = vsel %vm394, %v6598, %v6606
    %v6608 = vrot.slane %v6606, 4
    %v6615 = vsel %vm1253, %v6578, %v5922
    %6616 = vst [vmem:[#allocation3] sm:$0xe] %v6615
    %6617 = vst.msk [vmem:[#allocation3 + $0x4] sm:$0xf] %vm376, %v6588
    %v6618 = vld [vmem:[#allocation3 + $0x8] sm:$0x3]
    %v6619 = vsel %vm1259, %v6589, %v6618
    %6620 = vst [vmem:[#allocation3 + $0x8] sm:$0x3] %v6619
    %v6621 = vld [vmem:[#allocation3 + $0xc] sm:$0xe]
    %v6622 = vsel %vm1253, %v6597, %v6621
    %6623 = vst [vmem:[#allocation3 + $0xc] sm:$0xe] %v6622
    %6624 = vst.msk [vmem:[#allocation3 + $0x10] sm:$0xf] %vm376, %v6607
    %v6625 = vld [vmem:[#allocation3 + $0x14] sm:$0x3]
    %v6626 = vsel %vm1259, %v6608, %v6625
    %6627 = vst [vmem:[#allocation3 + $0x14] sm:$0x3] %v6626
    %v6628 = vld [vmem:[#allocation3] sm:$0xe]
    %v6629 = vld [vmem:[#allocation3 + $0x4] sm:$0xf]
    %v6630 = vld [vmem:[#allocation3 + $0x8] sm:$0x1]
    %v6631 = vld [vmem:[#allocation3 + $0xc] sm:$0xe]
    %v6632 = vld [vmem:[#allocation3 + $0x10] sm:$0xf]
    %v6633 = vld [vmem:[#allocation3 + $0x14] sm:$0x1]
    %v6640 = vrot.slane %v6628, 5
    %v6641 = vrot.slane %v6640, 4
    %v6642 = vrot.slane %v6629, 5
    %v6643 = vsel %vm660, %v6641, %v6642
    %v6644 = vrot.slane %v6642, 4
    %v6645 = vrot.slane %v6630, 5
    %v6646 = vsel %vm660, %v6644, %v6645
    %v6647 = vrot.slane %v6631, 5
    %v6648 = vrot.slane %v6647, 4
    %v6649 = vrot.slane %v6632, 5
    %v6650 = vsel %vm660, %v6648, %v6649
    %v6651 = vrot.slane %v6649, 4
    %v6652 = vrot.slane %v6633, 5
    %v6653 = vsel %vm660, %v6651, %v6652
    %v6654 = vld [vmem:[#allocation30] sm:$0xf]
    %v6655 = vld [vmem:[#allocation30 + $0x4] sm:$0xf]
    %v6656 = vld [vmem:[#allocation30 + $0x8] sm:$0xf]
    %v6657 = vld [vmem:[#allocation30 + $0xc] sm:$0xf]
    %v6658 = vld [vmem:[#allocation30 + $0x10] sm:$0xf]
    %v6659 = vld [vmem:[#allocation30 + $0x14] sm:$0xf]
    %v6660 = vld [vmem:[#allocation30 + $0x18] sm:$0xf]
    %v6661 = vld [vmem:[#allocation30 + $0x1c] sm:$0xf]
    %v6662 = vld [vmem:[#allocation3 + $0x8] sm:$0x3]
    %v6663 = vld [vmem:[#allocation3 + $0x14] sm:$0x3]
    %v6665 = vshrl.u32 %v6628, 16
    %v6667 = vrot.slane %v6665, 5
    %v6668 = vshll.u32 %v6628, 16
    %v6670 = vrot.slane %v6668, 6
    %v6671 = vor.u32 %v6667, %v6670
    %v6672 = vrot.slane %v6671, 4
    %v6674 = vshrl.u32 %v6629, 16
    %v6676 = vrot.slane %v6674, 5
    %v6677 = vshll.u32 %v6629, 16
    %v6679 = vrot.slane %v6677, 6
    %v6680 = vor.u32 %v6676, %v6679
    %v6681 = vsel %vm749, %v6672, %v6680
    %v6682 = vrot.slane %v6680, 4
    %v6684 = vshrl.u32 %v6662, 16
    %v6686 = vrot.slane %v6684, 5
    %v6687 = vshll.u32 %v6662, 16
    %v6689 = vrot.slane %v6687, 6
    %v6690 = vor.u32 %v6686, %v6689
    %v6691 = vsel %vm749, %v6682, %v6690
    %v6693 = vshrl.u32 %v6631, 16
    %v6695 = vrot.slane %v6693, 5
    %v6696 = vshll.u32 %v6631, 16
    %v6698 = vrot.slane %v6696, 6
    %v6699 = vor.u32 %v6695, %v6698
    %v6700 = vrot.slane %v6699, 4
    %v6702 = vshrl.u32 %v6632, 16
    %v6704 = vrot.slane %v6702, 5
    %v6705 = vshll.u32 %v6632, 16
    %v6707 = vrot.slane %v6705, 6
    %v6708 = vor.u32 %v6704, %v6707
    %v6709 = vsel %vm749, %v6700, %v6708
    %v6710 = vrot.slane %v6708, 4
    %v6712 = vshrl.u32 %v6663, 16
    %v6714 = vrot.slane %v6712, 5
    %v6715 = vshll.u32 %v6663, 16
    %v6717 = vrot.slane %v6715, 6
    %v6718 = vor.u32 %v6714, %v6717
    %v6719 = vsel %vm749, %v6710, %v6718
    %s6720 = scalar_lea.vmem [#allocation30], 32
    %v6721 = vld [vmem:[%s6720] sm:$0xf]
    %v6722 = vld [vmem:[%s6720 + $0x4] sm:$0xf]
    %v6723 = vld [vmem:[%s6720 + $0x8] sm:$0xf]
    %v6724 = vld [vmem:[%s6720 + $0xc] sm:$0xf]
    %v6725 = vld [vmem:[%s6720 + $0x10] sm:$0xf]
    %v6726 = vld [vmem:[%s6720 + $0x14] sm:$0xf]
    %v6727 = vld [vmem:[%s6720 + $0x18] sm:$0xf]
    %v6728 = vld [vmem:[%s6720 + $0x1c] sm:$0xf]
    %v6729 = vunpack.c.l.b16 %v6681
    %v6730 = vunpack.c.l.b16 %v6691
    %v6731 = vunpack.c.l.b16 %v6709
    %v6732 = vunpack.c.l.b16 %v6719
    %v6733 = vpack.c.b16 %v6730, %v6729
    %v6734 = vpack.c.b16 %v6732, %v6731
    %v6743 = vunpack.c.l.b16 %v6721
    %v6744 = vunpack.c.l.b16 %v6722
    %v6745 = vunpack.c.l.b16 %v6723
    %v6746 = vunpack.c.l.b16 %v6724
    %v6747 = vunpack.c.l.b16 %v6725
    %v6748 = vunpack.c.l.b16 %v6726
    %v6749 = vunpack.c.l.b16 %v6727
    %v6750 = vunpack.c.l.b16 %v6728
    %v6751 = vpack.c.b16 %v6744, %v6743
    %v6752 = vpack.c.b16 %v6746, %v6745
    %v6753 = vpack.c.b16 %v6748, %v6747
    %v6754 = vpack.c.b16 %v6750, %v6749
    %v6760 = vsel %vm1393, %v6733, 0
    %v6763 = vsel %vm1393, %v6734, 0
    %6765 = vmatprep.subr.bf16.mxu0 0
    %6766 = vmatpush1.bf16.msra.mxu0 %v6751
    %6767 = vmatprep.subr.bf16.mxu0 0
    %6768 = vmatpush1.bf16.msra.mxu0 %v6752
    %6769 = vmatprep.subr.bf16.mxu0 0
    %6770 = vmatpush1.bf16.msra.mxu0 %v6753
    %6771 = vmatprep.subr.bf16.mxu0 0
    %6772 = vmatpush1.bf16.msra.mxu0 %v6754
    %6773 = vmatprep.subr.bf16.mxu0 0
    %6774 = vmatpush1.bf16.msra.mxu0 0
    %6775 = vmatprep.subr.bf16.mxu0 0
    %6776 = vmatpush1.bf16.msra.mxu0 0
    %6777 = vmatprep.subr.bf16.mxu0 0
    %6778 = vmatpush1.bf16.msra.mxu0 0
    %6779 = vmatprep.subr.bf16.mxu0 0
    %6780 = vmatpush1.bf16.msra.mxu0 0
    %6781 = vmatprep.subr.bf16.mxu0 0
    %6782 = vmatpush1.bf16.msra.mxu0 0
    %6783 = vmatprep.subr.bf16.mxu0 0
    %6784 = vmatpush1.bf16.msra.mxu0 0
    %6785 = vmatprep.subr.bf16.mxu0 0
    %6786 = vmatpush1.bf16.msra.mxu0 0
    %6787 = vmatprep.subr.bf16.mxu0 0
    %6788 = vmatpush1.bf16.msra.mxu0 0
    %6789 = vmatprep.subr.bf16.mxu0 0
    %6790 = vmatpush1.bf16.msra.mxu0 0
    %6791 = vmatprep.subr.bf16.mxu0 0
    %6792 = vmatpush1.bf16.msra.mxu0 0
    %6793 = vmatprep.subr.bf16.mxu0 0
    %6794 = vmatpush1.bf16.msra.mxu0 0
    %6795 = vmatprep.subr.bf16.mxu0 0
    %6796 = vmatpush1.bf16.msra.mxu0 0
    %6797 = vmatprep.mubr.bf16.mxu0 0
    %6798 = vmatmul.mubr.bf16.gmra.mrb[0].mxu0 %v6760
    %v6799 = vpop.f32.mrb[0].mxu0
    %v6800 = vadd.f32 0.0, %v6799
    %v6801 = vpop.f32.mrb[0].mxu0
    %v6802 = vpop.f32.mrb[0].mxu0
    %v6803 = vadd.f32 0.0, %v6802
    %v6804 = vpop.f32.mrb[0].mxu0
    %6805 = vmatprep.mubr.bf16.mxu0 0
    %6806 = vmatmul.mubr.bf16.gmra.mrb[0].mxu0 %v6763
    %v6807 = vpop.f32.mrb[0].mxu0
    %v6808 = vadd.f32 0.0, %v6807
    %v6809 = vpop.f32.mrb[0].mxu0
    %v6810 = vpop.f32.mrb[0].mxu0
    %v6811 = vadd.f32 0.0, %v6810
    %v6812 = vpop.f32.mrb[0].mxu0
    %6813 = vdwg.mxu0
    %v6814 = vunpack.c.l.b16 %v6643
    %v6815 = vunpack.c.l.b16 %v6646
    %v6816 = vunpack.c.l.b16 %v6650
    %v6817 = vunpack.c.l.b16 %v6653
    %v6818 = vpack.c.b16 %v6815, %v6814
    %v6819 = vpack.c.b16 %v6817, %v6816
    %v6828 = vunpack.c.l.b16 %v6654
    %v6829 = vunpack.c.l.b16 %v6655
    %v6830 = vunpack.c.l.b16 %v6656
    %v6831 = vunpack.c.l.b16 %v6657
    %v6832 = vunpack.c.l.b16 %v6658
    %v6833 = vunpack.c.l.b16 %v6659
    %v6834 = vunpack.c.l.b16 %v6660
    %v6835 = vunpack.c.l.b16 %v6661
    %v6836 = vpack.c.b16 %v6829, %v6828
    %v6837 = vpack.c.b16 %v6831, %v6830
    %v6838 = vpack.c.b16 %v6833, %v6832
    %v6839 = vpack.c.b16 %v6835, %v6834
    %v6845 = vsel %vm1393, %v6818, 0
    %v6848 = vsel %vm1393, %v6819, 0
    %6850 = vmatprep.subr.bf16.mxu0 0
    %6851 = vmatpush1.bf16.msra.mxu0 %v6836
    %6852 = vmatprep.subr.bf16.mxu0 0
    %6853 = vmatpush1.bf16.msra.mxu0 %v6837
    %6854 = vmatprep.subr.bf16.mxu0 0
    %6855 = vmatpush1.bf16.msra.mxu0 %v6838
    %6856 = vmatprep.subr.bf16.mxu0 0
    %6857 = vmatpush1.bf16.msra.mxu0 %v6839
    %6858 = vmatprep.subr.bf16.mxu0 0
    %6859 = vmatpush1.bf16.msra.mxu0 0
    %6860 = vmatprep.subr.bf16.mxu0 0
    %6861 = vmatpush1.bf16.msra.mxu0 0
    %6862 = vmatprep.subr.bf16.mxu0 0
    %6863 = vmatpush1.bf16.msra.mxu0 0
    %6864 = vmatprep.subr.bf16.mxu0 0
    %6865 = vmatpush1.bf16.msra.mxu0 0
    %6866 = vmatprep.subr.bf16.mxu0 0
    %6867 = vmatpush1.bf16.msra.mxu0 0
    %6868 = vmatprep.subr.bf16.mxu0 0
    %6869 = vmatpush1.bf16.msra.mxu0 0
    %6870 = vmatprep.subr.bf16.mxu0 0
    %6871 = vmatpush1.bf16.msra.mxu0 0
    %6872 = vmatprep.subr.bf16.mxu0 0
    %6873 = vmatpush1.bf16.msra.mxu0 0
    %6874 = vmatprep.subr.bf16.mxu0 0
    %6875 = vmatpush1.bf16.msra.mxu0 0
    %6876 = vmatprep.subr.bf16.mxu0 0
    %6877 = vmatpush1.bf16.msra.mxu0 0
    %6878 = vmatprep.subr.bf16.mxu0 0
    %6879 = vmatpush1.bf16.msra.mxu0 0
    %6880 = vmatprep.subr.bf16.mxu0 0
    %6881 = vmatpush1.bf16.msra.mxu0 0
    %6882 = vmatprep.mubr.bf16.mxu0 0
    %6883 = vmatmul.mubr.bf16.gmra.mrb[0].mxu0 %v6845
    %v6884 = vpop.f32.mrb[0].mxu0
    %v6885 = vadd.f32 %v6800, %v6884
    %v6886 = vpop.f32.mrb[0].mxu0
    %v6887 = vpop.f32.mrb[0].mxu0
    %v6888 = vadd.f32 %v6803, %v6887
    %v6889 = vpop.f32.mrb[0].mxu0
    %6890 = vmatprep.mubr.bf16.mxu0 0
    %6891 = vmatmul.mubr.bf16.gmra.mrb[0].mxu0 %v6848
    %v6892 = vpop.f32.mrb[0].mxu0
    %v6893 = vadd.f32 %v6808, %v6892
    %v6894 = vpop.f32.mrb[0].mxu0
    %v6895 = vpop.f32.mrb[0].mxu0
    %v6896 = vadd.f32 %v6811, %v6895
    %v6897 = vpop.f32.mrb[0].mxu0
    %6898 = vdwg.mxu0
    %v6899 = vld [vmem:[#allocation3] sm:$0xc]
    %v6900 = vld [vmem:[#allocation3 + $0xc] sm:$0xc]
    %v6905 = vrot.slane %v6899, 6
    %v6906 = vrot.slane %v6905, 4
    %v6907 = vrot.slane %v6629, 6
    %v6908 = vsel %vm874, %v6906, %v6907
    %v6909 = vrot.slane %v6907, 4
    %v6910 = vrot.slane %v6662, 6
    %v6911 = vsel %vm874, %v6909, %v6910
    %v6912 = vrot.slane %v6900, 6
    %v6913 = vrot.slane %v6912, 4
    %v6914 = vrot.slane %v6632, 6
    %v6915 = vsel %vm874, %v6913, %v6914
    %v6916 = vrot.slane %v6914, 4
    %v6917 = vrot.slane %v6663, 6
    %v6918 = vsel %vm874, %v6916, %v6917
    %s6919 = scalar_lea.vmem [#allocation30], 64
    %v6920 = vld [vmem:[%s6919] sm:$0xf]
    %v6921 = vld [vmem:[%s6919 + $0x4] sm:$0xf]
    %v6922 = vld [vmem:[%s6919 + $0x8] sm:$0xf]
    %v6923 = vld [vmem:[%s6919 + $0xc] sm:$0xf]
    %v6924 = vld [vmem:[%s6919 + $0x10] sm:$0xf]
    %v6925 = vld [vmem:[%s6919 + $0x14] sm:$0xf]
    %v6926 = vld [vmem:[%s6919 + $0x18] sm:$0xf]
    %v6927 = vld [vmem:[%s6919 + $0x1c] sm:$0xf]
    %v6928 = vunpack.c.l.b16 %v6908
    %v6929 = vunpack.c.l.b16 %v6911
    %v6930 = vunpack.c.l.b16 %v6915
    %v6931 = vunpack.c.l.b16 %v6918
    %v6932 = vpack.c.b16 %v6929, %v6928
    %v6933 = vpack.c.b16 %v6931, %v6930
    %v6942 = vunpack.c.l.b16 %v6920
    %v6943 = vunpack.c.l.b16 %v6921
    %v6944 = vunpack.c.l.b16 %v6922
    %v6945 = vunpack.c.l.b16 %v6923
    %v6946 = vunpack.c.l.b16 %v6924
    %v6947 = vunpack.c.l.b16 %v6925
    %v6948 = vunpack.c.l.b16 %v6926
    %v6949 = vunpack.c.l.b16 %v6927
    %v6950 = vpack.c.b16 %v6943, %v6942
    %v6951 = vpack.c.b16 %v6945, %v6944
    %v6952 = vpack.c.b16 %v6947, %v6946
    %v6953 = vpack.c.b16 %v6949, %v6948
    %v6959 = vsel %vm1393, %v6932, 0
    %v6962 = vsel %vm1393, %v6933, 0
    %6964 = vmatprep.subr.bf16.mxu0 0
    %6965 = vmatpush1.bf16.msra.mxu0 %v6950
    %6966 = vmatprep.subr.bf16.mxu0 0
    %6967 = vmatpush1.bf16.msra.mxu0 %v6951
    %6968 = vmatprep.subr.bf16.mxu0 0
    %6969 = vmatpush1.bf16.msra.mxu0 %v6952
    %6970 = vmatprep.subr.bf16.mxu0 0
    %6971 = vmatpush1.bf16.msra.mxu0 %v6953
    %6972 = vmatprep.subr.bf16.mxu0 0
    %6973 = vmatpush1.bf16.msra.mxu0 0
    %6974 = vmatprep.subr.bf16.mxu0 0
    %6975 = vmatpush1.bf16.msra.mxu0 0
    %6976 = vmatprep.subr.bf16.mxu0 0
    %6977 = vmatpush1.bf16.msra.mxu0 0
    %6978 = vmatprep.subr.bf16.mxu0 0
    %6979 = vmatpush1.bf16.msra.mxu0 0
    %6980 = vmatprep.subr.bf16.mxu0 0
    %6981 = vmatpush1.bf16.msra.mxu0 0
    %6982 = vmatprep.subr.bf16.mxu0 0
    %6983 = vmatpush1.bf16.msra.mxu0 0
    %6984 = vmatprep.subr.bf16.mxu0 0
    %6985 = vmatpush1.bf16.msra.mxu0 0
    %6986 = vmatprep.subr.bf16.mxu0 0
    %6987 = vmatpush1.bf16.msra.mxu0 0
    %6988 = vmatprep.subr.bf16.mxu0 0
    %6989 = vmatpush1.bf16.msra.mxu0 0
    %6990 = vmatprep.subr.bf16.mxu0 0
    %6991 = vmatpush1.bf16.msra.mxu0 0
    %6992 = vmatprep.subr.bf16.mxu0 0
    %6993 = vmatpush1.bf16.msra.mxu0 0
    %6994 = vmatprep.subr.bf16.mxu0 0
    %6995 = vmatpush1.bf16.msra.mxu0 0
    %6996 = vmatprep.mubr.bf16.mxu0 0
    %6997 = vmatmul.mubr.bf16.gmra.mrb[0].mxu0 %v6959
    %v6998 = vpop.f32.mrb[0].mxu0
    %v6999 = vadd.f32 0.0, %v6998
    %v7000 = vpop.f32.mrb[0].mxu0
    %v7001 = vpop.f32.mrb[0].mxu0
    %v7002 = vadd.f32 0.0, %v7001
    %v7003 = vpop.f32.mrb[0].mxu0
    %7004 = vmatprep.mubr.bf16.mxu0 0
    %7005 = vmatmul.mubr.bf16.gmra.mrb[0].mxu0 %v6962
    %v7006 = vpop.f32.mrb[0].mxu0
    %v7007 = vadd.f32 0.0, %v7006
    %v7008 = vpop.f32.mrb[0].mxu0
    %v7009 = vpop.f32.mrb[0].mxu0
    %v7010 = vadd.f32 0.0, %v7009
    %v7011 = vpop.f32.mrb[0].mxu0
    %7012 = vdwg.mxu0
    %v7013 = vadd.f32 %v6885, %v6999
    %v7014 = vadd.f32 %v6888, %v7002
    %v7015 = vadd.f32 %v6893, %v7007
    %v7016 = vadd.f32 %v6896, %v7010
    %v7017 = vld [vmem:[%s63] sm:$0x1]
    %v7019 = vlaneseq
    %v7020 = vshrl.u32 %v7019, 7
    %v7021 = vsub.s32 0, %v7020
    %v7022 = vrot.slane %v7017, %v7021
    %v7024 = vmul.f32 %v7013, %v7022
    %v7025 = vmul.f32 %v7014, %v7022
    %v7026 = vmul.f32 %v7015, %v7022
    %v7027 = vmul.f32 %v7016, %v7022
    %v7028 = vld [vmem:[%s65] sm:$0x1]
    %v7030 = vlaneseq
    %v7031 = vshrl.u32 %v7030, 7
    %v7032 = vsub.s32 0, %v7031
    %v7033 = vrot.slane %v7028, %v7032
    %v7035 = vadd.f32 %v7024, %v7033
    %v7036 = vadd.f32 %v7025, %v7033
    %v7037 = vadd.f32 %v7026, %v7033
    %v7038 = vadd.f32 %v7027, %v7033
    %v7039 = vld [vmem:[%s67] sm:$0x1]
    %v7041 = vlaneseq
    %v7042 = vshrl.u32 %v7041, 7
    %v7043 = vsub.s32 0, %v7042
    %v7044 = vrot.slane %v7039, %v7043
    %v7046 = vmul.f32 %v4801, %v7044
    %v7047 = vmul.f32 %v4802, %v7044
    %v7048 = vmul.f32 %v4803, %v7044
    %v7049 = vmul.f32 %v4804, %v7044
    %v7050 = vld [vmem:[%s69] sm:$0x1]
    %v7052 = vlaneseq
    %v7053 = vshrl.u32 %v7052, 7
    %v7054 = vsub.s32 0, %v7053
    %v7055 = vrot.slane %v7050, %v7054
    %v7057 = vadd.f32 %v7046, %v7055
    %v7058 = vadd.f32 %v7047, %v7055
    %v7059 = vadd.f32 %v7048, %v7055
    %v7060 = vadd.f32 %v7049, %v7055
    %v7061 = vadd.f32 %v7035, %v7057
    %v7062 = vadd.f32 %v7036, %v7058
    %v7063 = vadd.f32 %v7037, %v7059
    %v7064 = vadd.f32 %v7038, %v7060
    %v7065 = vmax.f32 %v7061, 0.0
    %v7066 = vmax.f32 %v7062, 0.0
    %v7067 = vmax.f32 %v7063, 0.0
    %v7068 = vmax.f32 %v7064, 0.0
    %v7069 = vsel %vm1393, %v7065, 0.0
    %v7070 = vsel %vm1393, %v7066, 0.0
    %v7071 = vadd.f32 %v7069, %v7070
    %v7072 = vrot.slane %v7071, 4
    %v7073 = vadd.f32 %v7071, %v7072
    %v7074 = vrot.slane %v7073, 2
    %v7075 = vadd.f32 %v7073, %v7074
    %v7076 = vrot.slane %v7075, 1
    %v7077 = vadd.f32 %v7075, %v7076
    %v7078 = vsel %vm1393, %v7067, 0.0
    %v7079 = vsel %vm1393, %v7068, 0.0
    %v7080 = vadd.f32 %v7078, %v7079
    %v7081 = vrot.slane %v7080, 4
    %v7082 = vadd.f32 %v7080, %v7081
    %v7083 = vrot.slane %v7082, 2
    %v7084 = vadd.f32 %v7082, %v7083
    %v7085 = vrot.slane %v7084, 1
    %v7086 = vadd.f32 %v7084, %v7085
    %v7087 = vrcp.pop 16.0
    %v7088 = vmul.f32 %v7077, %v7087
    %v7089 = vmul.f32 %v7086, %v7087
    %v7090 = vld [vmem:[%s71] sm:$0xff]
    %v7091 = vld [vmem:[%s71 + $0x8] sm:$0xff]
    %v7092 = vld [vmem:[%s71 + $0x10] sm:$0xff]
    %v7093 = vld [vmem:[%s71 + $0x18] sm:$0xff]
    %v7094 = vld [vmem:[%s71 + $0x20] sm:$0xff]
    %v7095 = vld [vmem:[%s71 + $0x28] sm:$0xff]
    %v7096 = vld [vmem:[%s71 + $0x30] sm:$0xff]
    %v7097 = vld [vmem:[%s71 + $0x38] sm:$0xff]
    %v7098 = vld [vmem:[%s73] sm:$0x1]
    %v7100 = vlaneseq
    %v7101 = vshrl.u32 %v7100, 7
    %v7102 = vsub.s32 0, %v7101
    %v7103 = vrot.slane %v7098, %v7102
    %vm7107 = vcmask 1041409
    %v7108 = vsel %vm7107, %v7089, %v7088
    %v7109 = vsel %vm1393, %v7108, 0
    %7111 = vmatprep.subr.mxu0 0.0
    %7112 = vmatpush1.msra.mxu0 %v7090
    %7113 = vmatprep.subr.mxu0 0.0
    %7114 = vmatpush1.msra.mxu0 %v7091
    %7115 = vmatprep.subr.mxu0 0.0
    %7116 = vmatpush1.msra.mxu0 %v7092
    %7117 = vmatprep.subr.mxu0 0.0
    %7118 = vmatpush1.msra.mxu0 %v7093
    %7119 = vmatprep.subr.mxu0 0.0
    %7120 = vmatpush1.msra.mxu0 %v7094
    %7121 = vmatprep.subr.mxu0 0.0
    %7122 = vmatpush1.msra.mxu0 %v7095
    %7123 = vmatprep.subr.mxu0 0.0
    %7124 = vmatpush1.msra.mxu0 %v7096
    %7125 = vmatprep.subr.mxu0 0.0
    %7126 = vmatpush1.msra.mxu0 %v7097
    %7127 = vmatprep.subr.mxu0 0.0
    %7128 = vmatpush1.msra.mxu0 0.0
    %7129 = vmatprep.subr.mxu0 0.0
    %7130 = vmatpush1.msra.mxu0 0.0
    %7131 = vmatprep.subr.mxu0 0.0
    %7132 = vmatpush1.msra.mxu0 0.0
    %7133 = vmatprep.subr.mxu0 0.0
    %7134 = vmatpush1.msra.mxu0 0.0
    %7135 = vmatprep.subr.mxu0 0.0
    %7136 = vmatpush1.msra.mxu0 0.0
    %7137 = vmatprep.subr.mxu0 0.0
    %7138 = vmatpush1.msra.mxu0 0.0
    %7139 = vmatprep.subr.mxu0 0.0
    %7140 = vmatpush1.msra.mxu0 0.0
    %7141 = vmatprep.subr.mxu0 0.0
    %7142 = vmatpush1.msra.mxu0 0.0
    %7143 = vmatprep.subr.mxu0 0.0
    %7144 = vmatpush1.msra.mxu0 0.0
    %7145 = vmatprep.subr.mxu0 0.0
    %7146 = vmatpush1.msra.mxu0 0.0
    %7147 = vmatprep.subr.mxu0 0.0
    %7148 = vmatpush1.msra.mxu0 0.0
    %7149 = vmatprep.subr.mxu0 0.0
    %7150 = vmatpush1.msra.mxu0 0.0
    %7151 = vmatprep.subr.mxu0 0.0
    %7152 = vmatpush1.msra.mxu0 0.0
    %7153 = vmatprep.subr.mxu0 0.0
    %7154 = vmatpush1.msra.mxu0 0.0
    %7155 = vmatprep.subr.mxu0 0.0
    %7156 = vmatpush1.msra.mxu0 0.0
    %7157 = vmatprep.subr.mxu0 0.0
    %7158 = vmatpush1.msra.mxu0 0.0
    %7159 = vmatprep.subr.mxu0 0.0
    %7160 = vmatpush1.msra.mxu0 0.0
    %7161 = vmatprep.subr.mxu0 0.0
    %7162 = vmatpush1.msra.mxu0 0.0
    %7163 = vmatprep.subr.mxu0 0.0
    %7164 = vmatpush1.msra.mxu0 0.0
    %7165 = vmatprep.subr.mxu0 0.0
    %7166 = vmatpush1.msra.mxu0 0.0
    %7167 = vmatprep.subr.mxu0 0.0
    %7168 = vmatpush1.msra.mxu0 0.0
    %7169 = vmatprep.subr.mxu0 0.0
    %7170 = vmatpush1.msra.mxu0 0.0
    %7171 = vmatprep.subr.mxu0 0.0
    %7172 = vmatpush1.msra.mxu0 0.0
    %7173 = vmatprep.subr.mxu0 0.0
    %7174 = vmatpush1.msra.mxu0 0.0
    %7175 = vmatprep.mubr.f32.mxu0 0.0
    %7176 = vmatmul.mubr.f32.gmra.mrb[0].mxu0 %v7109
    %v7177 = vpop.f32.mrb[0].mxu0
    %v7178 = vadd.f32 %v7103, %v7177
    %v7179 = vpop.f32.mrb[0].mxu0
    %7180 = vdwg.mxu0
    %vm7181 = vcmask 17408
    %v7182 = vsel %vm7181, %v7178, -inf
    %7183 = vmax.xlane.f32.xlu0 %v7182
    %v7184 = vpop.xlane.xlu0 %7183
    %v7185 = vsub.f32 %v7178, %v7184
    %v7186 = vmul.f32 %v7185, 1.442695
    %v7187 = vpow.pop %v7186
    %v7188 = vsel %vm7181, %v7187, 0.0
    %7189 = vadd.xlane.f32.xlu0 %v7188
    %v7190 = vpop.xlane.xlu0 %7189
    %v7191 = vlog2.pop %v7190
    %v7192 = vmul.f32 %v7191, 0.6931472
    %v7193 = vadd.f32 %v7184, %v7192
    %v7194 = vsub.f32 %v7178, %v7193
    %7195 = vst.msk [vmem:[#allocation31] sm:$0x3] %vm7181, %v7194
    // Predicated region
    $region218: #{resnet_forward.1} parent=1 // pred_check
      _
    $region219: #{resnet_forward.1} parent=1 // pred_check_branch
      %7197 = sbr.rel (0) target = $region221
    $region220: #{resnet_forward.1} parent=1 // pred_region
      %s7199 = ssub.s32 32, 32
      %7200 = vsyncadd [#allocation6], %s7199
      %s7202 = sshll.u32 [#allocation31], 4
      %s7203 = int_to_ptr.vmem [resolvable:$true] %s7202
      %7205 = dma.vmem_to_hbm [thread:$0]  %s7203, 32, %s75, [#allocation6]
    $region221: #{resnet_forward.1} parent=1 // pred_fallthru
      _
    // Predicated region
    $region222: #{resnet_forward.1} parent=1 // pred_check
      _
    $region223: #{resnet_forward.1} parent=1 // pred_check_branch
      %7207 = sbr.rel (0) target = $region225
    $region224: #{resnet_forward.1} parent=1 // pred_region
      %7208 = dma.done [#allocation6], 32
    $region225: #{resnet_forward.1} parent=1 // pred_fallthru
      _
    %7209 = vsyncpa [#allocation5], 1
    %7210 = vsyncpa [#allocation8], 1
    %7211 = vsyncpa [#allocation11], 1
    %7212 = vsyncpa [#allocation14], 1
    %7213 = vsyncpa [#allocation17], 1
    %7214 = vsyncpa [#allocation20], 1
    %7215 = vsyncpa [#allocation23], 1
    %7216 = vsyncpa [#allocation26], 1
    %7217 = vsyncpa [#allocation29], 1
    %7218 = vsyncpa [#allocation6], 1

</llo_original>
